<compile_context>
chip_gen: v7x
topology: tpu7x:2x2x1
jax: 0.10.0
libtpu: 0.0.40
codegen_flags: <defaults>
</compile_context>

<pallas_src>
import jax
import jax.numpy as jnp
from jax.experimental import pallas as pl
from jax.experimental.pallas import tpu as pltpu

KSIZE = (3, 5, 7)
LSTM_SIZE = 24
NUM_CLASSES = 1


def _round_up(v, m):
    return ((v + m - 1) // m) * m


def _conv_out(sz, k, s):
    return (sz - k) // s + 1


def _pick_slab_batch(total, slab_bytes, max_bytes=4 << 20):
    """Largest divisor of `total` whose U block stays <= max_bytes while keeping >= 2 grid steps."""
    best = 1
    for cand in range(1, total + 1):
        if total % cand:
            continue
        if cand * slab_bytes > max_bytes:
            continue
        if total // cand < 2 and total > 1:
            continue
        best = cand
    return best


# -----------------------------------------------------------------------------
# Pallas kernel 1: per-(n, od)-slab-batch conv.
#   LHS  = per-height-tap weights (Cout, K), K = kd*kw*Cin   (bf16)
#   RHS  = partial-im2col slab U (K, Lpad), lanes = flattened (input-height, output-width) (bf16)
#   acc  = (Cout, Mpad) f32; the kh taps are realigned with XLU lane rotates and chained onto one
#          accumulator; fused bias + ELU epilogue; lane-dense stores.
# -----------------------------------------------------------------------------
def conv3d_core(x, w, b, sw, apply_elu, out_dtype):
    """3-D VALID conv with stride (1, 1, sw), fused bias + optional ELU.

    x: (N, D, Cin, H, W)  activations ("channel-third" layout, any float dtype).
    w: (Cout, Cin, kd, kh, kw)  (PyTorch Conv3d layout).   b: (Cout,).
    Returns (N, OD, Cout, OH, OW) in out_dtype.
    """
    x = x.astype(jnp.bfloat16)
    N, D, Cin, H, W = x.shape
    Cout, _, kd, kh, kw = w.shape
    OD = D - kd + 1
    OH = H - kh + 1
    OW = (W - kw) // sw + 1
    K = kd * kw * Cin                 # contraction, ordered (dz, dx, ci) by the glue
    L = H * OW                        # dense lane flattening of (input-height, output-width)
    Lpad = _round_up(L, 128)
    M = OH * OW                       # valid output lanes; [M, Mpad) is padding junk, sliced off below
    Mpad = _round_up(M, 128)

    # ---- glue: partial im2col over (dz, dx) only (kh handled in-kernel); a few MB at most,
    #      slice+stack+pad fuse into a single XLA pass producing U.
    cols = []
    for dz in range(kd):
        for dx in range(kw):
            cols.append(x[:, dz:dz + OD, :, :, dx:dx + sw * (OW - 1) + 1:sw])
    u = jnp.stack(cols, axis=2)                       # (N, OD, kd*kw, Cin, H, OW)
    u = u.reshape(N * OD, K, L)
    u = jnp.pad(u, ((0, 0), (0, 0), (0, Lpad - L)))

    # per-height-tap weights in the transposed orientation: (kh, Cout, K), K ordered (dz, dx, ci).
    wk = jnp.transpose(w, (3, 0, 2, 4, 1)).reshape(kh, Cout, K).astype(jnp.bfloat16)
    b2 = b.reshape(Cout, 1).astype(jnp.float32)

    total = N * OD
    B = _pick_slab_batch(total, K * Lpad * 2)
    G = total // B

    def kernel(u_ref, w_ref, b_ref, o_ref):
        for s in range(B):                            # B is small (<=9) -> static unroll
            u_s = u_ref[s]                            # (K, Lpad) bf16
            # Transposed orientation: only Cout rows stream through the MXU, result lanes are dense.
            acc = jnp.dot(w_ref[0], u_s, preferred_element_type=jnp.float32)[:, :Mpad]
            for dy in range(1, kh):
                prod = jnp.dot(w_ref[dy], u_s, preferred_element_type=jnp.float32)
                # bring lane (j + dy*OW) to lane j: cheap XLU rotate of the small f32 product,
                # valid output lanes never touch the wrap-around region (shown in the glue sizing).
                prod = pltpu.roll(prod, Lpad - dy * OW, axis=1)
                acc = acc + prod[:, :Mpad]
            acc = acc + b_ref[...]
            if apply_elu:
                # ELU(alpha=1); clamp the exp argument so the discarded branch never overflows.
                acc = jnp.where(acc > 0, acc, jnp.exp(jnp.minimum(acc, 0.0)) - 1.0)
            o_ref[s] = acc.astype(o_ref.dtype)

    out = pl.pallas_call(
        kernel,
        out_shape=jax.ShapeDtypeStruct((total, Cout, Mpad), out_dtype),
        grid=(G,),
        in_specs=[
            pl.BlockSpec((B, K, Lpad), lambda i: (i, 0, 0)),
            pl.BlockSpec((kh, Cout, K), lambda i: (0, 0, 0)),
            pl.BlockSpec((Cout, 1), lambda i: (0, 0)),
        ],
        out_specs=pl.BlockSpec((B, Cout, Mpad), lambda i: (i, 0, 0)),
        compiler_params=pltpu.CompilerParams(
            dimension_semantics=("parallel",),
            vmem_limit_bytes=48 * 1024 * 1024,        # stays under v7x's 64 MiB physical VMEM
        ),
    )(u, wk, b2)

    out = out[:, :, :M].reshape(N, OD, Cout, OH, OW)
    return out


def conv_transpose3d(x, w, b, strides, apply_elu, out_dtype):
    """PyTorch ConvTranspose3d (padding=0, output_padding=0) on (N, D, Cin, H, W) activations.
    w: (Cin, Cout, kd, kh, kw)."""
    # TODO(synk): stride-phase (sub-pixel) decomposition would skip the zero taps introduced by the
    # dilation below (d3 is 75% zeros) and cut d2/d3/d4 im2col traffic a further ~2-3x.
    x = x.astype(jnp.bfloat16)
    N, D, Cin, H, W = x.shape
    _, Cout, kd, kh, kw = w.shape
    sd, sh, sw = strides
    xd = jnp.zeros((N, (D - 1) * sd + 1, Cin, (H - 1) * sh + 1, (W - 1) * sw + 1), x.dtype)
    xd = xd.at[:, ::sd, :, ::sh, ::sw].set(x)
    xp = jnp.pad(xd, ((0, 0), (kd - 1, kd - 1), (0, 0), (kh - 1, kh - 1), (kw - 1, kw - 1)))
    wf = w[:, :, ::-1, ::-1, ::-1]                    # flip spatial taps
    wf = jnp.transpose(wf, (1, 0, 2, 3, 4))           # -> (Cout, Cin, kd, kh, kw)
    return conv3d_core(xp, wf, b, 1, apply_elu, out_dtype)


# -----------------------------------------------------------------------------
# Pallas kernel 2: fused single-layer LSTM (batch_first, unidirectional) + Linear.
# Implements: output1, (hn, cn) = LSTM(x); out = Linear(squeeze(hn))
# The input projection for all timesteps is hoisted out of the recurrence (one matmul).
# -----------------------------------------------------------------------------
def lstm_linear_pallas(x_tnf, wih_t, whh_t, b_lstm, wlin_t, blin):
    """x_tnf: (T, N, F); wih_t: (F, 4H); whh_t: (H, 4H); b_lstm: (1, 4H);
    wlin_t: (H, C); blin: (1, C). Returns (N, C)."""
    T, N, F = x_tnf.shape
    H = whh_t.shape[0]
    C = wlin_t.shape[1]
    x2 = x_tnf.reshape(T * N, F)                      # operand for the hoisted input projection

    def kernel(x_ref, wih_ref, whh_ref, b_ref, wlin_ref, blin_ref, out_ref):
        xz = jnp.dot(x_ref[...], wih_ref[...], preferred_element_type=jnp.float32) + b_ref[...]
        h = jnp.zeros((N, H), jnp.float32)
        c = jnp.zeros((N, H), jnp.float32)
        for t in range(T):                            # T is small and static -> unrolled
            z = xz[t * N:(t + 1) * N, :] + jnp.dot(h, whh_ref[...],
                                                   preferred_element_type=jnp.float32)
            i = jax.nn.sigmoid(z[:, 0:H])
            f = jax.nn.sigmoid(z[:, H:2 * H])
            g = jnp.tanh(z[:, 2 * H:3 * H])
            o = jax.nn.sigmoid(z[:, 3 * H:4 * H])
            c = f * c + i * g
            h = o * jnp.tanh(c)
        out_ref[...] = (jnp.dot(h, wlin_ref[...], preferred_element_type=jnp.float32)
                        + blin_ref[...])

    vmem = pl.BlockSpec(memory_space=pltpu.MemorySpace.VMEM)
    return pl.pallas_call(
        kernel,
        out_shape=jax.ShapeDtypeStruct((N, C), jnp.float32),
        in_specs=[vmem] * 6,
        out_specs=vmem,
    )(x2, wih_t, whh_t, b_lstm, wlin_t, blin)


# -----------------------------------------------------------------------------
# Parameter init + full forward (mirrors Autoencoder3D.forward).
# -----------------------------------------------------------------------------
def init_params(key, lstm_input_size):
    kd, kh, kw = KSIZE
    shapes = {
        # Encoder3D (Conv3d weight layout: Cout, Cin, kd, kh, kw)
        "c1_w": (12, 1, kd, kh, kw), "c1_b": (12,),
        "c2_w": (12, 12, kd, kh, kw), "c2_b": (12,),
        "c3_w": (12, 12, kd, kh, kw), "c3_b": (12,),
        "c4_w": (6, 12, kd, kh, kw), "c4_b": (6,),
        # Decoder3D (ConvTranspose3d weight layout: Cin, Cout, kd, kh, kw)
        "d1_w": (6, 12, kd, kh, kw), "d1_b": (12,),
        "d2_w": (12, 12, kd, kh, kw), "d2_b": (12,),
        "d3_w": (12, 12, kd, kh, kw), "d3_b": (12,),
        "d4_w": (12, 1, kd, kh, kw), "d4_b": (1,),
        # rnn_lstm
        "w_ih": (4 * LSTM_SIZE, lstm_input_size), "b_ih": (4 * LSTM_SIZE,),
        "w_hh": (4 * LSTM_SIZE, LSTM_SIZE), "b_hh": (4 * LSTM_SIZE,),
        "lin_w": (NUM_CLASSES, LSTM_SIZE), "lin_b": (NUM_CLASSES,),
    }
    params = {}
    keys = jax.random.split(key, len(shapes))
    for (name, shp), k in zip(sorted(shapes.items()), keys):
        fan_in = 1
        for s in shp[1:]:
            fan_in *= s
        scale = 1.0 / jnp.sqrt(jnp.maximum(fan_in, 1)).astype(jnp.float32)
        params[name] = scale * jax.random.normal(k, shp, jnp.float32)
    return params


@jax.jit
def autoencoder3d_forward(x, p):
    # single layout change at the model boundary: NCDHW -> (N, D, C, H, W) "channel-third"
    xc = jnp.transpose(x, (0, 2, 1, 3, 4))

    # ---- Encoder3D ----
    h = conv3d_core(xc, p["c1_w"], p["c1_b"], 2, True, jnp.bfloat16)
    # TODO(synk): original code passes stride=(1, 1) to a Conv3d; interpreted here as (1, 1, 1).
    h = conv3d_core(h, p["c2_w"], p["c2_b"], 1, True, jnp.bfloat16)
    h = conv3d_core(h, p["c3_w"], p["c3_b"], 2, True, jnp.bfloat16)
    latent = conv3d_core(h, p["c4_w"], p["c4_b"], 1, True, jnp.float32)

    # ---- Decoder3D ----
    d = conv_transpose3d(latent, p["d1_w"], p["d1_b"], (1, 1, 1), True, jnp.bfloat16)
    d = conv_transpose3d(d, p["d2_w"], p["d2_b"], (1, 1, 2), True, jnp.bfloat16)
    d = conv_transpose3d(d, p["d3_w"], p["d3_b"], (1, 2, 2), True, jnp.bfloat16)
    recon_l = conv_transpose3d(d, p["d4_w"], p["d4_b"], (1, 1, 2), False, jnp.float32)
    recon = jnp.transpose(recon_l, (0, 2, 1, 3, 4))   # back to NCDHW

    # ---- rnn_lstm classifier ----
    # torch: flatten (C, D, H) -> features (c-major, then d, then h), W -> time.
    n, dd, c6, hh, ww = latent.shape
    x_tnf = jnp.transpose(latent, (4, 0, 2, 1, 3)).reshape(ww, n, c6 * dd * hh)
    x_tnf = x_tnf.astype(jnp.float32)                 # (T, N, F)

    wih_t = p["w_ih"].T                               # (F, 4H)
    whh_t = p["w_hh"].T                               # (H, 4H)
    b_lstm = (p["b_ih"] + p["b_hh"]).reshape(1, -1)   # (1, 4H)
    wlin_t = p["lin_w"].T                             # (H, C)
    blin = p["lin_b"].reshape(1, -1)                  # (1, C)
    logits = lstm_linear_pallas(x_tnf, wih_t, whh_t, b_lstm, wlin_t, blin)
    return recon, logits


def _check_conv_kernel(key):
    """Numerically verify conv3d_core (orientation / im2col ordering / tap-roll) against XLA."""
    cases = [
        # (N, Cin, D, H, W), Cout, stride_w, elu
        ((2, 1, 11, 21, 63), 12, 2, True),    # c1-like: Cin=1, stride-2 in W
        ((1, 12, 5, 9, 15), 6, 1, True),      # Cin>1, stride-1
    ]
    for idx, ((n, ci, d, hh, ww), co, sw, elu) in enumerate(cases):
        ka, kb, kc = jax.random.split(jax.random.fold_in(key, idx), 3)
        x = jax.random.normal(ka, (n, ci, d, hh, ww), jnp.float32)
        w = 0.2 * jax.random.normal(kb, (co, ci) + KSIZE, jnp.float32)
        b = 0.2 * jax.random.normal(kc, (co,), jnp.float32)
        xr = x.astype(jnp.bfloat16).astype(jnp.float32)
        wr = w.astype(jnp.bfloat16).astype(jnp.float32)
        ref = jax.lax.conv_general_dilated(
            xr, wr, window_strides=(1, 1, sw), padding="VALID",
            dimension_numbers=("NCDHW", "OIDHW", "NCDHW"),
            precision=jax.lax.Precision.HIGHEST)
        ref = ref + b.reshape(1, -1, 1, 1, 1)
        if elu:
            ref = jnp.where(ref > 0, ref, jnp.exp(jnp.minimum(ref, 0.0)) - 1.0)
        got = conv3d_core(jnp.transpose(x, (0, 2, 1, 3, 4)), w, b, sw, elu, jnp.float32)
        got = jnp.transpose(got, (0, 2, 1, 3, 4))
        err = float(jnp.max(jnp.abs(got - ref)))
        if not bool(jnp.allclose(got, ref, atol=1e-2, rtol=1e-2)):
            raise AssertionError(f"conv3d_core check {idx} failed (max abs err {err:.3e})")


if __name__ == "__main__":
    # Small deterministic input, NCDHW (PyTorch convention).
    N, C, D, H, W = 2, 1, 11, 21, 63
    key = jax.random.PRNGKey(0)
    k_x, k_p, k_chk = jax.random.split(key, 3)
    x = jax.random.normal(k_x, (N, C, D, H, W), jnp.float32)

    # Derive latent spatial dims to size the LSTM input (input_size = 6 * D4 * H4).
    enc_strides = [(1, 1, 2), (1, 1, 1), (1, 1, 2), (1, 1, 1)]
    dd, hh, ww = D, H, W
    for sd, sh, sw in enc_strides:
        dd = _conv_out(dd, KSIZE[0], sd)
        hh = _conv_out(hh, KSIZE[1], sh)
        ww = _conv_out(ww, KSIZE[2], sw)
    lstm_input_size = 6 * dd * hh

    params = init_params(k_p, lstm_input_size)

    # Lightweight numerical check of the conv kernel before running the full model.
    _check_conv_kernel(k_chk)

    recon, logits = autoencoder3d_forward(x, params)
    jax.block_until_ready((recon, logits))

    assert recon.shape[0] == N and recon.shape[1] == 1
    assert logits.shape == (N, NUM_CLASSES)
    print("KERNEL_OK")
</pallas_src>

<mosaic_0001>
module attributes {stable_mosaic.version = 11 : i64} {
  func.func @kernel(%arg0: i32, %arg1: memref<9x21x640xbf16, #tpu.memory_space<vmem>>, %arg2: memref<5x12x21xbf16, #tpu.memory_space<vmem>>, %arg3: memref<12x1xf32, #tpu.memory_space<vmem>>, %arg4: memref<9x12x512xf32, #tpu.memory_space<vmem>>) attributes {dimension_semantics = [#tpu.dimension_semantics<parallel>], iteration_bounds = array<i64: 2>, scalar_prefetch = 0 : i64, scratch_operands = 0 : i64, tpu.core_type = #tpu.core_type<tc>, window_params = [{transform_indices = @transform_0, window_bounds = array<i64: 9, 21, 640>}, {pipeline_mode = #tpu.pipeline_mode<synchronous>, transform_indices = @transform_1, window_bounds = array<i64: 5, 12, 21>}, {pipeline_mode = #tpu.pipeline_mode<synchronous>, transform_indices = @transform_2, window_bounds = array<i64: 12, 1>}, {transform_indices = @transform_3, window_bounds = array<i64: 9, 12, 512>}]} {
    %c0 = arith.constant 0 : index
    %c0_0 = arith.constant 0 : index
    %c0_1 = arith.constant 0 : index
    %0 = vector.load %arg1[%c0, %c0_0, %c0_1] : memref<9x21x640xbf16, #tpu.memory_space<vmem>>, vector<1x21x640xbf16>
    %1 = vector.shape_cast %0 : vector<1x21x640xbf16> to vector<21x640xbf16>
    %c0_2 = arith.constant 0 : index
    %c0_3 = arith.constant 0 : index
    %c0_4 = arith.constant 0 : index
    %2 = vector.load %arg2[%c0_2, %c0_3, %c0_4] : memref<5x12x21xbf16, #tpu.memory_space<vmem>>, vector<1x12x21xbf16>
    %3 = vector.shape_cast %2 : vector<1x12x21xbf16> to vector<12x21xbf16>
    %cst = arith.constant dense<0.000000e+00> : vector<12x640xf32>
    %4 = tpu.matmul %3, %1, %cst {dimension_numbers = #tpu.dot_dimension_numbers<[1], [0], [0], [1], [0, 0, 1, 1], [], []>} : vector<12x21xbf16>, vector<21x640xbf16>, vector<12x640xf32> -> vector<12x640xf32>
    %5 = vector.extract_strided_slice %4 {offsets = [0, 0], sizes = [12, 512], strides = [1, 1]} : vector<12x640xf32> to vector<12x512xf32>
    %c1 = arith.constant 1 : index
    %c0_5 = arith.constant 0 : index
    %c0_6 = arith.constant 0 : index
    %6 = vector.load %arg2[%c1, %c0_5, %c0_6] : memref<5x12x21xbf16, #tpu.memory_space<vmem>>, vector<1x12x21xbf16>
    %7 = vector.shape_cast %6 : vector<1x12x21xbf16> to vector<12x21xbf16>
    %cst_7 = arith.constant dense<0.000000e+00> : vector<12x640xf32>
    %8 = tpu.matmul %7, %1, %cst_7 {dimension_numbers = #tpu.dot_dimension_numbers<[1], [0], [0], [1], [0, 0, 1, 1], [], []>} : vector<12x21xbf16>, vector<21x640xbf16>, vector<12x640xf32> -> vector<12x640xf32>
    %c611_i32 = arith.constant 611 : i32
    %9 = tpu.dynamic_rotate %8 by %c611_i32 dim 1 : vector<12x640xf32>, i32 -> vector<12x640xf32>
    %10 = vector.extract_strided_slice %9 {offsets = [0, 0], sizes = [12, 512], strides = [1, 1]} : vector<12x640xf32> to vector<12x512xf32>
    %11 = arith.addf %5, %10 : vector<12x512xf32>
    %c2 = arith.constant 2 : index
    %c0_8 = arith.constant 0 : index
    %c0_9 = arith.constant 0 : index
    %12 = vector.load %arg2[%c2, %c0_8, %c0_9] : memref<5x12x21xbf16, #tpu.memory_space<vmem>>, vector<1x12x21xbf16>
    %13 = vector.shape_cast %12 : vector<1x12x21xbf16> to vector<12x21xbf16>
    %cst_10 = arith.constant dense<0.000000e+00> : vector<12x640xf32>
    %14 = tpu.matmul %13, %1, %cst_10 {dimension_numbers = #tpu.dot_dimension_numbers<[1], [0], [0], [1], [0, 0, 1, 1], [], []>} : vector<12x21xbf16>, vector<21x640xbf16>, vector<12x640xf32> -> vector<12x640xf32>
    %c582_i32 = arith.constant 582 : i32
    %15 = tpu.dynamic_rotate %14 by %c582_i32 dim 1 : vector<12x640xf32>, i32 -> vector<12x640xf32>
    %16 = vector.extract_strided_slice %15 {offsets = [0, 0], sizes = [12, 512], strides = [1, 1]} : vector<12x640xf32> to vector<12x512xf32>
    %17 = arith.addf %11, %16 : vector<12x512xf32>
    %c3 = arith.constant 3 : index
    %c0_11 = arith.constant 0 : index
    %c0_12 = arith.constant 0 : index
    %18 = vector.load %arg2[%c3, %c0_11, %c0_12] : memref<5x12x21xbf16, #tpu.memory_space<vmem>>, vector<1x12x21xbf16>
    %19 = vector.shape_cast %18 : vector<1x12x21xbf16> to vector<12x21xbf16>
    %cst_13 = arith.constant dense<0.000000e+00> : vector<12x640xf32>
    %20 = tpu.matmul %19, %1, %cst_13 {dimension_numbers = #tpu.dot_dimension_numbers<[1], [0], [0], [1], [0, 0, 1, 1], [], []>} : vector<12x21xbf16>, vector<21x640xbf16>, vector<12x640xf32> -> vector<12x640xf32>
    %c553_i32 = arith.constant 553 : i32
    %21 = tpu.dynamic_rotate %20 by %c553_i32 dim 1 : vector<12x640xf32>, i32 -> vector<12x640xf32>
    %22 = vector.extract_strided_slice %21 {offsets = [0, 0], sizes = [12, 512], strides = [1, 1]} : vector<12x640xf32> to vector<12x512xf32>
    %23 = arith.addf %17, %22 : vector<12x512xf32>
    %c4 = arith.constant 4 : index
    %c0_14 = arith.constant 0 : index
    %c0_15 = arith.constant 0 : index
    %24 = vector.load %arg2[%c4, %c0_14, %c0_15] : memref<5x12x21xbf16, #tpu.memory_space<vmem>>, vector<1x12x21xbf16>
    %25 = vector.shape_cast %24 : vector<1x12x21xbf16> to vector<12x21xbf16>
    %cst_16 = arith.constant dense<0.000000e+00> : vector<12x640xf32>
    %26 = tpu.matmul %25, %1, %cst_16 {dimension_numbers = #tpu.dot_dimension_numbers<[1], [0], [0], [1], [0, 0, 1, 1], [], []>} : vector<12x21xbf16>, vector<21x640xbf16>, vector<12x640xf32> -> vector<12x640xf32>
    %c524_i32 = arith.constant 524 : i32
    %27 = tpu.dynamic_rotate %26 by %c524_i32 dim 1 : vector<12x640xf32>, i32 -> vector<12x640xf32>
    %28 = vector.extract_strided_slice %27 {offsets = [0, 0], sizes = [12, 512], strides = [1, 1]} : vector<12x640xf32> to vector<12x512xf32>
    %29 = arith.addf %23, %28 : vector<12x512xf32>
    %c0_17 = arith.constant 0 : index
    %c0_18 = arith.constant 0 : index
    %30 = vector.load %arg3[%c0_17, %c0_18] : memref<12x1xf32, #tpu.memory_space<vmem>>, vector<12x1xf32>
    %31 = vector.broadcast %30 : vector<12x1xf32> to vector<12x512xf32>
    %32 = arith.addf %29, %31 : vector<12x512xf32>
    %cst_19 = arith.constant 0.000000e+00 : f32
    %33 = vector.broadcast %cst_19 : f32 to vector<12x512xf32>
    %34 = arith.cmpf ogt, %32, %33 : vector<12x512xf32>
    %cst_20 = arith.constant 0.000000e+00 : f32
    %35 = vector.broadcast %cst_20 : f32 to vector<12x512xf32>
    %36 = arith.minimumf %32, %35 : vector<12x512xf32>
    %37 = math.exp %36 : vector<12x512xf32>
    %cst_21 = arith.constant 1.000000e+00 : f32
    %38 = vector.broadcast %cst_21 : f32 to vector<12x512xf32>
    %39 = arith.subf %37, %38 : vector<12x512xf32>
    %40 = arith.select %34, %32, %39 : vector<12x512xi1>, vector<12x512xf32>
    %c0_22 = arith.constant 0 : index
    %c0_23 = arith.constant 0 : index
    %c0_24 = arith.constant 0 : index
    %41 = vector.load %arg4[%c0_22, %c0_23, %c0_24] : memref<9x12x512xf32, #tpu.memory_space<vmem>>, vector<1x12x512xf32>
    %42 = vector.shape_cast %41 : vector<1x12x512xf32> to vector<12x512xf32>
    %43 = vector.shape_cast %40 : vector<12x512xf32> to vector<1x12x512xf32>
    tpu.vector_store %arg4[%c0_22, %c0_23, %c0_24], %43 {strides = array<i32>} : memref<9x12x512xf32, #tpu.memory_space<vmem>>, vector<1x12x512xf32>,
    %c1_25 = arith.constant 1 : index
    %c0_26 = arith.constant 0 : index
    %c0_27 = arith.constant 0 : index
    %44 = vector.load %arg1[%c1_25, %c0_26, %c0_27] : memref<9x21x640xbf16, #tpu.memory_space<vmem>>, vector<1x21x640xbf16>
    %45 = vector.shape_cast %44 : vector<1x21x640xbf16> to vector<21x640xbf16>
    %c0_28 = arith.constant 0 : index
    %c0_29 = arith.constant 0 : index
    %c0_30 = arith.constant 0 : index
    %46 = vector.load %arg2[%c0_28, %c0_29, %c0_30] : memref<5x12x21xbf16, #tpu.memory_space<vmem>>, vector<1x12x21xbf16>
    %47 = vector.shape_cast %46 : vector<1x12x21xbf16> to vector<12x21xbf16>
    %cst_31 = arith.constant dense<0.000000e+00> : vector<12x640xf32>
    %48 = tpu.matmul %47, %45, %cst_31 {dimension_numbers = #tpu.dot_dimension_numbers<[1], [0], [0], [1], [0, 0, 1, 1], [], []>} : vector<12x21xbf16>, vector<21x640xbf16>, vector<12x640xf32> -> vector<12x640xf32>
    %49 = vector.extract_strided_slice %48 {offsets = [0, 0], sizes = [12, 512], strides = [1, 1]} : vector<12x640xf32> to vector<12x512xf32>
    %c1_32 = arith.constant 1 : index
    %c0_33 = arith.constant 0 : index
    %c0_34 = arith.constant 0 : index
    %50 = vector.load %arg2[%c1_32, %c0_33, %c0_34] : memref<5x12x21xbf16, #tpu.memory_space<vmem>>, vector<1x12x21xbf16>
    %51 = vector.shape_cast %50 : vector<1x12x21xbf16> to vector<12x21xbf16>
    %cst_35 = arith.constant dense<0.000000e+00> : vector<12x640xf32>
    %52 = tpu.matmul %51, %45, %cst_35 {dimension_numbers = #tpu.dot_dimension_numbers<[1], [0], [0], [1], [0, 0, 1, 1], [], []>} : vector<12x21xbf16>, vector<21x640xbf16>, vector<12x640xf32> -> vector<12x640xf32>
    %c611_i32_36 = arith.constant 611 : i32
    %53 = tpu.dynamic_rotate %52 by %c611_i32_36 dim 1 : vector<12x640xf32>, i32 -> vector<12x640xf32>
    %54 = vector.extract_strided_slice %53 {offsets = [0, 0], sizes = [12, 512], strides = [1, 1]} : vector<12x640xf32> to vector<12x512xf32>
    %55 = arith.addf %49, %54 : vector<12x512xf32>
    %c2_37 = arith.constant 2 : index
    %c0_38 = arith.constant 0 : index
    %c0_39 = arith.constant 0 : index
    %56 = vector.load %arg2[%c2_37, %c0_38, %c0_39] : memref<5x12x21xbf16, #tpu.memory_space<vmem>>, vector<1x12x21xbf16>
    %57 = vector.shape_cast %56 : vector<1x12x21xbf16> to vector<12x21xbf16>
    %cst_40 = arith.constant dense<0.000000e+00> : vector<12x640xf32>
    %58 = tpu.matmul %57, %45, %cst_40 {dimension_numbers = #tpu.dot_dimension_numbers<[1], [0], [0], [1], [0, 0, 1, 1], [], []>} : vector<12x21xbf16>, vector<21x640xbf16>, vector<12x640xf32> -> vector<12x640xf32>
    %c582_i32_41 = arith.constant 582 : i32
    %59 = tpu.dynamic_rotate %58 by %c582_i32_41 dim 1 : vector<12x640xf32>, i32 -> vector<12x640xf32>
    %60 = vector.extract_strided_slice %59 {offsets = [0, 0], sizes = [12, 512], strides = [1, 1]} : vector<12x640xf32> to vector<12x512xf32>
    %61 = arith.addf %55, %60 : vector<12x512xf32>
    %c3_42 = arith.constant 3 : index
    %c0_43 = arith.constant 0 : index
    %c0_44 = arith.constant 0 : index
    %62 = vector.load %arg2[%c3_42, %c0_43, %c0_44] : memref<5x12x21xbf16, #tpu.memory_space<vmem>>, vector<1x12x21xbf16>
    %63 = vector.shape_cast %62 : vector<1x12x21xbf16> to vector<12x21xbf16>
    %cst_45 = arith.constant dense<0.000000e+00> : vector<12x640xf32>
    %64 = tpu.matmul %63, %45, %cst_45 {dimension_numbers = #tpu.dot_dimension_numbers<[1], [0], [0], [1], [0, 0, 1, 1], [], []>} : vector<12x21xbf16>, vector<21x640xbf16>, vector<12x640xf32> -> vector<12x640xf32>
    %c553_i32_46 = arith.constant 553 : i32
    %65 = tpu.dynamic_rotate %64 by %c553_i32_46 dim 1 : vector<12x640xf32>, i32 -> vector<12x640xf32>
    %66 = vector.extract_strided_slice %65 {offsets = [0, 0], sizes = [12, 512], strides = [1, 1]} : vector<12x640xf32> to vector<12x512xf32>
    %67 = arith.addf %61, %66 : vector<12x512xf32>
    %c4_47 = arith.constant 4 : index
    %c0_48 = arith.constant 0 : index
    %c0_49 = arith.constant 0 : index
    %68 = vector.load %arg2[%c4_47, %c0_48, %c0_49] : memref<5x12x21xbf16, #tpu.memory_space<vmem>>, vector<1x12x21xbf16>
    %69 = vector.shape_cast %68 : vector<1x12x21xbf16> to vector<12x21xbf16>
    %cst_50 = arith.constant dense<0.000000e+00> : vector<12x640xf32>
    %70 = tpu.matmul %69, %45, %cst_50 {dimension_numbers = #tpu.dot_dimension_numbers<[1], [0], [0], [1], [0, 0, 1, 1], [], []>} : vector<12x21xbf16>, vector<21x640xbf16>, vector<12x640xf32> -> vector<12x640xf32>
    %c524_i32_51 = arith.constant 524 : i32
    %71 = tpu.dynamic_rotate %70 by %c524_i32_51 dim 1 : vector<12x640xf32>, i32 -> vector<12x640xf32>
    %72 = vector.extract_strided_slice %71 {offsets = [0, 0], sizes = [12, 512], strides = [1, 1]} : vector<12x640xf32> to vector<12x512xf32>
    %73 = arith.addf %67, %72 : vector<12x512xf32>
    %c0_52 = arith.constant 0 : index
    %c0_53 = arith.constant 0 : index
    %74 = vector.load %arg3[%c0_52, %c0_53] : memref<12x1xf32, #tpu.memory_space<vmem>>, vector<12x1xf32>
    %75 = vector.broadcast %74 : vector<12x1xf32> to vector<12x512xf32>
    %76 = arith.addf %73, %75 : vector<12x512xf32>
    %cst_54 = arith.constant 0.000000e+00 : f32
    %77 = vector.broadcast %cst_54 : f32 to vector<12x512xf32>
    %78 = arith.cmpf ogt, %76, %77 : vector<12x512xf32>
    %cst_55 = arith.constant 0.000000e+00 : f32
    %79 = vector.broadcast %cst_55 : f32 to vector<12x512xf32>
    %80 = arith.minimumf %76, %79 : vector<12x512xf32>
    %81 = math.exp %80 : vector<12x512xf32>
    %cst_56 = arith.constant 1.000000e+00 : f32
    %82 = vector.broadcast %cst_56 : f32 to vector<12x512xf32>
    %83 = arith.subf %81, %82 : vector<12x512xf32>
    %84 = arith.select %78, %76, %83 : vector<12x512xi1>, vector<12x512xf32>
    %c1_57 = arith.constant 1 : index
    %c0_58 = arith.constant 0 : index
    %c0_59 = arith.constant 0 : index
    %85 = vector.load %arg4[%c1_57, %c0_58, %c0_59] : memref<9x12x512xf32, #tpu.memory_space<vmem>>, vector<1x12x512xf32>
    %86 = vector.shape_cast %85 : vector<1x12x512xf32> to vector<12x512xf32>
    %87 = vector.shape_cast %84 : vector<12x512xf32> to vector<1x12x512xf32>
    tpu.vector_store %arg4[%c1_57, %c0_58, %c0_59], %87 {strides = array<i32>} : memref<9x12x512xf32, #tpu.memory_space<vmem>>, vector<1x12x512xf32>,
    %c2_60 = arith.constant 2 : index
    %c0_61 = arith.constant 0 : index
    %c0_62 = arith.constant 0 : index
    %88 = vector.load %arg1[%c2_60, %c0_61, %c0_62] : memref<9x21x640xbf16, #tpu.memory_space<vmem>>, vector<1x21x640xbf16>
    %89 = vector.shape_cast %88 : vector<1x21x640xbf16> to vector<21x640xbf16>
    %c0_63 = arith.constant 0 : index
    %c0_64 = arith.constant 0 : index
    %c0_65 = arith.constant 0 : index
    %90 = vector.load %arg2[%c0_63, %c0_64, %c0_65] : memref<5x12x21xbf16, #tpu.memory_space<vmem>>, vector<1x12x21xbf16>
    %91 = vector.shape_cast %90 : vector<1x12x21xbf16> to vector<12x21xbf16>
    %cst_66 = arith.constant dense<0.000000e+00> : vector<12x640xf32>
    %92 = tpu.matmul %91, %89, %cst_66 {dimension_numbers = #tpu.dot_dimension_numbers<[1], [0], [0], [1], [0, 0, 1, 1], [], []>} : vector<12x21xbf16>, vector<21x640xbf16>, vector<12x640xf32> -> vector<12x640xf32>
    %93 = vector.extract_strided_slice %92 {offsets = [0, 0], sizes = [12, 512], strides = [1, 1]} : vector<12x640xf32> to vector<12x512xf32>
    %c1_67 = arith.constant 1 : index
    %c0_68 = arith.constant 0 : index
    %c0_69 = arith.constant 0 : index
    %94 = vector.load %arg2[%c1_67, %c0_68, %c0_69] : memref<5x12x21xbf16, #tpu.memory_space<vmem>>, vector<1x12x21xbf16>
    %95 = vector.shape_cast %94 : vector<1x12x21xbf16> to vector<12x21xbf16>
    %cst_70 = arith.constant dense<0.000000e+00> : vector<12x640xf32>
    %96 = tpu.matmul %95, %89, %cst_70 {dimension_numbers = #tpu.dot_dimension_numbers<[1], [0], [0], [1], [0, 0, 1, 1], [], []>} : vector<12x21xbf16>, vector<21x640xbf16>, vector<12x640xf32> -> vector<12x640xf32>
    %c611_i32_71 = arith.constant 611 : i32
    %97 = tpu.dynamic_rotate %96 by %c611_i32_71 dim 1 : vector<12x640xf32>, i32 -> vector<12x640xf32>
    %98 = vector.extract_strided_slice %97 {offsets = [0, 0], sizes = [12, 512], strides = [1, 1]} : vector<12x640xf32> to vector<12x512xf32>
    %99 = arith.addf %93, %98 : vector<12x512xf32>
    %c2_72 = arith.constant 2 : index
    %c0_73 = arith.constant 0 : index
    %c0_74 = arith.constant 0 : index
    %100 = vector.load %arg2[%c2_72, %c0_73, %c0_74] : memref<5x12x21xbf16, #tpu.memory_space<vmem>>, vector<1x12x21xbf16>
    %101 = vector.shape_cast %100 : vector<1x12x21xbf16> to vector<12x21xbf16>
    %cst_75 = arith.constant dense<0.000000e+00> : vector<12x640xf32>
    %102 = tpu.matmul %101, %89, %cst_75 {dimension_numbers = #tpu.dot_dimension_numbers<[1], [0], [0], [1], [0, 0, 1, 1], [], []>} : vector<12x21xbf16>, vector<21x640xbf16>, vector<12x640xf32> -> vector<12x640xf32>
    %c582_i32_76 = arith.constant 582 : i32
    %103 = tpu.dynamic_rotate %102 by %c582_i32_76 dim 1 : vector<12x640xf32>, i32 -> vector<12x640xf32>
    %104 = vector.extract_strided_slice %103 {offsets = [0, 0], sizes = [12, 512], strides = [1, 1]} : vector<12x640xf32> to vector<12x512xf32>
    %105 = arith.addf %99, %104 : vector<12x512xf32>
    %c3_77 = arith.constant 3 : index
    %c0_78 = arith.constant 0 : index
    %c0_79 = arith.constant 0 : index
    %106 = vector.load %arg2[%c3_77, %c0_78, %c0_79] : memref<5x12x21xbf16, #tpu.memory_space<vmem>>, vector<1x12x21xbf16>
    %107 = vector.shape_cast %106 : vector<1x12x21xbf16> to vector<12x21xbf16>
    %cst_80 = arith.constant dense<0.000000e+00> : vector<12x640xf32>
    %108 = tpu.matmul %107, %89, %cst_80 {dimension_numbers = #tpu.dot_dimension_numbers<[1], [0], [0], [1], [0, 0, 1, 1], [], []>} : vector<12x21xbf16>, vector<21x640xbf16>, vector<12x640xf32> -> vector<12x640xf32>
    %c553_i32_81 = arith.constant 553 : i32
    %109 = tpu.dynamic_rotate %108 by %c553_i32_81 dim 1 : vector<12x640xf32>, i32 -> vector<12x640xf32>
    %110 = vector.extract_strided_slice %109 {offsets = [0, 0], sizes = [12, 512], strides = [1, 1]} : vector<12x640xf32> to vector<12x512xf32>
    %111 = arith.addf %105, %110 : vector<12x512xf32>
    %c4_82 = arith.constant 4 : index
    %c0_83 = arith.constant 0 : index
    %c0_84 = arith.constant 0 : index
    %112 = vector.load %arg2[%c4_82, %c0_83, %c0_84] : memref<5x12x21xbf16, #tpu.memory_space<vmem>>, vector<1x12x21xbf16>
    %113 = vector.shape_cast %112 : vector<1x12x21xbf16> to vector<12x21xbf16>
    %cst_85 = arith.constant dense<0.000000e+00> : vector<12x640xf32>
    %114 = tpu.matmul %113, %89, %cst_85 {dimension_numbers = #tpu.dot_dimension_numbers<[1], [0], [0], [1], [0, 0, 1, 1], [], []>} : vector<12x21xbf16>, vector<21x640xbf16>, vector<12x640xf32> -> vector<12x640xf32>
    %c524_i32_86 = arith.constant 524 : i32
    %115 = tpu.dynamic_rotate %114 by %c524_i32_86 dim 1 : vector<12x640xf32>, i32 -> vector<12x640xf32>
    %116 = vector.extract_strided_slice %115 {offsets = [0, 0], sizes = [12, 512], strides = [1, 1]} : vector<12x640xf32> to vector<12x512xf32>
    %117 = arith.addf %111, %116 : vector<12x512xf32>
    %c0_87 = arith.constant 0 : index
    %c0_88 = arith.constant 0 : index
    %118 = vector.load %arg3[%c0_87, %c0_88] : memref<12x1xf32, #tpu.memory_space<vmem>>, vector<12x1xf32>
    %119 = vector.broadcast %118 : vector<12x1xf32> to vector<12x512xf32>
    %120 = arith.addf %117, %119 : vector<12x512xf32>
    %cst_89 = arith.constant 0.000000e+00 : f32
    %121 = vector.broadcast %cst_89 : f32 to vector<12x512xf32>
    %122 = arith.cmpf ogt, %120, %121 : vector<12x512xf32>
    %cst_90 = arith.constant 0.000000e+00 : f32
    %123 = vector.broadcast %cst_90 : f32 to vector<12x512xf32>
    %124 = arith.minimumf %120, %123 : vector<12x512xf32>
    %125 = math.exp %124 : vector<12x512xf32>
    %cst_91 = arith.constant 1.000000e+00 : f32
    %126 = vector.broadcast %cst_91 : f32 to vector<12x512xf32>
    %127 = arith.subf %125, %126 : vector<12x512xf32>
    %128 = arith.select %122, %120, %127 : vector<12x512xi1>, vector<12x512xf32>
    %c2_92 = arith.constant 2 : index
    %c0_93 = arith.constant 0 : index
    %c0_94 = arith.constant 0 : index
    %129 = vector.load %arg4[%c2_92, %c0_93, %c0_94] : memref<9x12x512xf32, #tpu.memory_space<vmem>>, vector<1x12x512xf32>
    %130 = vector.shape_cast %129 : vector<1x12x512xf32> to vector<12x512xf32>
    %131 = vector.shape_cast %128 : vector<12x512xf32> to vector<1x12x512xf32>
    tpu.vector_store %arg4[%c2_92, %c0_93, %c0_94], %131 {strides = array<i32>} : memref<9x12x512xf32, #tpu.memory_space<vmem>>, vector<1x12x512xf32>,
    %c3_95 = arith.constant 3 : index
    %c0_96 = arith.constant 0 : index
    %c0_97 = arith.constant 0 : index
    %132 = vector.load %arg1[%c3_95, %c0_96, %c0_97] : memref<9x21x640xbf16, #tpu.memory_space<vmem>>, vector<1x21x640xbf16>
    %133 = vector.shape_cast %132 : vector<1x21x640xbf16> to vector<21x640xbf16>
    %c0_98 = arith.constant 0 : index
    %c0_99 = arith.constant 0 : index
    %c0_100 = arith.constant 0 : index
    %134 = vector.load %arg2[%c0_98, %c0_99, %c0_100] : memref<5x12x21xbf16, #tpu.memory_space<vmem>>, vector<1x12x21xbf16>
    %135 = vector.shape_cast %134 : vector<1x12x21xbf16> to vector<12x21xbf16>
    %cst_101 = arith.constant dense<0.000000e+00> : vector<12x640xf32>
    %136 = tpu.matmul %135, %133, %cst_101 {dimension_numbers = #tpu.dot_dimension_numbers<[1], [0], [0], [1], [0, 0, 1, 1], [], []>} : vector<12x21xbf16>, vector<21x640xbf16>, vector<12x640xf32> -> vector<12x640xf32>
    %137 = vector.extract_strided_slice %136 {offsets = [0, 0], sizes = [12, 512], strides = [1, 1]} : vector<12x640xf32> to vector<12x512xf32>
    %c1_102 = arith.constant 1 : index
    %c0_103 = arith.constant 0 : index
    %c0_104 = arith.constant 0 : index
    %138 = vector.load %arg2[%c1_102, %c0_103, %c0_104] : memref<5x12x21xbf16, #tpu.memory_space<vmem>>, vector<1x12x21xbf16>
    %139 = vector.shape_cast %138 : vector<1x12x21xbf16> to vector<12x21xbf16>
    %cst_105 = arith.constant dense<0.000000e+00> : vector<12x640xf32>
    %140 = tpu.matmul %139, %133, %cst_105 {dimension_numbers = #tpu.dot_dimension_numbers<[1], [0], [0], [1], [0, 0, 1, 1], [], []>} : vector<12x21xbf16>, vector<21x640xbf16>, vector<12x640xf32> -> vector<12x640xf32>
    %c611_i32_106 = arith.constant 611 : i32
    %141 = tpu.dynamic_rotate %140 by %c611_i32_106 dim 1 : vector<12x640xf32>, i32 -> vector<12x640xf32>
    %142 = vector.extract_strided_slice %141 {offsets = [0, 0], sizes = [12, 512], strides = [1, 1]} : vector<12x640xf32> to vector<12x512xf32>
    %143 = arith.addf %137, %142 : vector<12x512xf32>
    %c2_107 = arith.constant 2 : index
    %c0_108 = arith.constant 0 : index
    %c0_109 = arith.constant 0 : index
    %144 = vector.load %arg2[%c2_107, %c0_108, %c0_109] : memref<5x12x21xbf16, #tpu.memory_space<vmem>>, vector<1x12x21xbf16>
    %145 = vector.shape_cast %144 : vector<1x12x21xbf16> to vector<12x21xbf16>
    %cst_110 = arith.constant dense<0.000000e+00> : vector<12x640xf32>
    %146 = tpu.matmul %145, %133, %cst_110 {dimension_numbers = #tpu.dot_dimension_numbers<[1], [0], [0], [1], [0, 0, 1, 1], [], []>} : vector<12x21xbf16>, vector<21x640xbf16>, vector<12x640xf32> -> vector<12x640xf32>
    %c582_i32_111 = arith.constant 582 : i32
    %147 = tpu.dynamic_rotate %146 by %c582_i32_111 dim 1 : vector<12x640xf32>, i32 -> vector<12x640xf32>
    %148 = vector.extract_strided_slice %147 {offsets = [0, 0], sizes = [12, 512], strides = [1, 1]} : vector<12x640xf32> to vector<12x512xf32>
    %149 = arith.addf %143, %148 : vector<12x512xf32>
    %c3_112 = arith.constant 3 : index
    %c0_113 = arith.constant 0 : index
    %c0_114 = arith.constant 0 : index
    %150 = vector.load %arg2[%c3_112, %c0_113, %c0_114] : memref<5x12x21xbf16, #tpu.memory_space<vmem>>, vector<1x12x21xbf16>
    %151 = vector.shape_cast %150 : vector<1x12x21xbf16> to vector<12x21xbf16>
    %cst_115 = arith.constant dense<0.000000e+00> : vector<12x640xf32>
    %152 = tpu.matmul %151, %133, %cst_115 {dimension_numbers = #tpu.dot_dimension_numbers<[1], [0], [0], [1], [0, 0, 1, 1], [], []>} : vector<12x21xbf16>, vector<21x640xbf16>, vector<12x640xf32> -> vector<12x640xf32>
    %c553_i32_116 = arith.constant 553 : i32
    %153 = tpu.dynamic_rotate %152 by %c553_i32_116 dim 1 : vector<12x640xf32>, i32 -> vector<12x640xf32>
    %154 = vector.extract_strided_slice %153 {offsets = [0, 0], sizes = [12, 512], strides = [1, 1]} : vector<12x640xf32> to vector<12x512xf32>
    %155 = arith.addf %149, %154 : vector<12x512xf32>
    %c4_117 = arith.constant 4 : index
    %c0_118 = arith.constant 0 : index
    %c0_119 = arith.constant 0 : index
    %156 = vector.load %arg2[%c4_117, %c0_118, %c0_119] : memref<5x12x21xbf16, #tpu.memory_space<vmem>>, vector<1x12x21xbf16>
    %157 = vector.shape_cast %156 : vector<1x12x21xbf16> to vector<12x21xbf16>
    %cst_120 = arith.constant dense<0.000000e+00> : vector<12x640xf32>
    %158 = tpu.matmul %157, %133, %cst_120 {dimension_numbers = #tpu.dot_dimension_numbers<[1], [0], [0], [1], [0, 0, 1, 1], [], []>} : vector<12x21xbf16>, vector<21x640xbf16>, vector<12x640xf32> -> vector<12x640xf32>
    %c524_i32_121 = arith.constant 524 : i32
    %159 = tpu.dynamic_rotate %158 by %c524_i32_121 dim 1 : vector<12x640xf32>, i32 -> vector<12x640xf32>
    %160 = vector.extract_strided_slice %159 {offsets = [0, 0], sizes = [12, 512], strides = [1, 1]} : vector<12x640xf32> to vector<12x512xf32>
    %161 = arith.addf %155, %160 : vector<12x512xf32>
    %c0_122 = arith.constant 0 : index
    %c0_123 = arith.constant 0 : index
    %162 = vector.load %arg3[%c0_122, %c0_123] : memref<12x1xf32, #tpu.memory_space<vmem>>, vector<12x1xf32>
    %163 = vector.broadcast %162 : vector<12x1xf32> to vector<12x512xf32>
    %164 = arith.addf %161, %163 : vector<12x512xf32>
    %cst_124 = arith.constant 0.000000e+00 : f32
    %165 = vector.broadcast %cst_124 : f32 to vector<12x512xf32>
    %166 = arith.cmpf ogt, %164, %165 : vector<12x512xf32>
    %cst_125 = arith.constant 0.000000e+00 : f32
    %167 = vector.broadcast %cst_125 : f32 to vector<12x512xf32>
    %168 = arith.minimumf %164, %167 : vector<12x512xf32>
    %169 = math.exp %168 : vector<12x512xf32>
    %cst_126 = arith.constant 1.000000e+00 : f32
    %170 = vector.broadcast %cst_126 : f32 to vector<12x512xf32>
    %171 = arith.subf %169, %170 : vector<12x512xf32>
    %172 = arith.select %166, %164, %171 : vector<12x512xi1>, vector<12x512xf32>
    %c3_127 = arith.constant 3 : index
    %c0_128 = arith.constant 0 : index
    %c0_129 = arith.constant 0 : index
    %173 = vector.load %arg4[%c3_127, %c0_128, %c0_129] : memref<9x12x512xf32, #tpu.memory_space<vmem>>, vector<1x12x512xf32>
    %174 = vector.shape_cast %173 : vector<1x12x512xf32> to vector<12x512xf32>
    %175 = vector.shape_cast %172 : vector<12x512xf32> to vector<1x12x512xf32>
    tpu.vector_store %arg4[%c3_127, %c0_128, %c0_129], %175 {strides = array<i32>} : memref<9x12x512xf32, #tpu.memory_space<vmem>>, vector<1x12x512xf32>,
    %c4_130 = arith.constant 4 : index
    %c0_131 = arith.constant 0 : index
    %c0_132 = arith.constant 0 : index
    %176 = vector.load %arg1[%c4_130, %c0_131, %c0_132] : memref<9x21x640xbf16, #tpu.memory_space<vmem>>, vector<1x21x640xbf16>
    %177 = vector.shape_cast %176 : vector<1x21x640xbf16> to vector<21x640xbf16>
    %c0_133 = arith.constant 0 : index
    %c0_134 = arith.constant 0 : index
    %c0_135 = arith.constant 0 : index
    %178 = vector.load %arg2[%c0_133, %c0_134, %c0_135] : memref<5x12x21xbf16, #tpu.memory_space<vmem>>, vector<1x12x21xbf16>
    %179 = vector.shape_cast %178 : vector<1x12x21xbf16> to vector<12x21xbf16>
    %cst_136 = arith.constant dense<0.000000e+00> : vector<12x640xf32>
    %180 = tpu.matmul %179, %177, %cst_136 {dimension_numbers = #tpu.dot_dimension_numbers<[1], [0], [0], [1], [0, 0, 1, 1], [], []>} : vector<12x21xbf16>, vector<21x640xbf16>, vector<12x640xf32> -> vector<12x640xf32>
    %181 = vector.extract_strided_slice %180 {offsets = [0, 0], sizes = [12, 512], strides = [1, 1]} : vector<12x640xf32> to vector<12x512xf32>
    %c1_137 = arith.constant 1 : index
    %c0_138 = arith.constant 0 : index
    %c0_139 = arith.constant 0 : index
    %182 = vector.load %arg2[%c1_137, %c0_138, %c0_139] : memref<5x12x21xbf16, #tpu.memory_space<vmem>>, vector<1x12x21xbf16>
    %183 = vector.shape_cast %182 : vector<1x12x21xbf16> to vector<12x21xbf16>
    %cst_140 = arith.constant dense<0.000000e+00> : vector<12x640xf32>
    %184 = tpu.matmul %183, %177, %cst_140 {dimension_numbers = #tpu.dot_dimension_numbers<[1], [0], [0], [1], [0, 0, 1, 1], [], []>} : vector<12x21xbf16>, vector<21x640xbf16>, vector<12x640xf32> -> vector<12x640xf32>
    %c611_i32_141 = arith.constant 611 : i32
    %185 = tpu.dynamic_rotate %184 by %c611_i32_141 dim 1 : vector<12x640xf32>, i32 -> vector<12x640xf32>
    %186 = vector.extract_strided_slice %185 {offsets = [0, 0], sizes = [12, 512], strides = [1, 1]} : vector<12x640xf32> to vector<12x512xf32>
    %187 = arith.addf %181, %186 : vector<12x512xf32>
    %c2_142 = arith.constant 2 : index
    %c0_143 = arith.constant 0 : index
    %c0_144 = arith.constant 0 : index
    %188 = vector.load %arg2[%c2_142, %c0_143, %c0_144] : memref<5x12x21xbf16, #tpu.memory_space<vmem>>, vector<1x12x21xbf16>
    %189 = vector.shape_cast %188 : vector<1x12x21xbf16> to vector<12x21xbf16>
    %cst_145 = arith.constant dense<0.000000e+00> : vector<12x640xf32>
    %190 = tpu.matmul %189, %177, %cst_145 {dimension_numbers = #tpu.dot_dimension_numbers<[1], [0], [0], [1], [0, 0, 1, 1], [], []>} : vector<12x21xbf16>, vector<21x640xbf16>, vector<12x640xf32> -> vector<12x640xf32>
    %c582_i32_146 = arith.constant 582 : i32
    %191 = tpu.dynamic_rotate %190 by %c582_i32_146 dim 1 : vector<12x640xf32>, i32 -> vector<12x640xf32>
    %192 = vector.extract_strided_slice %191 {offsets = [0, 0], sizes = [12, 512], strides = [1, 1]} : vector<12x640xf32> to vector<12x512xf32>
    %193 = arith.addf %187, %192 : vector<12x512xf32>
    %c3_147 = arith.constant 3 : index
    %c0_148 = arith.constant 0 : index
    %c0_149 = arith.constant 0 : index
    %194 = vector.load %arg2[%c3_147, %c0_148, %c0_149] : memref<5x12x21xbf16, #tpu.memory_space<vmem>>, vector<1x12x21xbf16>
    %195 = vector.shape_cast %194 : vector<1x12x21xbf16> to vector<12x21xbf16>
    %cst_150 = arith.constant dense<0.000000e+00> : vector<12x640xf32>
    %196 = tpu.matmul %195, %177, %cst_150 {dimension_numbers = #tpu.dot_dimension_numbers<[1], [0], [0], [1], [0, 0, 1, 1], [], []>} : vector<12x21xbf16>, vector<21x640xbf16>, vector<12x640xf32> -> vector<12x640xf32>
    %c553_i32_151 = arith.constant 553 : i32
    %197 = tpu.dynamic_rotate %196 by %c553_i32_151 dim 1 : vector<12x640xf32>, i32 -> vector<12x640xf32>
    %198 = vector.extract_strided_slice %197 {offsets = [0, 0], sizes = [12, 512], strides = [1, 1]} : vector<12x640xf32> to vector<12x512xf32>
    %199 = arith.addf %193, %198 : vector<12x512xf32>
    %c4_152 = arith.constant 4 : index
    %c0_153 = arith.constant 0 : index
    %c0_154 = arith.constant 0 : index
    %200 = vector.load %arg2[%c4_152, %c0_153, %c0_154] : memref<5x12x21xbf16, #tpu.memory_space<vmem>>, vector<1x12x21xbf16>
    %201 = vector.shape_cast %200 : vector<1x12x21xbf16> to vector<12x21xbf16>
    %cst_155 = arith.constant dense<0.000000e+00> : vector<12x640xf32>
    %202 = tpu.matmul %201, %177, %cst_155 {dimension_numbers = #tpu.dot_dimension_numbers<[1], [0], [0], [1], [0, 0, 1, 1], [], []>} : vector<12x21xbf16>, vector<21x640xbf16>, vector<12x640xf32> -> vector<12x640xf32>
    %c524_i32_156 = arith.constant 524 : i32
    %203 = tpu.dynamic_rotate %202 by %c524_i32_156 dim 1 : vector<12x640xf32>, i32 -> vector<12x640xf32>
    %204 = vector.extract_strided_slice %203 {offsets = [0, 0], sizes = [12, 512], strides = [1, 1]} : vector<12x640xf32> to vector<12x512xf32>
    %205 = arith.addf %199, %204 : vector<12x512xf32>
    %c0_157 = arith.constant 0 : index
    %c0_158 = arith.constant 0 : index
    %206 = vector.load %arg3[%c0_157, %c0_158] : memref<12x1xf32, #tpu.memory_space<vmem>>, vector<12x1xf32>
    %207 = vector.broadcast %206 : vector<12x1xf32> to vector<12x512xf32>
    %208 = arith.addf %205, %207 : vector<12x512xf32>
    %cst_159 = arith.constant 0.000000e+00 : f32
    %209 = vector.broadcast %cst_159 : f32 to vector<12x512xf32>
    %210 = arith.cmpf ogt, %208, %209 : vector<12x512xf32>
    %cst_160 = arith.constant 0.000000e+00 : f32
    %211 = vector.broadcast %cst_160 : f32 to vector<12x512xf32>
    %212 = arith.minimumf %208, %211 : vector<12x512xf32>
    %213 = math.exp %212 : vector<12x512xf32>
    %cst_161 = arith.constant 1.000000e+00 : f32
    %214 = vector.broadcast %cst_161 : f32 to vector<12x512xf32>
    %215 = arith.subf %213, %214 : vector<12x512xf32>
    %216 = arith.select %210, %208, %215 : vector<12x512xi1>, vector<12x512xf32>
    %c4_162 = arith.constant 4 : index
    %c0_163 = arith.constant 0 : index
    %c0_164 = arith.constant 0 : index
    %217 = vector.load %arg4[%c4_162, %c0_163, %c0_164] : memref<9x12x512xf32, #tpu.memory_space<vmem>>, vector<1x12x512xf32>
    %218 = vector.shape_cast %217 : vector<1x12x512xf32> to vector<12x512xf32>
    %219 = vector.shape_cast %216 : vector<12x512xf32> to vector<1x12x512xf32>
    tpu.vector_store %arg4[%c4_162, %c0_163, %c0_164], %219 {strides = array<i32>} : memref<9x12x512xf32, #tpu.memory_space<vmem>>, vector<1x12x512xf32>,
    %c5 = arith.constant 5 : index
    %c0_165 = arith.constant 0 : index
    %c0_166 = arith.constant 0 : index
    %220 = vector.load %arg1[%c5, %c0_165, %c0_166] : memref<9x21x640xbf16, #tpu.memory_space<vmem>>, vector<1x21x640xbf16>
    %221 = vector.shape_cast %220 : vector<1x21x640xbf16> to vector<21x640xbf16>
    %c0_167 = arith.constant 0 : index
    %c0_168 = arith.constant 0 : index
    %c0_169 = arith.constant 0 : index
    %222 = vector.load %arg2[%c0_167, %c0_168, %c0_169] : memref<5x12x21xbf16, #tpu.memory_space<vmem>>, vector<1x12x21xbf16>
    %223 = vector.shape_cast %222 : vector<1x12x21xbf16> to vector<12x21xbf16>
    %cst_170 = arith.constant dense<0.000000e+00> : vector<12x640xf32>
    %224 = tpu.matmul %223, %221, %cst_170 {dimension_numbers = #tpu.dot_dimension_numbers<[1], [0], [0], [1], [0, 0, 1, 1], [], []>} : vector<12x21xbf16>, vector<21x640xbf16>, vector<12x640xf32> -> vector<12x640xf32>
    %225 = vector.extract_strided_slice %224 {offsets = [0, 0], sizes = [12, 512], strides = [1, 1]} : vector<12x640xf32> to vector<12x512xf32>
    %c1_171 = arith.constant 1 : index
    %c0_172 = arith.constant 0 : index
    %c0_173 = arith.constant 0 : index
    %226 = vector.load %arg2[%c1_171, %c0_172, %c0_173] : memref<5x12x21xbf16, #tpu.memory_space<vmem>>, vector<1x12x21xbf16>
    %227 = vector.shape_cast %226 : vector<1x12x21xbf16> to vector<12x21xbf16>
    %cst_174 = arith.constant dense<0.000000e+00> : vector<12x640xf32>
    %228 = tpu.matmul %227, %221, %cst_174 {dimension_numbers = #tpu.dot_dimension_numbers<[1], [0], [0], [1], [0, 0, 1, 1], [], []>} : vector<12x21xbf16>, vector<21x640xbf16>, vector<12x640xf32> -> vector<12x640xf32>
    %c611_i32_175 = arith.constant 611 : i32
    %229 = tpu.dynamic_rotate %228 by %c611_i32_175 dim 1 : vector<12x640xf32>, i32 -> vector<12x640xf32>
    %230 = vector.extract_strided_slice %229 {offsets = [0, 0], sizes = [12, 512], strides = [1, 1]} : vector<12x640xf32> to vector<12x512xf32>
    %231 = arith.addf %225, %230 : vector<12x512xf32>
    %c2_176 = arith.constant 2 : index
    %c0_177 = arith.constant 0 : index
    %c0_178 = arith.constant 0 : index
    %232 = vector.load %arg2[%c2_176, %c0_177, %c0_178] : memref<5x12x21xbf16, #tpu.memory_space<vmem>>, vector<1x12x21xbf16>
    %233 = vector.shape_cast %232 : vector<1x12x21xbf16> to vector<12x21xbf16>
    %cst_179 = arith.constant dense<0.000000e+00> : vector<12x640xf32>
    %234 = tpu.matmul %233, %221, %cst_179 {dimension_numbers = #tpu.dot_dimension_numbers<[1], [0], [0], [1], [0, 0, 1, 1], [], []>} : vector<12x21xbf16>, vector<21x640xbf16>, vector<12x640xf32> -> vector<12x640xf32>
    %c582_i32_180 = arith.constant 582 : i32
    %235 = tpu.dynamic_rotate %234 by %c582_i32_180 dim 1 : vector<12x640xf32>, i32 -> vector<12x640xf32>
    %236 = vector.extract_strided_slice %235 {offsets = [0, 0], sizes = [12, 512], strides = [1, 1]} : vector<12x640xf32> to vector<12x512xf32>
    %237 = arith.addf %231, %236 : vector<12x512xf32>
    %c3_181 = arith.constant 3 : index
    %c0_182 = arith.constant 0 : index
    %c0_183 = arith.constant 0 : index
    %238 = vector.load %arg2[%c3_181, %c0_182, %c0_183] : memref<5x12x21xbf16, #tpu.memory_space<vmem>>, vector<1x12x21xbf16>
    %239 = vector.shape_cast %238 : vector<1x12x21xbf16> to vector<12x21xbf16>
    %cst_184 = arith.constant dense<0.000000e+00> : vector<12x640xf32>
    %240 = tpu.matmul %239, %221, %cst_184 {dimension_numbers = #tpu.dot_dimension_numbers<[1], [0], [0], [1], [0, 0, 1, 1], [], []>} : vector<12x21xbf16>, vector<21x640xbf16>, vector<12x640xf32> -> vector<12x640xf32>
    %c553_i32_185 = arith.constant 553 : i32
    %241 = tpu.dynamic_rotate %240 by %c553_i32_185 dim 1 : vector<12x640xf32>, i32 -> vector<12x640xf32>
    %242 = vector.extract_strided_slice %241 {offsets = [0, 0], sizes = [12, 512], strides = [1, 1]} : vector<12x640xf32> to vector<12x512xf32>
    %243 = arith.addf %237, %242 : vector<12x512xf32>
    %c4_186 = arith.constant 4 : index
    %c0_187 = arith.constant 0 : index
    %c0_188 = arith.constant 0 : index
    %244 = vector.load %arg2[%c4_186, %c0_187, %c0_188] : memref<5x12x21xbf16, #tpu.memory_space<vmem>>, vector<1x12x21xbf16>
    %245 = vector.shape_cast %244 : vector<1x12x21xbf16> to vector<12x21xbf16>
    %cst_189 = arith.constant dense<0.000000e+00> : vector<12x640xf32>
    %246 = tpu.matmul %245, %221, %cst_189 {dimension_numbers = #tpu.dot_dimension_numbers<[1], [0], [0], [1], [0, 0, 1, 1], [], []>} : vector<12x21xbf16>, vector<21x640xbf16>, vector<12x640xf32> -> vector<12x640xf32>
    %c524_i32_190 = arith.constant 524 : i32
    %247 = tpu.dynamic_rotate %246 by %c524_i32_190 dim 1 : vector<12x640xf32>, i32 -> vector<12x640xf32>
    %248 = vector.extract_strided_slice %247 {offsets = [0, 0], sizes = [12, 512], strides = [1, 1]} : vector<12x640xf32> to vector<12x512xf32>
    %249 = arith.addf %243, %248 : vector<12x512xf32>
    %c0_191 = arith.constant 0 : index
    %c0_192 = arith.constant 0 : index
    %250 = vector.load %arg3[%c0_191, %c0_192] : memref<12x1xf32, #tpu.memory_space<vmem>>, vector<12x1xf32>
    %251 = vector.broadcast %250 : vector<12x1xf32> to vector<12x512xf32>
    %252 = arith.addf %249, %251 : vector<12x512xf32>
    %cst_193 = arith.constant 0.000000e+00 : f32
    %253 = vector.broadcast %cst_193 : f32 to vector<12x512xf32>
    %254 = arith.cmpf ogt, %252, %253 : vector<12x512xf32>
    %cst_194 = arith.constant 0.000000e+00 : f32
    %255 = vector.broadcast %cst_194 : f32 to vector<12x512xf32>
    %256 = arith.minimumf %252, %255 : vector<12x512xf32>
    %257 = math.exp %256 : vector<12x512xf32>
    %cst_195 = arith.constant 1.000000e+00 : f32
    %258 = vector.broadcast %cst_195 : f32 to vector<12x512xf32>
    %259 = arith.subf %257, %258 : vector<12x512xf32>
    %260 = arith.select %254, %252, %259 : vector<12x512xi1>, vector<12x512xf32>
    %c5_196 = arith.constant 5 : index
    %c0_197 = arith.constant 0 : index
    %c0_198 = arith.constant 0 : index
    %261 = vector.load %arg4[%c5_196, %c0_197, %c0_198] : memref<9x12x512xf32, #tpu.memory_space<vmem>>, vector<1x12x512xf32>
    %262 = vector.shape_cast %261 : vector<1x12x512xf32> to vector<12x512xf32>
    %263 = vector.shape_cast %260 : vector<12x512xf32> to vector<1x12x512xf32>
    tpu.vector_store %arg4[%c5_196, %c0_197, %c0_198], %263 {strides = array<i32>} : memref<9x12x512xf32, #tpu.memory_space<vmem>>, vector<1x12x512xf32>,
    %c6 = arith.constant 6 : index
    %c0_199 = arith.constant 0 : index
    %c0_200 = arith.constant 0 : index
    %264 = vector.load %arg1[%c6, %c0_199, %c0_200] : memref<9x21x640xbf16, #tpu.memory_space<vmem>>, vector<1x21x640xbf16>
    %265 = vector.shape_cast %264 : vector<1x21x640xbf16> to vector<21x640xbf16>
    %c0_201 = arith.constant 0 : index
    %c0_202 = arith.constant 0 : index
    %c0_203 = arith.constant 0 : index
    %266 = vector.load %arg2[%c0_201, %c0_202, %c0_203] : memref<5x12x21xbf16, #tpu.memory_space<vmem>>, vector<1x12x21xbf16>
    %267 = vector.shape_cast %266 : vector<1x12x21xbf16> to vector<12x21xbf16>
    %cst_204 = arith.constant dense<0.000000e+00> : vector<12x640xf32>
    %268 = tpu.matmul %267, %265, %cst_204 {dimension_numbers = #tpu.dot_dimension_numbers<[1], [0], [0], [1], [0, 0, 1, 1], [], []>} : vector<12x21xbf16>, vector<21x640xbf16>, vector<12x640xf32> -> vector<12x640xf32>
    %269 = vector.extract_strided_slice %268 {offsets = [0, 0], sizes = [12, 512], strides = [1, 1]} : vector<12x640xf32> to vector<12x512xf32>
    %c1_205 = arith.constant 1 : index
    %c0_206 = arith.constant 0 : index
    %c0_207 = arith.constant 0 : index
    %270 = vector.load %arg2[%c1_205, %c0_206, %c0_207] : memref<5x12x21xbf16, #tpu.memory_space<vmem>>, vector<1x12x21xbf16>
    %271 = vector.shape_cast %270 : vector<1x12x21xbf16> to vector<12x21xbf16>
    %cst_208 = arith.constant dense<0.000000e+00> : vector<12x640xf32>
    %272 = tpu.matmul %271, %265, %cst_208 {dimension_numbers = #tpu.dot_dimension_numbers<[1], [0], [0], [1], [0, 0, 1, 1], [], []>} : vector<12x21xbf16>, vector<21x640xbf16>, vector<12x640xf32> -> vector<12x640xf32>
    %c611_i32_209 = arith.constant 611 : i32
    %273 = tpu.dynamic_rotate %272 by %c611_i32_209 dim 1 : vector<12x640xf32>, i32 -> vector<12x640xf32>
    %274 = vector.extract_strided_slice %273 {offsets = [0, 0], sizes = [12, 512], strides = [1, 1]} : vector<12x640xf32> to vector<12x512xf32>
    %275 = arith.addf %269, %274 : vector<12x512xf32>
    %c2_210 = arith.constant 2 : index
    %c0_211 = arith.constant 0 : index
    %c0_212 = arith.constant 0 : index
    %276 = vector.load %arg2[%c2_210, %c0_211, %c0_212] : memref<5x12x21xbf16, #tpu.memory_space<vmem>>, vector<1x12x21xbf16>
    %277 = vector.shape_cast %276 : vector<1x12x21xbf16> to vector<12x21xbf16>
    %cst_213 = arith.constant dense<0.000000e+00> : vector<12x640xf32>
    %278 = tpu.matmul %277, %265, %cst_213 {dimension_numbers = #tpu.dot_dimension_numbers<[1], [0], [0], [1], [0, 0, 1, 1], [], []>} : vector<12x21xbf16>, vector<21x640xbf16>, vector<12x640xf32> -> vector<12x640xf32>
    %c582_i32_214 = arith.constant 582 : i32
    %279 = tpu.dynamic_rotate %278 by %c582_i32_214 dim 1 : vector<12x640xf32>, i32 -> vector<12x640xf32>
    %280 = vector.extract_strided_slice %279 {offsets = [0, 0], sizes = [12, 512], strides = [1, 1]} : vector<12x640xf32> to vector<12x512xf32>
    %281 = arith.addf %275, %280 : vector<12x512xf32>
    %c3_215 = arith.constant 3 : index
    %c0_216 = arith.constant 0 : index
    %c0_217 = arith.constant 0 : index
    %282 = vector.load %arg2[%c3_215, %c0_216, %c0_217] : memref<5x12x21xbf16, #tpu.memory_space<vmem>>, vector<1x12x21xbf16>
    %283 = vector.shape_cast %282 : vector<1x12x21xbf16> to vector<12x21xbf16>
    %cst_218 = arith.constant dense<0.000000e+00> : vector<12x640xf32>
    %284 = tpu.matmul %283, %265, %cst_218 {dimension_numbers = #tpu.dot_dimension_numbers<[1], [0], [0], [1], [0, 0, 1, 1], [], []>} : vector<12x21xbf16>, vector<21x640xbf16>, vector<12x640xf32> -> vector<12x640xf32>
    %c553_i32_219 = arith.constant 553 : i32
    %285 = tpu.dynamic_rotate %284 by %c553_i32_219 dim 1 : vector<12x640xf32>, i32 -> vector<12x640xf32>
    %286 = vector.extract_strided_slice %285 {offsets = [0, 0], sizes = [12, 512], strides = [1, 1]} : vector<12x640xf32> to vector<12x512xf32>
    %287 = arith.addf %281, %286 : vector<12x512xf32>
    %c4_220 = arith.constant 4 : index
    %c0_221 = arith.constant 0 : index
    %c0_222 = arith.constant 0 : index
    %288 = vector.load %arg2[%c4_220, %c0_221, %c0_222] : memref<5x12x21xbf16, #tpu.memory_space<vmem>>, vector<1x12x21xbf16>
    %289 = vector.shape_cast %288 : vector<1x12x21xbf16> to vector<12x21xbf16>
    %cst_223 = arith.constant dense<0.000000e+00> : vector<12x640xf32>
    %290 = tpu.matmul %289, %265, %cst_223 {dimension_numbers = #tpu.dot_dimension_numbers<[1], [0], [0], [1], [0, 0, 1, 1], [], []>} : vector<12x21xbf16>, vector<21x640xbf16>, vector<12x640xf32> -> vector<12x640xf32>
    %c524_i32_224 = arith.constant 524 : i32
    %291 = tpu.dynamic_rotate %290 by %c524_i32_224 dim 1 : vector<12x640xf32>, i32 -> vector<12x640xf32>
    %292 = vector.extract_strided_slice %291 {offsets = [0, 0], sizes = [12, 512], strides = [1, 1]} : vector<12x640xf32> to vector<12x512xf32>
    %293 = arith.addf %287, %292 : vector<12x512xf32>
    %c0_225 = arith.constant 0 : index
    %c0_226 = arith.constant 0 : index
    %294 = vector.load %arg3[%c0_225, %c0_226] : memref<12x1xf32, #tpu.memory_space<vmem>>, vector<12x1xf32>
    %295 = vector.broadcast %294 : vector<12x1xf32> to vector<12x512xf32>
    %296 = arith.addf %293, %295 : vector<12x512xf32>
    %cst_227 = arith.constant 0.000000e+00 : f32
    %297 = vector.broadcast %cst_227 : f32 to vector<12x512xf32>
    %298 = arith.cmpf ogt, %296, %297 : vector<12x512xf32>
    %cst_228 = arith.constant 0.000000e+00 : f32
    %299 = vector.broadcast %cst_228 : f32 to vector<12x512xf32>
    %300 = arith.minimumf %296, %299 : vector<12x512xf32>
    %301 = math.exp %300 : vector<12x512xf32>
    %cst_229 = arith.constant 1.000000e+00 : f32
    %302 = vector.broadcast %cst_229 : f32 to vector<12x512xf32>
    %303 = arith.subf %301, %302 : vector<12x512xf32>
    %304 = arith.select %298, %296, %303 : vector<12x512xi1>, vector<12x512xf32>
    %c6_230 = arith.constant 6 : index
    %c0_231 = arith.constant 0 : index
    %c0_232 = arith.constant 0 : index
    %305 = vector.load %arg4[%c6_230, %c0_231, %c0_232] : memref<9x12x512xf32, #tpu.memory_space<vmem>>, vector<1x12x512xf32>
    %306 = vector.shape_cast %305 : vector<1x12x512xf32> to vector<12x512xf32>
    %307 = vector.shape_cast %304 : vector<12x512xf32> to vector<1x12x512xf32>
    tpu.vector_store %arg4[%c6_230, %c0_231, %c0_232], %307 {strides = array<i32>} : memref<9x12x512xf32, #tpu.memory_space<vmem>>, vector<1x12x512xf32>,
    %c7 = arith.constant 7 : index
    %c0_233 = arith.constant 0 : index
    %c0_234 = arith.constant 0 : index
    %308 = vector.load %arg1[%c7, %c0_233, %c0_234] : memref<9x21x640xbf16, #tpu.memory_space<vmem>>, vector<1x21x640xbf16>
    %309 = vector.shape_cast %308 : vector<1x21x640xbf16> to vector<21x640xbf16>
    %c0_235 = arith.constant 0 : index
    %c0_236 = arith.constant 0 : index
    %c0_237 = arith.constant 0 : index
    %310 = vector.load %arg2[%c0_235, %c0_236, %c0_237] : memref<5x12x21xbf16, #tpu.memory_space<vmem>>, vector<1x12x21xbf16>
    %311 = vector.shape_cast %310 : vector<1x12x21xbf16> to vector<12x21xbf16>
    %cst_238 = arith.constant dense<0.000000e+00> : vector<12x640xf32>
    %312 = tpu.matmul %311, %309, %cst_238 {dimension_numbers = #tpu.dot_dimension_numbers<[1], [0], [0], [1], [0, 0, 1, 1], [], []>} : vector<12x21xbf16>, vector<21x640xbf16>, vector<12x640xf32> -> vector<12x640xf32>
    %313 = vector.extract_strided_slice %312 {offsets = [0, 0], sizes = [12, 512], strides = [1, 1]} : vector<12x640xf32> to vector<12x512xf32>
    %c1_239 = arith.constant 1 : index
    %c0_240 = arith.constant 0 : index
    %c0_241 = arith.constant 0 : index
    %314 = vector.load %arg2[%c1_239, %c0_240, %c0_241] : memref<5x12x21xbf16, #tpu.memory_space<vmem>>, vector<1x12x21xbf16>
    %315 = vector.shape_cast %314 : vector<1x12x21xbf16> to vector<12x21xbf16>
    %cst_242 = arith.constant dense<0.000000e+00> : vector<12x640xf32>
    %316 = tpu.matmul %315, %309, %cst_242 {dimension_numbers = #tpu.dot_dimension_numbers<[1], [0], [0], [1], [0, 0, 1, 1], [], []>} : vector<12x21xbf16>, vector<21x640xbf16>, vector<12x640xf32> -> vector<12x640xf32>
    %c611_i32_243 = arith.constant 611 : i32
    %317 = tpu.dynamic_rotate %316 by %c611_i32_243 dim 1 : vector<12x640xf32>, i32 -> vector<12x640xf32>
    %318 = vector.extract_strided_slice %317 {offsets = [0, 0], sizes = [12, 512], strides = [1, 1]} : vector<12x640xf32> to vector<12x512xf32>
    %319 = arith.addf %313, %318 : vector<12x512xf32>
    %c2_244 = arith.constant 2 : index
    %c0_245 = arith.constant 0 : index
    %c0_246 = arith.constant 0 : index
    %320 = vector.load %arg2[%c2_244, %c0_245, %c0_246] : memref<5x12x21xbf16, #tpu.memory_space<vmem>>, vector<1x12x21xbf16>
    %321 = vector.shape_cast %320 : vector<1x12x21xbf16> to vector<12x21xbf16>
    %cst_247 = arith.constant dense<0.000000e+00> : vector<12x640xf32>
    %322 = tpu.matmul %321, %309, %cst_247 {dimension_numbers = #tpu.dot_dimension_numbers<[1], [0], [0], [1], [0, 0, 1, 1], [], []>} : vector<12x21xbf16>, vector<21x640xbf16>, vector<12x640xf32> -> vector<12x640xf32>
    %c582_i32_248 = arith.constant 582 : i32
    %323 = tpu.dynamic_rotate %322 by %c582_i32_248 dim 1 : vector<12x640xf32>, i32 -> vector<12x640xf32>
    %324 = vector.extract_strided_slice %323 {offsets = [0, 0], sizes = [12, 512], strides = [1, 1]} : vector<12x640xf32> to vector<12x512xf32>
    %325 = arith.addf %319, %324 : vector<12x512xf32>
    %c3_249 = arith.constant 3 : index
    %c0_250 = arith.constant 0 : index
    %c0_251 = arith.constant 0 : index
    %326 = vector.load %arg2[%c3_249, %c0_250, %c0_251] : memref<5x12x21xbf16, #tpu.memory_space<vmem>>, vector<1x12x21xbf16>
    %327 = vector.shape_cast %326 : vector<1x12x21xbf16> to vector<12x21xbf16>
    %cst_252 = arith.constant dense<0.000000e+00> : vector<12x640xf32>
    %328 = tpu.matmul %327, %309, %cst_252 {dimension_numbers = #tpu.dot_dimension_numbers<[1], [0], [0], [1], [0, 0, 1, 1], [], []>} : vector<12x21xbf16>, vector<21x640xbf16>, vector<12x640xf32> -> vector<12x640xf32>
    %c553_i32_253 = arith.constant 553 : i32
    %329 = tpu.dynamic_rotate %328 by %c553_i32_253 dim 1 : vector<12x640xf32>, i32 -> vector<12x640xf32>
    %330 = vector.extract_strided_slice %329 {offsets = [0, 0], sizes = [12, 512], strides = [1, 1]} : vector<12x640xf32> to vector<12x512xf32>
    %331 = arith.addf %325, %330 : vector<12x512xf32>
    %c4_254 = arith.constant 4 : index
    %c0_255 = arith.constant 0 : index
    %c0_256 = arith.constant 0 : index
    %332 = vector.load %arg2[%c4_254, %c0_255, %c0_256] : memref<5x12x21xbf16, #tpu.memory_space<vmem>>, vector<1x12x21xbf16>
    %333 = vector.shape_cast %332 : vector<1x12x21xbf16> to vector<12x21xbf16>
    %cst_257 = arith.constant dense<0.000000e+00> : vector<12x640xf32>
    %334 = tpu.matmul %333, %309, %cst_257 {dimension_numbers = #tpu.dot_dimension_numbers<[1], [0], [0], [1], [0, 0, 1, 1], [], []>} : vector<12x21xbf16>, vector<21x640xbf16>, vector<12x640xf32> -> vector<12x640xf32>
    %c524_i32_258 = arith.constant 524 : i32
    %335 = tpu.dynamic_rotate %334 by %c524_i32_258 dim 1 : vector<12x640xf32>, i32 -> vector<12x640xf32>
    %336 = vector.extract_strided_slice %335 {offsets = [0, 0], sizes = [12, 512], strides = [1, 1]} : vector<12x640xf32> to vector<12x512xf32>
    %337 = arith.addf %331, %336 : vector<12x512xf32>
    %c0_259 = arith.constant 0 : index
    %c0_260 = arith.constant 0 : index
    %338 = vector.load %arg3[%c0_259, %c0_260] : memref<12x1xf32, #tpu.memory_space<vmem>>, vector<12x1xf32>
    %339 = vector.broadcast %338 : vector<12x1xf32> to vector<12x512xf32>
    %340 = arith.addf %337, %339 : vector<12x512xf32>
    %cst_261 = arith.constant 0.000000e+00 : f32
    %341 = vector.broadcast %cst_261 : f32 to vector<12x512xf32>
    %342 = arith.cmpf ogt, %340, %341 : vector<12x512xf32>
    %cst_262 = arith.constant 0.000000e+00 : f32
    %343 = vector.broadcast %cst_262 : f32 to vector<12x512xf32>
    %344 = arith.minimumf %340, %343 : vector<12x512xf32>
    %345 = math.exp %344 : vector<12x512xf32>
    %cst_263 = arith.constant 1.000000e+00 : f32
    %346 = vector.broadcast %cst_263 : f32 to vector<12x512xf32>
    %347 = arith.subf %345, %346 : vector<12x512xf32>
    %348 = arith.select %342, %340, %347 : vector<12x512xi1>, vector<12x512xf32>
    %c7_264 = arith.constant 7 : index
    %c0_265 = arith.constant 0 : index
    %c0_266 = arith.constant 0 : index
    %349 = vector.load %arg4[%c7_264, %c0_265, %c0_266] : memref<9x12x512xf32, #tpu.memory_space<vmem>>, vector<1x12x512xf32>
    %350 = vector.shape_cast %349 : vector<1x12x512xf32> to vector<12x512xf32>
    %351 = vector.shape_cast %348 : vector<12x512xf32> to vector<1x12x512xf32>
    tpu.vector_store %arg4[%c7_264, %c0_265, %c0_266], %351 {strides = array<i32>} : memref<9x12x512xf32, #tpu.memory_space<vmem>>, vector<1x12x512xf32>,
    %c8 = arith.constant 8 : index
    %c0_267 = arith.constant 0 : index
    %c0_268 = arith.constant 0 : index
    %352 = vector.load %arg1[%c8, %c0_267, %c0_268] : memref<9x21x640xbf16, #tpu.memory_space<vmem>>, vector<1x21x640xbf16>
    %353 = vector.shape_cast %352 : vector<1x21x640xbf16> to vector<21x640xbf16>
    %c0_269 = arith.constant 0 : index
    %c0_270 = arith.constant 0 : index
    %c0_271 = arith.constant 0 : index
    %354 = vector.load %arg2[%c0_269, %c0_270, %c0_271] : memref<5x12x21xbf16, #tpu.memory_space<vmem>>, vector<1x12x21xbf16>
    %355 = vector.shape_cast %354 : vector<1x12x21xbf16> to vector<12x21xbf16>
    %cst_272 = arith.constant dense<0.000000e+00> : vector<12x640xf32>
    %356 = tpu.matmul %355, %353, %cst_272 {dimension_numbers = #tpu.dot_dimension_numbers<[1], [0], [0], [1], [0, 0, 1, 1], [], []>} : vector<12x21xbf16>, vector<21x640xbf16>, vector<12x640xf32> -> vector<12x640xf32>
    %357 = vector.extract_strided_slice %356 {offsets = [0, 0], sizes = [12, 512], strides = [1, 1]} : vector<12x640xf32> to vector<12x512xf32>
    %c1_273 = arith.constant 1 : index
    %c0_274 = arith.constant 0 : index
    %c0_275 = arith.constant 0 : index
    %358 = vector.load %arg2[%c1_273, %c0_274, %c0_275] : memref<5x12x21xbf16, #tpu.memory_space<vmem>>, vector<1x12x21xbf16>
    %359 = vector.shape_cast %358 : vector<1x12x21xbf16> to vector<12x21xbf16>
    %cst_276 = arith.constant dense<0.000000e+00> : vector<12x640xf32>
    %360 = tpu.matmul %359, %353, %cst_276 {dimension_numbers = #tpu.dot_dimension_numbers<[1], [0], [0], [1], [0, 0, 1, 1], [], []>} : vector<12x21xbf16>, vector<21x640xbf16>, vector<12x640xf32> -> vector<12x640xf32>
    %c611_i32_277 = arith.constant 611 : i32
    %361 = tpu.dynamic_rotate %360 by %c611_i32_277 dim 1 : vector<12x640xf32>, i32 -> vector<12x640xf32>
    %362 = vector.extract_strided_slice %361 {offsets = [0, 0], sizes = [12, 512], strides = [1, 1]} : vector<12x640xf32> to vector<12x512xf32>
    %363 = arith.addf %357, %362 : vector<12x512xf32>
    %c2_278 = arith.constant 2 : index
    %c0_279 = arith.constant 0 : index
    %c0_280 = arith.constant 0 : index
    %364 = vector.load %arg2[%c2_278, %c0_279, %c0_280] : memref<5x12x21xbf16, #tpu.memory_space<vmem>>, vector<1x12x21xbf16>
    %365 = vector.shape_cast %364 : vector<1x12x21xbf16> to vector<12x21xbf16>
    %cst_281 = arith.constant dense<0.000000e+00> : vector<12x640xf32>
    %366 = tpu.matmul %365, %353, %cst_281 {dimension_numbers = #tpu.dot_dimension_numbers<[1], [0], [0], [1], [0, 0, 1, 1], [], []>} : vector<12x21xbf16>, vector<21x640xbf16>, vector<12x640xf32> -> vector<12x640xf32>
    %c582_i32_282 = arith.constant 582 : i32
    %367 = tpu.dynamic_rotate %366 by %c582_i32_282 dim 1 : vector<12x640xf32>, i32 -> vector<12x640xf32>
    %368 = vector.extract_strided_slice %367 {offsets = [0, 0], sizes = [12, 512], strides = [1, 1]} : vector<12x640xf32> to vector<12x512xf32>
    %369 = arith.addf %363, %368 : vector<12x512xf32>
    %c3_283 = arith.constant 3 : index
    %c0_284 = arith.constant 0 : index
    %c0_285 = arith.constant 0 : index
    %370 = vector.load %arg2[%c3_283, %c0_284, %c0_285] : memref<5x12x21xbf16, #tpu.memory_space<vmem>>, vector<1x12x21xbf16>
    %371 = vector.shape_cast %370 : vector<1x12x21xbf16> to vector<12x21xbf16>
    %cst_286 = arith.constant dense<0.000000e+00> : vector<12x640xf32>
    %372 = tpu.matmul %371, %353, %cst_286 {dimension_numbers = #tpu.dot_dimension_numbers<[1], [0], [0], [1], [0, 0, 1, 1], [], []>} : vector<12x21xbf16>, vector<21x640xbf16>, vector<12x640xf32> -> vector<12x640xf32>
    %c553_i32_287 = arith.constant 553 : i32
    %373 = tpu.dynamic_rotate %372 by %c553_i32_287 dim 1 : vector<12x640xf32>, i32 -> vector<12x640xf32>
    %374 = vector.extract_strided_slice %373 {offsets = [0, 0], sizes = [12, 512], strides = [1, 1]} : vector<12x640xf32> to vector<12x512xf32>
    %375 = arith.addf %369, %374 : vector<12x512xf32>
    %c4_288 = arith.constant 4 : index
    %c0_289 = arith.constant 0 : index
    %c0_290 = arith.constant 0 : index
    %376 = vector.load %arg2[%c4_288, %c0_289, %c0_290] : memref<5x12x21xbf16, #tpu.memory_space<vmem>>, vector<1x12x21xbf16>
    %377 = vector.shape_cast %376 : vector<1x12x21xbf16> to vector<12x21xbf16>
    %cst_291 = arith.constant dense<0.000000e+00> : vector<12x640xf32>
    %378 = tpu.matmul %377, %353, %cst_291 {dimension_numbers = #tpu.dot_dimension_numbers<[1], [0], [0], [1], [0, 0, 1, 1], [], []>} : vector<12x21xbf16>, vector<21x640xbf16>, vector<12x640xf32> -> vector<12x640xf32>
    %c524_i32_292 = arith.constant 524 : i32
    %379 = tpu.dynamic_rotate %378 by %c524_i32_292 dim 1 : vector<12x640xf32>, i32 -> vector<12x640xf32>
    %380 = vector.extract_strided_slice %379 {offsets = [0, 0], sizes = [12, 512], strides = [1, 1]} : vector<12x640xf32> to vector<12x512xf32>
    %381 = arith.addf %375, %380 : vector<12x512xf32>
    %c0_293 = arith.constant 0 : index
    %c0_294 = arith.constant 0 : index
    %382 = vector.load %arg3[%c0_293, %c0_294] : memref<12x1xf32, #tpu.memory_space<vmem>>, vector<12x1xf32>
    %383 = vector.broadcast %382 : vector<12x1xf32> to vector<12x512xf32>
    %384 = arith.addf %381, %383 : vector<12x512xf32>
    %cst_295 = arith.constant 0.000000e+00 : f32
    %385 = vector.broadcast %cst_295 : f32 to vector<12x512xf32>
    %386 = arith.cmpf ogt, %384, %385 : vector<12x512xf32>
    %cst_296 = arith.constant 0.000000e+00 : f32
    %387 = vector.broadcast %cst_296 : f32 to vector<12x512xf32>
    %388 = arith.minimumf %384, %387 : vector<12x512xf32>
    %389 = math.exp %388 : vector<12x512xf32>
    %cst_297 = arith.constant 1.000000e+00 : f32
    %390 = vector.broadcast %cst_297 : f32 to vector<12x512xf32>
    %391 = arith.subf %389, %390 : vector<12x512xf32>
    %392 = arith.select %386, %384, %391 : vector<12x512xi1>, vector<12x512xf32>
    %c8_298 = arith.constant 8 : index
    %c0_299 = arith.constant 0 : index
    %c0_300 = arith.constant 0 : index
    %393 = vector.load %arg4[%c8_298, %c0_299, %c0_300] : memref<9x12x512xf32, #tpu.memory_space<vmem>>, vector<1x12x512xf32>
    %394 = vector.shape_cast %393 : vector<1x12x512xf32> to vector<12x512xf32>
    %395 = vector.shape_cast %392 : vector<12x512xf32> to vector<1x12x512xf32>
    tpu.vector_store %arg4[%c8_298, %c0_299, %c0_300], %395 {strides = array<i32>} : memref<9x12x512xf32, #tpu.memory_space<vmem>>, vector<1x12x512xf32>,
    return
  }
  func.func @transform_0(%arg0: i32) -> (i32, i32, i32) {
    %c0_i32 = arith.constant 0 : i32
    %c0_i32_0 = arith.constant 0 : i32
    %c0_i32_1 = arith.constant 0 : i32
    return %arg0, %c0_i32, %c0_i32_0 : i32, i32, i32
  }
  func.func @transform_1(%arg0: i32) -> (i32, i32, i32) {
    %c0_i32 = arith.constant 0 : i32
    %c0_i32_0 = arith.constant 0 : i32
    %c0_i32_1 = arith.constant 0 : i32
    %c0_i32_2 = arith.constant 0 : i32
    return %c0_i32, %c0_i32_0, %c0_i32_1 : i32, i32, i32
  }
  func.func @transform_2(%arg0: i32) -> (i32, i32) {
    %c0_i32 = arith.constant 0 : i32
    %c0_i32_0 = arith.constant 0 : i32
    %c0_i32_1 = arith.constant 0 : i32
    return %c0_i32, %c0_i32_0 : i32, i32
  }
  func.func @transform_3(%arg0: i32) -> (i32, i32, i32) {
    %c0_i32 = arith.constant 0 : i32
    %c0_i32_0 = arith.constant 0 : i32
    %c0_i32_1 = arith.constant 0 : i32
    return %arg0, %c0_i32, %c0_i32_0 : i32, i32, i32
  }
}

</mosaic_0001>

<llo_original>
// kernel: tpu_custom_call.1
$region0: #{tpu_custom_call.1}
  #allocation0 [shape = 'u32[]', space=smem, size = 0x4, offset = 0x4, fixed_abs, tag = 'smem constant byte address 0x4 - core index']
  #allocation1 [shape = 'u32[144,128]{1,0:T(1,128)}', space=vmem, size = 0x12000, scoped, tag = 'internal scratch']
  %s0 = inlined_call_operand.hbm [shape: bf16[18,21,640], index: 0, kind: input, shape index: {}]
  %s1 = inlined_call_operand.hbm [shape: bf16[5,12,21], index: 1, kind: input, shape index: {}]
  %s2 = inlined_call_operand.vmem [shape: f32[12,1], index: 2, kind: input, shape index: {}]
  %s3 = inlined_call_operand.hbm [shape: f32[18,12,512], index: 3, kind: output, shape index: {}]
  %s4 = sld [smem:[#allocation0]]
  $region53: #{tpu_custom_call.1} parent=0
    _
  %s6 = ssub.s32 1, %s4
  %s7 = scalar_select 0, %s6, %s4
  $region1: #{tpu_custom_call.1} parent=0
    #allocation2 [shape = 'u8[552960]{0}', space=vmem, size = 0x87000, scoped, tag = 'input window, operand 0']
    #allocation3 [shape = 's32[2]{0}', space=sflag, size = 0x8, scoped, tag = 'scoped memory for tpu_custom_call.1']
    #allocation4 [shape = 's32[2]{0}', space=sflag, size = 0x8, scoped, tag = 'scoped memory for tpu_custom_call.1']
    #allocation5 [shape = 'u8[20480]{0}', space=vmem, size = 0x5000, scoped, tag = 'input window, operand 1, single buffered']
    #allocation6 [shape = 's32[1]{0}', space=sflag, size = 0x4, scoped, tag = 'scoped memory for tpu_custom_call.1']
    #allocation7 [shape = 'u8[589824]{0}', space=vmem, size = 0x90000, scoped, tag = 'output window, operand 0']
    %8 = vsyncpa [#allocation3], 0
    %s9 = scalar_lea.sflag [#allocation3], 1
    %10 = vsyncpa %s9, 0
    %11 = vsyncpa [#allocation6], 0
    %12 = vsyncpa [#allocation4], 0
    %s13 = scalar_lea.sflag [#allocation4], 1
    %14 = vsyncpa %s13, 0
    loop: start=0, step=1, limit=4
    $region2: #{tpu_custom_call.1} parent=1 // loop_pre_header
      _
    $region3: #{tpu_custom_call.1} parent=1 // loop_header
      %s16 = sphi 0, %s20
      %p17 = scmp.ge.s32.totalorder %s16, 4
      %s26 = sphi 0, %s28
      %s29 = sphi 0, %s26
      %s30 = sphi 0, %s29
      %s46 = sphi 0, %s30
      %s50 = sphi 0, %s50
      %s52 = sphi 0, %s50
      %s53 = sphi 0, %s52
      %s67 = sphi 0, %s53
      %s71 = sphi 0, %s71
      %s73 = sphi 0, %s71
      %s74 = sphi 0, %s73
      %s88 = sphi 0, %s74
      %s94 = sphi 0, %s96
      %s97 = sphi 0, %s94
      %s98 = sphi 0, %s97
      %s114 = sphi 0, %s98
    $region4: #{tpu_custom_call.1} parent=1 // loop_header_branch
      %19 = sbr.rel (%p17) target = $region8
    $region5: #{tpu_custom_call.1} parent=1 // loop_body
      %s21 = ssub.s32 %s16, 1
      %s22 = ssub.s32 %s16, 2
      %s23 = sadd.s32 %s16, 1
      %s24 = ssub.s32 %s16, %s23
      %p25 = scmp.eq.s32.totalorder %s24, 0
      %s27 = sadd.s32 %s26, 1
      %s28 = scalar_select %p25, %s26, %s27
      %p31 = pneg %p25
      %p32 = scmp.eq.s32.totalorder %s16, 1
      %p33 = por %p31, %p32
      %p34 = scmp.ne.s32.totalorder %s26, %s29
      %p35 = scmp.eq.s32.totalorder %s16, 0
      %p36 = por %p34, %p35
      %p37 = scmp.ne.s32.totalorder %s26, %s29
      %p38 = scmp.eq.s32.totalorder %s21, 1
      %p39 = por %p37, %p38
      %p40 = scmp.ne.s32.totalorder %s29, %s30
      %p41 = scmp.eq.s32.totalorder %s21, 0
      %p42 = por %p40, %p41
      %p43 = scmp.ne.s32.totalorder %s29, %s30
      %p44 = scmp.eq.s32.totalorder %s22, 1
      %p45 = por %p43, %p44
      %p47 = scmp.ne.s32.totalorder %s30, %s46
      %p48 = scmp.eq.s32.totalorder %s22, 0
      %p49 = por %p47, %p48
      %s51 = sadd.s32 %s50, 1
      %p54 = scmp.eq.s32.totalorder %s16, 1
      %p55 = scmp.ne.s32.totalorder %s50, %s52
      %p56 = scmp.eq.s32.totalorder %s16, 0
      %p57 = por %p55, %p56
      %p58 = scmp.ne.s32.totalorder %s50, %s52
      %p59 = scmp.eq.s32.totalorder %s21, 1
      %p60 = por %p58, %p59
      %p61 = scmp.ne.s32.totalorder %s52, %s53
      %p62 = scmp.eq.s32.totalorder %s21, 0
      %p63 = por %p61, %p62
      %p64 = scmp.ne.s32.totalorder %s52, %s53
      %p65 = scmp.eq.s32.totalorder %s22, 1
      %p66 = por %p64, %p65
      %p68 = scmp.ne.s32.totalorder %s53, %s67
      %p69 = scmp.eq.s32.totalorder %s22, 0
      %p70 = por %p68, %p69
      %s72 = sadd.s32 %s71, 1
      %p75 = scmp.eq.s32.totalorder %s16, 1
      %p76 = scmp.ne.s32.totalorder %s71, %s73
      %p77 = scmp.eq.s32.totalorder %s16, 0
      %p78 = por %p76, %p77
      %p79 = scmp.ne.s32.totalorder %s71, %s73
      %p80 = scmp.eq.s32.totalorder %s21, 1
      %p81 = por %p79, %p80
      %p82 = scmp.ne.s32.totalorder %s73, %s74
      %p83 = scmp.eq.s32.totalorder %s21, 0
      %p84 = por %p82, %p83
      %p85 = scmp.ne.s32.totalorder %s73, %s74
      %p86 = scmp.eq.s32.totalorder %s22, 1
      %p87 = por %p85, %p86
      %p89 = scmp.ne.s32.totalorder %s74, %s88
      %p90 = scmp.eq.s32.totalorder %s22, 0
      %p91 = por %p89, %p90
      %s92 = ssub.s32 %s16, %s23
      %p93 = scmp.eq.s32.totalorder %s92, 0
      %s95 = sadd.s32 %s94, 1
      %s96 = scalar_select %p93, %s94, %s95
      %p99 = pneg %p93
      %p100 = scmp.eq.s32.totalorder %s16, 1
      %p101 = por %p99, %p100
      %p102 = scmp.ne.s32.totalorder %s94, %s97
      %p103 = scmp.eq.s32.totalorder %s16, 0
      %p104 = por %p102, %p103
      %p105 = scmp.ne.s32.totalorder %s94, %s97
      %p106 = scmp.eq.s32.totalorder %s21, 1
      %p107 = por %p105, %p106
      %p108 = scmp.ne.s32.totalorder %s97, %s98
      %p109 = scmp.eq.s32.totalorder %s21, 0
      %p110 = por %p108, %p109
      %p111 = scmp.ne.s32.totalorder %s97, %s98
      %p112 = scmp.eq.s32.totalorder %s22, 1
      %p113 = por %p111, %p112
      %p115 = scmp.ne.s32.totalorder %s98, %s114
      %p116 = scmp.eq.s32.totalorder %s22, 0
      %p117 = por %p115, %p116
      %p118 = scmp.le.s32.totalorder 1, %s16
      %p119 = scmp.lt.s32.totalorder %s16, 3
      %p120 = pnand %p118, %p119
      %p121 = pneg %p120
      // Predicated region
      $region9: #{tpu_custom_call.1} parent=5 // pred_check
        _
      $region10: #{tpu_custom_call.1} parent=5 // pred_check_branch
        %123 = sbr.rel (%p120) target = $region12
      $region11: #{tpu_custom_call.1} parent=5 // pred_region
        %s124 = ssub.s32 %s16, 1
        // Predicated region
        $region13: #{tpu_custom_call.1} parent=11 // pred_check
          %p125 = pneg %p63
        $region14: #{tpu_custom_call.1} parent=11 // pred_check_branch
          %127 = sbr.rel (%p125) target = $region16
        $region15: #{tpu_custom_call.1} parent=11 // pred_region
          %s129 = ssub.s32 640, 640
          %130 = vsyncadd [#allocation6], %s129
          %s131 = sshll.u32 [#allocation5], 4
          %s132 = int_to_ptr.vmem [resolvable:$true] %s131
          %137 = dma.hbm_to_vmem [thread:$0]  %s1, 640, %s132, [#allocation6], 64, 64, 4
        $region16: #{tpu_custom_call.1} parent=11 // pred_fallthru
          _
        // Predicated region
        $region17: #{tpu_custom_call.1} parent=11 // pred_check
          %p138 = pneg %p84
        $region18: #{tpu_custom_call.1} parent=11 // pred_check_branch
          %140 = sbr.rel (%p138) target = $region20
        $region19: #{tpu_custom_call.1} parent=11 // pred_region
          _
        $region20: #{tpu_custom_call.1} parent=11 // pred_fallthru
          _
      $region12: #{tpu_custom_call.1} parent=5 // pred_fallthru
        _
      %p141 = scmp.lt.s32.totalorder %s16, 2
      // Predicated region
      $region21: #{tpu_custom_call.1} parent=5 // pred_check
        %p142 = pneg %p141
      $region22: #{tpu_custom_call.1} parent=5 // pred_check_branch
        %144 = sbr.rel (%p142) target = $region24
      $region23: #{tpu_custom_call.1} parent=5 // pred_region
        // Predicated region
        $region25: #{tpu_custom_call.1} parent=23 // pred_check
          %p145 = pneg %p36
        $region26: #{tpu_custom_call.1} parent=23 // pred_check_branch
          %147 = sbr.rel (%p145) target = $region28
        $region27: #{tpu_custom_call.1} parent=23 // pred_region
          %s148 = sand.u32 %s26, 1
          %s149 = scalar_lea.sflag [#allocation3], %s148
          %s150 = sand.u32 %s26, 1
          %s151 = smul.addr %s150, 540
          %s152 = scalar_lea.vmem [#allocation2], %s151
          %s153 = smul.u32 9, %s16
          %s155 = ssub.s32 8640, 8640
          %156 = vsyncadd %s149, %s155
          %s157 = smul.addr %s153, 15
          %s158 = smul.addr %s157, 64
          %s159 = scalar_lea.hbm %s0, %s158
          %s160 = sshll.u32 %s152, 4
          %s161 = int_to_ptr.vmem [resolvable:$true] %s160
          %166 = dma.hbm_to_vmem [thread:$0]  %s159, 8640, %s161, %s149, 320, 320, 20
        $region28: #{tpu_custom_call.1} parent=23 // pred_fallthru
          _
      $region24: #{tpu_custom_call.1} parent=5 // pred_fallthru
        _
      %p167 = scmp.le.s32.totalorder 1, %s16
      %p168 = scmp.lt.s32.totalorder %s16, 3
      %p169 = pnand %p167, %p168
      %p170 = pneg %p169
      // Predicated region
      $region29: #{tpu_custom_call.1} parent=5 // pred_check
        _
      $region30: #{tpu_custom_call.1} parent=5 // pred_check_branch
        %172 = sbr.rel (%p169) target = $region32
      $region31: #{tpu_custom_call.1} parent=5 // pred_region
        %s173 = ssub.s32 %s16, 1
        %s174 = sand.u32 %s29, 1
        %s175 = scalar_lea.sflag [#allocation3], %s174
        %s176 = sand.u32 %s29, 1
        %s177 = smul.addr %s176, 540
        %s178 = scalar_lea.vmem [#allocation2], %s177
        // Predicated region
        $region33: #{tpu_custom_call.1} parent=31 // pred_check
          %p179 = pneg %p42
        $region34: #{tpu_custom_call.1} parent=31 // pred_check_branch
          %181 = sbr.rel (%p179) target = $region36
        $region35: #{tpu_custom_call.1} parent=31 // pred_region
          %182 = dma.done %s175, 8640
        $region36: #{tpu_custom_call.1} parent=31 // pred_fallthru
          _
        // Predicated region
        $region37: #{tpu_custom_call.1} parent=31 // pred_check
          %p183 = pneg %p63
        $region38: #{tpu_custom_call.1} parent=31 // pred_check_branch
          %185 = sbr.rel (%p183) target = $region40
        $region39: #{tpu_custom_call.1} parent=31 // pred_region
          %186 = dma.done [#allocation6], 640
        $region40: #{tpu_custom_call.1} parent=31 // pred_fallthru
          _
        %s187 = sand.u32 %s29, 1
        %s188 = scalar_lea.sflag [#allocation3], %s187
        %s189 = sand.u32 %s29, 1
        %s190 = smul.addr %s189, 540
        %s191 = scalar_lea.vmem [#allocation2], %s190
        %p192 = pneg %p42
        %p193 = pneg %p39
        %p194 = pneg %p63
        %p195 = pneg %p60
        %p196 = pneg %p84
        %p197 = pneg %p81
        %p198 = pneg %p110
        %p199 = pneg %p107
        %s200 = sand.u32 %s97, 1
        %s201 = scalar_lea.sflag [#allocation4], %s200
        %s202 = sand.u32 %s97, 1
        %s203 = smul.addr %s202, 576
        %s204 = scalar_lea.vmem [#allocation7], %s203
        %s205 = smul.u32 9, %s21
        %s206 = smul.u32 9, %s21
        %v208 = vld [vmem:[%s178] sm:$0xff]
        %v209 = vld [vmem:[%s178 + $0x8] sm:$0xff]
        %v210 = vld [vmem:[%s178 + $0x10] sm:$0xf]
        %v211 = vld [vmem:[%s178 + $0x14] sm:$0xff]
        %v212 = vld [vmem:[%s178 + $0x1c] sm:$0xff]
        %v213 = vld [vmem:[%s178 + $0x24] sm:$0xf]
        %v214 = vld [vmem:[%s178 + $0x28] sm:$0x77]
        %v215 = vld [vmem:[%s178 + $0x30] sm:$0x77]
        %v216 = vld [vmem:[%s178 + $0x38] sm:$0x7]
        %v217 = vld [vmem:[#allocation5] sm:$0xf]
        %v218 = vld [vmem:[#allocation5 + $0x4] sm:$0x3]
        %v221 = vunpack.c.l.b16 %v217
        %v222 = vunpack.c.l.b16 %v218
        %v223 = vpack.c.b16 %v222, %v221
        %v230 = vunpack.c.l.b16 %v208
        %v231 = vunpack.c.h.b16 %v208
        %v232 = vunpack.c.l.b16 %v209
        %v233 = vunpack.c.h.b16 %v209
        %v234 = vunpack.c.l.b16 %v211
        %v235 = vunpack.c.h.b16 %v211
        %v236 = vunpack.c.l.b16 %v212
        %v237 = vunpack.c.h.b16 %v212
        %v238 = vunpack.c.l.b16 %v214
        %v239 = vunpack.c.h.b16 %v214
        %v240 = vunpack.c.l.b16 %v215
        %v241 = vunpack.c.h.b16 %v215
        %v242 = vpack.c.b16 %v234, %v230
        %v243 = vpack.c.b16 %v235, %v231
        %v244 = vpack.c.b16 %v236, %v232
        %v245 = vpack.c.b16 %v237, %v233
        %v246 = vpack.c.b16 %v238, %v238
        %v247 = vpack.c.b16 %v239, %v239
        %v248 = vpack.c.b16 %v240, %v240
        %v249 = vpack.c.b16 %v241, %v241
        %vm254 = vcmask 171008
        %v256 = vsel %vm254, %v223, 0
        %vm258 = vcmask 1041408
        %vm259 = vcmask 1042432
        %v260 = vsel %vm258, 4294967295, 65535
        %v261 = vsel %vm259, %v260, 0
        %v263 = vand.u32 %v246, %v261
        %v266 = vand.u32 %v247, %v261
        %v269 = vand.u32 %v248, %v261
        %v272 = vand.u32 %v249, %v261
        %274 = vmatprep.subr.bf16.mxu0 %v243
        %275 = vmatpush1.bf16.msra.mxu0 %v242
        %276 = vmatprep.subr.bf16.mxu0 %v266
        %277 = vmatpush1.bf16.msra.mxu0 %v263
        %278 = vmatprep.subr.bf16.mxu0 0
        %279 = vmatpush1.bf16.msra.mxu0 0
        %280 = vmatprep.subr.bf16.mxu0 0
        %281 = vmatpush1.bf16.msra.mxu0 0
        %282 = vmatprep.subr.bf16.mxu0 0
        %283 = vmatpush1.bf16.msra.mxu0 0
        %284 = vmatprep.subr.bf16.mxu0 0
        %285 = vmatpush1.bf16.msra.mxu0 0
        %286 = vmatprep.subr.bf16.mxu0 0
        %287 = vmatpush1.bf16.msra.mxu0 0
        %288 = vmatprep.subr.bf16.mxu0 0
        %289 = vmatpush1.bf16.msra.mxu0 0
        %290 = vmatprep.subr.bf16.mxu0 0
        %291 = vmatpush1.bf16.msra.mxu0 0
        %292 = vmatprep.subr.bf16.mxu0 0
        %293 = vmatpush1.bf16.msra.mxu0 0
        %294 = vmatprep.subr.bf16.mxu0 0
        %295 = vmatpush1.bf16.msra.mxu0 0
        %296 = vmatprep.subr.bf16.mxu0 0
        %297 = vmatpush1.bf16.msra.mxu0 0
        %298 = vmatprep.subr.bf16.mxu0 0
        %299 = vmatpush1.bf16.msra.mxu0 0
        %300 = vmatprep.subr.bf16.mxu0 0
        %301 = vmatpush1.bf16.msra.mxu0 0
        %302 = vmatprep.subr.bf16.mxu0 0
        %303 = vmatpush1.bf16.msra.mxu0 0
        %304 = vmatprep.subr.bf16.mxu0 0
        %305 = vmatpush1.bf16.msra.mxu0 0
        %306 = vmatprep.mubr.bf16.mxu0 0
        %307 = vmatmul.mubr.bf16.gmra.mrb[0].mxu0 %v256
        %v308 = vpop.f32.mrb[0].mxu0
        %v309 = vadd.f32 0.0, %v308
        %v310 = vpop.f32.mrb[0].mxu0
        %v311 = vadd.f32 0.0, %v310
        %v312 = vpop.f32.mrb[0].mxu0
        %v313 = vadd.f32 0.0, %v312
        %v314 = vpop.f32.mrb[0].mxu0
        %v315 = vadd.f32 0.0, %v314
        %316 = vdwg.mxu0
        %317 = vmatprep.subr.bf16.mxu0 %v245
        %318 = vmatpush1.bf16.msra.mxu0 %v244
        %319 = vmatprep.subr.bf16.mxu0 %v272
        %320 = vmatpush1.bf16.msra.mxu0 %v269
        %321 = vmatprep.subr.bf16.mxu0 0
        %322 = vmatpush1.bf16.msra.mxu0 0
        %323 = vmatprep.subr.bf16.mxu0 0
        %324 = vmatpush1.bf16.msra.mxu0 0
        %325 = vmatprep.subr.bf16.mxu0 0
        %326 = vmatpush1.bf16.msra.mxu0 0
        %327 = vmatprep.subr.bf16.mxu0 0
        %328 = vmatpush1.bf16.msra.mxu0 0
        %329 = vmatprep.subr.bf16.mxu0 0
        %330 = vmatpush1.bf16.msra.mxu0 0
        %331 = vmatprep.subr.bf16.mxu0 0
        %332 = vmatpush1.bf16.msra.mxu0 0
        %333 = vmatprep.subr.bf16.mxu0 0
        %334 = vmatpush1.bf16.msra.mxu0 0
        %335 = vmatprep.subr.bf16.mxu0 0
        %336 = vmatpush1.bf16.msra.mxu0 0
        %337 = vmatprep.subr.bf16.mxu0 0
        %338 = vmatpush1.bf16.msra.mxu0 0
        %339 = vmatprep.subr.bf16.mxu0 0
        %340 = vmatpush1.bf16.msra.mxu0 0
        %341 = vmatprep.subr.bf16.mxu0 0
        %342 = vmatpush1.bf16.msra.mxu0 0
        %343 = vmatprep.subr.bf16.mxu0 0
        %344 = vmatpush1.bf16.msra.mxu0 0
        %345 = vmatprep.subr.bf16.mxu0 0
        %346 = vmatpush1.bf16.msra.mxu0 0
        %347 = vmatprep.subr.bf16.mxu0 0
        %348 = vmatpush1.bf16.msra.mxu0 0
        %349 = vmatprep.mubr.bf16.mxu0 0
        %350 = vmatmul.mubr.bf16.gmra.mrb[0].mxu0 %v256
        %v351 = vpop.f32.mrb[0].mxu0
        %v352 = vadd.f32 0.0, %v351
        %v353 = vpop.f32.mrb[0].mxu0
        %v354 = vadd.f32 0.0, %v353
        %v355 = vpop.f32.mrb[0].mxu0
        %v356 = vadd.f32 0.0, %v355
        %v357 = vpop.f32.mrb[0].mxu0
        %v358 = vadd.f32 0.0, %v357
        %359 = vdwg.mxu0
        %s360 = scalar_lea.vmem [#allocation5], 8
        %v361 = vld [vmem:[%s360] sm:$0xf]
        %v362 = vld [vmem:[%s360 + $0x4] sm:$0x3]
        %v365 = vunpack.c.l.b16 %v361
        %v366 = vunpack.c.l.b16 %v362
        %v367 = vpack.c.b16 %v366, %v365
        %v371 = vunpack.c.l.b16 %v210
        %v372 = vunpack.c.l.b16 %v213
        %v373 = vunpack.c.l.b16 %v216
        %v374 = vpack.c.b16 %v372, %v371
        %v375 = vpack.c.b16 %v373, %v373
        %v378 = vsel %vm254, %v367, 0
        %v381 = vand.u32 %v375, %v261
        %383 = vmatprep.subr.bf16.mxu0 %v243
        %384 = vmatpush1.bf16.msra.mxu0 %v242
        %385 = vmatprep.subr.bf16.mxu0 %v266
        %386 = vmatpush1.bf16.msra.mxu0 %v263
        %387 = vmatprep.subr.bf16.mxu0 0
        %388 = vmatpush1.bf16.msra.mxu0 0
        %389 = vmatprep.subr.bf16.mxu0 0
        %390 = vmatpush1.bf16.msra.mxu0 0
        %391 = vmatprep.subr.bf16.mxu0 0
        %392 = vmatpush1.bf16.msra.mxu0 0
        %393 = vmatprep.subr.bf16.mxu0 0
        %394 = vmatpush1.bf16.msra.mxu0 0
        %395 = vmatprep.subr.bf16.mxu0 0
        %396 = vmatpush1.bf16.msra.mxu0 0
        %397 = vmatprep.subr.bf16.mxu0 0
        %398 = vmatpush1.bf16.msra.mxu0 0
        %399 = vmatprep.subr.bf16.mxu0 0
        %400 = vmatpush1.bf16.msra.mxu0 0
        %401 = vmatprep.subr.bf16.mxu0 0
        %402 = vmatpush1.bf16.msra.mxu0 0
        %403 = vmatprep.subr.bf16.mxu0 0
        %404 = vmatpush1.bf16.msra.mxu0 0
        %405 = vmatprep.subr.bf16.mxu0 0
        %406 = vmatpush1.bf16.msra.mxu0 0
        %407 = vmatprep.subr.bf16.mxu0 0
        %408 = vmatpush1.bf16.msra.mxu0 0
        %409 = vmatprep.subr.bf16.mxu0 0
        %410 = vmatpush1.bf16.msra.mxu0 0
        %411 = vmatprep.subr.bf16.mxu0 0
        %412 = vmatpush1.bf16.msra.mxu0 0
        %413 = vmatprep.subr.bf16.mxu0 0
        %414 = vmatpush1.bf16.msra.mxu0 0
        %415 = vmatprep.mubr.bf16.mxu0 0
        %416 = vmatmul.mubr.bf16.gmra.mrb[0].mxu0 %v378
        %v417 = vpop.f32.mrb[0].mxu0
        %v418 = vadd.f32 0.0, %v417
        %v419 = vpop.f32.mrb[0].mxu0
        %v420 = vadd.f32 0.0, %v419
        %v421 = vpop.f32.mrb[0].mxu0
        %v422 = vadd.f32 0.0, %v421
        %v423 = vpop.f32.mrb[0].mxu0
        %v424 = vadd.f32 0.0, %v423
        %425 = vdwg.mxu0
        %426 = vmatprep.subr.bf16.mxu0 %v245
        %427 = vmatpush1.bf16.msra.mxu0 %v244
        %428 = vmatprep.subr.bf16.mxu0 %v272
        %429 = vmatpush1.bf16.msra.mxu0 %v269
        %430 = vmatprep.subr.bf16.mxu0 0
        %431 = vmatpush1.bf16.msra.mxu0 0
        %432 = vmatprep.subr.bf16.mxu0 0
        %433 = vmatpush1.bf16.msra.mxu0 0
        %434 = vmatprep.subr.bf16.mxu0 0
        %435 = vmatpush1.bf16.msra.mxu0 0
        %436 = vmatprep.subr.bf16.mxu0 0
        %437 = vmatpush1.bf16.msra.mxu0 0
        %438 = vmatprep.subr.bf16.mxu0 0
        %439 = vmatpush1.bf16.msra.mxu0 0
        %440 = vmatprep.subr.bf16.mxu0 0
        %441 = vmatpush1.bf16.msra.mxu0 0
        %442 = vmatprep.subr.bf16.mxu0 0
        %443 = vmatpush1.bf16.msra.mxu0 0
        %444 = vmatprep.subr.bf16.mxu0 0
        %445 = vmatpush1.bf16.msra.mxu0 0
        %446 = vmatprep.subr.bf16.mxu0 0
        %447 = vmatpush1.bf16.msra.mxu0 0
        %448 = vmatprep.subr.bf16.mxu0 0
        %449 = vmatpush1.bf16.msra.mxu0 0
        %450 = vmatprep.subr.bf16.mxu0 0
        %451 = vmatpush1.bf16.msra.mxu0 0
        %452 = vmatprep.subr.bf16.mxu0 0
        %453 = vmatpush1.bf16.msra.mxu0 0
        %454 = vmatprep.subr.bf16.mxu0 0
        %455 = vmatpush1.bf16.msra.mxu0 0
        %456 = vmatprep.subr.bf16.mxu0 0
        %457 = vmatpush1.bf16.msra.mxu0 0
        %458 = vmatprep.mubr.bf16.mxu0 0
        %459 = vmatmul.mubr.bf16.gmra.mrb[0].mxu0 %v378
        %v460 = vpop.f32.mrb[0].mxu0
        %v461 = vadd.f32 0.0, %v460
        %v462 = vpop.f32.mrb[0].mxu0
        %v463 = vadd.f32 0.0, %v462
        %v464 = vpop.f32.mrb[0].mxu0
        %v465 = vadd.f32 0.0, %v464
        %v466 = vpop.f32.mrb[0].mxu0
        %v467 = vadd.f32 0.0, %v466
        %468 = vdwg.mxu0
        %469 = vmatprep.subr.bf16.mxu0 0
        %470 = vmatpush1.bf16.msra.mxu0 %v374
        %471 = vmatprep.subr.bf16.mxu0 0
        %472 = vmatpush1.bf16.msra.mxu0 %v381
        %473 = vmatprep.subr.bf16.mxu0 0
        %474 = vmatpush1.bf16.msra.mxu0 0
        %475 = vmatprep.subr.bf16.mxu0 0
        %476 = vmatpush1.bf16.msra.mxu0 0
        %477 = vmatprep.subr.bf16.mxu0 0
        %478 = vmatpush1.bf16.msra.mxu0 0
        %479 = vmatprep.subr.bf16.mxu0 0
        %480 = vmatpush1.bf16.msra.mxu0 0
        %481 = vmatprep.subr.bf16.mxu0 0
        %482 = vmatpush1.bf16.msra.mxu0 0
        %483 = vmatprep.subr.bf16.mxu0 0
        %484 = vmatpush1.bf16.msra.mxu0 0
        %485 = vmatprep.subr.bf16.mxu0 0
        %486 = vmatpush1.bf16.msra.mxu0 0
        %487 = vmatprep.subr.bf16.mxu0 0
        %488 = vmatpush1.bf16.msra.mxu0 0
        %489 = vmatprep.subr.bf16.mxu0 0
        %490 = vmatpush1.bf16.msra.mxu0 0
        %491 = vmatprep.subr.bf16.mxu0 0
        %492 = vmatpush1.bf16.msra.mxu0 0
        %493 = vmatprep.subr.bf16.mxu0 0
        %494 = vmatpush1.bf16.msra.mxu0 0
        %495 = vmatprep.subr.bf16.mxu0 0
        %496 = vmatpush1.bf16.msra.mxu0 0
        %497 = vmatprep.subr.bf16.mxu0 0
        %498 = vmatpush1.bf16.msra.mxu0 0
        %499 = vmatprep.subr.bf16.mxu0 0
        %500 = vmatpush1.bf16.msra.mxu0 0
        %501 = vmatprep.mubr.bf16.mxu0 0
        %502 = vmatmul.mubr.bf16.gmra.mrb[0].mxu0 %v378
        %v503 = vpop.f32.mrb[0].mxu0
        %v504 = vadd.f32 0.0, %v503
        %v505 = vpop.f32.mrb[0].mxu0
        %v506 = vpop.f32.mrb[0].mxu0
        %v507 = vadd.f32 0.0, %v506
        %v508 = vpop.f32.mrb[0].mxu0
        %509 = vdwg.mxu0
        %510 = vrot.lane.b32.xlu0 %v418, 99
        %v511 = vpop.permute.xlu0 %510
        %512 = vrot.lane.b32.xlu0 %v422, 99
        %v513 = vpop.permute.xlu0 %512
        %514 = vrot.lane.b32.xlu0 %v420, 99
        %v515 = vpop.permute.xlu0 %514
        %516 = vrot.lane.b32.xlu0 %v424, 99
        %v517 = vpop.permute.xlu0 %516
        %518 = vrot.lane.b32.xlu0 %v461, 99
        %v519 = vpop.permute.xlu0 %518
        %520 = vrot.lane.b32.xlu0 %v465, 99
        %v521 = vpop.permute.xlu0 %520
        %522 = vrot.lane.b32.xlu0 %v463, 99
        %v523 = vpop.permute.xlu0 %522
        %524 = vrot.lane.b32.xlu0 %v467, 99
        %v525 = vpop.permute.xlu0 %524
        %526 = vrot.lane.b32.xlu0 %v504, 99
        %v527 = vpop.permute.xlu0 %526
        %528 = vrot.lane.b32.xlu0 %v507, 99
        %v529 = vpop.permute.xlu0 %528
        %v530 = vlaneseq
        %v531 = vand.u32 %v530, 127
        %vm532 = vcmp.lt.s32.totalorder %v531, 99
        %v533 = vsel %vm532, %v523, %v527
        %v534 = vsel %vm532, %v525, %v529
        %v535 = vsel %vm532, %v519, %v523
        %v536 = vsel %vm532, %v521, %v525
        %v537 = vsel %vm532, %v515, %v519
        %v538 = vsel %vm532, %v517, %v521
        %v539 = vsel %vm532, %v511, %v515
        %v540 = vsel %vm532, %v513, %v517
        %v541 = vadd.f32 %v309, %v539
        %v542 = vadd.f32 %v311, %v537
        %v543 = vadd.f32 %v352, %v535
        %v544 = vadd.f32 %v354, %v533
        %v545 = vadd.f32 %v313, %v540
        %v546 = vadd.f32 %v315, %v538
        %v547 = vadd.f32 %v356, %v536
        %v548 = vadd.f32 %v358, %v534
        %s549 = scalar_lea.vmem [#allocation5], 16
        %v550 = vld [vmem:[%s549] sm:$0xf]
        %v551 = vld [vmem:[%s549 + $0x4] sm:$0x3]
        %v554 = vunpack.c.l.b16 %v550
        %v555 = vunpack.c.l.b16 %v551
        %v556 = vpack.c.b16 %v555, %v554
        %v558 = vsel %vm254, %v556, 0
        %560 = vmatprep.subr.bf16.mxu0 %v243
        %561 = vmatpush1.bf16.msra.mxu0 %v242
        %562 = vmatprep.subr.bf16.mxu0 %v266
        %563 = vmatpush1.bf16.msra.mxu0 %v263
        %564 = vmatprep.subr.bf16.mxu0 0
        %565 = vmatpush1.bf16.msra.mxu0 0
        %566 = vmatprep.subr.bf16.mxu0 0
        %567 = vmatpush1.bf16.msra.mxu0 0
        %568 = vmatprep.subr.bf16.mxu0 0
        %569 = vmatpush1.bf16.msra.mxu0 0
        %570 = vmatprep.subr.bf16.mxu0 0
        %571 = vmatpush1.bf16.msra.mxu0 0
        %572 = vmatprep.subr.bf16.mxu0 0
        %573 = vmatpush1.bf16.msra.mxu0 0
        %574 = vmatprep.subr.bf16.mxu0 0
        %575 = vmatpush1.bf16.msra.mxu0 0
        %576 = vmatprep.subr.bf16.mxu0 0
        %577 = vmatpush1.bf16.msra.mxu0 0
        %578 = vmatprep.subr.bf16.mxu0 0
        %579 = vmatpush1.bf16.msra.mxu0 0
        %580 = vmatprep.subr.bf16.mxu0 0
        %581 = vmatpush1.bf16.msra.mxu0 0
        %582 = vmatprep.subr.bf16.mxu0 0
        %583 = vmatpush1.bf16.msra.mxu0 0
        %584 = vmatprep.subr.bf16.mxu0 0
        %585 = vmatpush1.bf16.msra.mxu0 0
        %586 = vmatprep.subr.bf16.mxu0 0
        %587 = vmatpush1.bf16.msra.mxu0 0
        %588 = vmatprep.subr.bf16.mxu0 0
        %589 = vmatpush1.bf16.msra.mxu0 0
        %590 = vmatprep.subr.bf16.mxu0 0
        %591 = vmatpush1.bf16.msra.mxu0 0
        %592 = vmatprep.mubr.bf16.mxu0 0
        %593 = vmatmul.mubr.bf16.gmra.mrb[0].mxu0 %v558
        %v594 = vpop.f32.mrb[0].mxu0
        %v595 = vadd.f32 0.0, %v594
        %v596 = vpop.f32.mrb[0].mxu0
        %v597 = vadd.f32 0.0, %v596
        %v598 = vpop.f32.mrb[0].mxu0
        %v599 = vadd.f32 0.0, %v598
        %v600 = vpop.f32.mrb[0].mxu0
        %v601 = vadd.f32 0.0, %v600
        %602 = vdwg.mxu0
        %603 = vmatprep.subr.bf16.mxu0 %v245
        %604 = vmatpush1.bf16.msra.mxu0 %v244
        %605 = vmatprep.subr.bf16.mxu0 %v272
        %606 = vmatpush1.bf16.msra.mxu0 %v269
        %607 = vmatprep.subr.bf16.mxu0 0
        %608 = vmatpush1.bf16.msra.mxu0 0
        %609 = vmatprep.subr.bf16.mxu0 0
        %610 = vmatpush1.bf16.msra.mxu0 0
        %611 = vmatprep.subr.bf16.mxu0 0
        %612 = vmatpush1.bf16.msra.mxu0 0
        %613 = vmatprep.subr.bf16.mxu0 0
        %614 = vmatpush1.bf16.msra.mxu0 0
        %615 = vmatprep.subr.bf16.mxu0 0
        %616 = vmatpush1.bf16.msra.mxu0 0
        %617 = vmatprep.subr.bf16.mxu0 0
        %618 = vmatpush1.bf16.msra.mxu0 0
        %619 = vmatprep.subr.bf16.mxu0 0
        %620 = vmatpush1.bf16.msra.mxu0 0
        %621 = vmatprep.subr.bf16.mxu0 0
        %622 = vmatpush1.bf16.msra.mxu0 0
        %623 = vmatprep.subr.bf16.mxu0 0
        %624 = vmatpush1.bf16.msra.mxu0 0
        %625 = vmatprep.subr.bf16.mxu0 0
        %626 = vmatpush1.bf16.msra.mxu0 0
        %627 = vmatprep.subr.bf16.mxu0 0
        %628 = vmatpush1.bf16.msra.mxu0 0
        %629 = vmatprep.subr.bf16.mxu0 0
        %630 = vmatpush1.bf16.msra.mxu0 0
        %631 = vmatprep.subr.bf16.mxu0 0
        %632 = vmatpush1.bf16.msra.mxu0 0
        %633 = vmatprep.subr.bf16.mxu0 0
        %634 = vmatpush1.bf16.msra.mxu0 0
        %635 = vmatprep.mubr.bf16.mxu0 0
        %636 = vmatmul.mubr.bf16.gmra.mrb[0].mxu0 %v558
        %v637 = vpop.f32.mrb[0].mxu0
        %v638 = vadd.f32 0.0, %v637
        %v639 = vpop.f32.mrb[0].mxu0
        %v640 = vadd.f32 0.0, %v639
        %v641 = vpop.f32.mrb[0].mxu0
        %v642 = vadd.f32 0.0, %v641
        %v643 = vpop.f32.mrb[0].mxu0
        %v644 = vadd.f32 0.0, %v643
        %645 = vdwg.mxu0
        %646 = vmatprep.subr.bf16.mxu0 0
        %647 = vmatpush1.bf16.msra.mxu0 %v374
        %648 = vmatprep.subr.bf16.mxu0 0
        %649 = vmatpush1.bf16.msra.mxu0 %v381
        %650 = vmatprep.subr.bf16.mxu0 0
        %651 = vmatpush1.bf16.msra.mxu0 0
        %652 = vmatprep.subr.bf16.mxu0 0
        %653 = vmatpush1.bf16.msra.mxu0 0
        %654 = vmatprep.subr.bf16.mxu0 0
        %655 = vmatpush1.bf16.msra.mxu0 0
        %656 = vmatprep.subr.bf16.mxu0 0
        %657 = vmatpush1.bf16.msra.mxu0 0
        %658 = vmatprep.subr.bf16.mxu0 0
        %659 = vmatpush1.bf16.msra.mxu0 0
        %660 = vmatprep.subr.bf16.mxu0 0
        %661 = vmatpush1.bf16.msra.mxu0 0
        %662 = vmatprep.subr.bf16.mxu0 0
        %663 = vmatpush1.bf16.msra.mxu0 0
        %664 = vmatprep.subr.bf16.mxu0 0
        %665 = vmatpush1.bf16.msra.mxu0 0
        %666 = vmatprep.subr.bf16.mxu0 0
        %667 = vmatpush1.bf16.msra.mxu0 0
        %668 = vmatprep.subr.bf16.mxu0 0
        %669 = vmatpush1.bf16.msra.mxu0 0
        %670 = vmatprep.subr.bf16.mxu0 0
        %671 = vmatpush1.bf16.msra.mxu0 0
        %672 = vmatprep.subr.bf16.mxu0 0
        %673 = vmatpush1.bf16.msra.mxu0 0
        %674 = vmatprep.subr.bf16.mxu0 0
        %675 = vmatpush1.bf16.msra.mxu0 0
        %676 = vmatprep.subr.bf16.mxu0 0
        %677 = vmatpush1.bf16.msra.mxu0 0
        %678 = vmatprep.mubr.bf16.mxu0 0
        %679 = vmatmul.mubr.bf16.gmra.mrb[0].mxu0 %v558
        %v680 = vpop.f32.mrb[0].mxu0
        %v681 = vadd.f32 0.0, %v680
        %v682 = vpop.f32.mrb[0].mxu0
        %v683 = vpop.f32.mrb[0].mxu0
        %v684 = vadd.f32 0.0, %v683
        %v685 = vpop.f32.mrb[0].mxu0
        %686 = vdwg.mxu0
        %687 = vrot.lane.b32.xlu0 %v595, 70
        %v688 = vpop.permute.xlu0 %687
        %689 = vrot.lane.b32.xlu0 %v599, 70
        %v690 = vpop.permute.xlu0 %689
        %691 = vrot.lane.b32.xlu0 %v597, 70
        %v692 = vpop.permute.xlu0 %691
        %693 = vrot.lane.b32.xlu0 %v601, 70
        %v694 = vpop.permute.xlu0 %693
        %695 = vrot.lane.b32.xlu0 %v638, 70
        %v696 = vpop.permute.xlu0 %695
        %697 = vrot.lane.b32.xlu0 %v642, 70
        %v698 = vpop.permute.xlu0 %697
        %699 = vrot.lane.b32.xlu0 %v640, 70
        %v700 = vpop.permute.xlu0 %699
        %701 = vrot.lane.b32.xlu0 %v644, 70
        %v702 = vpop.permute.xlu0 %701
        %703 = vrot.lane.b32.xlu0 %v681, 70
        %v704 = vpop.permute.xlu0 %703
        %705 = vrot.lane.b32.xlu0 %v684, 70
        %v706 = vpop.permute.xlu0 %705
        %vm707 = vcmp.lt.s32.totalorder %v531, 70
        %v708 = vsel %vm707, %v700, %v704
        %v709 = vsel %vm707, %v702, %v706
        %v710 = vsel %vm707, %v696, %v700
        %v711 = vsel %vm707, %v698, %v702
        %v712 = vsel %vm707, %v692, %v696
        %v713 = vsel %vm707, %v694, %v698
        %v714 = vsel %vm707, %v688, %v692
        %v715 = vsel %vm707, %v690, %v694
        %v716 = vadd.f32 %v541, %v714
        %v717 = vadd.f32 %v542, %v712
        %v718 = vadd.f32 %v543, %v710
        %v719 = vadd.f32 %v544, %v708
        %v720 = vadd.f32 %v545, %v715
        %v721 = vadd.f32 %v546, %v713
        %v722 = vadd.f32 %v547, %v711
        %v723 = vadd.f32 %v548, %v709
        %s724 = scalar_lea.vmem [#allocation5], 24
        %v725 = vld [vmem:[%s724] sm:$0xf]
        %v726 = vld [vmem:[%s724 + $0x4] sm:$0x3]
        %v729 = vunpack.c.l.b16 %v725
        %v730 = vunpack.c.l.b16 %v726
        %v731 = vpack.c.b16 %v730, %v729
        %v733 = vsel %vm254, %v731, 0
        %735 = vmatprep.subr.bf16.mxu0 %v243
        %736 = vmatpush1.bf16.msra.mxu0 %v242
        %737 = vmatprep.subr.bf16.mxu0 %v266
        %738 = vmatpush1.bf16.msra.mxu0 %v263
        %739 = vmatprep.subr.bf16.mxu0 0
        %740 = vmatpush1.bf16.msra.mxu0 0
        %741 = vmatprep.subr.bf16.mxu0 0
        %742 = vmatpush1.bf16.msra.mxu0 0
        %743 = vmatprep.subr.bf16.mxu0 0
        %744 = vmatpush1.bf16.msra.mxu0 0
        %745 = vmatprep.subr.bf16.mxu0 0
        %746 = vmatpush1.bf16.msra.mxu0 0
        %747 = vmatprep.subr.bf16.mxu0 0
        %748 = vmatpush1.bf16.msra.mxu0 0
        %749 = vmatprep.subr.bf16.mxu0 0
        %750 = vmatpush1.bf16.msra.mxu0 0
        %751 = vmatprep.subr.bf16.mxu0 0
        %752 = vmatpush1.bf16.msra.mxu0 0
        %753 = vmatprep.subr.bf16.mxu0 0
        %754 = vmatpush1.bf16.msra.mxu0 0
        %755 = vmatprep.subr.bf16.mxu0 0
        %756 = vmatpush1.bf16.msra.mxu0 0
        %757 = vmatprep.subr.bf16.mxu0 0
        %758 = vmatpush1.bf16.msra.mxu0 0
        %759 = vmatprep.subr.bf16.mxu0 0
        %760 = vmatpush1.bf16.msra.mxu0 0
        %761 = vmatprep.subr.bf16.mxu0 0
        %762 = vmatpush1.bf16.msra.mxu0 0
        %763 = vmatprep.subr.bf16.mxu0 0
        %764 = vmatpush1.bf16.msra.mxu0 0
        %765 = vmatprep.subr.bf16.mxu0 0
        %766 = vmatpush1.bf16.msra.mxu0 0
        %767 = vmatprep.mubr.bf16.mxu0 0
        %768 = vmatmul.mubr.bf16.gmra.mrb[0].mxu0 %v733
        %v769 = vpop.f32.mrb[0].mxu0
        %v770 = vadd.f32 0.0, %v769
        %v771 = vpop.f32.mrb[0].mxu0
        %v772 = vadd.f32 0.0, %v771
        %v773 = vpop.f32.mrb[0].mxu0
        %v774 = vadd.f32 0.0, %v773
        %v775 = vpop.f32.mrb[0].mxu0
        %v776 = vadd.f32 0.0, %v775
        %777 = vdwg.mxu0
        %778 = vmatprep.subr.bf16.mxu0 %v245
        %779 = vmatpush1.bf16.msra.mxu0 %v244
        %780 = vmatprep.subr.bf16.mxu0 %v272
        %781 = vmatpush1.bf16.msra.mxu0 %v269
        %782 = vmatprep.subr.bf16.mxu0 0
        %783 = vmatpush1.bf16.msra.mxu0 0
        %784 = vmatprep.subr.bf16.mxu0 0
        %785 = vmatpush1.bf16.msra.mxu0 0
        %786 = vmatprep.subr.bf16.mxu0 0
        %787 = vmatpush1.bf16.msra.mxu0 0
        %788 = vmatprep.subr.bf16.mxu0 0
        %789 = vmatpush1.bf16.msra.mxu0 0
        %790 = vmatprep.subr.bf16.mxu0 0
        %791 = vmatpush1.bf16.msra.mxu0 0
        %792 = vmatprep.subr.bf16.mxu0 0
        %793 = vmatpush1.bf16.msra.mxu0 0
        %794 = vmatprep.subr.bf16.mxu0 0
        %795 = vmatpush1.bf16.msra.mxu0 0
        %796 = vmatprep.subr.bf16.mxu0 0
        %797 = vmatpush1.bf16.msra.mxu0 0
        %798 = vmatprep.subr.bf16.mxu0 0
        %799 = vmatpush1.bf16.msra.mxu0 0
        %800 = vmatprep.subr.bf16.mxu0 0
        %801 = vmatpush1.bf16.msra.mxu0 0
        %802 = vmatprep.subr.bf16.mxu0 0
        %803 = vmatpush1.bf16.msra.mxu0 0
        %804 = vmatprep.subr.bf16.mxu0 0
        %805 = vmatpush1.bf16.msra.mxu0 0
        %806 = vmatprep.subr.bf16.mxu0 0
        %807 = vmatpush1.bf16.msra.mxu0 0
        %808 = vmatprep.subr.bf16.mxu0 0
        %809 = vmatpush1.bf16.msra.mxu0 0
        %810 = vmatprep.mubr.bf16.mxu0 0
        %811 = vmatmul.mubr.bf16.gmra.mrb[0].mxu0 %v733
        %v812 = vpop.f32.mrb[0].mxu0
        %v813 = vadd.f32 0.0, %v812
        %v814 = vpop.f32.mrb[0].mxu0
        %v815 = vadd.f32 0.0, %v814
        %v816 = vpop.f32.mrb[0].mxu0
        %v817 = vadd.f32 0.0, %v816
        %v818 = vpop.f32.mrb[0].mxu0
        %v819 = vadd.f32 0.0, %v818
        %820 = vdwg.mxu0
        %821 = vmatprep.subr.bf16.mxu0 0
        %822 = vmatpush1.bf16.msra.mxu0 %v374
        %823 = vmatprep.subr.bf16.mxu0 0
        %824 = vmatpush1.bf16.msra.mxu0 %v381
        %825 = vmatprep.subr.bf16.mxu0 0
        %826 = vmatpush1.bf16.msra.mxu0 0
        %827 = vmatprep.subr.bf16.mxu0 0
        %828 = vmatpush1.bf16.msra.mxu0 0
        %829 = vmatprep.subr.bf16.mxu0 0
        %830 = vmatpush1.bf16.msra.mxu0 0
        %831 = vmatprep.subr.bf16.mxu0 0
        %832 = vmatpush1.bf16.msra.mxu0 0
        %833 = vmatprep.subr.bf16.mxu0 0
        %834 = vmatpush1.bf16.msra.mxu0 0
        %835 = vmatprep.subr.bf16.mxu0 0
        %836 = vmatpush1.bf16.msra.mxu0 0
        %837 = vmatprep.subr.bf16.mxu0 0
        %838 = vmatpush1.bf16.msra.mxu0 0
        %839 = vmatprep.subr.bf16.mxu0 0
        %840 = vmatpush1.bf16.msra.mxu0 0
        %841 = vmatprep.subr.bf16.mxu0 0
        %842 = vmatpush1.bf16.msra.mxu0 0
        %843 = vmatprep.subr.bf16.mxu0 0
        %844 = vmatpush1.bf16.msra.mxu0 0
        %845 = vmatprep.subr.bf16.mxu0 0
        %846 = vmatpush1.bf16.msra.mxu0 0
        %847 = vmatprep.subr.bf16.mxu0 0
        %848 = vmatpush1.bf16.msra.mxu0 0
        %849 = vmatprep.subr.bf16.mxu0 0
        %850 = vmatpush1.bf16.msra.mxu0 0
        %851 = vmatprep.subr.bf16.mxu0 0
        %852 = vmatpush1.bf16.msra.mxu0 0
        %853 = vmatprep.mubr.bf16.mxu0 0
        %854 = vmatmul.mubr.bf16.gmra.mrb[0].mxu0 %v733
        %v855 = vpop.f32.mrb[0].mxu0
        %v856 = vadd.f32 0.0, %v855
        %v857 = vpop.f32.mrb[0].mxu0
        %v858 = vpop.f32.mrb[0].mxu0
        %v859 = vadd.f32 0.0, %v858
        %v860 = vpop.f32.mrb[0].mxu0
        %861 = vdwg.mxu0
        %862 = vrot.lane.b32.xlu0 %v770, 41
        %v863 = vpop.permute.xlu0 %862
        %864 = vrot.lane.b32.xlu0 %v774, 41
        %v865 = vpop.permute.xlu0 %864
        %866 = vrot.lane.b32.xlu0 %v772, 41
        %v867 = vpop.permute.xlu0 %866
        %868 = vrot.lane.b32.xlu0 %v776, 41
        %v869 = vpop.permute.xlu0 %868
        %870 = vrot.lane.b32.xlu0 %v813, 41
        %v871 = vpop.permute.xlu0 %870
        %872 = vrot.lane.b32.xlu0 %v817, 41
        %v873 = vpop.permute.xlu0 %872
        %874 = vrot.lane.b32.xlu0 %v815, 41
        %v875 = vpop.permute.xlu0 %874
        %876 = vrot.lane.b32.xlu0 %v819, 41
        %v877 = vpop.permute.xlu0 %876
        %878 = vrot.lane.b32.xlu0 %v856, 41
        %v879 = vpop.permute.xlu0 %878
        %880 = vrot.lane.b32.xlu0 %v859, 41
        %v881 = vpop.permute.xlu0 %880
        %vm882 = vcmp.lt.s32.totalorder %v531, 41
        %v883 = vsel %vm882, %v875, %v879
        %v884 = vsel %vm882, %v877, %v881
        %v885 = vsel %vm882, %v871, %v875
        %v886 = vsel %vm882, %v873, %v877
        %v887 = vsel %vm882, %v867, %v871
        %v888 = vsel %vm882, %v869, %v873
        %v889 = vsel %vm882, %v863, %v867
        %v890 = vsel %vm882, %v865, %v869
        %v891 = vadd.f32 %v716, %v889
        %v892 = vadd.f32 %v717, %v887
        %v893 = vadd.f32 %v718, %v885
        %v894 = vadd.f32 %v719, %v883
        %v895 = vadd.f32 %v720, %v890
        %v896 = vadd.f32 %v721, %v888
        %v897 = vadd.f32 %v722, %v886
        %v898 = vadd.f32 %v723, %v884
        %s899 = scalar_lea.vmem [#allocation5], 32
        %v900 = vld [vmem:[%s899] sm:$0xf]
        %v901 = vld [vmem:[%s899 + $0x4] sm:$0x3]
        %v904 = vunpack.c.l.b16 %v900
        %v905 = vunpack.c.l.b16 %v901
        %v906 = vpack.c.b16 %v905, %v904
        %v908 = vsel %vm254, %v906, 0
        %910 = vmatprep.subr.bf16.mxu0 %v243
        %911 = vmatpush1.bf16.msra.mxu0 %v242
        %912 = vmatprep.subr.bf16.mxu0 %v266
        %913 = vmatpush1.bf16.msra.mxu0 %v263
        %914 = vmatprep.subr.bf16.mxu0 0
        %915 = vmatpush1.bf16.msra.mxu0 0
        %916 = vmatprep.subr.bf16.mxu0 0
        %917 = vmatpush1.bf16.msra.mxu0 0
        %918 = vmatprep.subr.bf16.mxu0 0
        %919 = vmatpush1.bf16.msra.mxu0 0
        %920 = vmatprep.subr.bf16.mxu0 0
        %921 = vmatpush1.bf16.msra.mxu0 0
        %922 = vmatprep.subr.bf16.mxu0 0
        %923 = vmatpush1.bf16.msra.mxu0 0
        %924 = vmatprep.subr.bf16.mxu0 0
        %925 = vmatpush1.bf16.msra.mxu0 0
        %926 = vmatprep.subr.bf16.mxu0 0
        %927 = vmatpush1.bf16.msra.mxu0 0
        %928 = vmatprep.subr.bf16.mxu0 0
        %929 = vmatpush1.bf16.msra.mxu0 0
        %930 = vmatprep.subr.bf16.mxu0 0
        %931 = vmatpush1.bf16.msra.mxu0 0
        %932 = vmatprep.subr.bf16.mxu0 0
        %933 = vmatpush1.bf16.msra.mxu0 0
        %934 = vmatprep.subr.bf16.mxu0 0
        %935 = vmatpush1.bf16.msra.mxu0 0
        %936 = vmatprep.subr.bf16.mxu0 0
        %937 = vmatpush1.bf16.msra.mxu0 0
        %938 = vmatprep.subr.bf16.mxu0 0
        %939 = vmatpush1.bf16.msra.mxu0 0
        %940 = vmatprep.subr.bf16.mxu0 0
        %941 = vmatpush1.bf16.msra.mxu0 0
        %942 = vmatprep.mubr.bf16.mxu0 0
        %943 = vmatmul.mubr.bf16.gmra.mrb[0].mxu0 %v908
        %v944 = vpop.f32.mrb[0].mxu0
        %v945 = vadd.f32 0.0, %v944
        %v946 = vpop.f32.mrb[0].mxu0
        %v947 = vadd.f32 0.0, %v946
        %v948 = vpop.f32.mrb[0].mxu0
        %v949 = vadd.f32 0.0, %v948
        %v950 = vpop.f32.mrb[0].mxu0
        %v951 = vadd.f32 0.0, %v950
        %952 = vdwg.mxu0
        %953 = vmatprep.subr.bf16.mxu0 %v245
        %954 = vmatpush1.bf16.msra.mxu0 %v244
        %955 = vmatprep.subr.bf16.mxu0 %v272
        %956 = vmatpush1.bf16.msra.mxu0 %v269
        %957 = vmatprep.subr.bf16.mxu0 0
        %958 = vmatpush1.bf16.msra.mxu0 0
        %959 = vmatprep.subr.bf16.mxu0 0
        %960 = vmatpush1.bf16.msra.mxu0 0
        %961 = vmatprep.subr.bf16.mxu0 0
        %962 = vmatpush1.bf16.msra.mxu0 0
        %963 = vmatprep.subr.bf16.mxu0 0
        %964 = vmatpush1.bf16.msra.mxu0 0
        %965 = vmatprep.subr.bf16.mxu0 0
        %966 = vmatpush1.bf16.msra.mxu0 0
        %967 = vmatprep.subr.bf16.mxu0 0
        %968 = vmatpush1.bf16.msra.mxu0 0
        %969 = vmatprep.subr.bf16.mxu0 0
        %970 = vmatpush1.bf16.msra.mxu0 0
        %971 = vmatprep.subr.bf16.mxu0 0
        %972 = vmatpush1.bf16.msra.mxu0 0
        %973 = vmatprep.subr.bf16.mxu0 0
        %974 = vmatpush1.bf16.msra.mxu0 0
        %975 = vmatprep.subr.bf16.mxu0 0
        %976 = vmatpush1.bf16.msra.mxu0 0
        %977 = vmatprep.subr.bf16.mxu0 0
        %978 = vmatpush1.bf16.msra.mxu0 0
        %979 = vmatprep.subr.bf16.mxu0 0
        %980 = vmatpush1.bf16.msra.mxu0 0
        %981 = vmatprep.subr.bf16.mxu0 0
        %982 = vmatpush1.bf16.msra.mxu0 0
        %983 = vmatprep.subr.bf16.mxu0 0
        %984 = vmatpush1.bf16.msra.mxu0 0
        %985 = vmatprep.mubr.bf16.mxu0 0
        %986 = vmatmul.mubr.bf16.gmra.mrb[0].mxu0 %v908
        %v987 = vpop.f32.mrb[0].mxu0
        %v988 = vadd.f32 0.0, %v987
        %v989 = vpop.f32.mrb[0].mxu0
        %v990 = vadd.f32 0.0, %v989
        %v991 = vpop.f32.mrb[0].mxu0
        %v992 = vadd.f32 0.0, %v991
        %v993 = vpop.f32.mrb[0].mxu0
        %v994 = vadd.f32 0.0, %v993
        %995 = vdwg.mxu0
        %996 = vmatprep.subr.bf16.mxu0 0
        %997 = vmatpush1.bf16.msra.mxu0 %v374
        %998 = vmatprep.subr.bf16.mxu0 0
        %999 = vmatpush1.bf16.msra.mxu0 %v381
        %1000 = vmatprep.subr.bf16.mxu0 0
        %1001 = vmatpush1.bf16.msra.mxu0 0
        %1002 = vmatprep.subr.bf16.mxu0 0
        %1003 = vmatpush1.bf16.msra.mxu0 0
        %1004 = vmatprep.subr.bf16.mxu0 0
        %1005 = vmatpush1.bf16.msra.mxu0 0
        %1006 = vmatprep.subr.bf16.mxu0 0
        %1007 = vmatpush1.bf16.msra.mxu0 0
        %1008 = vmatprep.subr.bf16.mxu0 0
        %1009 = vmatpush1.bf16.msra.mxu0 0
        %1010 = vmatprep.subr.bf16.mxu0 0
        %1011 = vmatpush1.bf16.msra.mxu0 0
        %1012 = vmatprep.subr.bf16.mxu0 0
        %1013 = vmatpush1.bf16.msra.mxu0 0
        %1014 = vmatprep.subr.bf16.mxu0 0
        %1015 = vmatpush1.bf16.msra.mxu0 0
        %1016 = vmatprep.subr.bf16.mxu0 0
        %1017 = vmatpush1.bf16.msra.mxu0 0
        %1018 = vmatprep.subr.bf16.mxu0 0
        %1019 = vmatpush1.bf16.msra.mxu0 0
        %1020 = vmatprep.subr.bf16.mxu0 0
        %1021 = vmatpush1.bf16.msra.mxu0 0
        %1022 = vmatprep.subr.bf16.mxu0 0
        %1023 = vmatpush1.bf16.msra.mxu0 0
        %1024 = vmatprep.subr.bf16.mxu0 0
        %1025 = vmatpush1.bf16.msra.mxu0 0
        %1026 = vmatprep.subr.bf16.mxu0 0
        %1027 = vmatpush1.bf16.msra.mxu0 0
        %1028 = vmatprep.mubr.bf16.mxu0 0
        %1029 = vmatmul.mubr.bf16.gmra.mrb[0].mxu0 %v908
        %v1030 = vpop.f32.mrb[0].mxu0
        %v1031 = vadd.f32 0.0, %v1030
        %v1032 = vpop.f32.mrb[0].mxu0
        %v1033 = vpop.f32.mrb[0].mxu0
        %v1034 = vadd.f32 0.0, %v1033
        %v1035 = vpop.f32.mrb[0].mxu0
        %1036 = vdwg.mxu0
        %1037 = vrot.lane.b32.xlu0 %v945, 12
        %v1038 = vpop.permute.xlu0 %1037
        %1039 = vrot.lane.b32.xlu0 %v949, 12
        %v1040 = vpop.permute.xlu0 %1039
        %1041 = vrot.lane.b32.xlu0 %v947, 12
        %v1042 = vpop.permute.xlu0 %1041
        %1043 = vrot.lane.b32.xlu0 %v951, 12
        %v1044 = vpop.permute.xlu0 %1043
        %1045 = vrot.lane.b32.xlu0 %v988, 12
        %v1046 = vpop.permute.xlu0 %1045
        %1047 = vrot.lane.b32.xlu0 %v992, 12
        %v1048 = vpop.permute.xlu0 %1047
        %1049 = vrot.lane.b32.xlu0 %v990, 12
        %v1050 = vpop.permute.xlu0 %1049
        %1051 = vrot.lane.b32.xlu0 %v994, 12
        %v1052 = vpop.permute.xlu0 %1051
        %1053 = vrot.lane.b32.xlu0 %v1031, 12
        %v1054 = vpop.permute.xlu0 %1053
        %1055 = vrot.lane.b32.xlu0 %v1034, 12
        %v1056 = vpop.permute.xlu0 %1055
        %vm1057 = vcmp.lt.s32.totalorder %v531, 12
        %v1058 = vsel %vm1057, %v1050, %v1054
        %v1059 = vsel %vm1057, %v1052, %v1056
        %v1060 = vsel %vm1057, %v1046, %v1050
        %v1061 = vsel %vm1057, %v1048, %v1052
        %v1062 = vsel %vm1057, %v1042, %v1046
        %v1063 = vsel %vm1057, %v1044, %v1048
        %v1064 = vsel %vm1057, %v1038, %v1042
        %v1065 = vsel %vm1057, %v1040, %v1044
        %v1066 = vadd.f32 %v891, %v1064
        %v1067 = vadd.f32 %v892, %v1062
        %v1068 = vadd.f32 %v893, %v1060
        %v1069 = vadd.f32 %v894, %v1058
        %v1070 = vadd.f32 %v895, %v1065
        %v1071 = vadd.f32 %v896, %v1063
        %v1072 = vadd.f32 %v897, %v1061
        %v1073 = vadd.f32 %v898, %v1059
        %v1074 = vld [vmem:[%s2] sm:$0xff]
        %v1075 = vld [vmem:[%s2 + $0x8] sm:$0xf]
        %1077 = vset.pattern.permute.xlu0 0
        %1078 = vperm.xlu0 %1077, %v1074
        %v1079 = vpop.permute.xlu0 %1078
        %1082 = vset.pattern.permute.xlu0 0
        %1083 = vperm.xlu0 %1082, %v1075
        %v1084 = vpop.permute.xlu0 %1083
        %v1086 = vadd.f32 %v1066, %v1079
        %v1087 = vadd.f32 %v1067, %v1079
        %v1088 = vadd.f32 %v1068, %v1079
        %v1089 = vadd.f32 %v1069, %v1079
        %v1090 = vadd.f32 %v1070, %v1084
        %v1091 = vadd.f32 %v1071, %v1084
        %v1092 = vadd.f32 %v1072, %v1084
        %v1093 = vadd.f32 %v1073, %v1084
        %vm1094 = vcmp.gt.f32.partialorder %v1086, 0.0
        %vm1095 = vcmp.gt.f32.partialorder %v1087, 0.0
        %vm1096 = vcmp.gt.f32.partialorder %v1088, 0.0
        %vm1097 = vcmp.gt.f32.partialorder %v1089, 0.0
        %vm1098 = vcmp.gt.f32.partialorder %v1090, 0.0
        %vm1099 = vcmp.gt.f32.partialorder %v1091, 0.0
        %vm1100 = vcmp.gt.f32.partialorder %v1092, 0.0
        %vm1101 = vcmp.gt.f32.partialorder %v1093, 0.0
        %v1102 = vmin.f32 %v1086, 0.0
        %v1103 = vmin.f32 %v1087, 0.0
        %v1104 = vmin.f32 %v1088, 0.0
        %v1105 = vmin.f32 %v1089, 0.0
        %v1106 = vmin.f32 %v1090, 0.0
        %v1107 = vmin.f32 %v1091, 0.0
        %v1108 = vmin.f32 %v1092, 0.0
        %v1109 = vmin.f32 %v1093, 0.0
        %v1110 = vmul.f32 %v1102, 1.442695
        %v1111 = vpow.pop %v1110
        %v1112 = vmul.f32 %v1103, 1.442695
        %v1113 = vpow.pop %v1112
        %v1114 = vmul.f32 %v1104, 1.442695
        %v1115 = vpow.pop %v1114
        %v1116 = vmul.f32 %v1105, 1.442695
        %v1117 = vpow.pop %v1116
        %v1118 = vmul.f32 %v1106, 1.442695
        %v1119 = vpow.pop %v1118
        %v1120 = vmul.f32 %v1107, 1.442695
        %v1121 = vpow.pop %v1120
        %v1122 = vmul.f32 %v1108, 1.442695
        %v1123 = vpow.pop %v1122
        %v1124 = vmul.f32 %v1109, 1.442695
        %v1125 = vpow.pop %v1124
        %v1126 = vsub.f32 %v1111, 1.0
        %v1127 = vsub.f32 %v1113, 1.0
        %v1128 = vsub.f32 %v1115, 1.0
        %v1129 = vsub.f32 %v1117, 1.0
        %v1130 = vsub.f32 %v1119, 1.0
        %v1131 = vsub.f32 %v1121, 1.0
        %v1132 = vsub.f32 %v1123, 1.0
        %v1133 = vsub.f32 %v1125, 1.0
        %v1134 = vsel %vm1094, %v1086, %v1126
        %v1135 = vsel %vm1095, %v1087, %v1127
        %v1136 = vsel %vm1096, %v1088, %v1128
        %v1137 = vsel %vm1097, %v1089, %v1129
        %v1138 = vsel %vm1098, %v1090, %v1130
        %v1139 = vsel %vm1099, %v1091, %v1131
        %v1140 = vsel %vm1100, %v1092, %v1132
        %v1141 = vsel %vm1101, %v1093, %v1133
        %1142 = vst [vmem:[%s204] sm:$0xff] %v1134
        %1143 = vst [vmem:[%s204 + $0x8] sm:$0xff] %v1135
        %1144 = vst [vmem:[%s204 + $0x10] sm:$0xff] %v1136
        %1145 = vst [vmem:[%s204 + $0x18] sm:$0xff] %v1137
        %1146 = vst [vmem:[%s204 + $0x20] sm:$0xf] %v1138
        %1147 = vst [vmem:[%s204 + $0x28] sm:$0xf] %v1139
        %1148 = vst [vmem:[%s204 + $0x30] sm:$0xf] %v1140
        %1149 = vst [vmem:[%s204 + $0x38] sm:$0xf] %v1141
        %s1150 = scalar_lea.vmem %s178, 60 [#allocation2]
        %v1151 = vld [vmem:[%s1150] sm:$0xff]
        %v1152 = vld [vmem:[%s1150 + $0x8] sm:$0xff]
        %v1153 = vld [vmem:[%s1150 + $0x10] sm:$0xf]
        %v1154 = vld [vmem:[%s1150 + $0x14] sm:$0xff]
        %v1155 = vld [vmem:[%s1150 + $0x1c] sm:$0xff]
        %v1156 = vld [vmem:[%s1150 + $0x24] sm:$0xf]
        %v1157 = vld [vmem:[%s1150 + $0x28] sm:$0x77]
        %v1158 = vld [vmem:[%s1150 + $0x30] sm:$0x77]
        %v1159 = vld [vmem:[%s1150 + $0x38] sm:$0x7]
        %v1160 = vld [vmem:[#allocation5] sm:$0xf]
        %v1161 = vld [vmem:[#allocation5 + $0x4] sm:$0x3]
        %v1164 = vunpack.c.l.b16 %v1160
        %v1165 = vunpack.c.l.b16 %v1161
        %v1166 = vpack.c.b16 %v1165, %v1164
        %v1173 = vunpack.c.l.b16 %v1151
        %v1174 = vunpack.c.h.b16 %v1151
        %v1175 = vunpack.c.l.b16 %v1152
        %v1176 = vunpack.c.h.b16 %v1152
        %v1177 = vunpack.c.l.b16 %v1154
        %v1178 = vunpack.c.h.b16 %v1154
        %v1179 = vunpack.c.l.b16 %v1155
        %v1180 = vunpack.c.h.b16 %v1155
        %v1181 = vunpack.c.l.b16 %v1157
        %v1182 = vunpack.c.h.b16 %v1157
        %v1183 = vunpack.c.l.b16 %v1158
        %v1184 = vunpack.c.h.b16 %v1158
        %v1185 = vpack.c.b16 %v1177, %v1173
        %v1186 = vpack.c.b16 %v1178, %v1174
        %v1187 = vpack.c.b16 %v1179, %v1175
        %v1188 = vpack.c.b16 %v1180, %v1176
        %v1189 = vpack.c.b16 %v1181, %v1181
        %v1190 = vpack.c.b16 %v1182, %v1182
        %v1191 = vpack.c.b16 %v1183, %v1183
        %v1192 = vpack.c.b16 %v1184, %v1184
        %v1198 = vsel %vm254, %v1166, 0
        %v1201 = vand.u32 %v1189, %v261
        %v1204 = vand.u32 %v1190, %v261
        %v1207 = vand.u32 %v1191, %v261
        %v1210 = vand.u32 %v1192, %v261
        %1212 = vmatprep.subr.bf16.mxu0 %v1186
        %1213 = vmatpush1.bf16.msra.mxu0 %v1185
        %1214 = vmatprep.subr.bf16.mxu0 %v1204
        %1215 = vmatpush1.bf16.msra.mxu0 %v1201
        %1216 = vmatprep.subr.bf16.mxu0 0
        %1217 = vmatpush1.bf16.msra.mxu0 0
        %1218 = vmatprep.subr.bf16.mxu0 0
        %1219 = vmatpush1.bf16.msra.mxu0 0
        %1220 = vmatprep.subr.bf16.mxu0 0
        %1221 = vmatpush1.bf16.msra.mxu0 0
        %1222 = vmatprep.subr.bf16.mxu0 0
        %1223 = vmatpush1.bf16.msra.mxu0 0
        %1224 = vmatprep.subr.bf16.mxu0 0
        %1225 = vmatpush1.bf16.msra.mxu0 0
        %1226 = vmatprep.subr.bf16.mxu0 0
        %1227 = vmatpush1.bf16.msra.mxu0 0
        %1228 = vmatprep.subr.bf16.mxu0 0
        %1229 = vmatpush1.bf16.msra.mxu0 0
        %1230 = vmatprep.subr.bf16.mxu0 0
        %1231 = vmatpush1.bf16.msra.mxu0 0
        %1232 = vmatprep.subr.bf16.mxu0 0
        %1233 = vmatpush1.bf16.msra.mxu0 0
        %1234 = vmatprep.subr.bf16.mxu0 0
        %1235 = vmatpush1.bf16.msra.mxu0 0
        %1236 = vmatprep.subr.bf16.mxu0 0
        %1237 = vmatpush1.bf16.msra.mxu0 0
        %1238 = vmatprep.subr.bf16.mxu0 0
        %1239 = vmatpush1.bf16.msra.mxu0 0
        %1240 = vmatprep.subr.bf16.mxu0 0
        %1241 = vmatpush1.bf16.msra.mxu0 0
        %1242 = vmatprep.subr.bf16.mxu0 0
        %1243 = vmatpush1.bf16.msra.mxu0 0
        %1244 = vmatprep.mubr.bf16.mxu0 0
        %1245 = vmatmul.mubr.bf16.gmra.mrb[0].mxu0 %v1198
        %v1246 = vpop.f32.mrb[0].mxu0
        %v1247 = vadd.f32 0.0, %v1246
        %v1248 = vpop.f32.mrb[0].mxu0
        %v1249 = vadd.f32 0.0, %v1248
        %v1250 = vpop.f32.mrb[0].mxu0
        %v1251 = vadd.f32 0.0, %v1250
        %v1252 = vpop.f32.mrb[0].mxu0
        %v1253 = vadd.f32 0.0, %v1252
        %1254 = vdwg.mxu0
        %1255 = vmatprep.subr.bf16.mxu0 %v1188
        %1256 = vmatpush1.bf16.msra.mxu0 %v1187
        %1257 = vmatprep.subr.bf16.mxu0 %v1210
        %1258 = vmatpush1.bf16.msra.mxu0 %v1207
        %1259 = vmatprep.subr.bf16.mxu0 0
        %1260 = vmatpush1.bf16.msra.mxu0 0
        %1261 = vmatprep.subr.bf16.mxu0 0
        %1262 = vmatpush1.bf16.msra.mxu0 0
        %1263 = vmatprep.subr.bf16.mxu0 0
        %1264 = vmatpush1.bf16.msra.mxu0 0
        %1265 = vmatprep.subr.bf16.mxu0 0
        %1266 = vmatpush1.bf16.msra.mxu0 0
        %1267 = vmatprep.subr.bf16.mxu0 0
        %1268 = vmatpush1.bf16.msra.mxu0 0
        %1269 = vmatprep.subr.bf16.mxu0 0
        %1270 = vmatpush1.bf16.msra.mxu0 0
        %1271 = vmatprep.subr.bf16.mxu0 0
        %1272 = vmatpush1.bf16.msra.mxu0 0
        %1273 = vmatprep.subr.bf16.mxu0 0
        %1274 = vmatpush1.bf16.msra.mxu0 0
        %1275 = vmatprep.subr.bf16.mxu0 0
        %1276 = vmatpush1.bf16.msra.mxu0 0
        %1277 = vmatprep.subr.bf16.mxu0 0
        %1278 = vmatpush1.bf16.msra.mxu0 0
        %1279 = vmatprep.subr.bf16.mxu0 0
        %1280 = vmatpush1.bf16.msra.mxu0 0
        %1281 = vmatprep.subr.bf16.mxu0 0
        %1282 = vmatpush1.bf16.msra.mxu0 0
        %1283 = vmatprep.subr.bf16.mxu0 0
        %1284 = vmatpush1.bf16.msra.mxu0 0
        %1285 = vmatprep.subr.bf16.mxu0 0
        %1286 = vmatpush1.bf16.msra.mxu0 0
        %1287 = vmatprep.mubr.bf16.mxu0 0
        %1288 = vmatmul.mubr.bf16.gmra.mrb[0].mxu0 %v1198
        %v1289 = vpop.f32.mrb[0].mxu0
        %v1290 = vadd.f32 0.0, %v1289
        %v1291 = vpop.f32.mrb[0].mxu0
        %v1292 = vadd.f32 0.0, %v1291
        %v1293 = vpop.f32.mrb[0].mxu0
        %v1294 = vadd.f32 0.0, %v1293
        %v1295 = vpop.f32.mrb[0].mxu0
        %v1296 = vadd.f32 0.0, %v1295
        %1297 = vdwg.mxu0
        %v1298 = vld [vmem:[%s360] sm:$0xf]
        %v1299 = vld [vmem:[%s360 + $0x4] sm:$0x3]
        %v1302 = vunpack.c.l.b16 %v1298
        %v1303 = vunpack.c.l.b16 %v1299
        %v1304 = vpack.c.b16 %v1303, %v1302
        %v1308 = vunpack.c.l.b16 %v1153
        %v1309 = vunpack.c.l.b16 %v1156
        %v1310 = vunpack.c.l.b16 %v1159
        %v1311 = vpack.c.b16 %v1309, %v1308
        %v1312 = vpack.c.b16 %v1310, %v1310
        %v1315 = vsel %vm254, %v1304, 0
        %v1318 = vand.u32 %v1312, %v261
        %1320 = vmatprep.subr.bf16.mxu0 %v1186
        %1321 = vmatpush1.bf16.msra.mxu0 %v1185
        %1322 = vmatprep.subr.bf16.mxu0 %v1204
        %1323 = vmatpush1.bf16.msra.mxu0 %v1201
        %1324 = vmatprep.subr.bf16.mxu0 0
        %1325 = vmatpush1.bf16.msra.mxu0 0
        %1326 = vmatprep.subr.bf16.mxu0 0
        %1327 = vmatpush1.bf16.msra.mxu0 0
        %1328 = vmatprep.subr.bf16.mxu0 0
        %1329 = vmatpush1.bf16.msra.mxu0 0
        %1330 = vmatprep.subr.bf16.mxu0 0
        %1331 = vmatpush1.bf16.msra.mxu0 0
        %1332 = vmatprep.subr.bf16.mxu0 0
        %1333 = vmatpush1.bf16.msra.mxu0 0
        %1334 = vmatprep.subr.bf16.mxu0 0
        %1335 = vmatpush1.bf16.msra.mxu0 0
        %1336 = vmatprep.subr.bf16.mxu0 0
        %1337 = vmatpush1.bf16.msra.mxu0 0
        %1338 = vmatprep.subr.bf16.mxu0 0
        %1339 = vmatpush1.bf16.msra.mxu0 0
        %1340 = vmatprep.subr.bf16.mxu0 0
        %1341 = vmatpush1.bf16.msra.mxu0 0
        %1342 = vmatprep.subr.bf16.mxu0 0
        %1343 = vmatpush1.bf16.msra.mxu0 0
        %1344 = vmatprep.subr.bf16.mxu0 0
        %1345 = vmatpush1.bf16.msra.mxu0 0
        %1346 = vmatprep.subr.bf16.mxu0 0
        %1347 = vmatpush1.bf16.msra.mxu0 0
        %1348 = vmatprep.subr.bf16.mxu0 0
        %1349 = vmatpush1.bf16.msra.mxu0 0
        %1350 = vmatprep.subr.bf16.mxu0 0
        %1351 = vmatpush1.bf16.msra.mxu0 0
        %1352 = vmatprep.mubr.bf16.mxu0 0
        %1353 = vmatmul.mubr.bf16.gmra.mrb[0].mxu0 %v1315
        %v1354 = vpop.f32.mrb[0].mxu0
        %v1355 = vadd.f32 0.0, %v1354
        %v1356 = vpop.f32.mrb[0].mxu0
        %v1357 = vadd.f32 0.0, %v1356
        %v1358 = vpop.f32.mrb[0].mxu0
        %v1359 = vadd.f32 0.0, %v1358
        %v1360 = vpop.f32.mrb[0].mxu0
        %v1361 = vadd.f32 0.0, %v1360
        %1362 = vdwg.mxu0
        %1363 = vmatprep.subr.bf16.mxu0 %v1188
        %1364 = vmatpush1.bf16.msra.mxu0 %v1187
        %1365 = vmatprep.subr.bf16.mxu0 %v1210
        %1366 = vmatpush1.bf16.msra.mxu0 %v1207
        %1367 = vmatprep.subr.bf16.mxu0 0
        %1368 = vmatpush1.bf16.msra.mxu0 0
        %1369 = vmatprep.subr.bf16.mxu0 0
        %1370 = vmatpush1.bf16.msra.mxu0 0
        %1371 = vmatprep.subr.bf16.mxu0 0
        %1372 = vmatpush1.bf16.msra.mxu0 0
        %1373 = vmatprep.subr.bf16.mxu0 0
        %1374 = vmatpush1.bf16.msra.mxu0 0
        %1375 = vmatprep.subr.bf16.mxu0 0
        %1376 = vmatpush1.bf16.msra.mxu0 0
        %1377 = vmatprep.subr.bf16.mxu0 0
        %1378 = vmatpush1.bf16.msra.mxu0 0
        %1379 = vmatprep.subr.bf16.mxu0 0
        %1380 = vmatpush1.bf16.msra.mxu0 0
        %1381 = vmatprep.subr.bf16.mxu0 0
        %1382 = vmatpush1.bf16.msra.mxu0 0
        %1383 = vmatprep.subr.bf16.mxu0 0
        %1384 = vmatpush1.bf16.msra.mxu0 0
        %1385 = vmatprep.subr.bf16.mxu0 0
        %1386 = vmatpush1.bf16.msra.mxu0 0
        %1387 = vmatprep.subr.bf16.mxu0 0
        %1388 = vmatpush1.bf16.msra.mxu0 0
        %1389 = vmatprep.subr.bf16.mxu0 0
        %1390 = vmatpush1.bf16.msra.mxu0 0
        %1391 = vmatprep.subr.bf16.mxu0 0
        %1392 = vmatpush1.bf16.msra.mxu0 0
        %1393 = vmatprep.subr.bf16.mxu0 0
        %1394 = vmatpush1.bf16.msra.mxu0 0
        %1395 = vmatprep.mubr.bf16.mxu0 0
        %1396 = vmatmul.mubr.bf16.gmra.mrb[0].mxu0 %v1315
        %v1397 = vpop.f32.mrb[0].mxu0
        %v1398 = vadd.f32 0.0, %v1397
        %v1399 = vpop.f32.mrb[0].mxu0
        %v1400 = vadd.f32 0.0, %v1399
        %v1401 = vpop.f32.mrb[0].mxu0
        %v1402 = vadd.f32 0.0, %v1401
        %v1403 = vpop.f32.mrb[0].mxu0
        %v1404 = vadd.f32 0.0, %v1403
        %1405 = vdwg.mxu0
        %1406 = vmatprep.subr.bf16.mxu0 0
        %1407 = vmatpush1.bf16.msra.mxu0 %v1311
        %1408 = vmatprep.subr.bf16.mxu0 0
        %1409 = vmatpush1.bf16.msra.mxu0 %v1318
        %1410 = vmatprep.subr.bf16.mxu0 0
        %1411 = vmatpush1.bf16.msra.mxu0 0
        %1412 = vmatprep.subr.bf16.mxu0 0
        %1413 = vmatpush1.bf16.msra.mxu0 0
        %1414 = vmatprep.subr.bf16.mxu0 0
        %1415 = vmatpush1.bf16.msra.mxu0 0
        %1416 = vmatprep.subr.bf16.mxu0 0
        %1417 = vmatpush1.bf16.msra.mxu0 0
        %1418 = vmatprep.subr.bf16.mxu0 0
        %1419 = vmatpush1.bf16.msra.mxu0 0
        %1420 = vmatprep.subr.bf16.mxu0 0
        %1421 = vmatpush1.bf16.msra.mxu0 0
        %1422 = vmatprep.subr.bf16.mxu0 0
        %1423 = vmatpush1.bf16.msra.mxu0 0
        %1424 = vmatprep.subr.bf16.mxu0 0
        %1425 = vmatpush1.bf16.msra.mxu0 0
        %1426 = vmatprep.subr.bf16.mxu0 0
        %1427 = vmatpush1.bf16.msra.mxu0 0
        %1428 = vmatprep.subr.bf16.mxu0 0
        %1429 = vmatpush1.bf16.msra.mxu0 0
        %1430 = vmatprep.subr.bf16.mxu0 0
        %1431 = vmatpush1.bf16.msra.mxu0 0
        %1432 = vmatprep.subr.bf16.mxu0 0
        %1433 = vmatpush1.bf16.msra.mxu0 0
        %1434 = vmatprep.subr.bf16.mxu0 0
        %1435 = vmatpush1.bf16.msra.mxu0 0
        %1436 = vmatprep.subr.bf16.mxu0 0
        %1437 = vmatpush1.bf16.msra.mxu0 0
        %1438 = vmatprep.mubr.bf16.mxu0 0
        %1439 = vmatmul.mubr.bf16.gmra.mrb[0].mxu0 %v1315
        %v1440 = vpop.f32.mrb[0].mxu0
        %v1441 = vadd.f32 0.0, %v1440
        %v1442 = vpop.f32.mrb[0].mxu0
        %v1443 = vpop.f32.mrb[0].mxu0
        %v1444 = vadd.f32 0.0, %v1443
        %v1445 = vpop.f32.mrb[0].mxu0
        %1446 = vdwg.mxu0
        %1447 = vrot.lane.b32.xlu0 %v1355, 99
        %v1448 = vpop.permute.xlu0 %1447
        %1449 = vrot.lane.b32.xlu0 %v1359, 99
        %v1450 = vpop.permute.xlu0 %1449
        %1451 = vrot.lane.b32.xlu0 %v1357, 99
        %v1452 = vpop.permute.xlu0 %1451
        %1453 = vrot.lane.b32.xlu0 %v1361, 99
        %v1454 = vpop.permute.xlu0 %1453
        %1455 = vrot.lane.b32.xlu0 %v1398, 99
        %v1456 = vpop.permute.xlu0 %1455
        %1457 = vrot.lane.b32.xlu0 %v1402, 99
        %v1458 = vpop.permute.xlu0 %1457
        %1459 = vrot.lane.b32.xlu0 %v1400, 99
        %v1460 = vpop.permute.xlu0 %1459
        %1461 = vrot.lane.b32.xlu0 %v1404, 99
        %v1462 = vpop.permute.xlu0 %1461
        %1463 = vrot.lane.b32.xlu0 %v1441, 99
        %v1464 = vpop.permute.xlu0 %1463
        %1465 = vrot.lane.b32.xlu0 %v1444, 99
        %v1466 = vpop.permute.xlu0 %1465
        %v1467 = vsel %vm532, %v1460, %v1464
        %v1468 = vsel %vm532, %v1462, %v1466
        %v1469 = vsel %vm532, %v1456, %v1460
        %v1470 = vsel %vm532, %v1458, %v1462
        %v1471 = vsel %vm532, %v1452, %v1456
        %v1472 = vsel %vm532, %v1454, %v1458
        %v1473 = vsel %vm532, %v1448, %v1452
        %v1474 = vsel %vm532, %v1450, %v1454
        %v1475 = vadd.f32 %v1247, %v1473
        %v1476 = vadd.f32 %v1249, %v1471
        %v1477 = vadd.f32 %v1290, %v1469
        %v1478 = vadd.f32 %v1292, %v1467
        %v1479 = vadd.f32 %v1251, %v1474
        %v1480 = vadd.f32 %v1253, %v1472
        %v1481 = vadd.f32 %v1294, %v1470
        %v1482 = vadd.f32 %v1296, %v1468
        %v1483 = vld [vmem:[%s549] sm:$0xf]
        %v1484 = vld [vmem:[%s549 + $0x4] sm:$0x3]
        %v1487 = vunpack.c.l.b16 %v1483
        %v1488 = vunpack.c.l.b16 %v1484
        %v1489 = vpack.c.b16 %v1488, %v1487
        %v1491 = vsel %vm254, %v1489, 0
        %1493 = vmatprep.subr.bf16.mxu0 %v1186
        %1494 = vmatpush1.bf16.msra.mxu0 %v1185
        %1495 = vmatprep.subr.bf16.mxu0 %v1204
        %1496 = vmatpush1.bf16.msra.mxu0 %v1201
        %1497 = vmatprep.subr.bf16.mxu0 0
        %1498 = vmatpush1.bf16.msra.mxu0 0
        %1499 = vmatprep.subr.bf16.mxu0 0
        %1500 = vmatpush1.bf16.msra.mxu0 0
        %1501 = vmatprep.subr.bf16.mxu0 0
        %1502 = vmatpush1.bf16.msra.mxu0 0
        %1503 = vmatprep.subr.bf16.mxu0 0
        %1504 = vmatpush1.bf16.msra.mxu0 0
        %1505 = vmatprep.subr.bf16.mxu0 0
        %1506 = vmatpush1.bf16.msra.mxu0 0
        %1507 = vmatprep.subr.bf16.mxu0 0
        %1508 = vmatpush1.bf16.msra.mxu0 0
        %1509 = vmatprep.subr.bf16.mxu0 0
        %1510 = vmatpush1.bf16.msra.mxu0 0
        %1511 = vmatprep.subr.bf16.mxu0 0
        %1512 = vmatpush1.bf16.msra.mxu0 0
        %1513 = vmatprep.subr.bf16.mxu0 0
        %1514 = vmatpush1.bf16.msra.mxu0 0
        %1515 = vmatprep.subr.bf16.mxu0 0
        %1516 = vmatpush1.bf16.msra.mxu0 0
        %1517 = vmatprep.subr.bf16.mxu0 0
        %1518 = vmatpush1.bf16.msra.mxu0 0
        %1519 = vmatprep.subr.bf16.mxu0 0
        %1520 = vmatpush1.bf16.msra.mxu0 0
        %1521 = vmatprep.subr.bf16.mxu0 0
        %1522 = vmatpush1.bf16.msra.mxu0 0
        %1523 = vmatprep.subr.bf16.mxu0 0
        %1524 = vmatpush1.bf16.msra.mxu0 0
        %1525 = vmatprep.mubr.bf16.mxu0 0
        %1526 = vmatmul.mubr.bf16.gmra.mrb[0].mxu0 %v1491
        %v1527 = vpop.f32.mrb[0].mxu0
        %v1528 = vadd.f32 0.0, %v1527
        %v1529 = vpop.f32.mrb[0].mxu0
        %v1530 = vadd.f32 0.0, %v1529
        %v1531 = vpop.f32.mrb[0].mxu0
        %v1532 = vadd.f32 0.0, %v1531
        %v1533 = vpop.f32.mrb[0].mxu0
        %v1534 = vadd.f32 0.0, %v1533
        %1535 = vdwg.mxu0
        %1536 = vmatprep.subr.bf16.mxu0 %v1188
        %1537 = vmatpush1.bf16.msra.mxu0 %v1187
        %1538 = vmatprep.subr.bf16.mxu0 %v1210
        %1539 = vmatpush1.bf16.msra.mxu0 %v1207
        %1540 = vmatprep.subr.bf16.mxu0 0
        %1541 = vmatpush1.bf16.msra.mxu0 0
        %1542 = vmatprep.subr.bf16.mxu0 0
        %1543 = vmatpush1.bf16.msra.mxu0 0
        %1544 = vmatprep.subr.bf16.mxu0 0
        %1545 = vmatpush1.bf16.msra.mxu0 0
        %1546 = vmatprep.subr.bf16.mxu0 0
        %1547 = vmatpush1.bf16.msra.mxu0 0
        %1548 = vmatprep.subr.bf16.mxu0 0
        %1549 = vmatpush1.bf16.msra.mxu0 0
        %1550 = vmatprep.subr.bf16.mxu0 0
        %1551 = vmatpush1.bf16.msra.mxu0 0
        %1552 = vmatprep.subr.bf16.mxu0 0
        %1553 = vmatpush1.bf16.msra.mxu0 0
        %1554 = vmatprep.subr.bf16.mxu0 0
        %1555 = vmatpush1.bf16.msra.mxu0 0
        %1556 = vmatprep.subr.bf16.mxu0 0
        %1557 = vmatpush1.bf16.msra.mxu0 0
        %1558 = vmatprep.subr.bf16.mxu0 0
        %1559 = vmatpush1.bf16.msra.mxu0 0
        %1560 = vmatprep.subr.bf16.mxu0 0
        %1561 = vmatpush1.bf16.msra.mxu0 0
        %1562 = vmatprep.subr.bf16.mxu0 0
        %1563 = vmatpush1.bf16.msra.mxu0 0
        %1564 = vmatprep.subr.bf16.mxu0 0
        %1565 = vmatpush1.bf16.msra.mxu0 0
        %1566 = vmatprep.subr.bf16.mxu0 0
        %1567 = vmatpush1.bf16.msra.mxu0 0
        %1568 = vmatprep.mubr.bf16.mxu0 0
        %1569 = vmatmul.mubr.bf16.gmra.mrb[0].mxu0 %v1491
        %v1570 = vpop.f32.mrb[0].mxu0
        %v1571 = vadd.f32 0.0, %v1570
        %v1572 = vpop.f32.mrb[0].mxu0
        %v1573 = vadd.f32 0.0, %v1572
        %v1574 = vpop.f32.mrb[0].mxu0
        %v1575 = vadd.f32 0.0, %v1574
        %v1576 = vpop.f32.mrb[0].mxu0
        %v1577 = vadd.f32 0.0, %v1576
        %1578 = vdwg.mxu0
        %1579 = vmatprep.subr.bf16.mxu0 0
        %1580 = vmatpush1.bf16.msra.mxu0 %v1311
        %1581 = vmatprep.subr.bf16.mxu0 0
        %1582 = vmatpush1.bf16.msra.mxu0 %v1318
        %1583 = vmatprep.subr.bf16.mxu0 0
        %1584 = vmatpush1.bf16.msra.mxu0 0
        %1585 = vmatprep.subr.bf16.mxu0 0
        %1586 = vmatpush1.bf16.msra.mxu0 0
        %1587 = vmatprep.subr.bf16.mxu0 0
        %1588 = vmatpush1.bf16.msra.mxu0 0
        %1589 = vmatprep.subr.bf16.mxu0 0
        %1590 = vmatpush1.bf16.msra.mxu0 0
        %1591 = vmatprep.subr.bf16.mxu0 0
        %1592 = vmatpush1.bf16.msra.mxu0 0
        %1593 = vmatprep.subr.bf16.mxu0 0
        %1594 = vmatpush1.bf16.msra.mxu0 0
        %1595 = vmatprep.subr.bf16.mxu0 0
        %1596 = vmatpush1.bf16.msra.mxu0 0
        %1597 = vmatprep.subr.bf16.mxu0 0
        %1598 = vmatpush1.bf16.msra.mxu0 0
        %1599 = vmatprep.subr.bf16.mxu0 0
        %1600 = vmatpush1.bf16.msra.mxu0 0
        %1601 = vmatprep.subr.bf16.mxu0 0
        %1602 = vmatpush1.bf16.msra.mxu0 0
        %1603 = vmatprep.subr.bf16.mxu0 0
        %1604 = vmatpush1.bf16.msra.mxu0 0
        %1605 = vmatprep.subr.bf16.mxu0 0
        %1606 = vmatpush1.bf16.msra.mxu0 0
        %1607 = vmatprep.subr.bf16.mxu0 0
        %1608 = vmatpush1.bf16.msra.mxu0 0
        %1609 = vmatprep.subr.bf16.mxu0 0
        %1610 = vmatpush1.bf16.msra.mxu0 0
        %1611 = vmatprep.mubr.bf16.mxu0 0
        %1612 = vmatmul.mubr.bf16.gmra.mrb[0].mxu0 %v1491
        %v1613 = vpop.f32.mrb[0].mxu0
        %v1614 = vadd.f32 0.0, %v1613
        %v1615 = vpop.f32.mrb[0].mxu0
        %v1616 = vpop.f32.mrb[0].mxu0
        %v1617 = vadd.f32 0.0, %v1616
        %v1618 = vpop.f32.mrb[0].mxu0
        %1619 = vdwg.mxu0
        %1620 = vrot.lane.b32.xlu0 %v1528, 70
        %v1621 = vpop.permute.xlu0 %1620
        %1622 = vrot.lane.b32.xlu0 %v1532, 70
        %v1623 = vpop.permute.xlu0 %1622
        %1624 = vrot.lane.b32.xlu0 %v1530, 70
        %v1625 = vpop.permute.xlu0 %1624
        %1626 = vrot.lane.b32.xlu0 %v1534, 70
        %v1627 = vpop.permute.xlu0 %1626
        %1628 = vrot.lane.b32.xlu0 %v1571, 70
        %v1629 = vpop.permute.xlu0 %1628
        %1630 = vrot.lane.b32.xlu0 %v1575, 70
        %v1631 = vpop.permute.xlu0 %1630
        %1632 = vrot.lane.b32.xlu0 %v1573, 70
        %v1633 = vpop.permute.xlu0 %1632
        %1634 = vrot.lane.b32.xlu0 %v1577, 70
        %v1635 = vpop.permute.xlu0 %1634
        %1636 = vrot.lane.b32.xlu0 %v1614, 70
        %v1637 = vpop.permute.xlu0 %1636
        %1638 = vrot.lane.b32.xlu0 %v1617, 70
        %v1639 = vpop.permute.xlu0 %1638
        %v1640 = vsel %vm707, %v1633, %v1637
        %v1641 = vsel %vm707, %v1635, %v1639
        %v1642 = vsel %vm707, %v1629, %v1633
        %v1643 = vsel %vm707, %v1631, %v1635
        %v1644 = vsel %vm707, %v1625, %v1629
        %v1645 = vsel %vm707, %v1627, %v1631
        %v1646 = vsel %vm707, %v1621, %v1625
        %v1647 = vsel %vm707, %v1623, %v1627
        %v1648 = vadd.f32 %v1475, %v1646
        %v1649 = vadd.f32 %v1476, %v1644
        %v1650 = vadd.f32 %v1477, %v1642
        %v1651 = vadd.f32 %v1478, %v1640
        %v1652 = vadd.f32 %v1479, %v1647
        %v1653 = vadd.f32 %v1480, %v1645
        %v1654 = vadd.f32 %v1481, %v1643
        %v1655 = vadd.f32 %v1482, %v1641
        %v1656 = vld [vmem:[%s724] sm:$0xf]
        %v1657 = vld [vmem:[%s724 + $0x4] sm:$0x3]
        %v1660 = vunpack.c.l.b16 %v1656
        %v1661 = vunpack.c.l.b16 %v1657
        %v1662 = vpack.c.b16 %v1661, %v1660
        %v1664 = vsel %vm254, %v1662, 0
        %1666 = vmatprep.subr.bf16.mxu0 %v1186
        %1667 = vmatpush1.bf16.msra.mxu0 %v1185
        %1668 = vmatprep.subr.bf16.mxu0 %v1204
        %1669 = vmatpush1.bf16.msra.mxu0 %v1201
        %1670 = vmatprep.subr.bf16.mxu0 0
        %1671 = vmatpush1.bf16.msra.mxu0 0
        %1672 = vmatprep.subr.bf16.mxu0 0
        %1673 = vmatpush1.bf16.msra.mxu0 0
        %1674 = vmatprep.subr.bf16.mxu0 0
        %1675 = vmatpush1.bf16.msra.mxu0 0
        %1676 = vmatprep.subr.bf16.mxu0 0
        %1677 = vmatpush1.bf16.msra.mxu0 0
        %1678 = vmatprep.subr.bf16.mxu0 0
        %1679 = vmatpush1.bf16.msra.mxu0 0
        %1680 = vmatprep.subr.bf16.mxu0 0
        %1681 = vmatpush1.bf16.msra.mxu0 0
        %1682 = vmatprep.subr.bf16.mxu0 0
        %1683 = vmatpush1.bf16.msra.mxu0 0
        %1684 = vmatprep.subr.bf16.mxu0 0
        %1685 = vmatpush1.bf16.msra.mxu0 0
        %1686 = vmatprep.subr.bf16.mxu0 0
        %1687 = vmatpush1.bf16.msra.mxu0 0
        %1688 = vmatprep.subr.bf16.mxu0 0
        %1689 = vmatpush1.bf16.msra.mxu0 0
        %1690 = vmatprep.subr.bf16.mxu0 0
        %1691 = vmatpush1.bf16.msra.mxu0 0
        %1692 = vmatprep.subr.bf16.mxu0 0
        %1693 = vmatpush1.bf16.msra.mxu0 0
        %1694 = vmatprep.subr.bf16.mxu0 0
        %1695 = vmatpush1.bf16.msra.mxu0 0
        %1696 = vmatprep.subr.bf16.mxu0 0
        %1697 = vmatpush1.bf16.msra.mxu0 0
        %1698 = vmatprep.mubr.bf16.mxu0 0
        %1699 = vmatmul.mubr.bf16.gmra.mrb[0].mxu0 %v1664
        %v1700 = vpop.f32.mrb[0].mxu0
        %v1701 = vadd.f32 0.0, %v1700
        %v1702 = vpop.f32.mrb[0].mxu0
        %v1703 = vadd.f32 0.0, %v1702
        %v1704 = vpop.f32.mrb[0].mxu0
        %v1705 = vadd.f32 0.0, %v1704
        %v1706 = vpop.f32.mrb[0].mxu0
        %v1707 = vadd.f32 0.0, %v1706
        %1708 = vdwg.mxu0
        %1709 = vmatprep.subr.bf16.mxu0 %v1188
        %1710 = vmatpush1.bf16.msra.mxu0 %v1187
        %1711 = vmatprep.subr.bf16.mxu0 %v1210
        %1712 = vmatpush1.bf16.msra.mxu0 %v1207
        %1713 = vmatprep.subr.bf16.mxu0 0
        %1714 = vmatpush1.bf16.msra.mxu0 0
        %1715 = vmatprep.subr.bf16.mxu0 0
        %1716 = vmatpush1.bf16.msra.mxu0 0
        %1717 = vmatprep.subr.bf16.mxu0 0
        %1718 = vmatpush1.bf16.msra.mxu0 0
        %1719 = vmatprep.subr.bf16.mxu0 0
        %1720 = vmatpush1.bf16.msra.mxu0 0
        %1721 = vmatprep.subr.bf16.mxu0 0
        %1722 = vmatpush1.bf16.msra.mxu0 0
        %1723 = vmatprep.subr.bf16.mxu0 0
        %1724 = vmatpush1.bf16.msra.mxu0 0
        %1725 = vmatprep.subr.bf16.mxu0 0
        %1726 = vmatpush1.bf16.msra.mxu0 0
        %1727 = vmatprep.subr.bf16.mxu0 0
        %1728 = vmatpush1.bf16.msra.mxu0 0
        %1729 = vmatprep.subr.bf16.mxu0 0
        %1730 = vmatpush1.bf16.msra.mxu0 0
        %1731 = vmatprep.subr.bf16.mxu0 0
        %1732 = vmatpush1.bf16.msra.mxu0 0
        %1733 = vmatprep.subr.bf16.mxu0 0
        %1734 = vmatpush1.bf16.msra.mxu0 0
        %1735 = vmatprep.subr.bf16.mxu0 0
        %1736 = vmatpush1.bf16.msra.mxu0 0
        %1737 = vmatprep.subr.bf16.mxu0 0
        %1738 = vmatpush1.bf16.msra.mxu0 0
        %1739 = vmatprep.subr.bf16.mxu0 0
        %1740 = vmatpush1.bf16.msra.mxu0 0
        %1741 = vmatprep.mubr.bf16.mxu0 0
        %1742 = vmatmul.mubr.bf16.gmra.mrb[0].mxu0 %v1664
        %v1743 = vpop.f32.mrb[0].mxu0
        %v1744 = vadd.f32 0.0, %v1743
        %v1745 = vpop.f32.mrb[0].mxu0
        %v1746 = vadd.f32 0.0, %v1745
        %v1747 = vpop.f32.mrb[0].mxu0
        %v1748 = vadd.f32 0.0, %v1747
        %v1749 = vpop.f32.mrb[0].mxu0
        %v1750 = vadd.f32 0.0, %v1749
        %1751 = vdwg.mxu0
        %1752 = vmatprep.subr.bf16.mxu0 0
        %1753 = vmatpush1.bf16.msra.mxu0 %v1311
        %1754 = vmatprep.subr.bf16.mxu0 0
        %1755 = vmatpush1.bf16.msra.mxu0 %v1318
        %1756 = vmatprep.subr.bf16.mxu0 0
        %1757 = vmatpush1.bf16.msra.mxu0 0
        %1758 = vmatprep.subr.bf16.mxu0 0
        %1759 = vmatpush1.bf16.msra.mxu0 0
        %1760 = vmatprep.subr.bf16.mxu0 0
        %1761 = vmatpush1.bf16.msra.mxu0 0
        %1762 = vmatprep.subr.bf16.mxu0 0
        %1763 = vmatpush1.bf16.msra.mxu0 0
        %1764 = vmatprep.subr.bf16.mxu0 0
        %1765 = vmatpush1.bf16.msra.mxu0 0
        %1766 = vmatprep.subr.bf16.mxu0 0
        %1767 = vmatpush1.bf16.msra.mxu0 0
        %1768 = vmatprep.subr.bf16.mxu0 0
        %1769 = vmatpush1.bf16.msra.mxu0 0
        %1770 = vmatprep.subr.bf16.mxu0 0
        %1771 = vmatpush1.bf16.msra.mxu0 0
        %1772 = vmatprep.subr.bf16.mxu0 0
        %1773 = vmatpush1.bf16.msra.mxu0 0
        %1774 = vmatprep.subr.bf16.mxu0 0
        %1775 = vmatpush1.bf16.msra.mxu0 0
        %1776 = vmatprep.subr.bf16.mxu0 0
        %1777 = vmatpush1.bf16.msra.mxu0 0
        %1778 = vmatprep.subr.bf16.mxu0 0
        %1779 = vmatpush1.bf16.msra.mxu0 0
        %1780 = vmatprep.subr.bf16.mxu0 0
        %1781 = vmatpush1.bf16.msra.mxu0 0
        %1782 = vmatprep.subr.bf16.mxu0 0
        %1783 = vmatpush1.bf16.msra.mxu0 0
        %1784 = vmatprep.mubr.bf16.mxu0 0
        %1785 = vmatmul.mubr.bf16.gmra.mrb[0].mxu0 %v1664
        %v1786 = vpop.f32.mrb[0].mxu0
        %v1787 = vadd.f32 0.0, %v1786
        %v1788 = vpop.f32.mrb[0].mxu0
        %v1789 = vpop.f32.mrb[0].mxu0
        %v1790 = vadd.f32 0.0, %v1789
        %v1791 = vpop.f32.mrb[0].mxu0
        %1792 = vdwg.mxu0
        %1793 = vrot.lane.b32.xlu0 %v1701, 41
        %v1794 = vpop.permute.xlu0 %1793
        %1795 = vrot.lane.b32.xlu0 %v1705, 41
        %v1796 = vpop.permute.xlu0 %1795
        %1797 = vrot.lane.b32.xlu0 %v1703, 41
        %v1798 = vpop.permute.xlu0 %1797
        %1799 = vrot.lane.b32.xlu0 %v1707, 41
        %v1800 = vpop.permute.xlu0 %1799
        %1801 = vrot.lane.b32.xlu0 %v1744, 41
        %v1802 = vpop.permute.xlu0 %1801
        %1803 = vrot.lane.b32.xlu0 %v1748, 41
        %v1804 = vpop.permute.xlu0 %1803
        %1805 = vrot.lane.b32.xlu0 %v1746, 41
        %v1806 = vpop.permute.xlu0 %1805
        %1807 = vrot.lane.b32.xlu0 %v1750, 41
        %v1808 = vpop.permute.xlu0 %1807
        %1809 = vrot.lane.b32.xlu0 %v1787, 41
        %v1810 = vpop.permute.xlu0 %1809
        %1811 = vrot.lane.b32.xlu0 %v1790, 41
        %v1812 = vpop.permute.xlu0 %1811
        %v1813 = vsel %vm882, %v1806, %v1810
        %v1814 = vsel %vm882, %v1808, %v1812
        %v1815 = vsel %vm882, %v1802, %v1806
        %v1816 = vsel %vm882, %v1804, %v1808
        %v1817 = vsel %vm882, %v1798, %v1802
        %v1818 = vsel %vm882, %v1800, %v1804
        %v1819 = vsel %vm882, %v1794, %v1798
        %v1820 = vsel %vm882, %v1796, %v1800
        %v1821 = vadd.f32 %v1648, %v1819
        %v1822 = vadd.f32 %v1649, %v1817
        %v1823 = vadd.f32 %v1650, %v1815
        %v1824 = vadd.f32 %v1651, %v1813
        %v1825 = vadd.f32 %v1652, %v1820
        %v1826 = vadd.f32 %v1653, %v1818
        %v1827 = vadd.f32 %v1654, %v1816
        %v1828 = vadd.f32 %v1655, %v1814
        %v1829 = vld [vmem:[%s899] sm:$0xf]
        %v1830 = vld [vmem:[%s899 + $0x4] sm:$0x3]
        %v1833 = vunpack.c.l.b16 %v1829
        %v1834 = vunpack.c.l.b16 %v1830
        %v1835 = vpack.c.b16 %v1834, %v1833
        %v1837 = vsel %vm254, %v1835, 0
        %1839 = vmatprep.subr.bf16.mxu0 %v1186
        %1840 = vmatpush1.bf16.msra.mxu0 %v1185
        %1841 = vmatprep.subr.bf16.mxu0 %v1204
        %1842 = vmatpush1.bf16.msra.mxu0 %v1201
        %1843 = vmatprep.subr.bf16.mxu0 0
        %1844 = vmatpush1.bf16.msra.mxu0 0
        %1845 = vmatprep.subr.bf16.mxu0 0
        %1846 = vmatpush1.bf16.msra.mxu0 0
        %1847 = vmatprep.subr.bf16.mxu0 0
        %1848 = vmatpush1.bf16.msra.mxu0 0
        %1849 = vmatprep.subr.bf16.mxu0 0
        %1850 = vmatpush1.bf16.msra.mxu0 0
        %1851 = vmatprep.subr.bf16.mxu0 0
        %1852 = vmatpush1.bf16.msra.mxu0 0
        %1853 = vmatprep.subr.bf16.mxu0 0
        %1854 = vmatpush1.bf16.msra.mxu0 0
        %1855 = vmatprep.subr.bf16.mxu0 0
        %1856 = vmatpush1.bf16.msra.mxu0 0
        %1857 = vmatprep.subr.bf16.mxu0 0
        %1858 = vmatpush1.bf16.msra.mxu0 0
        %1859 = vmatprep.subr.bf16.mxu0 0
        %1860 = vmatpush1.bf16.msra.mxu0 0
        %1861 = vmatprep.subr.bf16.mxu0 0
        %1862 = vmatpush1.bf16.msra.mxu0 0
        %1863 = vmatprep.subr.bf16.mxu0 0
        %1864 = vmatpush1.bf16.msra.mxu0 0
        %1865 = vmatprep.subr.bf16.mxu0 0
        %1866 = vmatpush1.bf16.msra.mxu0 0
        %1867 = vmatprep.subr.bf16.mxu0 0
        %1868 = vmatpush1.bf16.msra.mxu0 0
        %1869 = vmatprep.subr.bf16.mxu0 0
        %1870 = vmatpush1.bf16.msra.mxu0 0
        %1871 = vmatprep.mubr.bf16.mxu0 0
        %1872 = vmatmul.mubr.bf16.gmra.mrb[0].mxu0 %v1837
        %v1873 = vpop.f32.mrb[0].mxu0
        %v1874 = vadd.f32 0.0, %v1873
        %v1875 = vpop.f32.mrb[0].mxu0
        %v1876 = vadd.f32 0.0, %v1875
        %v1877 = vpop.f32.mrb[0].mxu0
        %v1878 = vadd.f32 0.0, %v1877
        %v1879 = vpop.f32.mrb[0].mxu0
        %v1880 = vadd.f32 0.0, %v1879
        %1881 = vdwg.mxu0
        %1882 = vmatprep.subr.bf16.mxu0 %v1188
        %1883 = vmatpush1.bf16.msra.mxu0 %v1187
        %1884 = vmatprep.subr.bf16.mxu0 %v1210
        %1885 = vmatpush1.bf16.msra.mxu0 %v1207
        %1886 = vmatprep.subr.bf16.mxu0 0
        %1887 = vmatpush1.bf16.msra.mxu0 0
        %1888 = vmatprep.subr.bf16.mxu0 0
        %1889 = vmatpush1.bf16.msra.mxu0 0
        %1890 = vmatprep.subr.bf16.mxu0 0
        %1891 = vmatpush1.bf16.msra.mxu0 0
        %1892 = vmatprep.subr.bf16.mxu0 0
        %1893 = vmatpush1.bf16.msra.mxu0 0
        %1894 = vmatprep.subr.bf16.mxu0 0
        %1895 = vmatpush1.bf16.msra.mxu0 0
        %1896 = vmatprep.subr.bf16.mxu0 0
        %1897 = vmatpush1.bf16.msra.mxu0 0
        %1898 = vmatprep.subr.bf16.mxu0 0
        %1899 = vmatpush1.bf16.msra.mxu0 0
        %1900 = vmatprep.subr.bf16.mxu0 0
        %1901 = vmatpush1.bf16.msra.mxu0 0
        %1902 = vmatprep.subr.bf16.mxu0 0
        %1903 = vmatpush1.bf16.msra.mxu0 0
        %1904 = vmatprep.subr.bf16.mxu0 0
        %1905 = vmatpush1.bf16.msra.mxu0 0
        %1906 = vmatprep.subr.bf16.mxu0 0
        %1907 = vmatpush1.bf16.msra.mxu0 0
        %1908 = vmatprep.subr.bf16.mxu0 0
        %1909 = vmatpush1.bf16.msra.mxu0 0
        %1910 = vmatprep.subr.bf16.mxu0 0
        %1911 = vmatpush1.bf16.msra.mxu0 0
        %1912 = vmatprep.subr.bf16.mxu0 0
        %1913 = vmatpush1.bf16.msra.mxu0 0
        %1914 = vmatprep.mubr.bf16.mxu0 0
        %1915 = vmatmul.mubr.bf16.gmra.mrb[0].mxu0 %v1837
        %v1916 = vpop.f32.mrb[0].mxu0
        %v1917 = vadd.f32 0.0, %v1916
        %v1918 = vpop.f32.mrb[0].mxu0
        %v1919 = vadd.f32 0.0, %v1918
        %v1920 = vpop.f32.mrb[0].mxu0
        %v1921 = vadd.f32 0.0, %v1920
        %v1922 = vpop.f32.mrb[0].mxu0
        %v1923 = vadd.f32 0.0, %v1922
        %1924 = vdwg.mxu0
        %1925 = vmatprep.subr.bf16.mxu0 0
        %1926 = vmatpush1.bf16.msra.mxu0 %v1311
        %1927 = vmatprep.subr.bf16.mxu0 0
        %1928 = vmatpush1.bf16.msra.mxu0 %v1318
        %1929 = vmatprep.subr.bf16.mxu0 0
        %1930 = vmatpush1.bf16.msra.mxu0 0
        %1931 = vmatprep.subr.bf16.mxu0 0
        %1932 = vmatpush1.bf16.msra.mxu0 0
        %1933 = vmatprep.subr.bf16.mxu0 0
        %1934 = vmatpush1.bf16.msra.mxu0 0
        %1935 = vmatprep.subr.bf16.mxu0 0
        %1936 = vmatpush1.bf16.msra.mxu0 0
        %1937 = vmatprep.subr.bf16.mxu0 0
        %1938 = vmatpush1.bf16.msra.mxu0 0
        %1939 = vmatprep.subr.bf16.mxu0 0
        %1940 = vmatpush1.bf16.msra.mxu0 0
        %1941 = vmatprep.subr.bf16.mxu0 0
        %1942 = vmatpush1.bf16.msra.mxu0 0
        %1943 = vmatprep.subr.bf16.mxu0 0
        %1944 = vmatpush1.bf16.msra.mxu0 0
        %1945 = vmatprep.subr.bf16.mxu0 0
        %1946 = vmatpush1.bf16.msra.mxu0 0
        %1947 = vmatprep.subr.bf16.mxu0 0
        %1948 = vmatpush1.bf16.msra.mxu0 0
        %1949 = vmatprep.subr.bf16.mxu0 0
        %1950 = vmatpush1.bf16.msra.mxu0 0
        %1951 = vmatprep.subr.bf16.mxu0 0
        %1952 = vmatpush1.bf16.msra.mxu0 0
        %1953 = vmatprep.subr.bf16.mxu0 0
        %1954 = vmatpush1.bf16.msra.mxu0 0
        %1955 = vmatprep.subr.bf16.mxu0 0
        %1956 = vmatpush1.bf16.msra.mxu0 0
        %1957 = vmatprep.mubr.bf16.mxu0 0
        %1958 = vmatmul.mubr.bf16.gmra.mrb[0].mxu0 %v1837
        %v1959 = vpop.f32.mrb[0].mxu0
        %v1960 = vadd.f32 0.0, %v1959
        %v1961 = vpop.f32.mrb[0].mxu0
        %v1962 = vpop.f32.mrb[0].mxu0
        %v1963 = vadd.f32 0.0, %v1962
        %v1964 = vpop.f32.mrb[0].mxu0
        %1965 = vdwg.mxu0
        %1966 = vrot.lane.b32.xlu0 %v1874, 12
        %v1967 = vpop.permute.xlu0 %1966
        %1968 = vrot.lane.b32.xlu0 %v1878, 12
        %v1969 = vpop.permute.xlu0 %1968
        %1970 = vrot.lane.b32.xlu0 %v1876, 12
        %v1971 = vpop.permute.xlu0 %1970
        %1972 = vrot.lane.b32.xlu0 %v1880, 12
        %v1973 = vpop.permute.xlu0 %1972
        %1974 = vrot.lane.b32.xlu0 %v1917, 12
        %v1975 = vpop.permute.xlu0 %1974
        %1976 = vrot.lane.b32.xlu0 %v1921, 12
        %v1977 = vpop.permute.xlu0 %1976
        %1978 = vrot.lane.b32.xlu0 %v1919, 12
        %v1979 = vpop.permute.xlu0 %1978
        %1980 = vrot.lane.b32.xlu0 %v1923, 12
        %v1981 = vpop.permute.xlu0 %1980
        %1982 = vrot.lane.b32.xlu0 %v1960, 12
        %v1983 = vpop.permute.xlu0 %1982
        %1984 = vrot.lane.b32.xlu0 %v1963, 12
        %v1985 = vpop.permute.xlu0 %1984
        %v1986 = vsel %vm1057, %v1979, %v1983
        %v1987 = vsel %vm1057, %v1981, %v1985
        %v1988 = vsel %vm1057, %v1975, %v1979
        %v1989 = vsel %vm1057, %v1977, %v1981
        %v1990 = vsel %vm1057, %v1971, %v1975
        %v1991 = vsel %vm1057, %v1973, %v1977
        %v1992 = vsel %vm1057, %v1967, %v1971
        %v1993 = vsel %vm1057, %v1969, %v1973
        %v1994 = vadd.f32 %v1821, %v1992
        %v1995 = vadd.f32 %v1822, %v1990
        %v1996 = vadd.f32 %v1823, %v1988
        %v1997 = vadd.f32 %v1824, %v1986
        %v1998 = vadd.f32 %v1825, %v1993
        %v1999 = vadd.f32 %v1826, %v1991
        %v2000 = vadd.f32 %v1827, %v1989
        %v2001 = vadd.f32 %v1828, %v1987
        %v2002 = vld [vmem:[%s2] sm:$0xff]
        %v2003 = vld [vmem:[%s2 + $0x8] sm:$0xf]
        %2005 = vset.pattern.permute.xlu0 0
        %2006 = vperm.xlu0 %2005, %v2002
        %v2007 = vpop.permute.xlu0 %2006
        %2010 = vset.pattern.permute.xlu0 0
        %2011 = vperm.xlu0 %2010, %v2003
        %v2012 = vpop.permute.xlu0 %2011
        %v2014 = vadd.f32 %v1994, %v2007
        %v2015 = vadd.f32 %v1995, %v2007
        %v2016 = vadd.f32 %v1996, %v2007
        %v2017 = vadd.f32 %v1997, %v2007
        %v2018 = vadd.f32 %v1998, %v2012
        %v2019 = vadd.f32 %v1999, %v2012
        %v2020 = vadd.f32 %v2000, %v2012
        %v2021 = vadd.f32 %v2001, %v2012
        %vm2022 = vcmp.gt.f32.partialorder %v2014, 0.0
        %vm2023 = vcmp.gt.f32.partialorder %v2015, 0.0
        %vm2024 = vcmp.gt.f32.partialorder %v2016, 0.0
        %vm2025 = vcmp.gt.f32.partialorder %v2017, 0.0
        %vm2026 = vcmp.gt.f32.partialorder %v2018, 0.0
        %vm2027 = vcmp.gt.f32.partialorder %v2019, 0.0
        %vm2028 = vcmp.gt.f32.partialorder %v2020, 0.0
        %vm2029 = vcmp.gt.f32.partialorder %v2021, 0.0
        %v2030 = vmin.f32 %v2014, 0.0
        %v2031 = vmin.f32 %v2015, 0.0
        %v2032 = vmin.f32 %v2016, 0.0
        %v2033 = vmin.f32 %v2017, 0.0
        %v2034 = vmin.f32 %v2018, 0.0
        %v2035 = vmin.f32 %v2019, 0.0
        %v2036 = vmin.f32 %v2020, 0.0
        %v2037 = vmin.f32 %v2021, 0.0
        %v2038 = vmul.f32 %v2030, 1.442695
        %v2039 = vpow.pop %v2038
        %v2040 = vmul.f32 %v2031, 1.442695
        %v2041 = vpow.pop %v2040
        %v2042 = vmul.f32 %v2032, 1.442695
        %v2043 = vpow.pop %v2042
        %v2044 = vmul.f32 %v2033, 1.442695
        %v2045 = vpow.pop %v2044
        %v2046 = vmul.f32 %v2034, 1.442695
        %v2047 = vpow.pop %v2046
        %v2048 = vmul.f32 %v2035, 1.442695
        %v2049 = vpow.pop %v2048
        %v2050 = vmul.f32 %v2036, 1.442695
        %v2051 = vpow.pop %v2050
        %v2052 = vmul.f32 %v2037, 1.442695
        %v2053 = vpow.pop %v2052
        %v2054 = vsub.f32 %v2039, 1.0
        %v2055 = vsub.f32 %v2041, 1.0
        %v2056 = vsub.f32 %v2043, 1.0
        %v2057 = vsub.f32 %v2045, 1.0
        %v2058 = vsub.f32 %v2047, 1.0
        %v2059 = vsub.f32 %v2049, 1.0
        %v2060 = vsub.f32 %v2051, 1.0
        %v2061 = vsub.f32 %v2053, 1.0
        %v2062 = vsel %vm2022, %v2014, %v2054
        %v2063 = vsel %vm2023, %v2015, %v2055
        %v2064 = vsel %vm2024, %v2016, %v2056
        %v2065 = vsel %vm2025, %v2017, %v2057
        %v2066 = vsel %vm2026, %v2018, %v2058
        %v2067 = vsel %vm2027, %v2019, %v2059
        %v2068 = vsel %vm2028, %v2020, %v2060
        %v2069 = vsel %vm2029, %v2021, %v2061
        %s2070 = scalar_lea.vmem %s204, 64 [#allocation7]
        %2071 = vst [vmem:[%s2070] sm:$0xff] %v2062
        %2072 = vst [vmem:[%s2070 + $0x8] sm:$0xff] %v2063
        %2073 = vst [vmem:[%s2070 + $0x10] sm:$0xff] %v2064
        %2074 = vst [vmem:[%s2070 + $0x18] sm:$0xff] %v2065
        %2075 = vst [vmem:[%s2070 + $0x20] sm:$0xf] %v2066
        %2076 = vst [vmem:[%s2070 + $0x28] sm:$0xf] %v2067
        %2077 = vst [vmem:[%s2070 + $0x30] sm:$0xf] %v2068
        %2078 = vst [vmem:[%s2070 + $0x38] sm:$0xf] %v2069
        %s2079 = scalar_lea.vmem %s178, 120 [#allocation2]
        %v2080 = vld [vmem:[%s2079] sm:$0xff]
        %v2081 = vld [vmem:[%s2079 + $0x8] sm:$0xff]
        %v2082 = vld [vmem:[%s2079 + $0x10] sm:$0xf]
        %v2083 = vld [vmem:[%s2079 + $0x14] sm:$0xff]
        %v2084 = vld [vmem:[%s2079 + $0x1c] sm:$0xff]
        %v2085 = vld [vmem:[%s2079 + $0x24] sm:$0xf]
        %v2086 = vld [vmem:[%s2079 + $0x28] sm:$0x77]
        %v2087 = vld [vmem:[%s2079 + $0x30] sm:$0x77]
        %v2088 = vld [vmem:[%s2079 + $0x38] sm:$0x7]
        %v2089 = vld [vmem:[#allocation5] sm:$0xf]
        %v2090 = vld [vmem:[#allocation5 + $0x4] sm:$0x3]
        %v2093 = vunpack.c.l.b16 %v2089
        %v2094 = vunpack.c.l.b16 %v2090
        %v2095 = vpack.c.b16 %v2094, %v2093
        %v2102 = vunpack.c.l.b16 %v2080
        %v2103 = vunpack.c.h.b16 %v2080
        %v2104 = vunpack.c.l.b16 %v2081
        %v2105 = vunpack.c.h.b16 %v2081
        %v2106 = vunpack.c.l.b16 %v2083
        %v2107 = vunpack.c.h.b16 %v2083
        %v2108 = vunpack.c.l.b16 %v2084
        %v2109 = vunpack.c.h.b16 %v2084
        %v2110 = vunpack.c.l.b16 %v2086
        %v2111 = vunpack.c.h.b16 %v2086
        %v2112 = vunpack.c.l.b16 %v2087
        %v2113 = vunpack.c.h.b16 %v2087
        %v2114 = vpack.c.b16 %v2106, %v2102
        %v2115 = vpack.c.b16 %v2107, %v2103
        %v2116 = vpack.c.b16 %v2108, %v2104
        %v2117 = vpack.c.b16 %v2109, %v2105
        %v2118 = vpack.c.b16 %v2110, %v2110
        %v2119 = vpack.c.b16 %v2111, %v2111
        %v2120 = vpack.c.b16 %v2112, %v2112
        %v2121 = vpack.c.b16 %v2113, %v2113
        %v2127 = vsel %vm254, %v2095, 0
        %v2130 = vand.u32 %v2118, %v261
        %v2133 = vand.u32 %v2119, %v261
        %v2136 = vand.u32 %v2120, %v261
        %v2139 = vand.u32 %v2121, %v261
        %2141 = vmatprep.subr.bf16.mxu0 %v2115
        %2142 = vmatpush1.bf16.msra.mxu0 %v2114
        %2143 = vmatprep.subr.bf16.mxu0 %v2133
        %2144 = vmatpush1.bf16.msra.mxu0 %v2130
        %2145 = vmatprep.subr.bf16.mxu0 0
        %2146 = vmatpush1.bf16.msra.mxu0 0
        %2147 = vmatprep.subr.bf16.mxu0 0
        %2148 = vmatpush1.bf16.msra.mxu0 0
        %2149 = vmatprep.subr.bf16.mxu0 0
        %2150 = vmatpush1.bf16.msra.mxu0 0
        %2151 = vmatprep.subr.bf16.mxu0 0
        %2152 = vmatpush1.bf16.msra.mxu0 0
        %2153 = vmatprep.subr.bf16.mxu0 0
        %2154 = vmatpush1.bf16.msra.mxu0 0
        %2155 = vmatprep.subr.bf16.mxu0 0
        %2156 = vmatpush1.bf16.msra.mxu0 0
        %2157 = vmatprep.subr.bf16.mxu0 0
        %2158 = vmatpush1.bf16.msra.mxu0 0
        %2159 = vmatprep.subr.bf16.mxu0 0
        %2160 = vmatpush1.bf16.msra.mxu0 0
        %2161 = vmatprep.subr.bf16.mxu0 0
        %2162 = vmatpush1.bf16.msra.mxu0 0
        %2163 = vmatprep.subr.bf16.mxu0 0
        %2164 = vmatpush1.bf16.msra.mxu0 0
        %2165 = vmatprep.subr.bf16.mxu0 0
        %2166 = vmatpush1.bf16.msra.mxu0 0
        %2167 = vmatprep.subr.bf16.mxu0 0
        %2168 = vmatpush1.bf16.msra.mxu0 0
        %2169 = vmatprep.subr.bf16.mxu0 0
        %2170 = vmatpush1.bf16.msra.mxu0 0
        %2171 = vmatprep.subr.bf16.mxu0 0
        %2172 = vmatpush1.bf16.msra.mxu0 0
        %2173 = vmatprep.mubr.bf16.mxu0 0
        %2174 = vmatmul.mubr.bf16.gmra.mrb[0].mxu0 %v2127
        %v2175 = vpop.f32.mrb[0].mxu0
        %v2176 = vadd.f32 0.0, %v2175
        %v2177 = vpop.f32.mrb[0].mxu0
        %v2178 = vadd.f32 0.0, %v2177
        %v2179 = vpop.f32.mrb[0].mxu0
        %v2180 = vadd.f32 0.0, %v2179
        %v2181 = vpop.f32.mrb[0].mxu0
        %v2182 = vadd.f32 0.0, %v2181
        %2183 = vdwg.mxu0
        %2184 = vmatprep.subr.bf16.mxu0 %v2117
        %2185 = vmatpush1.bf16.msra.mxu0 %v2116
        %2186 = vmatprep.subr.bf16.mxu0 %v2139
        %2187 = vmatpush1.bf16.msra.mxu0 %v2136
        %2188 = vmatprep.subr.bf16.mxu0 0
        %2189 = vmatpush1.bf16.msra.mxu0 0
        %2190 = vmatprep.subr.bf16.mxu0 0
        %2191 = vmatpush1.bf16.msra.mxu0 0
        %2192 = vmatprep.subr.bf16.mxu0 0
        %2193 = vmatpush1.bf16.msra.mxu0 0
        %2194 = vmatprep.subr.bf16.mxu0 0
        %2195 = vmatpush1.bf16.msra.mxu0 0
        %2196 = vmatprep.subr.bf16.mxu0 0
        %2197 = vmatpush1.bf16.msra.mxu0 0
        %2198 = vmatprep.subr.bf16.mxu0 0
        %2199 = vmatpush1.bf16.msra.mxu0 0
        %2200 = vmatprep.subr.bf16.mxu0 0
        %2201 = vmatpush1.bf16.msra.mxu0 0
        %2202 = vmatprep.subr.bf16.mxu0 0
        %2203 = vmatpush1.bf16.msra.mxu0 0
        %2204 = vmatprep.subr.bf16.mxu0 0
        %2205 = vmatpush1.bf16.msra.mxu0 0
        %2206 = vmatprep.subr.bf16.mxu0 0
        %2207 = vmatpush1.bf16.msra.mxu0 0
        %2208 = vmatprep.subr.bf16.mxu0 0
        %2209 = vmatpush1.bf16.msra.mxu0 0
        %2210 = vmatprep.subr.bf16.mxu0 0
        %2211 = vmatpush1.bf16.msra.mxu0 0
        %2212 = vmatprep.subr.bf16.mxu0 0
        %2213 = vmatpush1.bf16.msra.mxu0 0
        %2214 = vmatprep.subr.bf16.mxu0 0
        %2215 = vmatpush1.bf16.msra.mxu0 0
        %2216 = vmatprep.mubr.bf16.mxu0 0
        %2217 = vmatmul.mubr.bf16.gmra.mrb[0].mxu0 %v2127
        %v2218 = vpop.f32.mrb[0].mxu0
        %v2219 = vadd.f32 0.0, %v2218
        %v2220 = vpop.f32.mrb[0].mxu0
        %v2221 = vadd.f32 0.0, %v2220
        %v2222 = vpop.f32.mrb[0].mxu0
        %v2223 = vadd.f32 0.0, %v2222
        %v2224 = vpop.f32.mrb[0].mxu0
        %v2225 = vadd.f32 0.0, %v2224
        %2226 = vdwg.mxu0
        %v2227 = vld [vmem:[%s360] sm:$0xf]
        %v2228 = vld [vmem:[%s360 + $0x4] sm:$0x3]
        %v2231 = vunpack.c.l.b16 %v2227
        %v2232 = vunpack.c.l.b16 %v2228
        %v2233 = vpack.c.b16 %v2232, %v2231
        %v2237 = vunpack.c.l.b16 %v2082
        %v2238 = vunpack.c.l.b16 %v2085
        %v2239 = vunpack.c.l.b16 %v2088
        %v2240 = vpack.c.b16 %v2238, %v2237
        %v2241 = vpack.c.b16 %v2239, %v2239
        %v2244 = vsel %vm254, %v2233, 0
        %v2247 = vand.u32 %v2241, %v261
        %2249 = vmatprep.subr.bf16.mxu0 %v2115
        %2250 = vmatpush1.bf16.msra.mxu0 %v2114
        %2251 = vmatprep.subr.bf16.mxu0 %v2133
        %2252 = vmatpush1.bf16.msra.mxu0 %v2130
        %2253 = vmatprep.subr.bf16.mxu0 0
        %2254 = vmatpush1.bf16.msra.mxu0 0
        %2255 = vmatprep.subr.bf16.mxu0 0
        %2256 = vmatpush1.bf16.msra.mxu0 0
        %2257 = vmatprep.subr.bf16.mxu0 0
        %2258 = vmatpush1.bf16.msra.mxu0 0
        %2259 = vmatprep.subr.bf16.mxu0 0
        %2260 = vmatpush1.bf16.msra.mxu0 0
        %2261 = vmatprep.subr.bf16.mxu0 0
        %2262 = vmatpush1.bf16.msra.mxu0 0
        %2263 = vmatprep.subr.bf16.mxu0 0
        %2264 = vmatpush1.bf16.msra.mxu0 0
        %2265 = vmatprep.subr.bf16.mxu0 0
        %2266 = vmatpush1.bf16.msra.mxu0 0
        %2267 = vmatprep.subr.bf16.mxu0 0
        %2268 = vmatpush1.bf16.msra.mxu0 0
        %2269 = vmatprep.subr.bf16.mxu0 0
        %2270 = vmatpush1.bf16.msra.mxu0 0
        %2271 = vmatprep.subr.bf16.mxu0 0
        %2272 = vmatpush1.bf16.msra.mxu0 0
        %2273 = vmatprep.subr.bf16.mxu0 0
        %2274 = vmatpush1.bf16.msra.mxu0 0
        %2275 = vmatprep.subr.bf16.mxu0 0
        %2276 = vmatpush1.bf16.msra.mxu0 0
        %2277 = vmatprep.subr.bf16.mxu0 0
        %2278 = vmatpush1.bf16.msra.mxu0 0
        %2279 = vmatprep.subr.bf16.mxu0 0
        %2280 = vmatpush1.bf16.msra.mxu0 0
        %2281 = vmatprep.mubr.bf16.mxu0 0
        %2282 = vmatmul.mubr.bf16.gmra.mrb[0].mxu0 %v2244
        %v2283 = vpop.f32.mrb[0].mxu0
        %v2284 = vadd.f32 0.0, %v2283
        %v2285 = vpop.f32.mrb[0].mxu0
        %v2286 = vadd.f32 0.0, %v2285
        %v2287 = vpop.f32.mrb[0].mxu0
        %v2288 = vadd.f32 0.0, %v2287
        %v2289 = vpop.f32.mrb[0].mxu0
        %v2290 = vadd.f32 0.0, %v2289
        %2291 = vdwg.mxu0
        %2292 = vmatprep.subr.bf16.mxu0 %v2117
        %2293 = vmatpush1.bf16.msra.mxu0 %v2116
        %2294 = vmatprep.subr.bf16.mxu0 %v2139
        %2295 = vmatpush1.bf16.msra.mxu0 %v2136
        %2296 = vmatprep.subr.bf16.mxu0 0
        %2297 = vmatpush1.bf16.msra.mxu0 0
        %2298 = vmatprep.subr.bf16.mxu0 0
        %2299 = vmatpush1.bf16.msra.mxu0 0
        %2300 = vmatprep.subr.bf16.mxu0 0
        %2301 = vmatpush1.bf16.msra.mxu0 0
        %2302 = vmatprep.subr.bf16.mxu0 0
        %2303 = vmatpush1.bf16.msra.mxu0 0
        %2304 = vmatprep.subr.bf16.mxu0 0
        %2305 = vmatpush1.bf16.msra.mxu0 0
        %2306 = vmatprep.subr.bf16.mxu0 0
        %2307 = vmatpush1.bf16.msra.mxu0 0
        %2308 = vmatprep.subr.bf16.mxu0 0
        %2309 = vmatpush1.bf16.msra.mxu0 0
        %2310 = vmatprep.subr.bf16.mxu0 0
        %2311 = vmatpush1.bf16.msra.mxu0 0
        %2312 = vmatprep.subr.bf16.mxu0 0
        %2313 = vmatpush1.bf16.msra.mxu0 0
        %2314 = vmatprep.subr.bf16.mxu0 0
        %2315 = vmatpush1.bf16.msra.mxu0 0
        %2316 = vmatprep.subr.bf16.mxu0 0
        %2317 = vmatpush1.bf16.msra.mxu0 0
        %2318 = vmatprep.subr.bf16.mxu0 0
        %2319 = vmatpush1.bf16.msra.mxu0 0
        %2320 = vmatprep.subr.bf16.mxu0 0
        %2321 = vmatpush1.bf16.msra.mxu0 0
        %2322 = vmatprep.subr.bf16.mxu0 0
        %2323 = vmatpush1.bf16.msra.mxu0 0
        %2324 = vmatprep.mubr.bf16.mxu0 0
        %2325 = vmatmul.mubr.bf16.gmra.mrb[0].mxu0 %v2244
        %v2326 = vpop.f32.mrb[0].mxu0
        %v2327 = vadd.f32 0.0, %v2326
        %v2328 = vpop.f32.mrb[0].mxu0
        %v2329 = vadd.f32 0.0, %v2328
        %v2330 = vpop.f32.mrb[0].mxu0
        %v2331 = vadd.f32 0.0, %v2330
        %v2332 = vpop.f32.mrb[0].mxu0
        %v2333 = vadd.f32 0.0, %v2332
        %2334 = vdwg.mxu0
        %2335 = vmatprep.subr.bf16.mxu0 0
        %2336 = vmatpush1.bf16.msra.mxu0 %v2240
        %2337 = vmatprep.subr.bf16.mxu0 0
        %2338 = vmatpush1.bf16.msra.mxu0 %v2247
        %2339 = vmatprep.subr.bf16.mxu0 0
        %2340 = vmatpush1.bf16.msra.mxu0 0
        %2341 = vmatprep.subr.bf16.mxu0 0
        %2342 = vmatpush1.bf16.msra.mxu0 0
        %2343 = vmatprep.subr.bf16.mxu0 0
        %2344 = vmatpush1.bf16.msra.mxu0 0
        %2345 = vmatprep.subr.bf16.mxu0 0
        %2346 = vmatpush1.bf16.msra.mxu0 0
        %2347 = vmatprep.subr.bf16.mxu0 0
        %2348 = vmatpush1.bf16.msra.mxu0 0
        %2349 = vmatprep.subr.bf16.mxu0 0
        %2350 = vmatpush1.bf16.msra.mxu0 0
        %2351 = vmatprep.subr.bf16.mxu0 0
        %2352 = vmatpush1.bf16.msra.mxu0 0
        %2353 = vmatprep.subr.bf16.mxu0 0
        %2354 = vmatpush1.bf16.msra.mxu0 0
        %2355 = vmatprep.subr.bf16.mxu0 0
        %2356 = vmatpush1.bf16.msra.mxu0 0
        %2357 = vmatprep.subr.bf16.mxu0 0
        %2358 = vmatpush1.bf16.msra.mxu0 0
        %2359 = vmatprep.subr.bf16.mxu0 0
        %2360 = vmatpush1.bf16.msra.mxu0 0
        %2361 = vmatprep.subr.bf16.mxu0 0
        %2362 = vmatpush1.bf16.msra.mxu0 0
        %2363 = vmatprep.subr.bf16.mxu0 0
        %2364 = vmatpush1.bf16.msra.mxu0 0
        %2365 = vmatprep.subr.bf16.mxu0 0
        %2366 = vmatpush1.bf16.msra.mxu0 0
        %2367 = vmatprep.mubr.bf16.mxu0 0
        %2368 = vmatmul.mubr.bf16.gmra.mrb[0].mxu0 %v2244
        %v2369 = vpop.f32.mrb[0].mxu0
        %v2370 = vadd.f32 0.0, %v2369
        %v2371 = vpop.f32.mrb[0].mxu0
        %v2372 = vpop.f32.mrb[0].mxu0
        %v2373 = vadd.f32 0.0, %v2372
        %v2374 = vpop.f32.mrb[0].mxu0
        %2375 = vdwg.mxu0
        %2376 = vrot.lane.b32.xlu0 %v2284, 99
        %v2377 = vpop.permute.xlu0 %2376
        %2378 = vrot.lane.b32.xlu0 %v2288, 99
        %v2379 = vpop.permute.xlu0 %2378
        %2380 = vrot.lane.b32.xlu0 %v2286, 99
        %v2381 = vpop.permute.xlu0 %2380
        %2382 = vrot.lane.b32.xlu0 %v2290, 99
        %v2383 = vpop.permute.xlu0 %2382
        %2384 = vrot.lane.b32.xlu0 %v2327, 99
        %v2385 = vpop.permute.xlu0 %2384
        %2386 = vrot.lane.b32.xlu0 %v2331, 99
        %v2387 = vpop.permute.xlu0 %2386
        %2388 = vrot.lane.b32.xlu0 %v2329, 99
        %v2389 = vpop.permute.xlu0 %2388
        %2390 = vrot.lane.b32.xlu0 %v2333, 99
        %v2391 = vpop.permute.xlu0 %2390
        %2392 = vrot.lane.b32.xlu0 %v2370, 99
        %v2393 = vpop.permute.xlu0 %2392
        %2394 = vrot.lane.b32.xlu0 %v2373, 99
        %v2395 = vpop.permute.xlu0 %2394
        %v2396 = vsel %vm532, %v2389, %v2393
        %v2397 = vsel %vm532, %v2391, %v2395
        %v2398 = vsel %vm532, %v2385, %v2389
        %v2399 = vsel %vm532, %v2387, %v2391
        %v2400 = vsel %vm532, %v2381, %v2385
        %v2401 = vsel %vm532, %v2383, %v2387
        %v2402 = vsel %vm532, %v2377, %v2381
        %v2403 = vsel %vm532, %v2379, %v2383
        %v2404 = vadd.f32 %v2176, %v2402
        %v2405 = vadd.f32 %v2178, %v2400
        %v2406 = vadd.f32 %v2219, %v2398
        %v2407 = vadd.f32 %v2221, %v2396
        %v2408 = vadd.f32 %v2180, %v2403
        %v2409 = vadd.f32 %v2182, %v2401
        %v2410 = vadd.f32 %v2223, %v2399
        %v2411 = vadd.f32 %v2225, %v2397
        %v2412 = vld [vmem:[%s549] sm:$0xf]
        %v2413 = vld [vmem:[%s549 + $0x4] sm:$0x3]
        %v2416 = vunpack.c.l.b16 %v2412
        %v2417 = vunpack.c.l.b16 %v2413
        %v2418 = vpack.c.b16 %v2417, %v2416
        %v2420 = vsel %vm254, %v2418, 0
        %2422 = vmatprep.subr.bf16.mxu0 %v2115
        %2423 = vmatpush1.bf16.msra.mxu0 %v2114
        %2424 = vmatprep.subr.bf16.mxu0 %v2133
        %2425 = vmatpush1.bf16.msra.mxu0 %v2130
        %2426 = vmatprep.subr.bf16.mxu0 0
        %2427 = vmatpush1.bf16.msra.mxu0 0
        %2428 = vmatprep.subr.bf16.mxu0 0
        %2429 = vmatpush1.bf16.msra.mxu0 0
        %2430 = vmatprep.subr.bf16.mxu0 0
        %2431 = vmatpush1.bf16.msra.mxu0 0
        %2432 = vmatprep.subr.bf16.mxu0 0
        %2433 = vmatpush1.bf16.msra.mxu0 0
        %2434 = vmatprep.subr.bf16.mxu0 0
        %2435 = vmatpush1.bf16.msra.mxu0 0
        %2436 = vmatprep.subr.bf16.mxu0 0
        %2437 = vmatpush1.bf16.msra.mxu0 0
        %2438 = vmatprep.subr.bf16.mxu0 0
        %2439 = vmatpush1.bf16.msra.mxu0 0
        %2440 = vmatprep.subr.bf16.mxu0 0
        %2441 = vmatpush1.bf16.msra.mxu0 0
        %2442 = vmatprep.subr.bf16.mxu0 0
        %2443 = vmatpush1.bf16.msra.mxu0 0
        %2444 = vmatprep.subr.bf16.mxu0 0
        %2445 = vmatpush1.bf16.msra.mxu0 0
        %2446 = vmatprep.subr.bf16.mxu0 0
        %2447 = vmatpush1.bf16.msra.mxu0 0
        %2448 = vmatprep.subr.bf16.mxu0 0
        %2449 = vmatpush1.bf16.msra.mxu0 0
        %2450 = vmatprep.subr.bf16.mxu0 0
        %2451 = vmatpush1.bf16.msra.mxu0 0
        %2452 = vmatprep.subr.bf16.mxu0 0
        %2453 = vmatpush1.bf16.msra.mxu0 0
        %2454 = vmatprep.mubr.bf16.mxu0 0
        %2455 = vmatmul.mubr.bf16.gmra.mrb[0].mxu0 %v2420
        %v2456 = vpop.f32.mrb[0].mxu0
        %v2457 = vadd.f32 0.0, %v2456
        %v2458 = vpop.f32.mrb[0].mxu0
        %v2459 = vadd.f32 0.0, %v2458
        %v2460 = vpop.f32.mrb[0].mxu0
        %v2461 = vadd.f32 0.0, %v2460
        %v2462 = vpop.f32.mrb[0].mxu0
        %v2463 = vadd.f32 0.0, %v2462
        %2464 = vdwg.mxu0
        %2465 = vmatprep.subr.bf16.mxu0 %v2117
        %2466 = vmatpush1.bf16.msra.mxu0 %v2116
        %2467 = vmatprep.subr.bf16.mxu0 %v2139
        %2468 = vmatpush1.bf16.msra.mxu0 %v2136
        %2469 = vmatprep.subr.bf16.mxu0 0
        %2470 = vmatpush1.bf16.msra.mxu0 0
        %2471 = vmatprep.subr.bf16.mxu0 0
        %2472 = vmatpush1.bf16.msra.mxu0 0
        %2473 = vmatprep.subr.bf16.mxu0 0
        %2474 = vmatpush1.bf16.msra.mxu0 0
        %2475 = vmatprep.subr.bf16.mxu0 0
        %2476 = vmatpush1.bf16.msra.mxu0 0
        %2477 = vmatprep.subr.bf16.mxu0 0
        %2478 = vmatpush1.bf16.msra.mxu0 0
        %2479 = vmatprep.subr.bf16.mxu0 0
        %2480 = vmatpush1.bf16.msra.mxu0 0
        %2481 = vmatprep.subr.bf16.mxu0 0
        %2482 = vmatpush1.bf16.msra.mxu0 0
        %2483 = vmatprep.subr.bf16.mxu0 0
        %2484 = vmatpush1.bf16.msra.mxu0 0
        %2485 = vmatprep.subr.bf16.mxu0 0
        %2486 = vmatpush1.bf16.msra.mxu0 0
        %2487 = vmatprep.subr.bf16.mxu0 0
        %2488 = vmatpush1.bf16.msra.mxu0 0
        %2489 = vmatprep.subr.bf16.mxu0 0
        %2490 = vmatpush1.bf16.msra.mxu0 0
        %2491 = vmatprep.subr.bf16.mxu0 0
        %2492 = vmatpush1.bf16.msra.mxu0 0
        %2493 = vmatprep.subr.bf16.mxu0 0
        %2494 = vmatpush1.bf16.msra.mxu0 0
        %2495 = vmatprep.subr.bf16.mxu0 0
        %2496 = vmatpush1.bf16.msra.mxu0 0
        %2497 = vmatprep.mubr.bf16.mxu0 0
        %2498 = vmatmul.mubr.bf16.gmra.mrb[0].mxu0 %v2420
        %v2499 = vpop.f32.mrb[0].mxu0
        %v2500 = vadd.f32 0.0, %v2499
        %v2501 = vpop.f32.mrb[0].mxu0
        %v2502 = vadd.f32 0.0, %v2501
        %v2503 = vpop.f32.mrb[0].mxu0
        %v2504 = vadd.f32 0.0, %v2503
        %v2505 = vpop.f32.mrb[0].mxu0
        %v2506 = vadd.f32 0.0, %v2505
        %2507 = vdwg.mxu0
        %2508 = vmatprep.subr.bf16.mxu0 0
        %2509 = vmatpush1.bf16.msra.mxu0 %v2240
        %2510 = vmatprep.subr.bf16.mxu0 0
        %2511 = vmatpush1.bf16.msra.mxu0 %v2247
        %2512 = vmatprep.subr.bf16.mxu0 0
        %2513 = vmatpush1.bf16.msra.mxu0 0
        %2514 = vmatprep.subr.bf16.mxu0 0
        %2515 = vmatpush1.bf16.msra.mxu0 0
        %2516 = vmatprep.subr.bf16.mxu0 0
        %2517 = vmatpush1.bf16.msra.mxu0 0
        %2518 = vmatprep.subr.bf16.mxu0 0
        %2519 = vmatpush1.bf16.msra.mxu0 0
        %2520 = vmatprep.subr.bf16.mxu0 0
        %2521 = vmatpush1.bf16.msra.mxu0 0
        %2522 = vmatprep.subr.bf16.mxu0 0
        %2523 = vmatpush1.bf16.msra.mxu0 0
        %2524 = vmatprep.subr.bf16.mxu0 0
        %2525 = vmatpush1.bf16.msra.mxu0 0
        %2526 = vmatprep.subr.bf16.mxu0 0
        %2527 = vmatpush1.bf16.msra.mxu0 0
        %2528 = vmatprep.subr.bf16.mxu0 0
        %2529 = vmatpush1.bf16.msra.mxu0 0
        %2530 = vmatprep.subr.bf16.mxu0 0
        %2531 = vmatpush1.bf16.msra.mxu0 0
        %2532 = vmatprep.subr.bf16.mxu0 0
        %2533 = vmatpush1.bf16.msra.mxu0 0
        %2534 = vmatprep.subr.bf16.mxu0 0
        %2535 = vmatpush1.bf16.msra.mxu0 0
        %2536 = vmatprep.subr.bf16.mxu0 0
        %2537 = vmatpush1.bf16.msra.mxu0 0
        %2538 = vmatprep.subr.bf16.mxu0 0
        %2539 = vmatpush1.bf16.msra.mxu0 0
        %2540 = vmatprep.mubr.bf16.mxu0 0
        %2541 = vmatmul.mubr.bf16.gmra.mrb[0].mxu0 %v2420
        %v2542 = vpop.f32.mrb[0].mxu0
        %v2543 = vadd.f32 0.0, %v2542
        %v2544 = vpop.f32.mrb[0].mxu0
        %v2545 = vpop.f32.mrb[0].mxu0
        %v2546 = vadd.f32 0.0, %v2545
        %v2547 = vpop.f32.mrb[0].mxu0
        %2548 = vdwg.mxu0
        %2549 = vrot.lane.b32.xlu0 %v2457, 70
        %v2550 = vpop.permute.xlu0 %2549
        %2551 = vrot.lane.b32.xlu0 %v2461, 70
        %v2552 = vpop.permute.xlu0 %2551
        %2553 = vrot.lane.b32.xlu0 %v2459, 70
        %v2554 = vpop.permute.xlu0 %2553
        %2555 = vrot.lane.b32.xlu0 %v2463, 70
        %v2556 = vpop.permute.xlu0 %2555
        %2557 = vrot.lane.b32.xlu0 %v2500, 70
        %v2558 = vpop.permute.xlu0 %2557
        %2559 = vrot.lane.b32.xlu0 %v2504, 70
        %v2560 = vpop.permute.xlu0 %2559
        %2561 = vrot.lane.b32.xlu0 %v2502, 70
        %v2562 = vpop.permute.xlu0 %2561
        %2563 = vrot.lane.b32.xlu0 %v2506, 70
        %v2564 = vpop.permute.xlu0 %2563
        %2565 = vrot.lane.b32.xlu0 %v2543, 70
        %v2566 = vpop.permute.xlu0 %2565
        %2567 = vrot.lane.b32.xlu0 %v2546, 70
        %v2568 = vpop.permute.xlu0 %2567
        %v2569 = vsel %vm707, %v2562, %v2566
        %v2570 = vsel %vm707, %v2564, %v2568
        %v2571 = vsel %vm707, %v2558, %v2562
        %v2572 = vsel %vm707, %v2560, %v2564
        %v2573 = vsel %vm707, %v2554, %v2558
        %v2574 = vsel %vm707, %v2556, %v2560
        %v2575 = vsel %vm707, %v2550, %v2554
        %v2576 = vsel %vm707, %v2552, %v2556
        %v2577 = vadd.f32 %v2404, %v2575
        %v2578 = vadd.f32 %v2405, %v2573
        %v2579 = vadd.f32 %v2406, %v2571
        %v2580 = vadd.f32 %v2407, %v2569
        %v2581 = vadd.f32 %v2408, %v2576
        %v2582 = vadd.f32 %v2409, %v2574
        %v2583 = vadd.f32 %v2410, %v2572
        %v2584 = vadd.f32 %v2411, %v2570
        %v2585 = vld [vmem:[%s724] sm:$0xf]
        %v2586 = vld [vmem:[%s724 + $0x4] sm:$0x3]
        %v2589 = vunpack.c.l.b16 %v2585
        %v2590 = vunpack.c.l.b16 %v2586
        %v2591 = vpack.c.b16 %v2590, %v2589
        %v2593 = vsel %vm254, %v2591, 0
        %2595 = vmatprep.subr.bf16.mxu0 %v2115
        %2596 = vmatpush1.bf16.msra.mxu0 %v2114
        %2597 = vmatprep.subr.bf16.mxu0 %v2133
        %2598 = vmatpush1.bf16.msra.mxu0 %v2130
        %2599 = vmatprep.subr.bf16.mxu0 0
        %2600 = vmatpush1.bf16.msra.mxu0 0
        %2601 = vmatprep.subr.bf16.mxu0 0
        %2602 = vmatpush1.bf16.msra.mxu0 0
        %2603 = vmatprep.subr.bf16.mxu0 0
        %2604 = vmatpush1.bf16.msra.mxu0 0
        %2605 = vmatprep.subr.bf16.mxu0 0
        %2606 = vmatpush1.bf16.msra.mxu0 0
        %2607 = vmatprep.subr.bf16.mxu0 0
        %2608 = vmatpush1.bf16.msra.mxu0 0
        %2609 = vmatprep.subr.bf16.mxu0 0
        %2610 = vmatpush1.bf16.msra.mxu0 0
        %2611 = vmatprep.subr.bf16.mxu0 0
        %2612 = vmatpush1.bf16.msra.mxu0 0
        %2613 = vmatprep.subr.bf16.mxu0 0
        %2614 = vmatpush1.bf16.msra.mxu0 0
        %2615 = vmatprep.subr.bf16.mxu0 0
        %2616 = vmatpush1.bf16.msra.mxu0 0
        %2617 = vmatprep.subr.bf16.mxu0 0
        %2618 = vmatpush1.bf16.msra.mxu0 0
        %2619 = vmatprep.subr.bf16.mxu0 0
        %2620 = vmatpush1.bf16.msra.mxu0 0
        %2621 = vmatprep.subr.bf16.mxu0 0
        %2622 = vmatpush1.bf16.msra.mxu0 0
        %2623 = vmatprep.subr.bf16.mxu0 0
        %2624 = vmatpush1.bf16.msra.mxu0 0
        %2625 = vmatprep.subr.bf16.mxu0 0
        %2626 = vmatpush1.bf16.msra.mxu0 0
        %2627 = vmatprep.mubr.bf16.mxu0 0
        %2628 = vmatmul.mubr.bf16.gmra.mrb[0].mxu0 %v2593
        %v2629 = vpop.f32.mrb[0].mxu0
        %v2630 = vadd.f32 0.0, %v2629
        %v2631 = vpop.f32.mrb[0].mxu0
        %v2632 = vadd.f32 0.0, %v2631
        %v2633 = vpop.f32.mrb[0].mxu0
        %v2634 = vadd.f32 0.0, %v2633
        %v2635 = vpop.f32.mrb[0].mxu0
        %v2636 = vadd.f32 0.0, %v2635
        %2637 = vdwg.mxu0
        %2638 = vmatprep.subr.bf16.mxu0 %v2117
        %2639 = vmatpush1.bf16.msra.mxu0 %v2116
        %2640 = vmatprep.subr.bf16.mxu0 %v2139
        %2641 = vmatpush1.bf16.msra.mxu0 %v2136
        %2642 = vmatprep.subr.bf16.mxu0 0
        %2643 = vmatpush1.bf16.msra.mxu0 0
        %2644 = vmatprep.subr.bf16.mxu0 0
        %2645 = vmatpush1.bf16.msra.mxu0 0
        %2646 = vmatprep.subr.bf16.mxu0 0
        %2647 = vmatpush1.bf16.msra.mxu0 0
        %2648 = vmatprep.subr.bf16.mxu0 0
        %2649 = vmatpush1.bf16.msra.mxu0 0
        %2650 = vmatprep.subr.bf16.mxu0 0
        %2651 = vmatpush1.bf16.msra.mxu0 0
        %2652 = vmatprep.subr.bf16.mxu0 0
        %2653 = vmatpush1.bf16.msra.mxu0 0
        %2654 = vmatprep.subr.bf16.mxu0 0
        %2655 = vmatpush1.bf16.msra.mxu0 0
        %2656 = vmatprep.subr.bf16.mxu0 0
        %2657 = vmatpush1.bf16.msra.mxu0 0
        %2658 = vmatprep.subr.bf16.mxu0 0
        %2659 = vmatpush1.bf16.msra.mxu0 0
        %2660 = vmatprep.subr.bf16.mxu0 0
        %2661 = vmatpush1.bf16.msra.mxu0 0
        %2662 = vmatprep.subr.bf16.mxu0 0
        %2663 = vmatpush1.bf16.msra.mxu0 0
        %2664 = vmatprep.subr.bf16.mxu0 0
        %2665 = vmatpush1.bf16.msra.mxu0 0
        %2666 = vmatprep.subr.bf16.mxu0 0
        %2667 = vmatpush1.bf16.msra.mxu0 0
        %2668 = vmatprep.subr.bf16.mxu0 0
        %2669 = vmatpush1.bf16.msra.mxu0 0
        %2670 = vmatprep.mubr.bf16.mxu0 0
        %2671 = vmatmul.mubr.bf16.gmra.mrb[0].mxu0 %v2593
        %v2672 = vpop.f32.mrb[0].mxu0
        %v2673 = vadd.f32 0.0, %v2672
        %v2674 = vpop.f32.mrb[0].mxu0
        %v2675 = vadd.f32 0.0, %v2674
        %v2676 = vpop.f32.mrb[0].mxu0
        %v2677 = vadd.f32 0.0, %v2676
        %v2678 = vpop.f32.mrb[0].mxu0
        %v2679 = vadd.f32 0.0, %v2678
        %2680 = vdwg.mxu0
        %2681 = vmatprep.subr.bf16.mxu0 0
        %2682 = vmatpush1.bf16.msra.mxu0 %v2240
        %2683 = vmatprep.subr.bf16.mxu0 0
        %2684 = vmatpush1.bf16.msra.mxu0 %v2247
        %2685 = vmatprep.subr.bf16.mxu0 0
        %2686 = vmatpush1.bf16.msra.mxu0 0
        %2687 = vmatprep.subr.bf16.mxu0 0
        %2688 = vmatpush1.bf16.msra.mxu0 0
        %2689 = vmatprep.subr.bf16.mxu0 0
        %2690 = vmatpush1.bf16.msra.mxu0 0
        %2691 = vmatprep.subr.bf16.mxu0 0
        %2692 = vmatpush1.bf16.msra.mxu0 0
        %2693 = vmatprep.subr.bf16.mxu0 0
        %2694 = vmatpush1.bf16.msra.mxu0 0
        %2695 = vmatprep.subr.bf16.mxu0 0
        %2696 = vmatpush1.bf16.msra.mxu0 0
        %2697 = vmatprep.subr.bf16.mxu0 0
        %2698 = vmatpush1.bf16.msra.mxu0 0
        %2699 = vmatprep.subr.bf16.mxu0 0
        %2700 = vmatpush1.bf16.msra.mxu0 0
        %2701 = vmatprep.subr.bf16.mxu0 0
        %2702 = vmatpush1.bf16.msra.mxu0 0
        %2703 = vmatprep.subr.bf16.mxu0 0
        %2704 = vmatpush1.bf16.msra.mxu0 0
        %2705 = vmatprep.subr.bf16.mxu0 0
        %2706 = vmatpush1.bf16.msra.mxu0 0
        %2707 = vmatprep.subr.bf16.mxu0 0
        %2708 = vmatpush1.bf16.msra.mxu0 0
        %2709 = vmatprep.subr.bf16.mxu0 0
        %2710 = vmatpush1.bf16.msra.mxu0 0
        %2711 = vmatprep.subr.bf16.mxu0 0
        %2712 = vmatpush1.bf16.msra.mxu0 0
        %2713 = vmatprep.mubr.bf16.mxu0 0
        %2714 = vmatmul.mubr.bf16.gmra.mrb[0].mxu0 %v2593
        %v2715 = vpop.f32.mrb[0].mxu0
        %v2716 = vadd.f32 0.0, %v2715
        %v2717 = vpop.f32.mrb[0].mxu0
        %v2718 = vpop.f32.mrb[0].mxu0
        %v2719 = vadd.f32 0.0, %v2718
        %v2720 = vpop.f32.mrb[0].mxu0
        %2721 = vdwg.mxu0
        %2722 = vrot.lane.b32.xlu0 %v2630, 41
        %v2723 = vpop.permute.xlu0 %2722
        %2724 = vrot.lane.b32.xlu0 %v2634, 41
        %v2725 = vpop.permute.xlu0 %2724
        %2726 = vrot.lane.b32.xlu0 %v2632, 41
        %v2727 = vpop.permute.xlu0 %2726
        %2728 = vrot.lane.b32.xlu0 %v2636, 41
        %v2729 = vpop.permute.xlu0 %2728
        %2730 = vrot.lane.b32.xlu0 %v2673, 41
        %v2731 = vpop.permute.xlu0 %2730
        %2732 = vrot.lane.b32.xlu0 %v2677, 41
        %v2733 = vpop.permute.xlu0 %2732
        %2734 = vrot.lane.b32.xlu0 %v2675, 41
        %v2735 = vpop.permute.xlu0 %2734
        %2736 = vrot.lane.b32.xlu0 %v2679, 41
        %v2737 = vpop.permute.xlu0 %2736
        %2738 = vrot.lane.b32.xlu0 %v2716, 41
        %v2739 = vpop.permute.xlu0 %2738
        %2740 = vrot.lane.b32.xlu0 %v2719, 41
        %v2741 = vpop.permute.xlu0 %2740
        %v2742 = vsel %vm882, %v2735, %v2739
        %v2743 = vsel %vm882, %v2737, %v2741
        %v2744 = vsel %vm882, %v2731, %v2735
        %v2745 = vsel %vm882, %v2733, %v2737
        %v2746 = vsel %vm882, %v2727, %v2731
        %v2747 = vsel %vm882, %v2729, %v2733
        %v2748 = vsel %vm882, %v2723, %v2727
        %v2749 = vsel %vm882, %v2725, %v2729
        %v2750 = vadd.f32 %v2577, %v2748
        %v2751 = vadd.f32 %v2578, %v2746
        %v2752 = vadd.f32 %v2579, %v2744
        %v2753 = vadd.f32 %v2580, %v2742
        %v2754 = vadd.f32 %v2581, %v2749
        %v2755 = vadd.f32 %v2582, %v2747
        %v2756 = vadd.f32 %v2583, %v2745
        %v2757 = vadd.f32 %v2584, %v2743
        %v2758 = vld [vmem:[%s899] sm:$0xf]
        %v2759 = vld [vmem:[%s899 + $0x4] sm:$0x3]
        %v2762 = vunpack.c.l.b16 %v2758
        %v2763 = vunpack.c.l.b16 %v2759
        %v2764 = vpack.c.b16 %v2763, %v2762
        %v2766 = vsel %vm254, %v2764, 0
        %2768 = vmatprep.subr.bf16.mxu0 %v2115
        %2769 = vmatpush1.bf16.msra.mxu0 %v2114
        %2770 = vmatprep.subr.bf16.mxu0 %v2133
        %2771 = vmatpush1.bf16.msra.mxu0 %v2130
        %2772 = vmatprep.subr.bf16.mxu0 0
        %2773 = vmatpush1.bf16.msra.mxu0 0
        %2774 = vmatprep.subr.bf16.mxu0 0
        %2775 = vmatpush1.bf16.msra.mxu0 0
        %2776 = vmatprep.subr.bf16.mxu0 0
        %2777 = vmatpush1.bf16.msra.mxu0 0
        %2778 = vmatprep.subr.bf16.mxu0 0
        %2779 = vmatpush1.bf16.msra.mxu0 0
        %2780 = vmatprep.subr.bf16.mxu0 0
        %2781 = vmatpush1.bf16.msra.mxu0 0
        %2782 = vmatprep.subr.bf16.mxu0 0
        %2783 = vmatpush1.bf16.msra.mxu0 0
        %2784 = vmatprep.subr.bf16.mxu0 0
        %2785 = vmatpush1.bf16.msra.mxu0 0
        %2786 = vmatprep.subr.bf16.mxu0 0
        %2787 = vmatpush1.bf16.msra.mxu0 0
        %2788 = vmatprep.subr.bf16.mxu0 0
        %2789 = vmatpush1.bf16.msra.mxu0 0
        %2790 = vmatprep.subr.bf16.mxu0 0
        %2791 = vmatpush1.bf16.msra.mxu0 0
        %2792 = vmatprep.subr.bf16.mxu0 0
        %2793 = vmatpush1.bf16.msra.mxu0 0
        %2794 = vmatprep.subr.bf16.mxu0 0
        %2795 = vmatpush1.bf16.msra.mxu0 0
        %2796 = vmatprep.subr.bf16.mxu0 0
        %2797 = vmatpush1.bf16.msra.mxu0 0
        %2798 = vmatprep.subr.bf16.mxu0 0
        %2799 = vmatpush1.bf16.msra.mxu0 0
        %2800 = vmatprep.mubr.bf16.mxu0 0
        %2801 = vmatmul.mubr.bf16.gmra.mrb[0].mxu0 %v2766
        %v2802 = vpop.f32.mrb[0].mxu0
        %v2803 = vadd.f32 0.0, %v2802
        %v2804 = vpop.f32.mrb[0].mxu0
        %v2805 = vadd.f32 0.0, %v2804
        %v2806 = vpop.f32.mrb[0].mxu0
        %v2807 = vadd.f32 0.0, %v2806
        %v2808 = vpop.f32.mrb[0].mxu0
        %v2809 = vadd.f32 0.0, %v2808
        %2810 = vdwg.mxu0
        %2811 = vmatprep.subr.bf16.mxu0 %v2117
        %2812 = vmatpush1.bf16.msra.mxu0 %v2116
        %2813 = vmatprep.subr.bf16.mxu0 %v2139
        %2814 = vmatpush1.bf16.msra.mxu0 %v2136
        %2815 = vmatprep.subr.bf16.mxu0 0
        %2816 = vmatpush1.bf16.msra.mxu0 0
        %2817 = vmatprep.subr.bf16.mxu0 0
        %2818 = vmatpush1.bf16.msra.mxu0 0
        %2819 = vmatprep.subr.bf16.mxu0 0
        %2820 = vmatpush1.bf16.msra.mxu0 0
        %2821 = vmatprep.subr.bf16.mxu0 0
        %2822 = vmatpush1.bf16.msra.mxu0 0
        %2823 = vmatprep.subr.bf16.mxu0 0
        %2824 = vmatpush1.bf16.msra.mxu0 0
        %2825 = vmatprep.subr.bf16.mxu0 0
        %2826 = vmatpush1.bf16.msra.mxu0 0
        %2827 = vmatprep.subr.bf16.mxu0 0
        %2828 = vmatpush1.bf16.msra.mxu0 0
        %2829 = vmatprep.subr.bf16.mxu0 0
        %2830 = vmatpush1.bf16.msra.mxu0 0
        %2831 = vmatprep.subr.bf16.mxu0 0
        %2832 = vmatpush1.bf16.msra.mxu0 0
        %2833 = vmatprep.subr.bf16.mxu0 0
        %2834 = vmatpush1.bf16.msra.mxu0 0
        %2835 = vmatprep.subr.bf16.mxu0 0
        %2836 = vmatpush1.bf16.msra.mxu0 0
        %2837 = vmatprep.subr.bf16.mxu0 0
        %2838 = vmatpush1.bf16.msra.mxu0 0
        %2839 = vmatprep.subr.bf16.mxu0 0
        %2840 = vmatpush1.bf16.msra.mxu0 0
        %2841 = vmatprep.subr.bf16.mxu0 0
        %2842 = vmatpush1.bf16.msra.mxu0 0
        %2843 = vmatprep.mubr.bf16.mxu0 0
        %2844 = vmatmul.mubr.bf16.gmra.mrb[0].mxu0 %v2766
        %v2845 = vpop.f32.mrb[0].mxu0
        %v2846 = vadd.f32 0.0, %v2845
        %v2847 = vpop.f32.mrb[0].mxu0
        %v2848 = vadd.f32 0.0, %v2847
        %v2849 = vpop.f32.mrb[0].mxu0
        %v2850 = vadd.f32 0.0, %v2849
        %v2851 = vpop.f32.mrb[0].mxu0
        %v2852 = vadd.f32 0.0, %v2851
        %2853 = vdwg.mxu0
        %2854 = vmatprep.subr.bf16.mxu0 0
        %2855 = vmatpush1.bf16.msra.mxu0 %v2240
        %2856 = vmatprep.subr.bf16.mxu0 0
        %2857 = vmatpush1.bf16.msra.mxu0 %v2247
        %2858 = vmatprep.subr.bf16.mxu0 0
        %2859 = vmatpush1.bf16.msra.mxu0 0
        %2860 = vmatprep.subr.bf16.mxu0 0
        %2861 = vmatpush1.bf16.msra.mxu0 0
        %2862 = vmatprep.subr.bf16.mxu0 0
        %2863 = vmatpush1.bf16.msra.mxu0 0
        %2864 = vmatprep.subr.bf16.mxu0 0
        %2865 = vmatpush1.bf16.msra.mxu0 0
        %2866 = vmatprep.subr.bf16.mxu0 0
        %2867 = vmatpush1.bf16.msra.mxu0 0
        %2868 = vmatprep.subr.bf16.mxu0 0
        %2869 = vmatpush1.bf16.msra.mxu0 0
        %2870 = vmatprep.subr.bf16.mxu0 0
        %2871 = vmatpush1.bf16.msra.mxu0 0
        %2872 = vmatprep.subr.bf16.mxu0 0
        %2873 = vmatpush1.bf16.msra.mxu0 0
        %2874 = vmatprep.subr.bf16.mxu0 0
        %2875 = vmatpush1.bf16.msra.mxu0 0
        %2876 = vmatprep.subr.bf16.mxu0 0
        %2877 = vmatpush1.bf16.msra.mxu0 0
        %2878 = vmatprep.subr.bf16.mxu0 0
        %2879 = vmatpush1.bf16.msra.mxu0 0
        %2880 = vmatprep.subr.bf16.mxu0 0
        %2881 = vmatpush1.bf16.msra.mxu0 0
        %2882 = vmatprep.subr.bf16.mxu0 0
        %2883 = vmatpush1.bf16.msra.mxu0 0
        %2884 = vmatprep.subr.bf16.mxu0 0
        %2885 = vmatpush1.bf16.msra.mxu0 0
        %2886 = vmatprep.mubr.bf16.mxu0 0
        %2887 = vmatmul.mubr.bf16.gmra.mrb[0].mxu0 %v2766
        %v2888 = vpop.f32.mrb[0].mxu0
        %v2889 = vadd.f32 0.0, %v2888
        %v2890 = vpop.f32.mrb[0].mxu0
        %v2891 = vpop.f32.mrb[0].mxu0
        %v2892 = vadd.f32 0.0, %v2891
        %v2893 = vpop.f32.mrb[0].mxu0
        %2894 = vdwg.mxu0
        %2895 = vrot.lane.b32.xlu0 %v2803, 12
        %v2896 = vpop.permute.xlu0 %2895
        %2897 = vrot.lane.b32.xlu0 %v2807, 12
        %v2898 = vpop.permute.xlu0 %2897
        %2899 = vrot.lane.b32.xlu0 %v2805, 12
        %v2900 = vpop.permute.xlu0 %2899
        %2901 = vrot.lane.b32.xlu0 %v2809, 12
        %v2902 = vpop.permute.xlu0 %2901
        %2903 = vrot.lane.b32.xlu0 %v2846, 12
        %v2904 = vpop.permute.xlu0 %2903
        %2905 = vrot.lane.b32.xlu0 %v2850, 12
        %v2906 = vpop.permute.xlu0 %2905
        %2907 = vrot.lane.b32.xlu0 %v2848, 12
        %v2908 = vpop.permute.xlu0 %2907
        %2909 = vrot.lane.b32.xlu0 %v2852, 12
        %v2910 = vpop.permute.xlu0 %2909
        %2911 = vrot.lane.b32.xlu0 %v2889, 12
        %v2912 = vpop.permute.xlu0 %2911
        %2913 = vrot.lane.b32.xlu0 %v2892, 12
        %v2914 = vpop.permute.xlu0 %2913
        %v2915 = vsel %vm1057, %v2908, %v2912
        %v2916 = vsel %vm1057, %v2910, %v2914
        %v2917 = vsel %vm1057, %v2904, %v2908
        %v2918 = vsel %vm1057, %v2906, %v2910
        %v2919 = vsel %vm1057, %v2900, %v2904
        %v2920 = vsel %vm1057, %v2902, %v2906
        %v2921 = vsel %vm1057, %v2896, %v2900
        %v2922 = vsel %vm1057, %v2898, %v2902
        %v2923 = vadd.f32 %v2750, %v2921
        %v2924 = vadd.f32 %v2751, %v2919
        %v2925 = vadd.f32 %v2752, %v2917
        %v2926 = vadd.f32 %v2753, %v2915
        %v2927 = vadd.f32 %v2754, %v2922
        %v2928 = vadd.f32 %v2755, %v2920
        %v2929 = vadd.f32 %v2756, %v2918
        %v2930 = vadd.f32 %v2757, %v2916
        %v2931 = vld [vmem:[%s2] sm:$0xff]
        %v2932 = vld [vmem:[%s2 + $0x8] sm:$0xf]
        %2934 = vset.pattern.permute.xlu0 0
        %2935 = vperm.xlu0 %2934, %v2931
        %v2936 = vpop.permute.xlu0 %2935
        %2939 = vset.pattern.permute.xlu0 0
        %2940 = vperm.xlu0 %2939, %v2932
        %v2941 = vpop.permute.xlu0 %2940
        %v2943 = vadd.f32 %v2923, %v2936
        %v2944 = vadd.f32 %v2924, %v2936
        %v2945 = vadd.f32 %v2925, %v2936
        %v2946 = vadd.f32 %v2926, %v2936
        %v2947 = vadd.f32 %v2927, %v2941
        %v2948 = vadd.f32 %v2928, %v2941
        %v2949 = vadd.f32 %v2929, %v2941
        %v2950 = vadd.f32 %v2930, %v2941
        %vm2951 = vcmp.gt.f32.partialorder %v2943, 0.0
        %vm2952 = vcmp.gt.f32.partialorder %v2944, 0.0
        %vm2953 = vcmp.gt.f32.partialorder %v2945, 0.0
        %vm2954 = vcmp.gt.f32.partialorder %v2946, 0.0
        %vm2955 = vcmp.gt.f32.partialorder %v2947, 0.0
        %vm2956 = vcmp.gt.f32.partialorder %v2948, 0.0
        %vm2957 = vcmp.gt.f32.partialorder %v2949, 0.0
        %vm2958 = vcmp.gt.f32.partialorder %v2950, 0.0
        %v2959 = vmin.f32 %v2943, 0.0
        %v2960 = vmin.f32 %v2944, 0.0
        %v2961 = vmin.f32 %v2945, 0.0
        %v2962 = vmin.f32 %v2946, 0.0
        %v2963 = vmin.f32 %v2947, 0.0
        %v2964 = vmin.f32 %v2948, 0.0
        %v2965 = vmin.f32 %v2949, 0.0
        %v2966 = vmin.f32 %v2950, 0.0
        %v2967 = vmul.f32 %v2959, 1.442695
        %v2968 = vpow.pop %v2967
        %v2969 = vmul.f32 %v2960, 1.442695
        %v2970 = vpow.pop %v2969
        %v2971 = vmul.f32 %v2961, 1.442695
        %v2972 = vpow.pop %v2971
        %v2973 = vmul.f32 %v2962, 1.442695
        %v2974 = vpow.pop %v2973
        %v2975 = vmul.f32 %v2963, 1.442695
        %v2976 = vpow.pop %v2975
        %v2977 = vmul.f32 %v2964, 1.442695
        %v2978 = vpow.pop %v2977
        %v2979 = vmul.f32 %v2965, 1.442695
        %v2980 = vpow.pop %v2979
        %v2981 = vmul.f32 %v2966, 1.442695
        %v2982 = vpow.pop %v2981
        %v2983 = vsub.f32 %v2968, 1.0
        %v2984 = vsub.f32 %v2970, 1.0
        %v2985 = vsub.f32 %v2972, 1.0
        %v2986 = vsub.f32 %v2974, 1.0
        %v2987 = vsub.f32 %v2976, 1.0
        %v2988 = vsub.f32 %v2978, 1.0
        %v2989 = vsub.f32 %v2980, 1.0
        %v2990 = vsub.f32 %v2982, 1.0
        %v2991 = vsel %vm2951, %v2943, %v2983
        %v2992 = vsel %vm2952, %v2944, %v2984
        %v2993 = vsel %vm2953, %v2945, %v2985
        %v2994 = vsel %vm2954, %v2946, %v2986
        %v2995 = vsel %vm2955, %v2947, %v2987
        %v2996 = vsel %vm2956, %v2948, %v2988
        %v2997 = vsel %vm2957, %v2949, %v2989
        %v2998 = vsel %vm2958, %v2950, %v2990
        %s2999 = scalar_lea.vmem %s204, 128 [#allocation7]
        %3000 = vst [vmem:[%s2999] sm:$0xff] %v2991
        %3001 = vst [vmem:[%s2999 + $0x8] sm:$0xff] %v2992
        %3002 = vst [vmem:[%s2999 + $0x10] sm:$0xff] %v2993
        %3003 = vst [vmem:[%s2999 + $0x18] sm:$0xff] %v2994
        %3004 = vst [vmem:[%s2999 + $0x20] sm:$0xf] %v2995
        %3005 = vst [vmem:[%s2999 + $0x28] sm:$0xf] %v2996
        %3006 = vst [vmem:[%s2999 + $0x30] sm:$0xf] %v2997
        %3007 = vst [vmem:[%s2999 + $0x38] sm:$0xf] %v2998
        %s3008 = scalar_lea.vmem %s178, 180 [#allocation2]
        %v3009 = vld [vmem:[%s3008] sm:$0xff]
        %v3010 = vld [vmem:[%s3008 + $0x8] sm:$0xff]
        %v3011 = vld [vmem:[%s3008 + $0x10] sm:$0xf]
        %v3012 = vld [vmem:[%s3008 + $0x14] sm:$0xff]
        %v3013 = vld [vmem:[%s3008 + $0x1c] sm:$0xff]
        %v3014 = vld [vmem:[%s3008 + $0x24] sm:$0xf]
        %v3015 = vld [vmem:[%s3008 + $0x28] sm:$0x77]
        %v3016 = vld [vmem:[%s3008 + $0x30] sm:$0x77]
        %v3017 = vld [vmem:[%s3008 + $0x38] sm:$0x7]
        %v3018 = vld [vmem:[#allocation5] sm:$0xf]
        %v3019 = vld [vmem:[#allocation5 + $0x4] sm:$0x3]
        %v3022 = vunpack.c.l.b16 %v3018
        %v3023 = vunpack.c.l.b16 %v3019
        %v3024 = vpack.c.b16 %v3023, %v3022
        %v3031 = vunpack.c.l.b16 %v3009
        %v3032 = vunpack.c.h.b16 %v3009
        %v3033 = vunpack.c.l.b16 %v3010
        %v3034 = vunpack.c.h.b16 %v3010
        %v3035 = vunpack.c.l.b16 %v3012
        %v3036 = vunpack.c.h.b16 %v3012
        %v3037 = vunpack.c.l.b16 %v3013
        %v3038 = vunpack.c.h.b16 %v3013
        %v3039 = vunpack.c.l.b16 %v3015
        %v3040 = vunpack.c.h.b16 %v3015
        %v3041 = vunpack.c.l.b16 %v3016
        %v3042 = vunpack.c.h.b16 %v3016
        %v3043 = vpack.c.b16 %v3035, %v3031
        %v3044 = vpack.c.b16 %v3036, %v3032
        %v3045 = vpack.c.b16 %v3037, %v3033
        %v3046 = vpack.c.b16 %v3038, %v3034
        %v3047 = vpack.c.b16 %v3039, %v3039
        %v3048 = vpack.c.b16 %v3040, %v3040
        %v3049 = vpack.c.b16 %v3041, %v3041
        %v3050 = vpack.c.b16 %v3042, %v3042
        %v3056 = vsel %vm254, %v3024, 0
        %v3059 = vand.u32 %v3047, %v261
        %v3062 = vand.u32 %v3048, %v261
        %v3065 = vand.u32 %v3049, %v261
        %v3068 = vand.u32 %v3050, %v261
        %3070 = vmatprep.subr.bf16.mxu0 %v3044
        %3071 = vmatpush1.bf16.msra.mxu0 %v3043
        %3072 = vmatprep.subr.bf16.mxu0 %v3062
        %3073 = vmatpush1.bf16.msra.mxu0 %v3059
        %3074 = vmatprep.subr.bf16.mxu0 0
        %3075 = vmatpush1.bf16.msra.mxu0 0
        %3076 = vmatprep.subr.bf16.mxu0 0
        %3077 = vmatpush1.bf16.msra.mxu0 0
        %3078 = vmatprep.subr.bf16.mxu0 0
        %3079 = vmatpush1.bf16.msra.mxu0 0
        %3080 = vmatprep.subr.bf16.mxu0 0
        %3081 = vmatpush1.bf16.msra.mxu0 0
        %3082 = vmatprep.subr.bf16.mxu0 0
        %3083 = vmatpush1.bf16.msra.mxu0 0
        %3084 = vmatprep.subr.bf16.mxu0 0
        %3085 = vmatpush1.bf16.msra.mxu0 0
        %3086 = vmatprep.subr.bf16.mxu0 0
        %3087 = vmatpush1.bf16.msra.mxu0 0
        %3088 = vmatprep.subr.bf16.mxu0 0
        %3089 = vmatpush1.bf16.msra.mxu0 0
        %3090 = vmatprep.subr.bf16.mxu0 0
        %3091 = vmatpush1.bf16.msra.mxu0 0
        %3092 = vmatprep.subr.bf16.mxu0 0
        %3093 = vmatpush1.bf16.msra.mxu0 0
        %3094 = vmatprep.subr.bf16.mxu0 0
        %3095 = vmatpush1.bf16.msra.mxu0 0
        %3096 = vmatprep.subr.bf16.mxu0 0
        %3097 = vmatpush1.bf16.msra.mxu0 0
        %3098 = vmatprep.subr.bf16.mxu0 0
        %3099 = vmatpush1.bf16.msra.mxu0 0
        %3100 = vmatprep.subr.bf16.mxu0 0
        %3101 = vmatpush1.bf16.msra.mxu0 0
        %3102 = vmatprep.mubr.bf16.mxu0 0
        %3103 = vmatmul.mubr.bf16.gmra.mrb[0].mxu0 %v3056
        %v3104 = vpop.f32.mrb[0].mxu0
        %v3105 = vadd.f32 0.0, %v3104
        %v3106 = vpop.f32.mrb[0].mxu0
        %v3107 = vadd.f32 0.0, %v3106
        %v3108 = vpop.f32.mrb[0].mxu0
        %v3109 = vadd.f32 0.0, %v3108
        %v3110 = vpop.f32.mrb[0].mxu0
        %v3111 = vadd.f32 0.0, %v3110
        %3112 = vdwg.mxu0
        %3113 = vmatprep.subr.bf16.mxu0 %v3046
        %3114 = vmatpush1.bf16.msra.mxu0 %v3045
        %3115 = vmatprep.subr.bf16.mxu0 %v3068
        %3116 = vmatpush1.bf16.msra.mxu0 %v3065
        %3117 = vmatprep.subr.bf16.mxu0 0
        %3118 = vmatpush1.bf16.msra.mxu0 0
        %3119 = vmatprep.subr.bf16.mxu0 0
        %3120 = vmatpush1.bf16.msra.mxu0 0
        %3121 = vmatprep.subr.bf16.mxu0 0
        %3122 = vmatpush1.bf16.msra.mxu0 0
        %3123 = vmatprep.subr.bf16.mxu0 0
        %3124 = vmatpush1.bf16.msra.mxu0 0
        %3125 = vmatprep.subr.bf16.mxu0 0
        %3126 = vmatpush1.bf16.msra.mxu0 0
        %3127 = vmatprep.subr.bf16.mxu0 0
        %3128 = vmatpush1.bf16.msra.mxu0 0
        %3129 = vmatprep.subr.bf16.mxu0 0
        %3130 = vmatpush1.bf16.msra.mxu0 0
        %3131 = vmatprep.subr.bf16.mxu0 0
        %3132 = vmatpush1.bf16.msra.mxu0 0
        %3133 = vmatprep.subr.bf16.mxu0 0
        %3134 = vmatpush1.bf16.msra.mxu0 0
        %3135 = vmatprep.subr.bf16.mxu0 0
        %3136 = vmatpush1.bf16.msra.mxu0 0
        %3137 = vmatprep.subr.bf16.mxu0 0
        %3138 = vmatpush1.bf16.msra.mxu0 0
        %3139 = vmatprep.subr.bf16.mxu0 0
        %3140 = vmatpush1.bf16.msra.mxu0 0
        %3141 = vmatprep.subr.bf16.mxu0 0
        %3142 = vmatpush1.bf16.msra.mxu0 0
        %3143 = vmatprep.subr.bf16.mxu0 0
        %3144 = vmatpush1.bf16.msra.mxu0 0
        %3145 = vmatprep.mubr.bf16.mxu0 0
        %3146 = vmatmul.mubr.bf16.gmra.mrb[0].mxu0 %v3056
        %v3147 = vpop.f32.mrb[0].mxu0
        %v3148 = vadd.f32 0.0, %v3147
        %v3149 = vpop.f32.mrb[0].mxu0
        %v3150 = vadd.f32 0.0, %v3149
        %v3151 = vpop.f32.mrb[0].mxu0
        %v3152 = vadd.f32 0.0, %v3151
        %v3153 = vpop.f32.mrb[0].mxu0
        %v3154 = vadd.f32 0.0, %v3153
        %3155 = vdwg.mxu0
        %v3156 = vld [vmem:[%s360] sm:$0xf]
        %v3157 = vld [vmem:[%s360 + $0x4] sm:$0x3]
        %v3160 = vunpack.c.l.b16 %v3156
        %v3161 = vunpack.c.l.b16 %v3157
        %v3162 = vpack.c.b16 %v3161, %v3160
        %v3166 = vunpack.c.l.b16 %v3011
        %v3167 = vunpack.c.l.b16 %v3014
        %v3168 = vunpack.c.l.b16 %v3017
        %v3169 = vpack.c.b16 %v3167, %v3166
        %v3170 = vpack.c.b16 %v3168, %v3168
        %v3173 = vsel %vm254, %v3162, 0
        %v3176 = vand.u32 %v3170, %v261
        %3178 = vmatprep.subr.bf16.mxu0 %v3044
        %3179 = vmatpush1.bf16.msra.mxu0 %v3043
        %3180 = vmatprep.subr.bf16.mxu0 %v3062
        %3181 = vmatpush1.bf16.msra.mxu0 %v3059
        %3182 = vmatprep.subr.bf16.mxu0 0
        %3183 = vmatpush1.bf16.msra.mxu0 0
        %3184 = vmatprep.subr.bf16.mxu0 0
        %3185 = vmatpush1.bf16.msra.mxu0 0
        %3186 = vmatprep.subr.bf16.mxu0 0
        %3187 = vmatpush1.bf16.msra.mxu0 0
        %3188 = vmatprep.subr.bf16.mxu0 0
        %3189 = vmatpush1.bf16.msra.mxu0 0
        %3190 = vmatprep.subr.bf16.mxu0 0
        %3191 = vmatpush1.bf16.msra.mxu0 0
        %3192 = vmatprep.subr.bf16.mxu0 0
        %3193 = vmatpush1.bf16.msra.mxu0 0
        %3194 = vmatprep.subr.bf16.mxu0 0
        %3195 = vmatpush1.bf16.msra.mxu0 0
        %3196 = vmatprep.subr.bf16.mxu0 0
        %3197 = vmatpush1.bf16.msra.mxu0 0
        %3198 = vmatprep.subr.bf16.mxu0 0
        %3199 = vmatpush1.bf16.msra.mxu0 0
        %3200 = vmatprep.subr.bf16.mxu0 0
        %3201 = vmatpush1.bf16.msra.mxu0 0
        %3202 = vmatprep.subr.bf16.mxu0 0
        %3203 = vmatpush1.bf16.msra.mxu0 0
        %3204 = vmatprep.subr.bf16.mxu0 0
        %3205 = vmatpush1.bf16.msra.mxu0 0
        %3206 = vmatprep.subr.bf16.mxu0 0
        %3207 = vmatpush1.bf16.msra.mxu0 0
        %3208 = vmatprep.subr.bf16.mxu0 0
        %3209 = vmatpush1.bf16.msra.mxu0 0
        %3210 = vmatprep.mubr.bf16.mxu0 0
        %3211 = vmatmul.mubr.bf16.gmra.mrb[0].mxu0 %v3173
        %v3212 = vpop.f32.mrb[0].mxu0
        %v3213 = vadd.f32 0.0, %v3212
        %v3214 = vpop.f32.mrb[0].mxu0
        %v3215 = vadd.f32 0.0, %v3214
        %v3216 = vpop.f32.mrb[0].mxu0
        %v3217 = vadd.f32 0.0, %v3216
        %v3218 = vpop.f32.mrb[0].mxu0
        %v3219 = vadd.f32 0.0, %v3218
        %3220 = vdwg.mxu0
        %3221 = vmatprep.subr.bf16.mxu0 %v3046
        %3222 = vmatpush1.bf16.msra.mxu0 %v3045
        %3223 = vmatprep.subr.bf16.mxu0 %v3068
        %3224 = vmatpush1.bf16.msra.mxu0 %v3065
        %3225 = vmatprep.subr.bf16.mxu0 0
        %3226 = vmatpush1.bf16.msra.mxu0 0
        %3227 = vmatprep.subr.bf16.mxu0 0
        %3228 = vmatpush1.bf16.msra.mxu0 0
        %3229 = vmatprep.subr.bf16.mxu0 0
        %3230 = vmatpush1.bf16.msra.mxu0 0
        %3231 = vmatprep.subr.bf16.mxu0 0
        %3232 = vmatpush1.bf16.msra.mxu0 0
        %3233 = vmatprep.subr.bf16.mxu0 0
        %3234 = vmatpush1.bf16.msra.mxu0 0
        %3235 = vmatprep.subr.bf16.mxu0 0
        %3236 = vmatpush1.bf16.msra.mxu0 0
        %3237 = vmatprep.subr.bf16.mxu0 0
        %3238 = vmatpush1.bf16.msra.mxu0 0
        %3239 = vmatprep.subr.bf16.mxu0 0
        %3240 = vmatpush1.bf16.msra.mxu0 0
        %3241 = vmatprep.subr.bf16.mxu0 0
        %3242 = vmatpush1.bf16.msra.mxu0 0
        %3243 = vmatprep.subr.bf16.mxu0 0
        %3244 = vmatpush1.bf16.msra.mxu0 0
        %3245 = vmatprep.subr.bf16.mxu0 0
        %3246 = vmatpush1.bf16.msra.mxu0 0
        %3247 = vmatprep.subr.bf16.mxu0 0
        %3248 = vmatpush1.bf16.msra.mxu0 0
        %3249 = vmatprep.subr.bf16.mxu0 0
        %3250 = vmatpush1.bf16.msra.mxu0 0
        %3251 = vmatprep.subr.bf16.mxu0 0
        %3252 = vmatpush1.bf16.msra.mxu0 0
        %3253 = vmatprep.mubr.bf16.mxu0 0
        %3254 = vmatmul.mubr.bf16.gmra.mrb[0].mxu0 %v3173
        %v3255 = vpop.f32.mrb[0].mxu0
        %v3256 = vadd.f32 0.0, %v3255
        %v3257 = vpop.f32.mrb[0].mxu0
        %v3258 = vadd.f32 0.0, %v3257
        %v3259 = vpop.f32.mrb[0].mxu0
        %v3260 = vadd.f32 0.0, %v3259
        %v3261 = vpop.f32.mrb[0].mxu0
        %v3262 = vadd.f32 0.0, %v3261
        %3263 = vdwg.mxu0
        %3264 = vmatprep.subr.bf16.mxu0 0
        %3265 = vmatpush1.bf16.msra.mxu0 %v3169
        %3266 = vmatprep.subr.bf16.mxu0 0
        %3267 = vmatpush1.bf16.msra.mxu0 %v3176
        %3268 = vmatprep.subr.bf16.mxu0 0
        %3269 = vmatpush1.bf16.msra.mxu0 0
        %3270 = vmatprep.subr.bf16.mxu0 0
        %3271 = vmatpush1.bf16.msra.mxu0 0
        %3272 = vmatprep.subr.bf16.mxu0 0
        %3273 = vmatpush1.bf16.msra.mxu0 0
        %3274 = vmatprep.subr.bf16.mxu0 0
        %3275 = vmatpush1.bf16.msra.mxu0 0
        %3276 = vmatprep.subr.bf16.mxu0 0
        %3277 = vmatpush1.bf16.msra.mxu0 0
        %3278 = vmatprep.subr.bf16.mxu0 0
        %3279 = vmatpush1.bf16.msra.mxu0 0
        %3280 = vmatprep.subr.bf16.mxu0 0
        %3281 = vmatpush1.bf16.msra.mxu0 0
        %3282 = vmatprep.subr.bf16.mxu0 0
        %3283 = vmatpush1.bf16.msra.mxu0 0
        %3284 = vmatprep.subr.bf16.mxu0 0
        %3285 = vmatpush1.bf16.msra.mxu0 0
        %3286 = vmatprep.subr.bf16.mxu0 0
        %3287 = vmatpush1.bf16.msra.mxu0 0
        %3288 = vmatprep.subr.bf16.mxu0 0
        %3289 = vmatpush1.bf16.msra.mxu0 0
        %3290 = vmatprep.subr.bf16.mxu0 0
        %3291 = vmatpush1.bf16.msra.mxu0 0
        %3292 = vmatprep.subr.bf16.mxu0 0
        %3293 = vmatpush1.bf16.msra.mxu0 0
        %3294 = vmatprep.subr.bf16.mxu0 0
        %3295 = vmatpush1.bf16.msra.mxu0 0
        %3296 = vmatprep.mubr.bf16.mxu0 0
        %3297 = vmatmul.mubr.bf16.gmra.mrb[0].mxu0 %v3173
        %v3298 = vpop.f32.mrb[0].mxu0
        %v3299 = vadd.f32 0.0, %v3298
        %v3300 = vpop.f32.mrb[0].mxu0
        %v3301 = vpop.f32.mrb[0].mxu0
        %v3302 = vadd.f32 0.0, %v3301
        %v3303 = vpop.f32.mrb[0].mxu0
        %3304 = vdwg.mxu0
        %3305 = vrot.lane.b32.xlu0 %v3213, 99
        %v3306 = vpop.permute.xlu0 %3305
        %3307 = vrot.lane.b32.xlu0 %v3217, 99
        %v3308 = vpop.permute.xlu0 %3307
        %3309 = vrot.lane.b32.xlu0 %v3215, 99
        %v3310 = vpop.permute.xlu0 %3309
        %3311 = vrot.lane.b32.xlu0 %v3219, 99
        %v3312 = vpop.permute.xlu0 %3311
        %3313 = vrot.lane.b32.xlu0 %v3256, 99
        %v3314 = vpop.permute.xlu0 %3313
        %3315 = vrot.lane.b32.xlu0 %v3260, 99
        %v3316 = vpop.permute.xlu0 %3315
        %3317 = vrot.lane.b32.xlu0 %v3258, 99
        %v3318 = vpop.permute.xlu0 %3317
        %3319 = vrot.lane.b32.xlu0 %v3262, 99
        %v3320 = vpop.permute.xlu0 %3319
        %3321 = vrot.lane.b32.xlu0 %v3299, 99
        %v3322 = vpop.permute.xlu0 %3321
        %3323 = vrot.lane.b32.xlu0 %v3302, 99
        %v3324 = vpop.permute.xlu0 %3323
        %v3325 = vsel %vm532, %v3318, %v3322
        %v3326 = vsel %vm532, %v3320, %v3324
        %v3327 = vsel %vm532, %v3314, %v3318
        %v3328 = vsel %vm532, %v3316, %v3320
        %v3329 = vsel %vm532, %v3310, %v3314
        %v3330 = vsel %vm532, %v3312, %v3316
        %v3331 = vsel %vm532, %v3306, %v3310
        %v3332 = vsel %vm532, %v3308, %v3312
        %v3333 = vadd.f32 %v3105, %v3331
        %v3334 = vadd.f32 %v3107, %v3329
        %v3335 = vadd.f32 %v3148, %v3327
        %v3336 = vadd.f32 %v3150, %v3325
        %v3337 = vadd.f32 %v3109, %v3332
        %v3338 = vadd.f32 %v3111, %v3330
        %v3339 = vadd.f32 %v3152, %v3328
        %v3340 = vadd.f32 %v3154, %v3326
        %v3341 = vld [vmem:[%s549] sm:$0xf]
        %v3342 = vld [vmem:[%s549 + $0x4] sm:$0x3]
        %v3345 = vunpack.c.l.b16 %v3341
        %v3346 = vunpack.c.l.b16 %v3342
        %v3347 = vpack.c.b16 %v3346, %v3345
        %v3349 = vsel %vm254, %v3347, 0
        %3351 = vmatprep.subr.bf16.mxu0 %v3044
        %3352 = vmatpush1.bf16.msra.mxu0 %v3043
        %3353 = vmatprep.subr.bf16.mxu0 %v3062
        %3354 = vmatpush1.bf16.msra.mxu0 %v3059
        %3355 = vmatprep.subr.bf16.mxu0 0
        %3356 = vmatpush1.bf16.msra.mxu0 0
        %3357 = vmatprep.subr.bf16.mxu0 0
        %3358 = vmatpush1.bf16.msra.mxu0 0
        %3359 = vmatprep.subr.bf16.mxu0 0
        %3360 = vmatpush1.bf16.msra.mxu0 0
        %3361 = vmatprep.subr.bf16.mxu0 0
        %3362 = vmatpush1.bf16.msra.mxu0 0
        %3363 = vmatprep.subr.bf16.mxu0 0
        %3364 = vmatpush1.bf16.msra.mxu0 0
        %3365 = vmatprep.subr.bf16.mxu0 0
        %3366 = vmatpush1.bf16.msra.mxu0 0
        %3367 = vmatprep.subr.bf16.mxu0 0
        %3368 = vmatpush1.bf16.msra.mxu0 0
        %3369 = vmatprep.subr.bf16.mxu0 0
        %3370 = vmatpush1.bf16.msra.mxu0 0
        %3371 = vmatprep.subr.bf16.mxu0 0
        %3372 = vmatpush1.bf16.msra.mxu0 0
        %3373 = vmatprep.subr.bf16.mxu0 0
        %3374 = vmatpush1.bf16.msra.mxu0 0
        %3375 = vmatprep.subr.bf16.mxu0 0
        %3376 = vmatpush1.bf16.msra.mxu0 0
        %3377 = vmatprep.subr.bf16.mxu0 0
        %3378 = vmatpush1.bf16.msra.mxu0 0
        %3379 = vmatprep.subr.bf16.mxu0 0
        %3380 = vmatpush1.bf16.msra.mxu0 0
        %3381 = vmatprep.subr.bf16.mxu0 0
        %3382 = vmatpush1.bf16.msra.mxu0 0
        %3383 = vmatprep.mubr.bf16.mxu0 0
        %3384 = vmatmul.mubr.bf16.gmra.mrb[0].mxu0 %v3349
        %v3385 = vpop.f32.mrb[0].mxu0
        %v3386 = vadd.f32 0.0, %v3385
        %v3387 = vpop.f32.mrb[0].mxu0
        %v3388 = vadd.f32 0.0, %v3387
        %v3389 = vpop.f32.mrb[0].mxu0
        %v3390 = vadd.f32 0.0, %v3389
        %v3391 = vpop.f32.mrb[0].mxu0
        %v3392 = vadd.f32 0.0, %v3391
        %3393 = vdwg.mxu0
        %3394 = vmatprep.subr.bf16.mxu0 %v3046
        %3395 = vmatpush1.bf16.msra.mxu0 %v3045
        %3396 = vmatprep.subr.bf16.mxu0 %v3068
        %3397 = vmatpush1.bf16.msra.mxu0 %v3065
        %3398 = vmatprep.subr.bf16.mxu0 0
        %3399 = vmatpush1.bf16.msra.mxu0 0
        %3400 = vmatprep.subr.bf16.mxu0 0
        %3401 = vmatpush1.bf16.msra.mxu0 0
        %3402 = vmatprep.subr.bf16.mxu0 0
        %3403 = vmatpush1.bf16.msra.mxu0 0
        %3404 = vmatprep.subr.bf16.mxu0 0
        %3405 = vmatpush1.bf16.msra.mxu0 0
        %3406 = vmatprep.subr.bf16.mxu0 0
        %3407 = vmatpush1.bf16.msra.mxu0 0
        %3408 = vmatprep.subr.bf16.mxu0 0
        %3409 = vmatpush1.bf16.msra.mxu0 0
        %3410 = vmatprep.subr.bf16.mxu0 0
        %3411 = vmatpush1.bf16.msra.mxu0 0
        %3412 = vmatprep.subr.bf16.mxu0 0
        %3413 = vmatpush1.bf16.msra.mxu0 0
        %3414 = vmatprep.subr.bf16.mxu0 0
        %3415 = vmatpush1.bf16.msra.mxu0 0
        %3416 = vmatprep.subr.bf16.mxu0 0
        %3417 = vmatpush1.bf16.msra.mxu0 0
        %3418 = vmatprep.subr.bf16.mxu0 0
        %3419 = vmatpush1.bf16.msra.mxu0 0
        %3420 = vmatprep.subr.bf16.mxu0 0
        %3421 = vmatpush1.bf16.msra.mxu0 0
        %3422 = vmatprep.subr.bf16.mxu0 0
        %3423 = vmatpush1.bf16.msra.mxu0 0
        %3424 = vmatprep.subr.bf16.mxu0 0
        %3425 = vmatpush1.bf16.msra.mxu0 0
        %3426 = vmatprep.mubr.bf16.mxu0 0
        %3427 = vmatmul.mubr.bf16.gmra.mrb[0].mxu0 %v3349
        %v3428 = vpop.f32.mrb[0].mxu0
        %v3429 = vadd.f32 0.0, %v3428
        %v3430 = vpop.f32.mrb[0].mxu0
        %v3431 = vadd.f32 0.0, %v3430
        %v3432 = vpop.f32.mrb[0].mxu0
        %v3433 = vadd.f32 0.0, %v3432
        %v3434 = vpop.f32.mrb[0].mxu0
        %v3435 = vadd.f32 0.0, %v3434
        %3436 = vdwg.mxu0
        %3437 = vmatprep.subr.bf16.mxu0 0
        %3438 = vmatpush1.bf16.msra.mxu0 %v3169
        %3439 = vmatprep.subr.bf16.mxu0 0
        %3440 = vmatpush1.bf16.msra.mxu0 %v3176
        %3441 = vmatprep.subr.bf16.mxu0 0
        %3442 = vmatpush1.bf16.msra.mxu0 0
        %3443 = vmatprep.subr.bf16.mxu0 0
        %3444 = vmatpush1.bf16.msra.mxu0 0
        %3445 = vmatprep.subr.bf16.mxu0 0
        %3446 = vmatpush1.bf16.msra.mxu0 0
        %3447 = vmatprep.subr.bf16.mxu0 0
        %3448 = vmatpush1.bf16.msra.mxu0 0
        %3449 = vmatprep.subr.bf16.mxu0 0
        %3450 = vmatpush1.bf16.msra.mxu0 0
        %3451 = vmatprep.subr.bf16.mxu0 0
        %3452 = vmatpush1.bf16.msra.mxu0 0
        %3453 = vmatprep.subr.bf16.mxu0 0
        %3454 = vmatpush1.bf16.msra.mxu0 0
        %3455 = vmatprep.subr.bf16.mxu0 0
        %3456 = vmatpush1.bf16.msra.mxu0 0
        %3457 = vmatprep.subr.bf16.mxu0 0
        %3458 = vmatpush1.bf16.msra.mxu0 0
        %3459 = vmatprep.subr.bf16.mxu0 0
        %3460 = vmatpush1.bf16.msra.mxu0 0
        %3461 = vmatprep.subr.bf16.mxu0 0
        %3462 = vmatpush1.bf16.msra.mxu0 0
        %3463 = vmatprep.subr.bf16.mxu0 0
        %3464 = vmatpush1.bf16.msra.mxu0 0
        %3465 = vmatprep.subr.bf16.mxu0 0
        %3466 = vmatpush1.bf16.msra.mxu0 0
        %3467 = vmatprep.subr.bf16.mxu0 0
        %3468 = vmatpush1.bf16.msra.mxu0 0
        %3469 = vmatprep.mubr.bf16.mxu0 0
        %3470 = vmatmul.mubr.bf16.gmra.mrb[0].mxu0 %v3349
        %v3471 = vpop.f32.mrb[0].mxu0
        %v3472 = vadd.f32 0.0, %v3471
        %v3473 = vpop.f32.mrb[0].mxu0
        %v3474 = vpop.f32.mrb[0].mxu0
        %v3475 = vadd.f32 0.0, %v3474
        %v3476 = vpop.f32.mrb[0].mxu0
        %3477 = vdwg.mxu0
        %3478 = vrot.lane.b32.xlu0 %v3386, 70
        %v3479 = vpop.permute.xlu0 %3478
        %3480 = vrot.lane.b32.xlu0 %v3390, 70
        %v3481 = vpop.permute.xlu0 %3480
        %3482 = vrot.lane.b32.xlu0 %v3388, 70
        %v3483 = vpop.permute.xlu0 %3482
        %3484 = vrot.lane.b32.xlu0 %v3392, 70
        %v3485 = vpop.permute.xlu0 %3484
        %3486 = vrot.lane.b32.xlu0 %v3429, 70
        %v3487 = vpop.permute.xlu0 %3486
        %3488 = vrot.lane.b32.xlu0 %v3433, 70
        %v3489 = vpop.permute.xlu0 %3488
        %3490 = vrot.lane.b32.xlu0 %v3431, 70
        %v3491 = vpop.permute.xlu0 %3490
        %3492 = vrot.lane.b32.xlu0 %v3435, 70
        %v3493 = vpop.permute.xlu0 %3492
        %3494 = vrot.lane.b32.xlu0 %v3472, 70
        %v3495 = vpop.permute.xlu0 %3494
        %3496 = vrot.lane.b32.xlu0 %v3475, 70
        %v3497 = vpop.permute.xlu0 %3496
        %v3498 = vsel %vm707, %v3491, %v3495
        %v3499 = vsel %vm707, %v3493, %v3497
        %v3500 = vsel %vm707, %v3487, %v3491
        %v3501 = vsel %vm707, %v3489, %v3493
        %v3502 = vsel %vm707, %v3483, %v3487
        %v3503 = vsel %vm707, %v3485, %v3489
        %v3504 = vsel %vm707, %v3479, %v3483
        %v3505 = vsel %vm707, %v3481, %v3485
        %v3506 = vadd.f32 %v3333, %v3504
        %v3507 = vadd.f32 %v3334, %v3502
        %v3508 = vadd.f32 %v3335, %v3500
        %v3509 = vadd.f32 %v3336, %v3498
        %v3510 = vadd.f32 %v3337, %v3505
        %v3511 = vadd.f32 %v3338, %v3503
        %v3512 = vadd.f32 %v3339, %v3501
        %v3513 = vadd.f32 %v3340, %v3499
        %v3514 = vld [vmem:[%s724] sm:$0xf]
        %v3515 = vld [vmem:[%s724 + $0x4] sm:$0x3]
        %v3518 = vunpack.c.l.b16 %v3514
        %v3519 = vunpack.c.l.b16 %v3515
        %v3520 = vpack.c.b16 %v3519, %v3518
        %v3522 = vsel %vm254, %v3520, 0
        %3524 = vmatprep.subr.bf16.mxu0 %v3044
        %3525 = vmatpush1.bf16.msra.mxu0 %v3043
        %3526 = vmatprep.subr.bf16.mxu0 %v3062
        %3527 = vmatpush1.bf16.msra.mxu0 %v3059
        %3528 = vmatprep.subr.bf16.mxu0 0
        %3529 = vmatpush1.bf16.msra.mxu0 0
        %3530 = vmatprep.subr.bf16.mxu0 0
        %3531 = vmatpush1.bf16.msra.mxu0 0
        %3532 = vmatprep.subr.bf16.mxu0 0
        %3533 = vmatpush1.bf16.msra.mxu0 0
        %3534 = vmatprep.subr.bf16.mxu0 0
        %3535 = vmatpush1.bf16.msra.mxu0 0
        %3536 = vmatprep.subr.bf16.mxu0 0
        %3537 = vmatpush1.bf16.msra.mxu0 0
        %3538 = vmatprep.subr.bf16.mxu0 0
        %3539 = vmatpush1.bf16.msra.mxu0 0
        %3540 = vmatprep.subr.bf16.mxu0 0
        %3541 = vmatpush1.bf16.msra.mxu0 0
        %3542 = vmatprep.subr.bf16.mxu0 0
        %3543 = vmatpush1.bf16.msra.mxu0 0
        %3544 = vmatprep.subr.bf16.mxu0 0
        %3545 = vmatpush1.bf16.msra.mxu0 0
        %3546 = vmatprep.subr.bf16.mxu0 0
        %3547 = vmatpush1.bf16.msra.mxu0 0
        %3548 = vmatprep.subr.bf16.mxu0 0
        %3549 = vmatpush1.bf16.msra.mxu0 0
        %3550 = vmatprep.subr.bf16.mxu0 0
        %3551 = vmatpush1.bf16.msra.mxu0 0
        %3552 = vmatprep.subr.bf16.mxu0 0
        %3553 = vmatpush1.bf16.msra.mxu0 0
        %3554 = vmatprep.subr.bf16.mxu0 0
        %3555 = vmatpush1.bf16.msra.mxu0 0
        %3556 = vmatprep.mubr.bf16.mxu0 0
        %3557 = vmatmul.mubr.bf16.gmra.mrb[0].mxu0 %v3522
        %v3558 = vpop.f32.mrb[0].mxu0
        %v3559 = vadd.f32 0.0, %v3558
        %v3560 = vpop.f32.mrb[0].mxu0
        %v3561 = vadd.f32 0.0, %v3560
        %v3562 = vpop.f32.mrb[0].mxu0
        %v3563 = vadd.f32 0.0, %v3562
        %v3564 = vpop.f32.mrb[0].mxu0
        %v3565 = vadd.f32 0.0, %v3564
        %3566 = vdwg.mxu0
        %3567 = vmatprep.subr.bf16.mxu0 %v3046
        %3568 = vmatpush1.bf16.msra.mxu0 %v3045
        %3569 = vmatprep.subr.bf16.mxu0 %v3068
        %3570 = vmatpush1.bf16.msra.mxu0 %v3065
        %3571 = vmatprep.subr.bf16.mxu0 0
        %3572 = vmatpush1.bf16.msra.mxu0 0
        %3573 = vmatprep.subr.bf16.mxu0 0
        %3574 = vmatpush1.bf16.msra.mxu0 0
        %3575 = vmatprep.subr.bf16.mxu0 0
        %3576 = vmatpush1.bf16.msra.mxu0 0
        %3577 = vmatprep.subr.bf16.mxu0 0
        %3578 = vmatpush1.bf16.msra.mxu0 0
        %3579 = vmatprep.subr.bf16.mxu0 0
        %3580 = vmatpush1.bf16.msra.mxu0 0
        %3581 = vmatprep.subr.bf16.mxu0 0
        %3582 = vmatpush1.bf16.msra.mxu0 0
        %3583 = vmatprep.subr.bf16.mxu0 0
        %3584 = vmatpush1.bf16.msra.mxu0 0
        %3585 = vmatprep.subr.bf16.mxu0 0
        %3586 = vmatpush1.bf16.msra.mxu0 0
        %3587 = vmatprep.subr.bf16.mxu0 0
        %3588 = vmatpush1.bf16.msra.mxu0 0
        %3589 = vmatprep.subr.bf16.mxu0 0
        %3590 = vmatpush1.bf16.msra.mxu0 0
        %3591 = vmatprep.subr.bf16.mxu0 0
        %3592 = vmatpush1.bf16.msra.mxu0 0
        %3593 = vmatprep.subr.bf16.mxu0 0
        %3594 = vmatpush1.bf16.msra.mxu0 0
        %3595 = vmatprep.subr.bf16.mxu0 0
        %3596 = vmatpush1.bf16.msra.mxu0 0
        %3597 = vmatprep.subr.bf16.mxu0 0
        %3598 = vmatpush1.bf16.msra.mxu0 0
        %3599 = vmatprep.mubr.bf16.mxu0 0
        %3600 = vmatmul.mubr.bf16.gmra.mrb[0].mxu0 %v3522
        %v3601 = vpop.f32.mrb[0].mxu0
        %v3602 = vadd.f32 0.0, %v3601
        %v3603 = vpop.f32.mrb[0].mxu0
        %v3604 = vadd.f32 0.0, %v3603
        %v3605 = vpop.f32.mrb[0].mxu0
        %v3606 = vadd.f32 0.0, %v3605
        %v3607 = vpop.f32.mrb[0].mxu0
        %v3608 = vadd.f32 0.0, %v3607
        %3609 = vdwg.mxu0
        %3610 = vmatprep.subr.bf16.mxu0 0
        %3611 = vmatpush1.bf16.msra.mxu0 %v3169
        %3612 = vmatprep.subr.bf16.mxu0 0
        %3613 = vmatpush1.bf16.msra.mxu0 %v3176
        %3614 = vmatprep.subr.bf16.mxu0 0
        %3615 = vmatpush1.bf16.msra.mxu0 0
        %3616 = vmatprep.subr.bf16.mxu0 0
        %3617 = vmatpush1.bf16.msra.mxu0 0
        %3618 = vmatprep.subr.bf16.mxu0 0
        %3619 = vmatpush1.bf16.msra.mxu0 0
        %3620 = vmatprep.subr.bf16.mxu0 0
        %3621 = vmatpush1.bf16.msra.mxu0 0
        %3622 = vmatprep.subr.bf16.mxu0 0
        %3623 = vmatpush1.bf16.msra.mxu0 0
        %3624 = vmatprep.subr.bf16.mxu0 0
        %3625 = vmatpush1.bf16.msra.mxu0 0
        %3626 = vmatprep.subr.bf16.mxu0 0
        %3627 = vmatpush1.bf16.msra.mxu0 0
        %3628 = vmatprep.subr.bf16.mxu0 0
        %3629 = vmatpush1.bf16.msra.mxu0 0
        %3630 = vmatprep.subr.bf16.mxu0 0
        %3631 = vmatpush1.bf16.msra.mxu0 0
        %3632 = vmatprep.subr.bf16.mxu0 0
        %3633 = vmatpush1.bf16.msra.mxu0 0
        %3634 = vmatprep.subr.bf16.mxu0 0
        %3635 = vmatpush1.bf16.msra.mxu0 0
        %3636 = vmatprep.subr.bf16.mxu0 0
        %3637 = vmatpush1.bf16.msra.mxu0 0
        %3638 = vmatprep.subr.bf16.mxu0 0
        %3639 = vmatpush1.bf16.msra.mxu0 0
        %3640 = vmatprep.subr.bf16.mxu0 0
        %3641 = vmatpush1.bf16.msra.mxu0 0
        %3642 = vmatprep.mubr.bf16.mxu0 0
        %3643 = vmatmul.mubr.bf16.gmra.mrb[0].mxu0 %v3522
        %v3644 = vpop.f32.mrb[0].mxu0
        %v3645 = vadd.f32 0.0, %v3644
        %v3646 = vpop.f32.mrb[0].mxu0
        %v3647 = vpop.f32.mrb[0].mxu0
        %v3648 = vadd.f32 0.0, %v3647
        %v3649 = vpop.f32.mrb[0].mxu0
        %3650 = vdwg.mxu0
        %3651 = vrot.lane.b32.xlu0 %v3559, 41
        %v3652 = vpop.permute.xlu0 %3651
        %3653 = vrot.lane.b32.xlu0 %v3563, 41
        %v3654 = vpop.permute.xlu0 %3653
        %3655 = vrot.lane.b32.xlu0 %v3561, 41
        %v3656 = vpop.permute.xlu0 %3655
        %3657 = vrot.lane.b32.xlu0 %v3565, 41
        %v3658 = vpop.permute.xlu0 %3657
        %3659 = vrot.lane.b32.xlu0 %v3602, 41
        %v3660 = vpop.permute.xlu0 %3659
        %3661 = vrot.lane.b32.xlu0 %v3606, 41
        %v3662 = vpop.permute.xlu0 %3661
        %3663 = vrot.lane.b32.xlu0 %v3604, 41
        %v3664 = vpop.permute.xlu0 %3663
        %3665 = vrot.lane.b32.xlu0 %v3608, 41
        %v3666 = vpop.permute.xlu0 %3665
        %3667 = vrot.lane.b32.xlu0 %v3645, 41
        %v3668 = vpop.permute.xlu0 %3667
        %3669 = vrot.lane.b32.xlu0 %v3648, 41
        %v3670 = vpop.permute.xlu0 %3669
        %v3671 = vsel %vm882, %v3664, %v3668
        %v3672 = vsel %vm882, %v3666, %v3670
        %v3673 = vsel %vm882, %v3660, %v3664
        %v3674 = vsel %vm882, %v3662, %v3666
        %v3675 = vsel %vm882, %v3656, %v3660
        %v3676 = vsel %vm882, %v3658, %v3662
        %v3677 = vsel %vm882, %v3652, %v3656
        %v3678 = vsel %vm882, %v3654, %v3658
        %v3679 = vadd.f32 %v3506, %v3677
        %v3680 = vadd.f32 %v3507, %v3675
        %v3681 = vadd.f32 %v3508, %v3673
        %v3682 = vadd.f32 %v3509, %v3671
        %v3683 = vadd.f32 %v3510, %v3678
        %v3684 = vadd.f32 %v3511, %v3676
        %v3685 = vadd.f32 %v3512, %v3674
        %v3686 = vadd.f32 %v3513, %v3672
        %v3687 = vld [vmem:[%s899] sm:$0xf]
        %v3688 = vld [vmem:[%s899 + $0x4] sm:$0x3]
        %v3691 = vunpack.c.l.b16 %v3687
        %v3692 = vunpack.c.l.b16 %v3688
        %v3693 = vpack.c.b16 %v3692, %v3691
        %v3695 = vsel %vm254, %v3693, 0
        %3697 = vmatprep.subr.bf16.mxu0 %v3044
        %3698 = vmatpush1.bf16.msra.mxu0 %v3043
        %3699 = vmatprep.subr.bf16.mxu0 %v3062
        %3700 = vmatpush1.bf16.msra.mxu0 %v3059
        %3701 = vmatprep.subr.bf16.mxu0 0
        %3702 = vmatpush1.bf16.msra.mxu0 0
        %3703 = vmatprep.subr.bf16.mxu0 0
        %3704 = vmatpush1.bf16.msra.mxu0 0
        %3705 = vmatprep.subr.bf16.mxu0 0
        %3706 = vmatpush1.bf16.msra.mxu0 0
        %3707 = vmatprep.subr.bf16.mxu0 0
        %3708 = vmatpush1.bf16.msra.mxu0 0
        %3709 = vmatprep.subr.bf16.mxu0 0
        %3710 = vmatpush1.bf16.msra.mxu0 0
        %3711 = vmatprep.subr.bf16.mxu0 0
        %3712 = vmatpush1.bf16.msra.mxu0 0
        %3713 = vmatprep.subr.bf16.mxu0 0
        %3714 = vmatpush1.bf16.msra.mxu0 0
        %3715 = vmatprep.subr.bf16.mxu0 0
        %3716 = vmatpush1.bf16.msra.mxu0 0
        %3717 = vmatprep.subr.bf16.mxu0 0
        %3718 = vmatpush1.bf16.msra.mxu0 0
        %3719 = vmatprep.subr.bf16.mxu0 0
        %3720 = vmatpush1.bf16.msra.mxu0 0
        %3721 = vmatprep.subr.bf16.mxu0 0
        %3722 = vmatpush1.bf16.msra.mxu0 0
        %3723 = vmatprep.subr.bf16.mxu0 0
        %3724 = vmatpush1.bf16.msra.mxu0 0
        %3725 = vmatprep.subr.bf16.mxu0 0
        %3726 = vmatpush1.bf16.msra.mxu0 0
        %3727 = vmatprep.subr.bf16.mxu0 0
        %3728 = vmatpush1.bf16.msra.mxu0 0
        %3729 = vmatprep.mubr.bf16.mxu0 0
        %3730 = vmatmul.mubr.bf16.gmra.mrb[0].mxu0 %v3695
        %v3731 = vpop.f32.mrb[0].mxu0
        %v3732 = vadd.f32 0.0, %v3731
        %v3733 = vpop.f32.mrb[0].mxu0
        %v3734 = vadd.f32 0.0, %v3733
        %v3735 = vpop.f32.mrb[0].mxu0
        %v3736 = vadd.f32 0.0, %v3735
        %v3737 = vpop.f32.mrb[0].mxu0
        %v3738 = vadd.f32 0.0, %v3737
        %3739 = vdwg.mxu0
        %3740 = vmatprep.subr.bf16.mxu0 %v3046
        %3741 = vmatpush1.bf16.msra.mxu0 %v3045
        %3742 = vmatprep.subr.bf16.mxu0 %v3068
        %3743 = vmatpush1.bf16.msra.mxu0 %v3065
        %3744 = vmatprep.subr.bf16.mxu0 0
        %3745 = vmatpush1.bf16.msra.mxu0 0
        %3746 = vmatprep.subr.bf16.mxu0 0
        %3747 = vmatpush1.bf16.msra.mxu0 0
        %3748 = vmatprep.subr.bf16.mxu0 0
        %3749 = vmatpush1.bf16.msra.mxu0 0
        %3750 = vmatprep.subr.bf16.mxu0 0
        %3751 = vmatpush1.bf16.msra.mxu0 0
        %3752 = vmatprep.subr.bf16.mxu0 0
        %3753 = vmatpush1.bf16.msra.mxu0 0
        %3754 = vmatprep.subr.bf16.mxu0 0
        %3755 = vmatpush1.bf16.msra.mxu0 0
        %3756 = vmatprep.subr.bf16.mxu0 0
        %3757 = vmatpush1.bf16.msra.mxu0 0
        %3758 = vmatprep.subr.bf16.mxu0 0
        %3759 = vmatpush1.bf16.msra.mxu0 0
        %3760 = vmatprep.subr.bf16.mxu0 0
        %3761 = vmatpush1.bf16.msra.mxu0 0
        %3762 = vmatprep.subr.bf16.mxu0 0
        %3763 = vmatpush1.bf16.msra.mxu0 0
        %3764 = vmatprep.subr.bf16.mxu0 0
        %3765 = vmatpush1.bf16.msra.mxu0 0
        %3766 = vmatprep.subr.bf16.mxu0 0
        %3767 = vmatpush1.bf16.msra.mxu0 0
        %3768 = vmatprep.subr.bf16.mxu0 0
        %3769 = vmatpush1.bf16.msra.mxu0 0
        %3770 = vmatprep.subr.bf16.mxu0 0
        %3771 = vmatpush1.bf16.msra.mxu0 0
        %3772 = vmatprep.mubr.bf16.mxu0 0
        %3773 = vmatmul.mubr.bf16.gmra.mrb[0].mxu0 %v3695
        %v3774 = vpop.f32.mrb[0].mxu0
        %v3775 = vadd.f32 0.0, %v3774
        %v3776 = vpop.f32.mrb[0].mxu0
        %v3777 = vadd.f32 0.0, %v3776
        %v3778 = vpop.f32.mrb[0].mxu0
        %v3779 = vadd.f32 0.0, %v3778
        %v3780 = vpop.f32.mrb[0].mxu0
        %v3781 = vadd.f32 0.0, %v3780
        %3782 = vdwg.mxu0
        %3783 = vmatprep.subr.bf16.mxu0 0
        %3784 = vmatpush1.bf16.msra.mxu0 %v3169
        %3785 = vmatprep.subr.bf16.mxu0 0
        %3786 = vmatpush1.bf16.msra.mxu0 %v3176
        %3787 = vmatprep.subr.bf16.mxu0 0
        %3788 = vmatpush1.bf16.msra.mxu0 0
        %3789 = vmatprep.subr.bf16.mxu0 0
        %3790 = vmatpush1.bf16.msra.mxu0 0
        %3791 = vmatprep.subr.bf16.mxu0 0
        %3792 = vmatpush1.bf16.msra.mxu0 0
        %3793 = vmatprep.subr.bf16.mxu0 0
        %3794 = vmatpush1.bf16.msra.mxu0 0
        %3795 = vmatprep.subr.bf16.mxu0 0
        %3796 = vmatpush1.bf16.msra.mxu0 0
        %3797 = vmatprep.subr.bf16.mxu0 0
        %3798 = vmatpush1.bf16.msra.mxu0 0
        %3799 = vmatprep.subr.bf16.mxu0 0
        %3800 = vmatpush1.bf16.msra.mxu0 0
        %3801 = vmatprep.subr.bf16.mxu0 0
        %3802 = vmatpush1.bf16.msra.mxu0 0
        %3803 = vmatprep.subr.bf16.mxu0 0
        %3804 = vmatpush1.bf16.msra.mxu0 0
        %3805 = vmatprep.subr.bf16.mxu0 0
        %3806 = vmatpush1.bf16.msra.mxu0 0
        %3807 = vmatprep.subr.bf16.mxu0 0
        %3808 = vmatpush1.bf16.msra.mxu0 0
        %3809 = vmatprep.subr.bf16.mxu0 0
        %3810 = vmatpush1.bf16.msra.mxu0 0
        %3811 = vmatprep.subr.bf16.mxu0 0
        %3812 = vmatpush1.bf16.msra.mxu0 0
        %3813 = vmatprep.subr.bf16.mxu0 0
        %3814 = vmatpush1.bf16.msra.mxu0 0
        %3815 = vmatprep.mubr.bf16.mxu0 0
        %3816 = vmatmul.mubr.bf16.gmra.mrb[0].mxu0 %v3695
        %v3817 = vpop.f32.mrb[0].mxu0
        %v3818 = vadd.f32 0.0, %v3817
        %v3819 = vpop.f32.mrb[0].mxu0
        %v3820 = vpop.f32.mrb[0].mxu0
        %v3821 = vadd.f32 0.0, %v3820
        %v3822 = vpop.f32.mrb[0].mxu0
        %3823 = vdwg.mxu0
        %3824 = vrot.lane.b32.xlu0 %v3732, 12
        %v3825 = vpop.permute.xlu0 %3824
        %3826 = vrot.lane.b32.xlu0 %v3736, 12
        %v3827 = vpop.permute.xlu0 %3826
        %3828 = vrot.lane.b32.xlu0 %v3734, 12
        %v3829 = vpop.permute.xlu0 %3828
        %3830 = vrot.lane.b32.xlu0 %v3738, 12
        %v3831 = vpop.permute.xlu0 %3830
        %3832 = vrot.lane.b32.xlu0 %v3775, 12
        %v3833 = vpop.permute.xlu0 %3832
        %3834 = vrot.lane.b32.xlu0 %v3779, 12
        %v3835 = vpop.permute.xlu0 %3834
        %3836 = vrot.lane.b32.xlu0 %v3777, 12
        %v3837 = vpop.permute.xlu0 %3836
        %3838 = vrot.lane.b32.xlu0 %v3781, 12
        %v3839 = vpop.permute.xlu0 %3838
        %3840 = vrot.lane.b32.xlu0 %v3818, 12
        %v3841 = vpop.permute.xlu0 %3840
        %3842 = vrot.lane.b32.xlu0 %v3821, 12
        %v3843 = vpop.permute.xlu0 %3842
        %v3844 = vsel %vm1057, %v3837, %v3841
        %v3845 = vsel %vm1057, %v3839, %v3843
        %v3846 = vsel %vm1057, %v3833, %v3837
        %v3847 = vsel %vm1057, %v3835, %v3839
        %v3848 = vsel %vm1057, %v3829, %v3833
        %v3849 = vsel %vm1057, %v3831, %v3835
        %v3850 = vsel %vm1057, %v3825, %v3829
        %v3851 = vsel %vm1057, %v3827, %v3831
        %v3852 = vadd.f32 %v3679, %v3850
        %v3853 = vadd.f32 %v3680, %v3848
        %v3854 = vadd.f32 %v3681, %v3846
        %v3855 = vadd.f32 %v3682, %v3844
        %v3856 = vadd.f32 %v3683, %v3851
        %v3857 = vadd.f32 %v3684, %v3849
        %v3858 = vadd.f32 %v3685, %v3847
        %v3859 = vadd.f32 %v3686, %v3845
        %v3860 = vld [vmem:[%s2] sm:$0xff]
        %v3861 = vld [vmem:[%s2 + $0x8] sm:$0xf]
        %3863 = vset.pattern.permute.xlu0 0
        %3864 = vperm.xlu0 %3863, %v3860
        %v3865 = vpop.permute.xlu0 %3864
        %3868 = vset.pattern.permute.xlu0 0
        %3869 = vperm.xlu0 %3868, %v3861
        %v3870 = vpop.permute.xlu0 %3869
        %v3872 = vadd.f32 %v3852, %v3865
        %v3873 = vadd.f32 %v3853, %v3865
        %v3874 = vadd.f32 %v3854, %v3865
        %v3875 = vadd.f32 %v3855, %v3865
        %v3876 = vadd.f32 %v3856, %v3870
        %v3877 = vadd.f32 %v3857, %v3870
        %v3878 = vadd.f32 %v3858, %v3870
        %v3879 = vadd.f32 %v3859, %v3870
        %vm3880 = vcmp.gt.f32.partialorder %v3872, 0.0
        %vm3881 = vcmp.gt.f32.partialorder %v3873, 0.0
        %vm3882 = vcmp.gt.f32.partialorder %v3874, 0.0
        %vm3883 = vcmp.gt.f32.partialorder %v3875, 0.0
        %vm3884 = vcmp.gt.f32.partialorder %v3876, 0.0
        %vm3885 = vcmp.gt.f32.partialorder %v3877, 0.0
        %vm3886 = vcmp.gt.f32.partialorder %v3878, 0.0
        %vm3887 = vcmp.gt.f32.partialorder %v3879, 0.0
        %v3888 = vmin.f32 %v3872, 0.0
        %v3889 = vmin.f32 %v3873, 0.0
        %v3890 = vmin.f32 %v3874, 0.0
        %v3891 = vmin.f32 %v3875, 0.0
        %v3892 = vmin.f32 %v3876, 0.0
        %v3893 = vmin.f32 %v3877, 0.0
        %v3894 = vmin.f32 %v3878, 0.0
        %v3895 = vmin.f32 %v3879, 0.0
        %v3896 = vmul.f32 %v3888, 1.442695
        %v3897 = vpow.pop %v3896
        %v3898 = vmul.f32 %v3889, 1.442695
        %v3899 = vpow.pop %v3898
        %v3900 = vmul.f32 %v3890, 1.442695
        %v3901 = vpow.pop %v3900
        %v3902 = vmul.f32 %v3891, 1.442695
        %v3903 = vpow.pop %v3902
        %v3904 = vmul.f32 %v3892, 1.442695
        %v3905 = vpow.pop %v3904
        %v3906 = vmul.f32 %v3893, 1.442695
        %v3907 = vpow.pop %v3906
        %v3908 = vmul.f32 %v3894, 1.442695
        %v3909 = vpow.pop %v3908
        %v3910 = vmul.f32 %v3895, 1.442695
        %v3911 = vpow.pop %v3910
        %v3912 = vsub.f32 %v3897, 1.0
        %v3913 = vsub.f32 %v3899, 1.0
        %v3914 = vsub.f32 %v3901, 1.0
        %v3915 = vsub.f32 %v3903, 1.0
        %v3916 = vsub.f32 %v3905, 1.0
        %v3917 = vsub.f32 %v3907, 1.0
        %v3918 = vsub.f32 %v3909, 1.0
        %v3919 = vsub.f32 %v3911, 1.0
        %v3920 = vsel %vm3880, %v3872, %v3912
        %v3921 = vsel %vm3881, %v3873, %v3913
        %v3922 = vsel %vm3882, %v3874, %v3914
        %v3923 = vsel %vm3883, %v3875, %v3915
        %v3924 = vsel %vm3884, %v3876, %v3916
        %v3925 = vsel %vm3885, %v3877, %v3917
        %v3926 = vsel %vm3886, %v3878, %v3918
        %v3927 = vsel %vm3887, %v3879, %v3919
        %s3928 = scalar_lea.vmem %s204, 192 [#allocation7]
        %3929 = vst [vmem:[%s3928] sm:$0xff] %v3920
        %3930 = vst [vmem:[%s3928 + $0x8] sm:$0xff] %v3921
        %3931 = vst [vmem:[%s3928 + $0x10] sm:$0xff] %v3922
        %3932 = vst [vmem:[%s3928 + $0x18] sm:$0xff] %v3923
        %3933 = vst [vmem:[%s3928 + $0x20] sm:$0xf] %v3924
        %3934 = vst [vmem:[%s3928 + $0x28] sm:$0xf] %v3925
        %3935 = vst [vmem:[%s3928 + $0x30] sm:$0xf] %v3926
        %3936 = vst [vmem:[%s3928 + $0x38] sm:$0xf] %v3927
        %s3937 = scalar_lea.vmem %s178, 240 [#allocation2]
        %v3938 = vld [vmem:[%s3937] sm:$0xff]
        %v3939 = vld [vmem:[%s3937 + $0x8] sm:$0xff]
        %v3940 = vld [vmem:[%s3937 + $0x10] sm:$0xf]
        %v3941 = vld [vmem:[%s3937 + $0x14] sm:$0xff]
        %v3942 = vld [vmem:[%s3937 + $0x1c] sm:$0xff]
        %v3943 = vld [vmem:[%s3937 + $0x24] sm:$0xf]
        %v3944 = vld [vmem:[%s3937 + $0x28] sm:$0x77]
        %v3945 = vld [vmem:[%s3937 + $0x30] sm:$0x77]
        %v3946 = vld [vmem:[%s3937 + $0x38] sm:$0x7]
        %v3947 = vld [vmem:[#allocation5] sm:$0xf]
        %v3948 = vld [vmem:[#allocation5 + $0x4] sm:$0x3]
        %v3951 = vunpack.c.l.b16 %v3947
        %v3952 = vunpack.c.l.b16 %v3948
        %v3953 = vpack.c.b16 %v3952, %v3951
        %v3960 = vunpack.c.l.b16 %v3938
        %v3961 = vunpack.c.h.b16 %v3938
        %v3962 = vunpack.c.l.b16 %v3939
        %v3963 = vunpack.c.h.b16 %v3939
        %v3964 = vunpack.c.l.b16 %v3941
        %v3965 = vunpack.c.h.b16 %v3941
        %v3966 = vunpack.c.l.b16 %v3942
        %v3967 = vunpack.c.h.b16 %v3942
        %v3968 = vunpack.c.l.b16 %v3944
        %v3969 = vunpack.c.h.b16 %v3944
        %v3970 = vunpack.c.l.b16 %v3945
        %v3971 = vunpack.c.h.b16 %v3945
        %v3972 = vpack.c.b16 %v3964, %v3960
        %v3973 = vpack.c.b16 %v3965, %v3961
        %v3974 = vpack.c.b16 %v3966, %v3962
        %v3975 = vpack.c.b16 %v3967, %v3963
        %v3976 = vpack.c.b16 %v3968, %v3968
        %v3977 = vpack.c.b16 %v3969, %v3969
        %v3978 = vpack.c.b16 %v3970, %v3970
        %v3979 = vpack.c.b16 %v3971, %v3971
        %v3985 = vsel %vm254, %v3953, 0
        %v3988 = vand.u32 %v3976, %v261
        %v3991 = vand.u32 %v3977, %v261
        %v3994 = vand.u32 %v3978, %v261
        %v3997 = vand.u32 %v3979, %v261
        %3999 = vmatprep.subr.bf16.mxu0 %v3973
        %4000 = vmatpush1.bf16.msra.mxu0 %v3972
        %4001 = vmatprep.subr.bf16.mxu0 %v3991
        %4002 = vmatpush1.bf16.msra.mxu0 %v3988
        %4003 = vmatprep.subr.bf16.mxu0 0
        %4004 = vmatpush1.bf16.msra.mxu0 0
        %4005 = vmatprep.subr.bf16.mxu0 0
        %4006 = vmatpush1.bf16.msra.mxu0 0
        %4007 = vmatprep.subr.bf16.mxu0 0
        %4008 = vmatpush1.bf16.msra.mxu0 0
        %4009 = vmatprep.subr.bf16.mxu0 0
        %4010 = vmatpush1.bf16.msra.mxu0 0
        %4011 = vmatprep.subr.bf16.mxu0 0
        %4012 = vmatpush1.bf16.msra.mxu0 0
        %4013 = vmatprep.subr.bf16.mxu0 0
        %4014 = vmatpush1.bf16.msra.mxu0 0
        %4015 = vmatprep.subr.bf16.mxu0 0
        %4016 = vmatpush1.bf16.msra.mxu0 0
        %4017 = vmatprep.subr.bf16.mxu0 0
        %4018 = vmatpush1.bf16.msra.mxu0 0
        %4019 = vmatprep.subr.bf16.mxu0 0
        %4020 = vmatpush1.bf16.msra.mxu0 0
        %4021 = vmatprep.subr.bf16.mxu0 0
        %4022 = vmatpush1.bf16.msra.mxu0 0
        %4023 = vmatprep.subr.bf16.mxu0 0
        %4024 = vmatpush1.bf16.msra.mxu0 0
        %4025 = vmatprep.subr.bf16.mxu0 0
        %4026 = vmatpush1.bf16.msra.mxu0 0
        %4027 = vmatprep.subr.bf16.mxu0 0
        %4028 = vmatpush1.bf16.msra.mxu0 0
        %4029 = vmatprep.subr.bf16.mxu0 0
        %4030 = vmatpush1.bf16.msra.mxu0 0
        %4031 = vmatprep.mubr.bf16.mxu0 0
        %4032 = vmatmul.mubr.bf16.gmra.mrb[0].mxu0 %v3985
        %v4033 = vpop.f32.mrb[0].mxu0
        %v4034 = vadd.f32 0.0, %v4033
        %v4035 = vpop.f32.mrb[0].mxu0
        %v4036 = vadd.f32 0.0, %v4035
        %v4037 = vpop.f32.mrb[0].mxu0
        %v4038 = vadd.f32 0.0, %v4037
        %v4039 = vpop.f32.mrb[0].mxu0
        %v4040 = vadd.f32 0.0, %v4039
        %4041 = vdwg.mxu0
        %4042 = vmatprep.subr.bf16.mxu0 %v3975
        %4043 = vmatpush1.bf16.msra.mxu0 %v3974
        %4044 = vmatprep.subr.bf16.mxu0 %v3997
        %4045 = vmatpush1.bf16.msra.mxu0 %v3994
        %4046 = vmatprep.subr.bf16.mxu0 0
        %4047 = vmatpush1.bf16.msra.mxu0 0
        %4048 = vmatprep.subr.bf16.mxu0 0
        %4049 = vmatpush1.bf16.msra.mxu0 0
        %4050 = vmatprep.subr.bf16.mxu0 0
        %4051 = vmatpush1.bf16.msra.mxu0 0
        %4052 = vmatprep.subr.bf16.mxu0 0
        %4053 = vmatpush1.bf16.msra.mxu0 0
        %4054 = vmatprep.subr.bf16.mxu0 0
        %4055 = vmatpush1.bf16.msra.mxu0 0
        %4056 = vmatprep.subr.bf16.mxu0 0
        %4057 = vmatpush1.bf16.msra.mxu0 0
        %4058 = vmatprep.subr.bf16.mxu0 0
        %4059 = vmatpush1.bf16.msra.mxu0 0
        %4060 = vmatprep.subr.bf16.mxu0 0
        %4061 = vmatpush1.bf16.msra.mxu0 0
        %4062 = vmatprep.subr.bf16.mxu0 0
        %4063 = vmatpush1.bf16.msra.mxu0 0
        %4064 = vmatprep.subr.bf16.mxu0 0
        %4065 = vmatpush1.bf16.msra.mxu0 0
        %4066 = vmatprep.subr.bf16.mxu0 0
        %4067 = vmatpush1.bf16.msra.mxu0 0
        %4068 = vmatprep.subr.bf16.mxu0 0
        %4069 = vmatpush1.bf16.msra.mxu0 0
        %4070 = vmatprep.subr.bf16.mxu0 0
        %4071 = vmatpush1.bf16.msra.mxu0 0
        %4072 = vmatprep.subr.bf16.mxu0 0
        %4073 = vmatpush1.bf16.msra.mxu0 0
        %4074 = vmatprep.mubr.bf16.mxu0 0
        %4075 = vmatmul.mubr.bf16.gmra.mrb[0].mxu0 %v3985
        %v4076 = vpop.f32.mrb[0].mxu0
        %v4077 = vadd.f32 0.0, %v4076
        %v4078 = vpop.f32.mrb[0].mxu0
        %v4079 = vadd.f32 0.0, %v4078
        %v4080 = vpop.f32.mrb[0].mxu0
        %v4081 = vadd.f32 0.0, %v4080
        %v4082 = vpop.f32.mrb[0].mxu0
        %v4083 = vadd.f32 0.0, %v4082
        %4084 = vdwg.mxu0
        %v4085 = vld [vmem:[%s360] sm:$0xf]
        %v4086 = vld [vmem:[%s360 + $0x4] sm:$0x3]
        %v4089 = vunpack.c.l.b16 %v4085
        %v4090 = vunpack.c.l.b16 %v4086
        %v4091 = vpack.c.b16 %v4090, %v4089
        %v4095 = vunpack.c.l.b16 %v3940
        %v4096 = vunpack.c.l.b16 %v3943
        %v4097 = vunpack.c.l.b16 %v3946
        %v4098 = vpack.c.b16 %v4096, %v4095
        %v4099 = vpack.c.b16 %v4097, %v4097
        %v4102 = vsel %vm254, %v4091, 0
        %v4105 = vand.u32 %v4099, %v261
        %4107 = vmatprep.subr.bf16.mxu0 %v3973
        %4108 = vmatpush1.bf16.msra.mxu0 %v3972
        %4109 = vmatprep.subr.bf16.mxu0 %v3991
        %4110 = vmatpush1.bf16.msra.mxu0 %v3988
        %4111 = vmatprep.subr.bf16.mxu0 0
        %4112 = vmatpush1.bf16.msra.mxu0 0
        %4113 = vmatprep.subr.bf16.mxu0 0
        %4114 = vmatpush1.bf16.msra.mxu0 0
        %4115 = vmatprep.subr.bf16.mxu0 0
        %4116 = vmatpush1.bf16.msra.mxu0 0
        %4117 = vmatprep.subr.bf16.mxu0 0
        %4118 = vmatpush1.bf16.msra.mxu0 0
        %4119 = vmatprep.subr.bf16.mxu0 0
        %4120 = vmatpush1.bf16.msra.mxu0 0
        %4121 = vmatprep.subr.bf16.mxu0 0
        %4122 = vmatpush1.bf16.msra.mxu0 0
        %4123 = vmatprep.subr.bf16.mxu0 0
        %4124 = vmatpush1.bf16.msra.mxu0 0
        %4125 = vmatprep.subr.bf16.mxu0 0
        %4126 = vmatpush1.bf16.msra.mxu0 0
        %4127 = vmatprep.subr.bf16.mxu0 0
        %4128 = vmatpush1.bf16.msra.mxu0 0
        %4129 = vmatprep.subr.bf16.mxu0 0
        %4130 = vmatpush1.bf16.msra.mxu0 0
        %4131 = vmatprep.subr.bf16.mxu0 0
        %4132 = vmatpush1.bf16.msra.mxu0 0
        %4133 = vmatprep.subr.bf16.mxu0 0
        %4134 = vmatpush1.bf16.msra.mxu0 0
        %4135 = vmatprep.subr.bf16.mxu0 0
        %4136 = vmatpush1.bf16.msra.mxu0 0
        %4137 = vmatprep.subr.bf16.mxu0 0
        %4138 = vmatpush1.bf16.msra.mxu0 0
        %4139 = vmatprep.mubr.bf16.mxu0 0
        %4140 = vmatmul.mubr.bf16.gmra.mrb[0].mxu0 %v4102
        %v4141 = vpop.f32.mrb[0].mxu0
        %v4142 = vadd.f32 0.0, %v4141
        %v4143 = vpop.f32.mrb[0].mxu0
        %v4144 = vadd.f32 0.0, %v4143
        %v4145 = vpop.f32.mrb[0].mxu0
        %v4146 = vadd.f32 0.0, %v4145
        %v4147 = vpop.f32.mrb[0].mxu0
        %v4148 = vadd.f32 0.0, %v4147
        %4149 = vdwg.mxu0
        %4150 = vmatprep.subr.bf16.mxu0 %v3975
        %4151 = vmatpush1.bf16.msra.mxu0 %v3974
        %4152 = vmatprep.subr.bf16.mxu0 %v3997
        %4153 = vmatpush1.bf16.msra.mxu0 %v3994
        %4154 = vmatprep.subr.bf16.mxu0 0
        %4155 = vmatpush1.bf16.msra.mxu0 0
        %4156 = vmatprep.subr.bf16.mxu0 0
        %4157 = vmatpush1.bf16.msra.mxu0 0
        %4158 = vmatprep.subr.bf16.mxu0 0
        %4159 = vmatpush1.bf16.msra.mxu0 0
        %4160 = vmatprep.subr.bf16.mxu0 0
        %4161 = vmatpush1.bf16.msra.mxu0 0
        %4162 = vmatprep.subr.bf16.mxu0 0
        %4163 = vmatpush1.bf16.msra.mxu0 0
        %4164 = vmatprep.subr.bf16.mxu0 0
        %4165 = vmatpush1.bf16.msra.mxu0 0
        %4166 = vmatprep.subr.bf16.mxu0 0
        %4167 = vmatpush1.bf16.msra.mxu0 0
        %4168 = vmatprep.subr.bf16.mxu0 0
        %4169 = vmatpush1.bf16.msra.mxu0 0
        %4170 = vmatprep.subr.bf16.mxu0 0
        %4171 = vmatpush1.bf16.msra.mxu0 0
        %4172 = vmatprep.subr.bf16.mxu0 0
        %4173 = vmatpush1.bf16.msra.mxu0 0
        %4174 = vmatprep.subr.bf16.mxu0 0
        %4175 = vmatpush1.bf16.msra.mxu0 0
        %4176 = vmatprep.subr.bf16.mxu0 0
        %4177 = vmatpush1.bf16.msra.mxu0 0
        %4178 = vmatprep.subr.bf16.mxu0 0
        %4179 = vmatpush1.bf16.msra.mxu0 0
        %4180 = vmatprep.subr.bf16.mxu0 0
        %4181 = vmatpush1.bf16.msra.mxu0 0
        %4182 = vmatprep.mubr.bf16.mxu0 0
        %4183 = vmatmul.mubr.bf16.gmra.mrb[0].mxu0 %v4102
        %v4184 = vpop.f32.mrb[0].mxu0
        %v4185 = vadd.f32 0.0, %v4184
        %v4186 = vpop.f32.mrb[0].mxu0
        %v4187 = vadd.f32 0.0, %v4186
        %v4188 = vpop.f32.mrb[0].mxu0
        %v4189 = vadd.f32 0.0, %v4188
        %v4190 = vpop.f32.mrb[0].mxu0
        %v4191 = vadd.f32 0.0, %v4190
        %4192 = vdwg.mxu0
        %4193 = vmatprep.subr.bf16.mxu0 0
        %4194 = vmatpush1.bf16.msra.mxu0 %v4098
        %4195 = vmatprep.subr.bf16.mxu0 0
        %4196 = vmatpush1.bf16.msra.mxu0 %v4105
        %4197 = vmatprep.subr.bf16.mxu0 0
        %4198 = vmatpush1.bf16.msra.mxu0 0
        %4199 = vmatprep.subr.bf16.mxu0 0
        %4200 = vmatpush1.bf16.msra.mxu0 0
        %4201 = vmatprep.subr.bf16.mxu0 0
        %4202 = vmatpush1.bf16.msra.mxu0 0
        %4203 = vmatprep.subr.bf16.mxu0 0
        %4204 = vmatpush1.bf16.msra.mxu0 0
        %4205 = vmatprep.subr.bf16.mxu0 0
        %4206 = vmatpush1.bf16.msra.mxu0 0
        %4207 = vmatprep.subr.bf16.mxu0 0
        %4208 = vmatpush1.bf16.msra.mxu0 0
        %4209 = vmatprep.subr.bf16.mxu0 0
        %4210 = vmatpush1.bf16.msra.mxu0 0
        %4211 = vmatprep.subr.bf16.mxu0 0
        %4212 = vmatpush1.bf16.msra.mxu0 0
        %4213 = vmatprep.subr.bf16.mxu0 0
        %4214 = vmatpush1.bf16.msra.mxu0 0
        %4215 = vmatprep.subr.bf16.mxu0 0
        %4216 = vmatpush1.bf16.msra.mxu0 0
        %4217 = vmatprep.subr.bf16.mxu0 0
        %4218 = vmatpush1.bf16.msra.mxu0 0
        %4219 = vmatprep.subr.bf16.mxu0 0
        %4220 = vmatpush1.bf16.msra.mxu0 0
        %4221 = vmatprep.subr.bf16.mxu0 0
        %4222 = vmatpush1.bf16.msra.mxu0 0
        %4223 = vmatprep.subr.bf16.mxu0 0
        %4224 = vmatpush1.bf16.msra.mxu0 0
        %4225 = vmatprep.mubr.bf16.mxu0 0
        %4226 = vmatmul.mubr.bf16.gmra.mrb[0].mxu0 %v4102
        %v4227 = vpop.f32.mrb[0].mxu0
        %v4228 = vadd.f32 0.0, %v4227
        %v4229 = vpop.f32.mrb[0].mxu0
        %v4230 = vpop.f32.mrb[0].mxu0
        %v4231 = vadd.f32 0.0, %v4230
        %v4232 = vpop.f32.mrb[0].mxu0
        %4233 = vdwg.mxu0
        %4234 = vrot.lane.b32.xlu0 %v4142, 99
        %v4235 = vpop.permute.xlu0 %4234
        %4236 = vrot.lane.b32.xlu0 %v4146, 99
        %v4237 = vpop.permute.xlu0 %4236
        %4238 = vrot.lane.b32.xlu0 %v4144, 99
        %v4239 = vpop.permute.xlu0 %4238
        %4240 = vrot.lane.b32.xlu0 %v4148, 99
        %v4241 = vpop.permute.xlu0 %4240
        %4242 = vrot.lane.b32.xlu0 %v4185, 99
        %v4243 = vpop.permute.xlu0 %4242
        %4244 = vrot.lane.b32.xlu0 %v4189, 99
        %v4245 = vpop.permute.xlu0 %4244
        %4246 = vrot.lane.b32.xlu0 %v4187, 99
        %v4247 = vpop.permute.xlu0 %4246
        %4248 = vrot.lane.b32.xlu0 %v4191, 99
        %v4249 = vpop.permute.xlu0 %4248
        %4250 = vrot.lane.b32.xlu0 %v4228, 99
        %v4251 = vpop.permute.xlu0 %4250
        %4252 = vrot.lane.b32.xlu0 %v4231, 99
        %v4253 = vpop.permute.xlu0 %4252
        %v4254 = vsel %vm532, %v4247, %v4251
        %v4255 = vsel %vm532, %v4249, %v4253
        %v4256 = vsel %vm532, %v4243, %v4247
        %v4257 = vsel %vm532, %v4245, %v4249
        %v4258 = vsel %vm532, %v4239, %v4243
        %v4259 = vsel %vm532, %v4241, %v4245
        %v4260 = vsel %vm532, %v4235, %v4239
        %v4261 = vsel %vm532, %v4237, %v4241
        %v4262 = vadd.f32 %v4034, %v4260
        %v4263 = vadd.f32 %v4036, %v4258
        %v4264 = vadd.f32 %v4077, %v4256
        %v4265 = vadd.f32 %v4079, %v4254
        %v4266 = vadd.f32 %v4038, %v4261
        %v4267 = vadd.f32 %v4040, %v4259
        %v4268 = vadd.f32 %v4081, %v4257
        %v4269 = vadd.f32 %v4083, %v4255
        %v4270 = vld [vmem:[%s549] sm:$0xf]
        %v4271 = vld [vmem:[%s549 + $0x4] sm:$0x3]
        %v4274 = vunpack.c.l.b16 %v4270
        %v4275 = vunpack.c.l.b16 %v4271
        %v4276 = vpack.c.b16 %v4275, %v4274
        %v4278 = vsel %vm254, %v4276, 0
        %4280 = vmatprep.subr.bf16.mxu0 %v3973
        %4281 = vmatpush1.bf16.msra.mxu0 %v3972
        %4282 = vmatprep.subr.bf16.mxu0 %v3991
        %4283 = vmatpush1.bf16.msra.mxu0 %v3988
        %4284 = vmatprep.subr.bf16.mxu0 0
        %4285 = vmatpush1.bf16.msra.mxu0 0
        %4286 = vmatprep.subr.bf16.mxu0 0
        %4287 = vmatpush1.bf16.msra.mxu0 0
        %4288 = vmatprep.subr.bf16.mxu0 0
        %4289 = vmatpush1.bf16.msra.mxu0 0
        %4290 = vmatprep.subr.bf16.mxu0 0
        %4291 = vmatpush1.bf16.msra.mxu0 0
        %4292 = vmatprep.subr.bf16.mxu0 0
        %4293 = vmatpush1.bf16.msra.mxu0 0
        %4294 = vmatprep.subr.bf16.mxu0 0
        %4295 = vmatpush1.bf16.msra.mxu0 0
        %4296 = vmatprep.subr.bf16.mxu0 0
        %4297 = vmatpush1.bf16.msra.mxu0 0
        %4298 = vmatprep.subr.bf16.mxu0 0
        %4299 = vmatpush1.bf16.msra.mxu0 0
        %4300 = vmatprep.subr.bf16.mxu0 0
        %4301 = vmatpush1.bf16.msra.mxu0 0
        %4302 = vmatprep.subr.bf16.mxu0 0
        %4303 = vmatpush1.bf16.msra.mxu0 0
        %4304 = vmatprep.subr.bf16.mxu0 0
        %4305 = vmatpush1.bf16.msra.mxu0 0
        %4306 = vmatprep.subr.bf16.mxu0 0
        %4307 = vmatpush1.bf16.msra.mxu0 0
        %4308 = vmatprep.subr.bf16.mxu0 0
        %4309 = vmatpush1.bf16.msra.mxu0 0
        %4310 = vmatprep.subr.bf16.mxu0 0
        %4311 = vmatpush1.bf16.msra.mxu0 0
        %4312 = vmatprep.mubr.bf16.mxu0 0
        %4313 = vmatmul.mubr.bf16.gmra.mrb[0].mxu0 %v4278
        %v4314 = vpop.f32.mrb[0].mxu0
        %v4315 = vadd.f32 0.0, %v4314
        %v4316 = vpop.f32.mrb[0].mxu0
        %v4317 = vadd.f32 0.0, %v4316
        %v4318 = vpop.f32.mrb[0].mxu0
        %v4319 = vadd.f32 0.0, %v4318
        %v4320 = vpop.f32.mrb[0].mxu0
        %v4321 = vadd.f32 0.0, %v4320
        %4322 = vdwg.mxu0
        %4323 = vmatprep.subr.bf16.mxu0 %v3975
        %4324 = vmatpush1.bf16.msra.mxu0 %v3974
        %4325 = vmatprep.subr.bf16.mxu0 %v3997
        %4326 = vmatpush1.bf16.msra.mxu0 %v3994
        %4327 = vmatprep.subr.bf16.mxu0 0
        %4328 = vmatpush1.bf16.msra.mxu0 0
        %4329 = vmatprep.subr.bf16.mxu0 0
        %4330 = vmatpush1.bf16.msra.mxu0 0
        %4331 = vmatprep.subr.bf16.mxu0 0
        %4332 = vmatpush1.bf16.msra.mxu0 0
        %4333 = vmatprep.subr.bf16.mxu0 0
        %4334 = vmatpush1.bf16.msra.mxu0 0
        %4335 = vmatprep.subr.bf16.mxu0 0
        %4336 = vmatpush1.bf16.msra.mxu0 0
        %4337 = vmatprep.subr.bf16.mxu0 0
        %4338 = vmatpush1.bf16.msra.mxu0 0
        %4339 = vmatprep.subr.bf16.mxu0 0
        %4340 = vmatpush1.bf16.msra.mxu0 0
        %4341 = vmatprep.subr.bf16.mxu0 0
        %4342 = vmatpush1.bf16.msra.mxu0 0
        %4343 = vmatprep.subr.bf16.mxu0 0
        %4344 = vmatpush1.bf16.msra.mxu0 0
        %4345 = vmatprep.subr.bf16.mxu0 0
        %4346 = vmatpush1.bf16.msra.mxu0 0
        %4347 = vmatprep.subr.bf16.mxu0 0
        %4348 = vmatpush1.bf16.msra.mxu0 0
        %4349 = vmatprep.subr.bf16.mxu0 0
        %4350 = vmatpush1.bf16.msra.mxu0 0
        %4351 = vmatprep.subr.bf16.mxu0 0
        %4352 = vmatpush1.bf16.msra.mxu0 0
        %4353 = vmatprep.subr.bf16.mxu0 0
        %4354 = vmatpush1.bf16.msra.mxu0 0
        %4355 = vmatprep.mubr.bf16.mxu0 0
        %4356 = vmatmul.mubr.bf16.gmra.mrb[0].mxu0 %v4278
        %v4357 = vpop.f32.mrb[0].mxu0
        %v4358 = vadd.f32 0.0, %v4357
        %v4359 = vpop.f32.mrb[0].mxu0
        %v4360 = vadd.f32 0.0, %v4359
        %v4361 = vpop.f32.mrb[0].mxu0
        %v4362 = vadd.f32 0.0, %v4361
        %v4363 = vpop.f32.mrb[0].mxu0
        %v4364 = vadd.f32 0.0, %v4363
        %4365 = vdwg.mxu0
        %4366 = vmatprep.subr.bf16.mxu0 0
        %4367 = vmatpush1.bf16.msra.mxu0 %v4098
        %4368 = vmatprep.subr.bf16.mxu0 0
        %4369 = vmatpush1.bf16.msra.mxu0 %v4105
        %4370 = vmatprep.subr.bf16.mxu0 0
        %4371 = vmatpush1.bf16.msra.mxu0 0
        %4372 = vmatprep.subr.bf16.mxu0 0
        %4373 = vmatpush1.bf16.msra.mxu0 0
        %4374 = vmatprep.subr.bf16.mxu0 0
        %4375 = vmatpush1.bf16.msra.mxu0 0
        %4376 = vmatprep.subr.bf16.mxu0 0
        %4377 = vmatpush1.bf16.msra.mxu0 0
        %4378 = vmatprep.subr.bf16.mxu0 0
        %4379 = vmatpush1.bf16.msra.mxu0 0
        %4380 = vmatprep.subr.bf16.mxu0 0
        %4381 = vmatpush1.bf16.msra.mxu0 0
        %4382 = vmatprep.subr.bf16.mxu0 0
        %4383 = vmatpush1.bf16.msra.mxu0 0
        %4384 = vmatprep.subr.bf16.mxu0 0
        %4385 = vmatpush1.bf16.msra.mxu0 0
        %4386 = vmatprep.subr.bf16.mxu0 0
        %4387 = vmatpush1.bf16.msra.mxu0 0
        %4388 = vmatprep.subr.bf16.mxu0 0
        %4389 = vmatpush1.bf16.msra.mxu0 0
        %4390 = vmatprep.subr.bf16.mxu0 0
        %4391 = vmatpush1.bf16.msra.mxu0 0
        %4392 = vmatprep.subr.bf16.mxu0 0
        %4393 = vmatpush1.bf16.msra.mxu0 0
        %4394 = vmatprep.subr.bf16.mxu0 0
        %4395 = vmatpush1.bf16.msra.mxu0 0
        %4396 = vmatprep.subr.bf16.mxu0 0
        %4397 = vmatpush1.bf16.msra.mxu0 0
        %4398 = vmatprep.mubr.bf16.mxu0 0
        %4399 = vmatmul.mubr.bf16.gmra.mrb[0].mxu0 %v4278
        %v4400 = vpop.f32.mrb[0].mxu0
        %v4401 = vadd.f32 0.0, %v4400
        %v4402 = vpop.f32.mrb[0].mxu0
        %v4403 = vpop.f32.mrb[0].mxu0
        %v4404 = vadd.f32 0.0, %v4403
        %v4405 = vpop.f32.mrb[0].mxu0
        %4406 = vdwg.mxu0
        %4407 = vrot.lane.b32.xlu0 %v4315, 70
        %v4408 = vpop.permute.xlu0 %4407
        %4409 = vrot.lane.b32.xlu0 %v4319, 70
        %v4410 = vpop.permute.xlu0 %4409
        %4411 = vrot.lane.b32.xlu0 %v4317, 70
        %v4412 = vpop.permute.xlu0 %4411
        %4413 = vrot.lane.b32.xlu0 %v4321, 70
        %v4414 = vpop.permute.xlu0 %4413
        %4415 = vrot.lane.b32.xlu0 %v4358, 70
        %v4416 = vpop.permute.xlu0 %4415
        %4417 = vrot.lane.b32.xlu0 %v4362, 70
        %v4418 = vpop.permute.xlu0 %4417
        %4419 = vrot.lane.b32.xlu0 %v4360, 70
        %v4420 = vpop.permute.xlu0 %4419
        %4421 = vrot.lane.b32.xlu0 %v4364, 70
        %v4422 = vpop.permute.xlu0 %4421
        %4423 = vrot.lane.b32.xlu0 %v4401, 70
        %v4424 = vpop.permute.xlu0 %4423
        %4425 = vrot.lane.b32.xlu0 %v4404, 70
        %v4426 = vpop.permute.xlu0 %4425
        %v4427 = vsel %vm707, %v4420, %v4424
        %v4428 = vsel %vm707, %v4422, %v4426
        %v4429 = vsel %vm707, %v4416, %v4420
        %v4430 = vsel %vm707, %v4418, %v4422
        %v4431 = vsel %vm707, %v4412, %v4416
        %v4432 = vsel %vm707, %v4414, %v4418
        %v4433 = vsel %vm707, %v4408, %v4412
        %v4434 = vsel %vm707, %v4410, %v4414
        %v4435 = vadd.f32 %v4262, %v4433
        %v4436 = vadd.f32 %v4263, %v4431
        %v4437 = vadd.f32 %v4264, %v4429
        %v4438 = vadd.f32 %v4265, %v4427
        %v4439 = vadd.f32 %v4266, %v4434
        %v4440 = vadd.f32 %v4267, %v4432
        %v4441 = vadd.f32 %v4268, %v4430
        %v4442 = vadd.f32 %v4269, %v4428
        %v4443 = vld [vmem:[%s724] sm:$0xf]
        %v4444 = vld [vmem:[%s724 + $0x4] sm:$0x3]
        %v4447 = vunpack.c.l.b16 %v4443
        %v4448 = vunpack.c.l.b16 %v4444
        %v4449 = vpack.c.b16 %v4448, %v4447
        %v4451 = vsel %vm254, %v4449, 0
        %4453 = vmatprep.subr.bf16.mxu0 %v3973
        %4454 = vmatpush1.bf16.msra.mxu0 %v3972
        %4455 = vmatprep.subr.bf16.mxu0 %v3991
        %4456 = vmatpush1.bf16.msra.mxu0 %v3988
        %4457 = vmatprep.subr.bf16.mxu0 0
        %4458 = vmatpush1.bf16.msra.mxu0 0
        %4459 = vmatprep.subr.bf16.mxu0 0
        %4460 = vmatpush1.bf16.msra.mxu0 0
        %4461 = vmatprep.subr.bf16.mxu0 0
        %4462 = vmatpush1.bf16.msra.mxu0 0
        %4463 = vmatprep.subr.bf16.mxu0 0
        %4464 = vmatpush1.bf16.msra.mxu0 0
        %4465 = vmatprep.subr.bf16.mxu0 0
        %4466 = vmatpush1.bf16.msra.mxu0 0
        %4467 = vmatprep.subr.bf16.mxu0 0
        %4468 = vmatpush1.bf16.msra.mxu0 0
        %4469 = vmatprep.subr.bf16.mxu0 0
        %4470 = vmatpush1.bf16.msra.mxu0 0
        %4471 = vmatprep.subr.bf16.mxu0 0
        %4472 = vmatpush1.bf16.msra.mxu0 0
        %4473 = vmatprep.subr.bf16.mxu0 0
        %4474 = vmatpush1.bf16.msra.mxu0 0
        %4475 = vmatprep.subr.bf16.mxu0 0
        %4476 = vmatpush1.bf16.msra.mxu0 0
        %4477 = vmatprep.subr.bf16.mxu0 0
        %4478 = vmatpush1.bf16.msra.mxu0 0
        %4479 = vmatprep.subr.bf16.mxu0 0
        %4480 = vmatpush1.bf16.msra.mxu0 0
        %4481 = vmatprep.subr.bf16.mxu0 0
        %4482 = vmatpush1.bf16.msra.mxu0 0
        %4483 = vmatprep.subr.bf16.mxu0 0
        %4484 = vmatpush1.bf16.msra.mxu0 0
        %4485 = vmatprep.mubr.bf16.mxu0 0
        %4486 = vmatmul.mubr.bf16.gmra.mrb[0].mxu0 %v4451
        %v4487 = vpop.f32.mrb[0].mxu0
        %v4488 = vadd.f32 0.0, %v4487
        %v4489 = vpop.f32.mrb[0].mxu0
        %v4490 = vadd.f32 0.0, %v4489
        %v4491 = vpop.f32.mrb[0].mxu0
        %v4492 = vadd.f32 0.0, %v4491
        %v4493 = vpop.f32.mrb[0].mxu0
        %v4494 = vadd.f32 0.0, %v4493
        %4495 = vdwg.mxu0
        %4496 = vmatprep.subr.bf16.mxu0 %v3975
        %4497 = vmatpush1.bf16.msra.mxu0 %v3974
        %4498 = vmatprep.subr.bf16.mxu0 %v3997
        %4499 = vmatpush1.bf16.msra.mxu0 %v3994
        %4500 = vmatprep.subr.bf16.mxu0 0
        %4501 = vmatpush1.bf16.msra.mxu0 0
        %4502 = vmatprep.subr.bf16.mxu0 0
        %4503 = vmatpush1.bf16.msra.mxu0 0
        %4504 = vmatprep.subr.bf16.mxu0 0
        %4505 = vmatpush1.bf16.msra.mxu0 0
        %4506 = vmatprep.subr.bf16.mxu0 0
        %4507 = vmatpush1.bf16.msra.mxu0 0
        %4508 = vmatprep.subr.bf16.mxu0 0
        %4509 = vmatpush1.bf16.msra.mxu0 0
        %4510 = vmatprep.subr.bf16.mxu0 0
        %4511 = vmatpush1.bf16.msra.mxu0 0
        %4512 = vmatprep.subr.bf16.mxu0 0
        %4513 = vmatpush1.bf16.msra.mxu0 0
        %4514 = vmatprep.subr.bf16.mxu0 0
        %4515 = vmatpush1.bf16.msra.mxu0 0
        %4516 = vmatprep.subr.bf16.mxu0 0
        %4517 = vmatpush1.bf16.msra.mxu0 0
        %4518 = vmatprep.subr.bf16.mxu0 0
        %4519 = vmatpush1.bf16.msra.mxu0 0
        %4520 = vmatprep.subr.bf16.mxu0 0
        %4521 = vmatpush1.bf16.msra.mxu0 0
        %4522 = vmatprep.subr.bf16.mxu0 0
        %4523 = vmatpush1.bf16.msra.mxu0 0
        %4524 = vmatprep.subr.bf16.mxu0 0
        %4525 = vmatpush1.bf16.msra.mxu0 0
        %4526 = vmatprep.subr.bf16.mxu0 0
        %4527 = vmatpush1.bf16.msra.mxu0 0
        %4528 = vmatprep.mubr.bf16.mxu0 0
        %4529 = vmatmul.mubr.bf16.gmra.mrb[0].mxu0 %v4451
        %v4530 = vpop.f32.mrb[0].mxu0
        %v4531 = vadd.f32 0.0, %v4530
        %v4532 = vpop.f32.mrb[0].mxu0
        %v4533 = vadd.f32 0.0, %v4532
        %v4534 = vpop.f32.mrb[0].mxu0
        %v4535 = vadd.f32 0.0, %v4534
        %v4536 = vpop.f32.mrb[0].mxu0
        %v4537 = vadd.f32 0.0, %v4536
        %4538 = vdwg.mxu0
        %4539 = vmatprep.subr.bf16.mxu0 0
        %4540 = vmatpush1.bf16.msra.mxu0 %v4098
        %4541 = vmatprep.subr.bf16.mxu0 0
        %4542 = vmatpush1.bf16.msra.mxu0 %v4105
        %4543 = vmatprep.subr.bf16.mxu0 0
        %4544 = vmatpush1.bf16.msra.mxu0 0
        %4545 = vmatprep.subr.bf16.mxu0 0
        %4546 = vmatpush1.bf16.msra.mxu0 0
        %4547 = vmatprep.subr.bf16.mxu0 0
        %4548 = vmatpush1.bf16.msra.mxu0 0
        %4549 = vmatprep.subr.bf16.mxu0 0
        %4550 = vmatpush1.bf16.msra.mxu0 0
        %4551 = vmatprep.subr.bf16.mxu0 0
        %4552 = vmatpush1.bf16.msra.mxu0 0
        %4553 = vmatprep.subr.bf16.mxu0 0
        %4554 = vmatpush1.bf16.msra.mxu0 0
        %4555 = vmatprep.subr.bf16.mxu0 0
        %4556 = vmatpush1.bf16.msra.mxu0 0
        %4557 = vmatprep.subr.bf16.mxu0 0
        %4558 = vmatpush1.bf16.msra.mxu0 0
        %4559 = vmatprep.subr.bf16.mxu0 0
        %4560 = vmatpush1.bf16.msra.mxu0 0
        %4561 = vmatprep.subr.bf16.mxu0 0
        %4562 = vmatpush1.bf16.msra.mxu0 0
        %4563 = vmatprep.subr.bf16.mxu0 0
        %4564 = vmatpush1.bf16.msra.mxu0 0
        %4565 = vmatprep.subr.bf16.mxu0 0
        %4566 = vmatpush1.bf16.msra.mxu0 0
        %4567 = vmatprep.subr.bf16.mxu0 0
        %4568 = vmatpush1.bf16.msra.mxu0 0
        %4569 = vmatprep.subr.bf16.mxu0 0
        %4570 = vmatpush1.bf16.msra.mxu0 0
        %4571 = vmatprep.mubr.bf16.mxu0 0
        %4572 = vmatmul.mubr.bf16.gmra.mrb[0].mxu0 %v4451
        %v4573 = vpop.f32.mrb[0].mxu0
        %v4574 = vadd.f32 0.0, %v4573
        %v4575 = vpop.f32.mrb[0].mxu0
        %v4576 = vpop.f32.mrb[0].mxu0
        %v4577 = vadd.f32 0.0, %v4576
        %v4578 = vpop.f32.mrb[0].mxu0
        %4579 = vdwg.mxu0
        %4580 = vrot.lane.b32.xlu0 %v4488, 41
        %v4581 = vpop.permute.xlu0 %4580
        %4582 = vrot.lane.b32.xlu0 %v4492, 41
        %v4583 = vpop.permute.xlu0 %4582
        %4584 = vrot.lane.b32.xlu0 %v4490, 41
        %v4585 = vpop.permute.xlu0 %4584
        %4586 = vrot.lane.b32.xlu0 %v4494, 41
        %v4587 = vpop.permute.xlu0 %4586
        %4588 = vrot.lane.b32.xlu0 %v4531, 41
        %v4589 = vpop.permute.xlu0 %4588
        %4590 = vrot.lane.b32.xlu0 %v4535, 41
        %v4591 = vpop.permute.xlu0 %4590
        %4592 = vrot.lane.b32.xlu0 %v4533, 41
        %v4593 = vpop.permute.xlu0 %4592
        %4594 = vrot.lane.b32.xlu0 %v4537, 41
        %v4595 = vpop.permute.xlu0 %4594
        %4596 = vrot.lane.b32.xlu0 %v4574, 41
        %v4597 = vpop.permute.xlu0 %4596
        %4598 = vrot.lane.b32.xlu0 %v4577, 41
        %v4599 = vpop.permute.xlu0 %4598
        %v4600 = vsel %vm882, %v4593, %v4597
        %v4601 = vsel %vm882, %v4595, %v4599
        %v4602 = vsel %vm882, %v4589, %v4593
        %v4603 = vsel %vm882, %v4591, %v4595
        %v4604 = vsel %vm882, %v4585, %v4589
        %v4605 = vsel %vm882, %v4587, %v4591
        %v4606 = vsel %vm882, %v4581, %v4585
        %v4607 = vsel %vm882, %v4583, %v4587
        %v4608 = vadd.f32 %v4435, %v4606
        %v4609 = vadd.f32 %v4436, %v4604
        %v4610 = vadd.f32 %v4437, %v4602
        %v4611 = vadd.f32 %v4438, %v4600
        %v4612 = vadd.f32 %v4439, %v4607
        %v4613 = vadd.f32 %v4440, %v4605
        %v4614 = vadd.f32 %v4441, %v4603
        %v4615 = vadd.f32 %v4442, %v4601
        %v4616 = vld [vmem:[%s899] sm:$0xf]
        %v4617 = vld [vmem:[%s899 + $0x4] sm:$0x3]
        %v4620 = vunpack.c.l.b16 %v4616
        %v4621 = vunpack.c.l.b16 %v4617
        %v4622 = vpack.c.b16 %v4621, %v4620
        %v4624 = vsel %vm254, %v4622, 0
        %4626 = vmatprep.subr.bf16.mxu0 %v3973
        %4627 = vmatpush1.bf16.msra.mxu0 %v3972
        %4628 = vmatprep.subr.bf16.mxu0 %v3991
        %4629 = vmatpush1.bf16.msra.mxu0 %v3988
        %4630 = vmatprep.subr.bf16.mxu0 0
        %4631 = vmatpush1.bf16.msra.mxu0 0
        %4632 = vmatprep.subr.bf16.mxu0 0
        %4633 = vmatpush1.bf16.msra.mxu0 0
        %4634 = vmatprep.subr.bf16.mxu0 0
        %4635 = vmatpush1.bf16.msra.mxu0 0
        %4636 = vmatprep.subr.bf16.mxu0 0
        %4637 = vmatpush1.bf16.msra.mxu0 0
        %4638 = vmatprep.subr.bf16.mxu0 0
        %4639 = vmatpush1.bf16.msra.mxu0 0
        %4640 = vmatprep.subr.bf16.mxu0 0
        %4641 = vmatpush1.bf16.msra.mxu0 0
        %4642 = vmatprep.subr.bf16.mxu0 0
        %4643 = vmatpush1.bf16.msra.mxu0 0
        %4644 = vmatprep.subr.bf16.mxu0 0
        %4645 = vmatpush1.bf16.msra.mxu0 0
        %4646 = vmatprep.subr.bf16.mxu0 0
        %4647 = vmatpush1.bf16.msra.mxu0 0
        %4648 = vmatprep.subr.bf16.mxu0 0
        %4649 = vmatpush1.bf16.msra.mxu0 0
        %4650 = vmatprep.subr.bf16.mxu0 0
        %4651 = vmatpush1.bf16.msra.mxu0 0
        %4652 = vmatprep.subr.bf16.mxu0 0
        %4653 = vmatpush1.bf16.msra.mxu0 0
        %4654 = vmatprep.subr.bf16.mxu0 0
        %4655 = vmatpush1.bf16.msra.mxu0 0
        %4656 = vmatprep.subr.bf16.mxu0 0
        %4657 = vmatpush1.bf16.msra.mxu0 0
        %4658 = vmatprep.mubr.bf16.mxu0 0
        %4659 = vmatmul.mubr.bf16.gmra.mrb[0].mxu0 %v4624
        %v4660 = vpop.f32.mrb[0].mxu0
        %v4661 = vadd.f32 0.0, %v4660
        %v4662 = vpop.f32.mrb[0].mxu0
        %v4663 = vadd.f32 0.0, %v4662
        %v4664 = vpop.f32.mrb[0].mxu0
        %v4665 = vadd.f32 0.0, %v4664
        %v4666 = vpop.f32.mrb[0].mxu0
        %v4667 = vadd.f32 0.0, %v4666
        %4668 = vdwg.mxu0
        %4669 = vmatprep.subr.bf16.mxu0 %v3975
        %4670 = vmatpush1.bf16.msra.mxu0 %v3974
        %4671 = vmatprep.subr.bf16.mxu0 %v3997
        %4672 = vmatpush1.bf16.msra.mxu0 %v3994
        %4673 = vmatprep.subr.bf16.mxu0 0
        %4674 = vmatpush1.bf16.msra.mxu0 0
        %4675 = vmatprep.subr.bf16.mxu0 0
        %4676 = vmatpush1.bf16.msra.mxu0 0
        %4677 = vmatprep.subr.bf16.mxu0 0
        %4678 = vmatpush1.bf16.msra.mxu0 0
        %4679 = vmatprep.subr.bf16.mxu0 0
        %4680 = vmatpush1.bf16.msra.mxu0 0
        %4681 = vmatprep.subr.bf16.mxu0 0
        %4682 = vmatpush1.bf16.msra.mxu0 0
        %4683 = vmatprep.subr.bf16.mxu0 0
        %4684 = vmatpush1.bf16.msra.mxu0 0
        %4685 = vmatprep.subr.bf16.mxu0 0
        %4686 = vmatpush1.bf16.msra.mxu0 0
        %4687 = vmatprep.subr.bf16.mxu0 0
        %4688 = vmatpush1.bf16.msra.mxu0 0
        %4689 = vmatprep.subr.bf16.mxu0 0
        %4690 = vmatpush1.bf16.msra.mxu0 0
        %4691 = vmatprep.subr.bf16.mxu0 0
        %4692 = vmatpush1.bf16.msra.mxu0 0
        %4693 = vmatprep.subr.bf16.mxu0 0
        %4694 = vmatpush1.bf16.msra.mxu0 0
        %4695 = vmatprep.subr.bf16.mxu0 0
        %4696 = vmatpush1.bf16.msra.mxu0 0
        %4697 = vmatprep.subr.bf16.mxu0 0
        %4698 = vmatpush1.bf16.msra.mxu0 0
        %4699 = vmatprep.subr.bf16.mxu0 0
        %4700 = vmatpush1.bf16.msra.mxu0 0
        %4701 = vmatprep.mubr.bf16.mxu0 0
        %4702 = vmatmul.mubr.bf16.gmra.mrb[0].mxu0 %v4624
        %v4703 = vpop.f32.mrb[0].mxu0
        %v4704 = vadd.f32 0.0, %v4703
        %v4705 = vpop.f32.mrb[0].mxu0
        %v4706 = vadd.f32 0.0, %v4705
        %v4707 = vpop.f32.mrb[0].mxu0
        %v4708 = vadd.f32 0.0, %v4707
        %v4709 = vpop.f32.mrb[0].mxu0
        %v4710 = vadd.f32 0.0, %v4709
        %4711 = vdwg.mxu0
        %4712 = vmatprep.subr.bf16.mxu0 0
        %4713 = vmatpush1.bf16.msra.mxu0 %v4098
        %4714 = vmatprep.subr.bf16.mxu0 0
        %4715 = vmatpush1.bf16.msra.mxu0 %v4105
        %4716 = vmatprep.subr.bf16.mxu0 0
        %4717 = vmatpush1.bf16.msra.mxu0 0
        %4718 = vmatprep.subr.bf16.mxu0 0
        %4719 = vmatpush1.bf16.msra.mxu0 0
        %4720 = vmatprep.subr.bf16.mxu0 0
        %4721 = vmatpush1.bf16.msra.mxu0 0
        %4722 = vmatprep.subr.bf16.mxu0 0
        %4723 = vmatpush1.bf16.msra.mxu0 0
        %4724 = vmatprep.subr.bf16.mxu0 0
        %4725 = vmatpush1.bf16.msra.mxu0 0
        %4726 = vmatprep.subr.bf16.mxu0 0
        %4727 = vmatpush1.bf16.msra.mxu0 0
        %4728 = vmatprep.subr.bf16.mxu0 0
        %4729 = vmatpush1.bf16.msra.mxu0 0
        %4730 = vmatprep.subr.bf16.mxu0 0
        %4731 = vmatpush1.bf16.msra.mxu0 0
        %4732 = vmatprep.subr.bf16.mxu0 0
        %4733 = vmatpush1.bf16.msra.mxu0 0
        %4734 = vmatprep.subr.bf16.mxu0 0
        %4735 = vmatpush1.bf16.msra.mxu0 0
        %4736 = vmatprep.subr.bf16.mxu0 0
        %4737 = vmatpush1.bf16.msra.mxu0 0
        %4738 = vmatprep.subr.bf16.mxu0 0
        %4739 = vmatpush1.bf16.msra.mxu0 0
        %4740 = vmatprep.subr.bf16.mxu0 0
        %4741 = vmatpush1.bf16.msra.mxu0 0
        %4742 = vmatprep.subr.bf16.mxu0 0
        %4743 = vmatpush1.bf16.msra.mxu0 0
        %4744 = vmatprep.mubr.bf16.mxu0 0
        %4745 = vmatmul.mubr.bf16.gmra.mrb[0].mxu0 %v4624
        %v4746 = vpop.f32.mrb[0].mxu0
        %v4747 = vadd.f32 0.0, %v4746
        %v4748 = vpop.f32.mrb[0].mxu0
        %v4749 = vpop.f32.mrb[0].mxu0
        %v4750 = vadd.f32 0.0, %v4749
        %v4751 = vpop.f32.mrb[0].mxu0
        %4752 = vdwg.mxu0
        %4753 = vrot.lane.b32.xlu0 %v4661, 12
        %v4754 = vpop.permute.xlu0 %4753
        %4755 = vrot.lane.b32.xlu0 %v4665, 12
        %v4756 = vpop.permute.xlu0 %4755
        %4757 = vrot.lane.b32.xlu0 %v4663, 12
        %v4758 = vpop.permute.xlu0 %4757
        %4759 = vrot.lane.b32.xlu0 %v4667, 12
        %v4760 = vpop.permute.xlu0 %4759
        %4761 = vrot.lane.b32.xlu0 %v4704, 12
        %v4762 = vpop.permute.xlu0 %4761
        %4763 = vrot.lane.b32.xlu0 %v4708, 12
        %v4764 = vpop.permute.xlu0 %4763
        %4765 = vrot.lane.b32.xlu0 %v4706, 12
        %v4766 = vpop.permute.xlu0 %4765
        %4767 = vrot.lane.b32.xlu0 %v4710, 12
        %v4768 = vpop.permute.xlu0 %4767
        %4769 = vrot.lane.b32.xlu0 %v4747, 12
        %v4770 = vpop.permute.xlu0 %4769
        %4771 = vrot.lane.b32.xlu0 %v4750, 12
        %v4772 = vpop.permute.xlu0 %4771
        %v4773 = vsel %vm1057, %v4766, %v4770
        %v4774 = vsel %vm1057, %v4768, %v4772
        %v4775 = vsel %vm1057, %v4762, %v4766
        %v4776 = vsel %vm1057, %v4764, %v4768
        %v4777 = vsel %vm1057, %v4758, %v4762
        %v4778 = vsel %vm1057, %v4760, %v4764
        %v4779 = vsel %vm1057, %v4754, %v4758
        %v4780 = vsel %vm1057, %v4756, %v4760
        %v4781 = vadd.f32 %v4608, %v4779
        %v4782 = vadd.f32 %v4609, %v4777
        %v4783 = vadd.f32 %v4610, %v4775
        %v4784 = vadd.f32 %v4611, %v4773
        %v4785 = vadd.f32 %v4612, %v4780
        %v4786 = vadd.f32 %v4613, %v4778
        %v4787 = vadd.f32 %v4614, %v4776
        %v4788 = vadd.f32 %v4615, %v4774
        %v4789 = vld [vmem:[%s2] sm:$0xff]
        %v4790 = vld [vmem:[%s2 + $0x8] sm:$0xf]
        %4792 = vset.pattern.permute.xlu0 0
        %4793 = vperm.xlu0 %4792, %v4789
        %v4794 = vpop.permute.xlu0 %4793
        %4797 = vset.pattern.permute.xlu0 0
        %4798 = vperm.xlu0 %4797, %v4790
        %v4799 = vpop.permute.xlu0 %4798
        %v4801 = vadd.f32 %v4781, %v4794
        %v4802 = vadd.f32 %v4782, %v4794
        %v4803 = vadd.f32 %v4783, %v4794
        %v4804 = vadd.f32 %v4784, %v4794
        %v4805 = vadd.f32 %v4785, %v4799
        %v4806 = vadd.f32 %v4786, %v4799
        %v4807 = vadd.f32 %v4787, %v4799
        %v4808 = vadd.f32 %v4788, %v4799
        %vm4809 = vcmp.gt.f32.partialorder %v4801, 0.0
        %vm4810 = vcmp.gt.f32.partialorder %v4802, 0.0
        %vm4811 = vcmp.gt.f32.partialorder %v4803, 0.0
        %vm4812 = vcmp.gt.f32.partialorder %v4804, 0.0
        %vm4813 = vcmp.gt.f32.partialorder %v4805, 0.0
        %vm4814 = vcmp.gt.f32.partialorder %v4806, 0.0
        %vm4815 = vcmp.gt.f32.partialorder %v4807, 0.0
        %vm4816 = vcmp.gt.f32.partialorder %v4808, 0.0
        %v4817 = vmin.f32 %v4801, 0.0
        %v4818 = vmin.f32 %v4802, 0.0
        %v4819 = vmin.f32 %v4803, 0.0
        %v4820 = vmin.f32 %v4804, 0.0
        %v4821 = vmin.f32 %v4805, 0.0
        %v4822 = vmin.f32 %v4806, 0.0
        %v4823 = vmin.f32 %v4807, 0.0
        %v4824 = vmin.f32 %v4808, 0.0
        %v4825 = vmul.f32 %v4817, 1.442695
        %v4826 = vpow.pop %v4825
        %v4827 = vmul.f32 %v4818, 1.442695
        %v4828 = vpow.pop %v4827
        %v4829 = vmul.f32 %v4819, 1.442695
        %v4830 = vpow.pop %v4829
        %v4831 = vmul.f32 %v4820, 1.442695
        %v4832 = vpow.pop %v4831
        %v4833 = vmul.f32 %v4821, 1.442695
        %v4834 = vpow.pop %v4833
        %v4835 = vmul.f32 %v4822, 1.442695
        %v4836 = vpow.pop %v4835
        %v4837 = vmul.f32 %v4823, 1.442695
        %v4838 = vpow.pop %v4837
        %v4839 = vmul.f32 %v4824, 1.442695
        %v4840 = vpow.pop %v4839
        %v4841 = vsub.f32 %v4826, 1.0
        %v4842 = vsub.f32 %v4828, 1.0
        %v4843 = vsub.f32 %v4830, 1.0
        %v4844 = vsub.f32 %v4832, 1.0
        %v4845 = vsub.f32 %v4834, 1.0
        %v4846 = vsub.f32 %v4836, 1.0
        %v4847 = vsub.f32 %v4838, 1.0
        %v4848 = vsub.f32 %v4840, 1.0
        %v4849 = vsel %vm4809, %v4801, %v4841
        %v4850 = vsel %vm4810, %v4802, %v4842
        %v4851 = vsel %vm4811, %v4803, %v4843
        %v4852 = vsel %vm4812, %v4804, %v4844
        %v4853 = vsel %vm4813, %v4805, %v4845
        %v4854 = vsel %vm4814, %v4806, %v4846
        %v4855 = vsel %vm4815, %v4807, %v4847
        %v4856 = vsel %vm4816, %v4808, %v4848
        %s4857 = scalar_lea.vmem %s204, 256 [#allocation7]
        %4858 = vst [vmem:[%s4857] sm:$0xff] %v4849
        %4859 = vst [vmem:[%s4857 + $0x8] sm:$0xff] %v4850
        %4860 = vst [vmem:[%s4857 + $0x10] sm:$0xff] %v4851
        %4861 = vst [vmem:[%s4857 + $0x18] sm:$0xff] %v4852
        %4862 = vst [vmem:[%s4857 + $0x20] sm:$0xf] %v4853
        %4863 = vst [vmem:[%s4857 + $0x28] sm:$0xf] %v4854
        %4864 = vst [vmem:[%s4857 + $0x30] sm:$0xf] %v4855
        %4865 = vst [vmem:[%s4857 + $0x38] sm:$0xf] %v4856
        %s4866 = scalar_lea.vmem %s178, 300 [#allocation2]
        %v4867 = vld [vmem:[%s4866] sm:$0xff]
        %v4868 = vld [vmem:[%s4866 + $0x8] sm:$0xff]
        %v4869 = vld [vmem:[%s4866 + $0x10] sm:$0xf]
        %v4870 = vld [vmem:[%s4866 + $0x14] sm:$0xff]
        %v4871 = vld [vmem:[%s4866 + $0x1c] sm:$0xff]
        %v4872 = vld [vmem:[%s4866 + $0x24] sm:$0xf]
        %v4873 = vld [vmem:[%s4866 + $0x28] sm:$0x77]
        %v4874 = vld [vmem:[%s4866 + $0x30] sm:$0x77]
        %v4875 = vld [vmem:[%s4866 + $0x38] sm:$0x7]
        %v4876 = vld [vmem:[#allocation5] sm:$0xf]
        %v4877 = vld [vmem:[#allocation5 + $0x4] sm:$0x3]
        %v4880 = vunpack.c.l.b16 %v4876
        %v4881 = vunpack.c.l.b16 %v4877
        %v4882 = vpack.c.b16 %v4881, %v4880
        %v4889 = vunpack.c.l.b16 %v4867
        %v4890 = vunpack.c.h.b16 %v4867
        %v4891 = vunpack.c.l.b16 %v4868
        %v4892 = vunpack.c.h.b16 %v4868
        %v4893 = vunpack.c.l.b16 %v4870
        %v4894 = vunpack.c.h.b16 %v4870
        %v4895 = vunpack.c.l.b16 %v4871
        %v4896 = vunpack.c.h.b16 %v4871
        %v4897 = vunpack.c.l.b16 %v4873
        %v4898 = vunpack.c.h.b16 %v4873
        %v4899 = vunpack.c.l.b16 %v4874
        %v4900 = vunpack.c.h.b16 %v4874
        %v4901 = vpack.c.b16 %v4893, %v4889
        %v4902 = vpack.c.b16 %v4894, %v4890
        %v4903 = vpack.c.b16 %v4895, %v4891
        %v4904 = vpack.c.b16 %v4896, %v4892
        %v4905 = vpack.c.b16 %v4897, %v4897
        %v4906 = vpack.c.b16 %v4898, %v4898
        %v4907 = vpack.c.b16 %v4899, %v4899
        %v4908 = vpack.c.b16 %v4900, %v4900
        %v4914 = vsel %vm254, %v4882, 0
        %v4917 = vand.u32 %v4905, %v261
        %v4920 = vand.u32 %v4906, %v261
        %v4923 = vand.u32 %v4907, %v261
        %v4926 = vand.u32 %v4908, %v261
        %4928 = vmatprep.subr.bf16.mxu0 %v4902
        %4929 = vmatpush1.bf16.msra.mxu0 %v4901
        %4930 = vmatprep.subr.bf16.mxu0 %v4920
        %4931 = vmatpush1.bf16.msra.mxu0 %v4917
        %4932 = vmatprep.subr.bf16.mxu0 0
        %4933 = vmatpush1.bf16.msra.mxu0 0
        %4934 = vmatprep.subr.bf16.mxu0 0
        %4935 = vmatpush1.bf16.msra.mxu0 0
        %4936 = vmatprep.subr.bf16.mxu0 0
        %4937 = vmatpush1.bf16.msra.mxu0 0
        %4938 = vmatprep.subr.bf16.mxu0 0
        %4939 = vmatpush1.bf16.msra.mxu0 0
        %4940 = vmatprep.subr.bf16.mxu0 0
        %4941 = vmatpush1.bf16.msra.mxu0 0
        %4942 = vmatprep.subr.bf16.mxu0 0
        %4943 = vmatpush1.bf16.msra.mxu0 0
        %4944 = vmatprep.subr.bf16.mxu0 0
        %4945 = vmatpush1.bf16.msra.mxu0 0
        %4946 = vmatprep.subr.bf16.mxu0 0
        %4947 = vmatpush1.bf16.msra.mxu0 0
        %4948 = vmatprep.subr.bf16.mxu0 0
        %4949 = vmatpush1.bf16.msra.mxu0 0
        %4950 = vmatprep.subr.bf16.mxu0 0
        %4951 = vmatpush1.bf16.msra.mxu0 0
        %4952 = vmatprep.subr.bf16.mxu0 0
        %4953 = vmatpush1.bf16.msra.mxu0 0
        %4954 = vmatprep.subr.bf16.mxu0 0
        %4955 = vmatpush1.bf16.msra.mxu0 0
        %4956 = vmatprep.subr.bf16.mxu0 0
        %4957 = vmatpush1.bf16.msra.mxu0 0
        %4958 = vmatprep.subr.bf16.mxu0 0
        %4959 = vmatpush1.bf16.msra.mxu0 0
        %4960 = vmatprep.mubr.bf16.mxu0 0
        %4961 = vmatmul.mubr.bf16.gmra.mrb[0].mxu0 %v4914
        %v4962 = vpop.f32.mrb[0].mxu0
        %v4963 = vadd.f32 0.0, %v4962
        %v4964 = vpop.f32.mrb[0].mxu0
        %v4965 = vadd.f32 0.0, %v4964
        %v4966 = vpop.f32.mrb[0].mxu0
        %v4967 = vadd.f32 0.0, %v4966
        %v4968 = vpop.f32.mrb[0].mxu0
        %v4969 = vadd.f32 0.0, %v4968
        %4970 = vdwg.mxu0
        %4971 = vmatprep.subr.bf16.mxu0 %v4904
        %4972 = vmatpush1.bf16.msra.mxu0 %v4903
        %4973 = vmatprep.subr.bf16.mxu0 %v4926
        %4974 = vmatpush1.bf16.msra.mxu0 %v4923
        %4975 = vmatprep.subr.bf16.mxu0 0
        %4976 = vmatpush1.bf16.msra.mxu0 0
        %4977 = vmatprep.subr.bf16.mxu0 0
        %4978 = vmatpush1.bf16.msra.mxu0 0
        %4979 = vmatprep.subr.bf16.mxu0 0
        %4980 = vmatpush1.bf16.msra.mxu0 0
        %4981 = vmatprep.subr.bf16.mxu0 0
        %4982 = vmatpush1.bf16.msra.mxu0 0
        %4983 = vmatprep.subr.bf16.mxu0 0
        %4984 = vmatpush1.bf16.msra.mxu0 0
        %4985 = vmatprep.subr.bf16.mxu0 0
        %4986 = vmatpush1.bf16.msra.mxu0 0
        %4987 = vmatprep.subr.bf16.mxu0 0
        %4988 = vmatpush1.bf16.msra.mxu0 0
        %4989 = vmatprep.subr.bf16.mxu0 0
        %4990 = vmatpush1.bf16.msra.mxu0 0
        %4991 = vmatprep.subr.bf16.mxu0 0
        %4992 = vmatpush1.bf16.msra.mxu0 0
        %4993 = vmatprep.subr.bf16.mxu0 0
        %4994 = vmatpush1.bf16.msra.mxu0 0
        %4995 = vmatprep.subr.bf16.mxu0 0
        %4996 = vmatpush1.bf16.msra.mxu0 0
        %4997 = vmatprep.subr.bf16.mxu0 0
        %4998 = vmatpush1.bf16.msra.mxu0 0
        %4999 = vmatprep.subr.bf16.mxu0 0
        %5000 = vmatpush1.bf16.msra.mxu0 0
        %5001 = vmatprep.subr.bf16.mxu0 0
        %5002 = vmatpush1.bf16.msra.mxu0 0
        %5003 = vmatprep.mubr.bf16.mxu0 0
        %5004 = vmatmul.mubr.bf16.gmra.mrb[0].mxu0 %v4914
        %v5005 = vpop.f32.mrb[0].mxu0
        %v5006 = vadd.f32 0.0, %v5005
        %v5007 = vpop.f32.mrb[0].mxu0
        %v5008 = vadd.f32 0.0, %v5007
        %v5009 = vpop.f32.mrb[0].mxu0
        %v5010 = vadd.f32 0.0, %v5009
        %v5011 = vpop.f32.mrb[0].mxu0
        %v5012 = vadd.f32 0.0, %v5011
        %5013 = vdwg.mxu0
        %v5014 = vld [vmem:[%s360] sm:$0xf]
        %v5015 = vld [vmem:[%s360 + $0x4] sm:$0x3]
        %v5018 = vunpack.c.l.b16 %v5014
        %v5019 = vunpack.c.l.b16 %v5015
        %v5020 = vpack.c.b16 %v5019, %v5018
        %v5024 = vunpack.c.l.b16 %v4869
        %v5025 = vunpack.c.l.b16 %v4872
        %v5026 = vunpack.c.l.b16 %v4875
        %v5027 = vpack.c.b16 %v5025, %v5024
        %v5028 = vpack.c.b16 %v5026, %v5026
        %v5031 = vsel %vm254, %v5020, 0
        %v5034 = vand.u32 %v5028, %v261
        %5036 = vmatprep.subr.bf16.mxu0 %v4902
        %5037 = vmatpush1.bf16.msra.mxu0 %v4901
        %5038 = vmatprep.subr.bf16.mxu0 %v4920
        %5039 = vmatpush1.bf16.msra.mxu0 %v4917
        %5040 = vmatprep.subr.bf16.mxu0 0
        %5041 = vmatpush1.bf16.msra.mxu0 0
        %5042 = vmatprep.subr.bf16.mxu0 0
        %5043 = vmatpush1.bf16.msra.mxu0 0
        %5044 = vmatprep.subr.bf16.mxu0 0
        %5045 = vmatpush1.bf16.msra.mxu0 0
        %5046 = vmatprep.subr.bf16.mxu0 0
        %5047 = vmatpush1.bf16.msra.mxu0 0
        %5048 = vmatprep.subr.bf16.mxu0 0
        %5049 = vmatpush1.bf16.msra.mxu0 0
        %5050 = vmatprep.subr.bf16.mxu0 0
        %5051 = vmatpush1.bf16.msra.mxu0 0
        %5052 = vmatprep.subr.bf16.mxu0 0
        %5053 = vmatpush1.bf16.msra.mxu0 0
        %5054 = vmatprep.subr.bf16.mxu0 0
        %5055 = vmatpush1.bf16.msra.mxu0 0
        %5056 = vmatprep.subr.bf16.mxu0 0
        %5057 = vmatpush1.bf16.msra.mxu0 0
        %5058 = vmatprep.subr.bf16.mxu0 0
        %5059 = vmatpush1.bf16.msra.mxu0 0
        %5060 = vmatprep.subr.bf16.mxu0 0
        %5061 = vmatpush1.bf16.msra.mxu0 0
        %5062 = vmatprep.subr.bf16.mxu0 0
        %5063 = vmatpush1.bf16.msra.mxu0 0
        %5064 = vmatprep.subr.bf16.mxu0 0
        %5065 = vmatpush1.bf16.msra.mxu0 0
        %5066 = vmatprep.subr.bf16.mxu0 0
        %5067 = vmatpush1.bf16.msra.mxu0 0
        %5068 = vmatprep.mubr.bf16.mxu0 0
        %5069 = vmatmul.mubr.bf16.gmra.mrb[0].mxu0 %v5031
        %v5070 = vpop.f32.mrb[0].mxu0
        %v5071 = vadd.f32 0.0, %v5070
        %v5072 = vpop.f32.mrb[0].mxu0
        %v5073 = vadd.f32 0.0, %v5072
        %v5074 = vpop.f32.mrb[0].mxu0
        %v5075 = vadd.f32 0.0, %v5074
        %v5076 = vpop.f32.mrb[0].mxu0
        %v5077 = vadd.f32 0.0, %v5076
        %5078 = vdwg.mxu0
        %5079 = vmatprep.subr.bf16.mxu0 %v4904
        %5080 = vmatpush1.bf16.msra.mxu0 %v4903
        %5081 = vmatprep.subr.bf16.mxu0 %v4926
        %5082 = vmatpush1.bf16.msra.mxu0 %v4923
        %5083 = vmatprep.subr.bf16.mxu0 0
        %5084 = vmatpush1.bf16.msra.mxu0 0
        %5085 = vmatprep.subr.bf16.mxu0 0
        %5086 = vmatpush1.bf16.msra.mxu0 0
        %5087 = vmatprep.subr.bf16.mxu0 0
        %5088 = vmatpush1.bf16.msra.mxu0 0
        %5089 = vmatprep.subr.bf16.mxu0 0
        %5090 = vmatpush1.bf16.msra.mxu0 0
        %5091 = vmatprep.subr.bf16.mxu0 0
        %5092 = vmatpush1.bf16.msra.mxu0 0
        %5093 = vmatprep.subr.bf16.mxu0 0
        %5094 = vmatpush1.bf16.msra.mxu0 0
        %5095 = vmatprep.subr.bf16.mxu0 0
        %5096 = vmatpush1.bf16.msra.mxu0 0
        %5097 = vmatprep.subr.bf16.mxu0 0
        %5098 = vmatpush1.bf16.msra.mxu0 0
        %5099 = vmatprep.subr.bf16.mxu0 0
        %5100 = vmatpush1.bf16.msra.mxu0 0
        %5101 = vmatprep.subr.bf16.mxu0 0
        %5102 = vmatpush1.bf16.msra.mxu0 0
        %5103 = vmatprep.subr.bf16.mxu0 0
        %5104 = vmatpush1.bf16.msra.mxu0 0
        %5105 = vmatprep.subr.bf16.mxu0 0
        %5106 = vmatpush1.bf16.msra.mxu0 0
        %5107 = vmatprep.subr.bf16.mxu0 0
        %5108 = vmatpush1.bf16.msra.mxu0 0
        %5109 = vmatprep.subr.bf16.mxu0 0
        %5110 = vmatpush1.bf16.msra.mxu0 0
        %5111 = vmatprep.mubr.bf16.mxu0 0
        %5112 = vmatmul.mubr.bf16.gmra.mrb[0].mxu0 %v5031
        %v5113 = vpop.f32.mrb[0].mxu0
        %v5114 = vadd.f32 0.0, %v5113
        %v5115 = vpop.f32.mrb[0].mxu0
        %v5116 = vadd.f32 0.0, %v5115
        %v5117 = vpop.f32.mrb[0].mxu0
        %v5118 = vadd.f32 0.0, %v5117
        %v5119 = vpop.f32.mrb[0].mxu0
        %v5120 = vadd.f32 0.0, %v5119
        %5121 = vdwg.mxu0
        %5122 = vmatprep.subr.bf16.mxu0 0
        %5123 = vmatpush1.bf16.msra.mxu0 %v5027
        %5124 = vmatprep.subr.bf16.mxu0 0
        %5125 = vmatpush1.bf16.msra.mxu0 %v5034
        %5126 = vmatprep.subr.bf16.mxu0 0
        %5127 = vmatpush1.bf16.msra.mxu0 0
        %5128 = vmatprep.subr.bf16.mxu0 0
        %5129 = vmatpush1.bf16.msra.mxu0 0
        %5130 = vmatprep.subr.bf16.mxu0 0
        %5131 = vmatpush1.bf16.msra.mxu0 0
        %5132 = vmatprep.subr.bf16.mxu0 0
        %5133 = vmatpush1.bf16.msra.mxu0 0
        %5134 = vmatprep.subr.bf16.mxu0 0
        %5135 = vmatpush1.bf16.msra.mxu0 0
        %5136 = vmatprep.subr.bf16.mxu0 0
        %5137 = vmatpush1.bf16.msra.mxu0 0
        %5138 = vmatprep.subr.bf16.mxu0 0
        %5139 = vmatpush1.bf16.msra.mxu0 0
        %5140 = vmatprep.subr.bf16.mxu0 0
        %5141 = vmatpush1.bf16.msra.mxu0 0
        %5142 = vmatprep.subr.bf16.mxu0 0
        %5143 = vmatpush1.bf16.msra.mxu0 0
        %5144 = vmatprep.subr.bf16.mxu0 0
        %5145 = vmatpush1.bf16.msra.mxu0 0
        %5146 = vmatprep.subr.bf16.mxu0 0
        %5147 = vmatpush1.bf16.msra.mxu0 0
        %5148 = vmatprep.subr.bf16.mxu0 0
        %5149 = vmatpush1.bf16.msra.mxu0 0
        %5150 = vmatprep.subr.bf16.mxu0 0
        %5151 = vmatpush1.bf16.msra.mxu0 0
        %5152 = vmatprep.subr.bf16.mxu0 0
        %5153 = vmatpush1.bf16.msra.mxu0 0
        %5154 = vmatprep.mubr.bf16.mxu0 0
        %5155 = vmatmul.mubr.bf16.gmra.mrb[0].mxu0 %v5031
        %v5156 = vpop.f32.mrb[0].mxu0
        %v5157 = vadd.f32 0.0, %v5156
        %v5158 = vpop.f32.mrb[0].mxu0
        %v5159 = vpop.f32.mrb[0].mxu0
        %v5160 = vadd.f32 0.0, %v5159
        %v5161 = vpop.f32.mrb[0].mxu0
        %5162 = vdwg.mxu0
        %5163 = vrot.lane.b32.xlu0 %v5071, 99
        %v5164 = vpop.permute.xlu0 %5163
        %5165 = vrot.lane.b32.xlu0 %v5075, 99
        %v5166 = vpop.permute.xlu0 %5165
        %5167 = vrot.lane.b32.xlu0 %v5073, 99
        %v5168 = vpop.permute.xlu0 %5167
        %5169 = vrot.lane.b32.xlu0 %v5077, 99
        %v5170 = vpop.permute.xlu0 %5169
        %5171 = vrot.lane.b32.xlu0 %v5114, 99
        %v5172 = vpop.permute.xlu0 %5171
        %5173 = vrot.lane.b32.xlu0 %v5118, 99
        %v5174 = vpop.permute.xlu0 %5173
        %5175 = vrot.lane.b32.xlu0 %v5116, 99
        %v5176 = vpop.permute.xlu0 %5175
        %5177 = vrot.lane.b32.xlu0 %v5120, 99
        %v5178 = vpop.permute.xlu0 %5177
        %5179 = vrot.lane.b32.xlu0 %v5157, 99
        %v5180 = vpop.permute.xlu0 %5179
        %5181 = vrot.lane.b32.xlu0 %v5160, 99
        %v5182 = vpop.permute.xlu0 %5181
        %v5183 = vsel %vm532, %v5176, %v5180
        %v5184 = vsel %vm532, %v5178, %v5182
        %v5185 = vsel %vm532, %v5172, %v5176
        %v5186 = vsel %vm532, %v5174, %v5178
        %v5187 = vsel %vm532, %v5168, %v5172
        %v5188 = vsel %vm532, %v5170, %v5174
        %v5189 = vsel %vm532, %v5164, %v5168
        %v5190 = vsel %vm532, %v5166, %v5170
        %v5191 = vadd.f32 %v4963, %v5189
        %v5192 = vadd.f32 %v4965, %v5187
        %v5193 = vadd.f32 %v5006, %v5185
        %v5194 = vadd.f32 %v5008, %v5183
        %v5195 = vadd.f32 %v4967, %v5190
        %v5196 = vadd.f32 %v4969, %v5188
        %v5197 = vadd.f32 %v5010, %v5186
        %v5198 = vadd.f32 %v5012, %v5184
        %v5199 = vld [vmem:[%s549] sm:$0xf]
        %v5200 = vld [vmem:[%s549 + $0x4] sm:$0x3]
        %v5203 = vunpack.c.l.b16 %v5199
        %v5204 = vunpack.c.l.b16 %v5200
        %v5205 = vpack.c.b16 %v5204, %v5203
        %v5207 = vsel %vm254, %v5205, 0
        %5209 = vmatprep.subr.bf16.mxu0 %v4902
        %5210 = vmatpush1.bf16.msra.mxu0 %v4901
        %5211 = vmatprep.subr.bf16.mxu0 %v4920
        %5212 = vmatpush1.bf16.msra.mxu0 %v4917
        %5213 = vmatprep.subr.bf16.mxu0 0
        %5214 = vmatpush1.bf16.msra.mxu0 0
        %5215 = vmatprep.subr.bf16.mxu0 0
        %5216 = vmatpush1.bf16.msra.mxu0 0
        %5217 = vmatprep.subr.bf16.mxu0 0
        %5218 = vmatpush1.bf16.msra.mxu0 0
        %5219 = vmatprep.subr.bf16.mxu0 0
        %5220 = vmatpush1.bf16.msra.mxu0 0
        %5221 = vmatprep.subr.bf16.mxu0 0
        %5222 = vmatpush1.bf16.msra.mxu0 0
        %5223 = vmatprep.subr.bf16.mxu0 0
        %5224 = vmatpush1.bf16.msra.mxu0 0
        %5225 = vmatprep.subr.bf16.mxu0 0
        %5226 = vmatpush1.bf16.msra.mxu0 0
        %5227 = vmatprep.subr.bf16.mxu0 0
        %5228 = vmatpush1.bf16.msra.mxu0 0
        %5229 = vmatprep.subr.bf16.mxu0 0
        %5230 = vmatpush1.bf16.msra.mxu0 0
        %5231 = vmatprep.subr.bf16.mxu0 0
        %5232 = vmatpush1.bf16.msra.mxu0 0
        %5233 = vmatprep.subr.bf16.mxu0 0
        %5234 = vmatpush1.bf16.msra.mxu0 0
        %5235 = vmatprep.subr.bf16.mxu0 0
        %5236 = vmatpush1.bf16.msra.mxu0 0
        %5237 = vmatprep.subr.bf16.mxu0 0
        %5238 = vmatpush1.bf16.msra.mxu0 0
        %5239 = vmatprep.subr.bf16.mxu0 0
        %5240 = vmatpush1.bf16.msra.mxu0 0
        %5241 = vmatprep.mubr.bf16.mxu0 0
        %5242 = vmatmul.mubr.bf16.gmra.mrb[0].mxu0 %v5207
        %v5243 = vpop.f32.mrb[0].mxu0
        %v5244 = vadd.f32 0.0, %v5243
        %v5245 = vpop.f32.mrb[0].mxu0
        %v5246 = vadd.f32 0.0, %v5245
        %v5247 = vpop.f32.mrb[0].mxu0
        %v5248 = vadd.f32 0.0, %v5247
        %v5249 = vpop.f32.mrb[0].mxu0
        %v5250 = vadd.f32 0.0, %v5249
        %5251 = vdwg.mxu0
        %5252 = vmatprep.subr.bf16.mxu0 %v4904
        %5253 = vmatpush1.bf16.msra.mxu0 %v4903
        %5254 = vmatprep.subr.bf16.mxu0 %v4926
        %5255 = vmatpush1.bf16.msra.mxu0 %v4923
        %5256 = vmatprep.subr.bf16.mxu0 0
        %5257 = vmatpush1.bf16.msra.mxu0 0
        %5258 = vmatprep.subr.bf16.mxu0 0
        %5259 = vmatpush1.bf16.msra.mxu0 0
        %5260 = vmatprep.subr.bf16.mxu0 0
        %5261 = vmatpush1.bf16.msra.mxu0 0
        %5262 = vmatprep.subr.bf16.mxu0 0
        %5263 = vmatpush1.bf16.msra.mxu0 0
        %5264 = vmatprep.subr.bf16.mxu0 0
        %5265 = vmatpush1.bf16.msra.mxu0 0
        %5266 = vmatprep.subr.bf16.mxu0 0
        %5267 = vmatpush1.bf16.msra.mxu0 0
        %5268 = vmatprep.subr.bf16.mxu0 0
        %5269 = vmatpush1.bf16.msra.mxu0 0
        %5270 = vmatprep.subr.bf16.mxu0 0
        %5271 = vmatpush1.bf16.msra.mxu0 0
        %5272 = vmatprep.subr.bf16.mxu0 0
        %5273 = vmatpush1.bf16.msra.mxu0 0
        %5274 = vmatprep.subr.bf16.mxu0 0
        %5275 = vmatpush1.bf16.msra.mxu0 0
        %5276 = vmatprep.subr.bf16.mxu0 0
        %5277 = vmatpush1.bf16.msra.mxu0 0
        %5278 = vmatprep.subr.bf16.mxu0 0
        %5279 = vmatpush1.bf16.msra.mxu0 0
        %5280 = vmatprep.subr.bf16.mxu0 0
        %5281 = vmatpush1.bf16.msra.mxu0 0
        %5282 = vmatprep.subr.bf16.mxu0 0
        %5283 = vmatpush1.bf16.msra.mxu0 0
        %5284 = vmatprep.mubr.bf16.mxu0 0
        %5285 = vmatmul.mubr.bf16.gmra.mrb[0].mxu0 %v5207
        %v5286 = vpop.f32.mrb[0].mxu0
        %v5287 = vadd.f32 0.0, %v5286
        %v5288 = vpop.f32.mrb[0].mxu0
        %v5289 = vadd.f32 0.0, %v5288
        %v5290 = vpop.f32.mrb[0].mxu0
        %v5291 = vadd.f32 0.0, %v5290
        %v5292 = vpop.f32.mrb[0].mxu0
        %v5293 = vadd.f32 0.0, %v5292
        %5294 = vdwg.mxu0
        %5295 = vmatprep.subr.bf16.mxu0 0
        %5296 = vmatpush1.bf16.msra.mxu0 %v5027
        %5297 = vmatprep.subr.bf16.mxu0 0
        %5298 = vmatpush1.bf16.msra.mxu0 %v5034
        %5299 = vmatprep.subr.bf16.mxu0 0
        %5300 = vmatpush1.bf16.msra.mxu0 0
        %5301 = vmatprep.subr.bf16.mxu0 0
        %5302 = vmatpush1.bf16.msra.mxu0 0
        %5303 = vmatprep.subr.bf16.mxu0 0
        %5304 = vmatpush1.bf16.msra.mxu0 0
        %5305 = vmatprep.subr.bf16.mxu0 0
        %5306 = vmatpush1.bf16.msra.mxu0 0
        %5307 = vmatprep.subr.bf16.mxu0 0
        %5308 = vmatpush1.bf16.msra.mxu0 0
        %5309 = vmatprep.subr.bf16.mxu0 0
        %5310 = vmatpush1.bf16.msra.mxu0 0
        %5311 = vmatprep.subr.bf16.mxu0 0
        %5312 = vmatpush1.bf16.msra.mxu0 0
        %5313 = vmatprep.subr.bf16.mxu0 0
        %5314 = vmatpush1.bf16.msra.mxu0 0
        %5315 = vmatprep.subr.bf16.mxu0 0
        %5316 = vmatpush1.bf16.msra.mxu0 0
        %5317 = vmatprep.subr.bf16.mxu0 0
        %5318 = vmatpush1.bf16.msra.mxu0 0
        %5319 = vmatprep.subr.bf16.mxu0 0
        %5320 = vmatpush1.bf16.msra.mxu0 0
        %5321 = vmatprep.subr.bf16.mxu0 0
        %5322 = vmatpush1.bf16.msra.mxu0 0
        %5323 = vmatprep.subr.bf16.mxu0 0
        %5324 = vmatpush1.bf16.msra.mxu0 0
        %5325 = vmatprep.subr.bf16.mxu0 0
        %5326 = vmatpush1.bf16.msra.mxu0 0
        %5327 = vmatprep.mubr.bf16.mxu0 0
        %5328 = vmatmul.mubr.bf16.gmra.mrb[0].mxu0 %v5207
        %v5329 = vpop.f32.mrb[0].mxu0
        %v5330 = vadd.f32 0.0, %v5329
        %v5331 = vpop.f32.mrb[0].mxu0
        %v5332 = vpop.f32.mrb[0].mxu0
        %v5333 = vadd.f32 0.0, %v5332
        %v5334 = vpop.f32.mrb[0].mxu0
        %5335 = vdwg.mxu0
        %5336 = vrot.lane.b32.xlu0 %v5244, 70
        %v5337 = vpop.permute.xlu0 %5336
        %5338 = vrot.lane.b32.xlu0 %v5248, 70
        %v5339 = vpop.permute.xlu0 %5338
        %5340 = vrot.lane.b32.xlu0 %v5246, 70
        %v5341 = vpop.permute.xlu0 %5340
        %5342 = vrot.lane.b32.xlu0 %v5250, 70
        %v5343 = vpop.permute.xlu0 %5342
        %5344 = vrot.lane.b32.xlu0 %v5287, 70
        %v5345 = vpop.permute.xlu0 %5344
        %5346 = vrot.lane.b32.xlu0 %v5291, 70
        %v5347 = vpop.permute.xlu0 %5346
        %5348 = vrot.lane.b32.xlu0 %v5289, 70
        %v5349 = vpop.permute.xlu0 %5348
        %5350 = vrot.lane.b32.xlu0 %v5293, 70
        %v5351 = vpop.permute.xlu0 %5350
        %5352 = vrot.lane.b32.xlu0 %v5330, 70
        %v5353 = vpop.permute.xlu0 %5352
        %5354 = vrot.lane.b32.xlu0 %v5333, 70
        %v5355 = vpop.permute.xlu0 %5354
        %v5356 = vsel %vm707, %v5349, %v5353
        %v5357 = vsel %vm707, %v5351, %v5355
        %v5358 = vsel %vm707, %v5345, %v5349
        %v5359 = vsel %vm707, %v5347, %v5351
        %v5360 = vsel %vm707, %v5341, %v5345
        %v5361 = vsel %vm707, %v5343, %v5347
        %v5362 = vsel %vm707, %v5337, %v5341
        %v5363 = vsel %vm707, %v5339, %v5343
        %v5364 = vadd.f32 %v5191, %v5362
        %v5365 = vadd.f32 %v5192, %v5360
        %v5366 = vadd.f32 %v5193, %v5358
        %v5367 = vadd.f32 %v5194, %v5356
        %v5368 = vadd.f32 %v5195, %v5363
        %v5369 = vadd.f32 %v5196, %v5361
        %v5370 = vadd.f32 %v5197, %v5359
        %v5371 = vadd.f32 %v5198, %v5357
        %v5372 = vld [vmem:[%s724] sm:$0xf]
        %v5373 = vld [vmem:[%s724 + $0x4] sm:$0x3]
        %v5376 = vunpack.c.l.b16 %v5372
        %v5377 = vunpack.c.l.b16 %v5373
        %v5378 = vpack.c.b16 %v5377, %v5376
        %v5380 = vsel %vm254, %v5378, 0
        %5382 = vmatprep.subr.bf16.mxu0 %v4902
        %5383 = vmatpush1.bf16.msra.mxu0 %v4901
        %5384 = vmatprep.subr.bf16.mxu0 %v4920
        %5385 = vmatpush1.bf16.msra.mxu0 %v4917
        %5386 = vmatprep.subr.bf16.mxu0 0
        %5387 = vmatpush1.bf16.msra.mxu0 0
        %5388 = vmatprep.subr.bf16.mxu0 0
        %5389 = vmatpush1.bf16.msra.mxu0 0
        %5390 = vmatprep.subr.bf16.mxu0 0
        %5391 = vmatpush1.bf16.msra.mxu0 0
        %5392 = vmatprep.subr.bf16.mxu0 0
        %5393 = vmatpush1.bf16.msra.mxu0 0
        %5394 = vmatprep.subr.bf16.mxu0 0
        %5395 = vmatpush1.bf16.msra.mxu0 0
        %5396 = vmatprep.subr.bf16.mxu0 0
        %5397 = vmatpush1.bf16.msra.mxu0 0
        %5398 = vmatprep.subr.bf16.mxu0 0
        %5399 = vmatpush1.bf16.msra.mxu0 0
        %5400 = vmatprep.subr.bf16.mxu0 0
        %5401 = vmatpush1.bf16.msra.mxu0 0
        %5402 = vmatprep.subr.bf16.mxu0 0
        %5403 = vmatpush1.bf16.msra.mxu0 0
        %5404 = vmatprep.subr.bf16.mxu0 0
        %5405 = vmatpush1.bf16.msra.mxu0 0
        %5406 = vmatprep.subr.bf16.mxu0 0
        %5407 = vmatpush1.bf16.msra.mxu0 0
        %5408 = vmatprep.subr.bf16.mxu0 0
        %5409 = vmatpush1.bf16.msra.mxu0 0
        %5410 = vmatprep.subr.bf16.mxu0 0
        %5411 = vmatpush1.bf16.msra.mxu0 0
        %5412 = vmatprep.subr.bf16.mxu0 0
        %5413 = vmatpush1.bf16.msra.mxu0 0
        %5414 = vmatprep.mubr.bf16.mxu0 0
        %5415 = vmatmul.mubr.bf16.gmra.mrb[0].mxu0 %v5380
        %v5416 = vpop.f32.mrb[0].mxu0
        %v5417 = vadd.f32 0.0, %v5416
        %v5418 = vpop.f32.mrb[0].mxu0
        %v5419 = vadd.f32 0.0, %v5418
        %v5420 = vpop.f32.mrb[0].mxu0
        %v5421 = vadd.f32 0.0, %v5420
        %v5422 = vpop.f32.mrb[0].mxu0
        %v5423 = vadd.f32 0.0, %v5422
        %5424 = vdwg.mxu0
        %5425 = vmatprep.subr.bf16.mxu0 %v4904
        %5426 = vmatpush1.bf16.msra.mxu0 %v4903
        %5427 = vmatprep.subr.bf16.mxu0 %v4926
        %5428 = vmatpush1.bf16.msra.mxu0 %v4923
        %5429 = vmatprep.subr.bf16.mxu0 0
        %5430 = vmatpush1.bf16.msra.mxu0 0
        %5431 = vmatprep.subr.bf16.mxu0 0
        %5432 = vmatpush1.bf16.msra.mxu0 0
        %5433 = vmatprep.subr.bf16.mxu0 0
        %5434 = vmatpush1.bf16.msra.mxu0 0
        %5435 = vmatprep.subr.bf16.mxu0 0
        %5436 = vmatpush1.bf16.msra.mxu0 0
        %5437 = vmatprep.subr.bf16.mxu0 0
        %5438 = vmatpush1.bf16.msra.mxu0 0
        %5439 = vmatprep.subr.bf16.mxu0 0
        %5440 = vmatpush1.bf16.msra.mxu0 0
        %5441 = vmatprep.subr.bf16.mxu0 0
        %5442 = vmatpush1.bf16.msra.mxu0 0
        %5443 = vmatprep.subr.bf16.mxu0 0
        %5444 = vmatpush1.bf16.msra.mxu0 0
        %5445 = vmatprep.subr.bf16.mxu0 0
        %5446 = vmatpush1.bf16.msra.mxu0 0
        %5447 = vmatprep.subr.bf16.mxu0 0
        %5448 = vmatpush1.bf16.msra.mxu0 0
        %5449 = vmatprep.subr.bf16.mxu0 0
        %5450 = vmatpush1.bf16.msra.mxu0 0
        %5451 = vmatprep.subr.bf16.mxu0 0
        %5452 = vmatpush1.bf16.msra.mxu0 0
        %5453 = vmatprep.subr.bf16.mxu0 0
        %5454 = vmatpush1.bf16.msra.mxu0 0
        %5455 = vmatprep.subr.bf16.mxu0 0
        %5456 = vmatpush1.bf16.msra.mxu0 0
        %5457 = vmatprep.mubr.bf16.mxu0 0
        %5458 = vmatmul.mubr.bf16.gmra.mrb[0].mxu0 %v5380
        %v5459 = vpop.f32.mrb[0].mxu0
        %v5460 = vadd.f32 0.0, %v5459
        %v5461 = vpop.f32.mrb[0].mxu0
        %v5462 = vadd.f32 0.0, %v5461
        %v5463 = vpop.f32.mrb[0].mxu0
        %v5464 = vadd.f32 0.0, %v5463
        %v5465 = vpop.f32.mrb[0].mxu0
        %v5466 = vadd.f32 0.0, %v5465
        %5467 = vdwg.mxu0
        %5468 = vmatprep.subr.bf16.mxu0 0
        %5469 = vmatpush1.bf16.msra.mxu0 %v5027
        %5470 = vmatprep.subr.bf16.mxu0 0
        %5471 = vmatpush1.bf16.msra.mxu0 %v5034
        %5472 = vmatprep.subr.bf16.mxu0 0
        %5473 = vmatpush1.bf16.msra.mxu0 0
        %5474 = vmatprep.subr.bf16.mxu0 0
        %5475 = vmatpush1.bf16.msra.mxu0 0
        %5476 = vmatprep.subr.bf16.mxu0 0
        %5477 = vmatpush1.bf16.msra.mxu0 0
        %5478 = vmatprep.subr.bf16.mxu0 0
        %5479 = vmatpush1.bf16.msra.mxu0 0
        %5480 = vmatprep.subr.bf16.mxu0 0
        %5481 = vmatpush1.bf16.msra.mxu0 0
        %5482 = vmatprep.subr.bf16.mxu0 0
        %5483 = vmatpush1.bf16.msra.mxu0 0
        %5484 = vmatprep.subr.bf16.mxu0 0
        %5485 = vmatpush1.bf16.msra.mxu0 0
        %5486 = vmatprep.subr.bf16.mxu0 0
        %5487 = vmatpush1.bf16.msra.mxu0 0
        %5488 = vmatprep.subr.bf16.mxu0 0
        %5489 = vmatpush1.bf16.msra.mxu0 0
        %5490 = vmatprep.subr.bf16.mxu0 0
        %5491 = vmatpush1.bf16.msra.mxu0 0
        %5492 = vmatprep.subr.bf16.mxu0 0
        %5493 = vmatpush1.bf16.msra.mxu0 0
        %5494 = vmatprep.subr.bf16.mxu0 0
        %5495 = vmatpush1.bf16.msra.mxu0 0
        %5496 = vmatprep.subr.bf16.mxu0 0
        %5497 = vmatpush1.bf16.msra.mxu0 0
        %5498 = vmatprep.subr.bf16.mxu0 0
        %5499 = vmatpush1.bf16.msra.mxu0 0
        %5500 = vmatprep.mubr.bf16.mxu0 0
        %5501 = vmatmul.mubr.bf16.gmra.mrb[0].mxu0 %v5380
        %v5502 = vpop.f32.mrb[0].mxu0
        %v5503 = vadd.f32 0.0, %v5502
        %v5504 = vpop.f32.mrb[0].mxu0
        %v5505 = vpop.f32.mrb[0].mxu0
        %v5506 = vadd.f32 0.0, %v5505
        %v5507 = vpop.f32.mrb[0].mxu0
        %5508 = vdwg.mxu0
        %5509 = vrot.lane.b32.xlu0 %v5417, 41
        %v5510 = vpop.permute.xlu0 %5509
        %5511 = vrot.lane.b32.xlu0 %v5421, 41
        %v5512 = vpop.permute.xlu0 %5511
        %5513 = vrot.lane.b32.xlu0 %v5419, 41
        %v5514 = vpop.permute.xlu0 %5513
        %5515 = vrot.lane.b32.xlu0 %v5423, 41
        %v5516 = vpop.permute.xlu0 %5515
        %5517 = vrot.lane.b32.xlu0 %v5460, 41
        %v5518 = vpop.permute.xlu0 %5517
        %5519 = vrot.lane.b32.xlu0 %v5464, 41
        %v5520 = vpop.permute.xlu0 %5519
        %5521 = vrot.lane.b32.xlu0 %v5462, 41
        %v5522 = vpop.permute.xlu0 %5521
        %5523 = vrot.lane.b32.xlu0 %v5466, 41
        %v5524 = vpop.permute.xlu0 %5523
        %5525 = vrot.lane.b32.xlu0 %v5503, 41
        %v5526 = vpop.permute.xlu0 %5525
        %5527 = vrot.lane.b32.xlu0 %v5506, 41
        %v5528 = vpop.permute.xlu0 %5527
        %v5529 = vsel %vm882, %v5522, %v5526
        %v5530 = vsel %vm882, %v5524, %v5528
        %v5531 = vsel %vm882, %v5518, %v5522
        %v5532 = vsel %vm882, %v5520, %v5524
        %v5533 = vsel %vm882, %v5514, %v5518
        %v5534 = vsel %vm882, %v5516, %v5520
        %v5535 = vsel %vm882, %v5510, %v5514
        %v5536 = vsel %vm882, %v5512, %v5516
        %v5537 = vadd.f32 %v5364, %v5535
        %v5538 = vadd.f32 %v5365, %v5533
        %v5539 = vadd.f32 %v5366, %v5531
        %v5540 = vadd.f32 %v5367, %v5529
        %v5541 = vadd.f32 %v5368, %v5536
        %v5542 = vadd.f32 %v5369, %v5534
        %v5543 = vadd.f32 %v5370, %v5532
        %v5544 = vadd.f32 %v5371, %v5530
        %v5545 = vld [vmem:[%s899] sm:$0xf]
        %v5546 = vld [vmem:[%s899 + $0x4] sm:$0x3]
        %v5549 = vunpack.c.l.b16 %v5545
        %v5550 = vunpack.c.l.b16 %v5546
        %v5551 = vpack.c.b16 %v5550, %v5549
        %v5553 = vsel %vm254, %v5551, 0
        %5555 = vmatprep.subr.bf16.mxu0 %v4902
        %5556 = vmatpush1.bf16.msra.mxu0 %v4901
        %5557 = vmatprep.subr.bf16.mxu0 %v4920
        %5558 = vmatpush1.bf16.msra.mxu0 %v4917
        %5559 = vmatprep.subr.bf16.mxu0 0
        %5560 = vmatpush1.bf16.msra.mxu0 0
        %5561 = vmatprep.subr.bf16.mxu0 0
        %5562 = vmatpush1.bf16.msra.mxu0 0
        %5563 = vmatprep.subr.bf16.mxu0 0
        %5564 = vmatpush1.bf16.msra.mxu0 0
        %5565 = vmatprep.subr.bf16.mxu0 0
        %5566 = vmatpush1.bf16.msra.mxu0 0
        %5567 = vmatprep.subr.bf16.mxu0 0
        %5568 = vmatpush1.bf16.msra.mxu0 0
        %5569 = vmatprep.subr.bf16.mxu0 0
        %5570 = vmatpush1.bf16.msra.mxu0 0
        %5571 = vmatprep.subr.bf16.mxu0 0
        %5572 = vmatpush1.bf16.msra.mxu0 0
        %5573 = vmatprep.subr.bf16.mxu0 0
        %5574 = vmatpush1.bf16.msra.mxu0 0
        %5575 = vmatprep.subr.bf16.mxu0 0
        %5576 = vmatpush1.bf16.msra.mxu0 0
        %5577 = vmatprep.subr.bf16.mxu0 0
        %5578 = vmatpush1.bf16.msra.mxu0 0
        %5579 = vmatprep.subr.bf16.mxu0 0
        %5580 = vmatpush1.bf16.msra.mxu0 0
        %5581 = vmatprep.subr.bf16.mxu0 0
        %5582 = vmatpush1.bf16.msra.mxu0 0
        %5583 = vmatprep.subr.bf16.mxu0 0
        %5584 = vmatpush1.bf16.msra.mxu0 0
        %5585 = vmatprep.subr.bf16.mxu0 0
        %5586 = vmatpush1.bf16.msra.mxu0 0
        %5587 = vmatprep.mubr.bf16.mxu0 0
        %5588 = vmatmul.mubr.bf16.gmra.mrb[0].mxu0 %v5553
        %v5589 = vpop.f32.mrb[0].mxu0
        %v5590 = vadd.f32 0.0, %v5589
        %v5591 = vpop.f32.mrb[0].mxu0
        %v5592 = vadd.f32 0.0, %v5591
        %v5593 = vpop.f32.mrb[0].mxu0
        %v5594 = vadd.f32 0.0, %v5593
        %v5595 = vpop.f32.mrb[0].mxu0
        %v5596 = vadd.f32 0.0, %v5595
        %5597 = vdwg.mxu0
        %5598 = vmatprep.subr.bf16.mxu0 %v4904
        %5599 = vmatpush1.bf16.msra.mxu0 %v4903
        %5600 = vmatprep.subr.bf16.mxu0 %v4926
        %5601 = vmatpush1.bf16.msra.mxu0 %v4923
        %5602 = vmatprep.subr.bf16.mxu0 0
        %5603 = vmatpush1.bf16.msra.mxu0 0
        %5604 = vmatprep.subr.bf16.mxu0 0
        %5605 = vmatpush1.bf16.msra.mxu0 0
        %5606 = vmatprep.subr.bf16.mxu0 0
        %5607 = vmatpush1.bf16.msra.mxu0 0
        %5608 = vmatprep.subr.bf16.mxu0 0
        %5609 = vmatpush1.bf16.msra.mxu0 0
        %5610 = vmatprep.subr.bf16.mxu0 0
        %5611 = vmatpush1.bf16.msra.mxu0 0
        %5612 = vmatprep.subr.bf16.mxu0 0
        %5613 = vmatpush1.bf16.msra.mxu0 0
        %5614 = vmatprep.subr.bf16.mxu0 0
        %5615 = vmatpush1.bf16.msra.mxu0 0
        %5616 = vmatprep.subr.bf16.mxu0 0
        %5617 = vmatpush1.bf16.msra.mxu0 0
        %5618 = vmatprep.subr.bf16.mxu0 0
        %5619 = vmatpush1.bf16.msra.mxu0 0
        %5620 = vmatprep.subr.bf16.mxu0 0
        %5621 = vmatpush1.bf16.msra.mxu0 0
        %5622 = vmatprep.subr.bf16.mxu0 0
        %5623 = vmatpush1.bf16.msra.mxu0 0
        %5624 = vmatprep.subr.bf16.mxu0 0
        %5625 = vmatpush1.bf16.msra.mxu0 0
        %5626 = vmatprep.subr.bf16.mxu0 0
        %5627 = vmatpush1.bf16.msra.mxu0 0
        %5628 = vmatprep.subr.bf16.mxu0 0
        %5629 = vmatpush1.bf16.msra.mxu0 0
        %5630 = vmatprep.mubr.bf16.mxu0 0
        %5631 = vmatmul.mubr.bf16.gmra.mrb[0].mxu0 %v5553
        %v5632 = vpop.f32.mrb[0].mxu0
        %v5633 = vadd.f32 0.0, %v5632
        %v5634 = vpop.f32.mrb[0].mxu0
        %v5635 = vadd.f32 0.0, %v5634
        %v5636 = vpop.f32.mrb[0].mxu0
        %v5637 = vadd.f32 0.0, %v5636
        %v5638 = vpop.f32.mrb[0].mxu0
        %v5639 = vadd.f32 0.0, %v5638
        %5640 = vdwg.mxu0
        %5641 = vmatprep.subr.bf16.mxu0 0
        %5642 = vmatpush1.bf16.msra.mxu0 %v5027
        %5643 = vmatprep.subr.bf16.mxu0 0
        %5644 = vmatpush1.bf16.msra.mxu0 %v5034
        %5645 = vmatprep.subr.bf16.mxu0 0
        %5646 = vmatpush1.bf16.msra.mxu0 0
        %5647 = vmatprep.subr.bf16.mxu0 0
        %5648 = vmatpush1.bf16.msra.mxu0 0
        %5649 = vmatprep.subr.bf16.mxu0 0
        %5650 = vmatpush1.bf16.msra.mxu0 0
        %5651 = vmatprep.subr.bf16.mxu0 0
        %5652 = vmatpush1.bf16.msra.mxu0 0
        %5653 = vmatprep.subr.bf16.mxu0 0
        %5654 = vmatpush1.bf16.msra.mxu0 0
        %5655 = vmatprep.subr.bf16.mxu0 0
        %5656 = vmatpush1.bf16.msra.mxu0 0
        %5657 = vmatprep.subr.bf16.mxu0 0
        %5658 = vmatpush1.bf16.msra.mxu0 0
        %5659 = vmatprep.subr.bf16.mxu0 0
        %5660 = vmatpush1.bf16.msra.mxu0 0
        %5661 = vmatprep.subr.bf16.mxu0 0
        %5662 = vmatpush1.bf16.msra.mxu0 0
        %5663 = vmatprep.subr.bf16.mxu0 0
        %5664 = vmatpush1.bf16.msra.mxu0 0
        %5665 = vmatprep.subr.bf16.mxu0 0
        %5666 = vmatpush1.bf16.msra.mxu0 0
        %5667 = vmatprep.subr.bf16.mxu0 0
        %5668 = vmatpush1.bf16.msra.mxu0 0
        %5669 = vmatprep.subr.bf16.mxu0 0
        %5670 = vmatpush1.bf16.msra.mxu0 0
        %5671 = vmatprep.subr.bf16.mxu0 0
        %5672 = vmatpush1.bf16.msra.mxu0 0
        %5673 = vmatprep.mubr.bf16.mxu0 0
        %5674 = vmatmul.mubr.bf16.gmra.mrb[0].mxu0 %v5553
        %v5675 = vpop.f32.mrb[0].mxu0
        %v5676 = vadd.f32 0.0, %v5675
        %v5677 = vpop.f32.mrb[0].mxu0
        %v5678 = vpop.f32.mrb[0].mxu0
        %v5679 = vadd.f32 0.0, %v5678
        %v5680 = vpop.f32.mrb[0].mxu0
        %5681 = vdwg.mxu0
        %5682 = vrot.lane.b32.xlu0 %v5590, 12
        %v5683 = vpop.permute.xlu0 %5682
        %5684 = vrot.lane.b32.xlu0 %v5594, 12
        %v5685 = vpop.permute.xlu0 %5684
        %5686 = vrot.lane.b32.xlu0 %v5592, 12
        %v5687 = vpop.permute.xlu0 %5686
        %5688 = vrot.lane.b32.xlu0 %v5596, 12
        %v5689 = vpop.permute.xlu0 %5688
        %5690 = vrot.lane.b32.xlu0 %v5633, 12
        %v5691 = vpop.permute.xlu0 %5690
        %5692 = vrot.lane.b32.xlu0 %v5637, 12
        %v5693 = vpop.permute.xlu0 %5692
        %5694 = vrot.lane.b32.xlu0 %v5635, 12
        %v5695 = vpop.permute.xlu0 %5694
        %5696 = vrot.lane.b32.xlu0 %v5639, 12
        %v5697 = vpop.permute.xlu0 %5696
        %5698 = vrot.lane.b32.xlu0 %v5676, 12
        %v5699 = vpop.permute.xlu0 %5698
        %5700 = vrot.lane.b32.xlu0 %v5679, 12
        %v5701 = vpop.permute.xlu0 %5700
        %v5702 = vsel %vm1057, %v5695, %v5699
        %v5703 = vsel %vm1057, %v5697, %v5701
        %v5704 = vsel %vm1057, %v5691, %v5695
        %v5705 = vsel %vm1057, %v5693, %v5697
        %v5706 = vsel %vm1057, %v5687, %v5691
        %v5707 = vsel %vm1057, %v5689, %v5693
        %v5708 = vsel %vm1057, %v5683, %v5687
        %v5709 = vsel %vm1057, %v5685, %v5689
        %v5710 = vadd.f32 %v5537, %v5708
        %v5711 = vadd.f32 %v5538, %v5706
        %v5712 = vadd.f32 %v5539, %v5704
        %v5713 = vadd.f32 %v5540, %v5702
        %v5714 = vadd.f32 %v5541, %v5709
        %v5715 = vadd.f32 %v5542, %v5707
        %v5716 = vadd.f32 %v5543, %v5705
        %v5717 = vadd.f32 %v5544, %v5703
        %v5718 = vld [vmem:[%s2] sm:$0xff]
        %v5719 = vld [vmem:[%s2 + $0x8] sm:$0xf]
        %5721 = vset.pattern.permute.xlu0 0
        %5722 = vperm.xlu0 %5721, %v5718
        %v5723 = vpop.permute.xlu0 %5722
        %5726 = vset.pattern.permute.xlu0 0
        %5727 = vperm.xlu0 %5726, %v5719
        %v5728 = vpop.permute.xlu0 %5727
        %v5730 = vadd.f32 %v5710, %v5723
        %v5731 = vadd.f32 %v5711, %v5723
        %v5732 = vadd.f32 %v5712, %v5723
        %v5733 = vadd.f32 %v5713, %v5723
        %v5734 = vadd.f32 %v5714, %v5728
        %v5735 = vadd.f32 %v5715, %v5728
        %v5736 = vadd.f32 %v5716, %v5728
        %v5737 = vadd.f32 %v5717, %v5728
        %vm5738 = vcmp.gt.f32.partialorder %v5730, 0.0
        %vm5739 = vcmp.gt.f32.partialorder %v5731, 0.0
        %vm5740 = vcmp.gt.f32.partialorder %v5732, 0.0
        %vm5741 = vcmp.gt.f32.partialorder %v5733, 0.0
        %vm5742 = vcmp.gt.f32.partialorder %v5734, 0.0
        %vm5743 = vcmp.gt.f32.partialorder %v5735, 0.0
        %vm5744 = vcmp.gt.f32.partialorder %v5736, 0.0
        %vm5745 = vcmp.gt.f32.partialorder %v5737, 0.0
        %v5746 = vmin.f32 %v5730, 0.0
        %v5747 = vmin.f32 %v5731, 0.0
        %v5748 = vmin.f32 %v5732, 0.0
        %v5749 = vmin.f32 %v5733, 0.0
        %v5750 = vmin.f32 %v5734, 0.0
        %v5751 = vmin.f32 %v5735, 0.0
        %v5752 = vmin.f32 %v5736, 0.0
        %v5753 = vmin.f32 %v5737, 0.0
        %v5754 = vmul.f32 %v5746, 1.442695
        %v5755 = vpow.pop %v5754
        %v5756 = vmul.f32 %v5747, 1.442695
        %v5757 = vpow.pop %v5756
        %v5758 = vmul.f32 %v5748, 1.442695
        %v5759 = vpow.pop %v5758
        %v5760 = vmul.f32 %v5749, 1.442695
        %v5761 = vpow.pop %v5760
        %v5762 = vmul.f32 %v5750, 1.442695
        %v5763 = vpow.pop %v5762
        %v5764 = vmul.f32 %v5751, 1.442695
        %v5765 = vpow.pop %v5764
        %v5766 = vmul.f32 %v5752, 1.442695
        %v5767 = vpow.pop %v5766
        %v5768 = vmul.f32 %v5753, 1.442695
        %v5769 = vpow.pop %v5768
        %v5770 = vsub.f32 %v5755, 1.0
        %v5771 = vsub.f32 %v5757, 1.0
        %v5772 = vsub.f32 %v5759, 1.0
        %v5773 = vsub.f32 %v5761, 1.0
        %v5774 = vsub.f32 %v5763, 1.0
        %v5775 = vsub.f32 %v5765, 1.0
        %v5776 = vsub.f32 %v5767, 1.0
        %v5777 = vsub.f32 %v5769, 1.0
        %v5778 = vsel %vm5738, %v5730, %v5770
        %v5779 = vsel %vm5739, %v5731, %v5771
        %v5780 = vsel %vm5740, %v5732, %v5772
        %v5781 = vsel %vm5741, %v5733, %v5773
        %v5782 = vsel %vm5742, %v5734, %v5774
        %v5783 = vsel %vm5743, %v5735, %v5775
        %v5784 = vsel %vm5744, %v5736, %v5776
        %v5785 = vsel %vm5745, %v5737, %v5777
        %s5786 = scalar_lea.vmem %s204, 320 [#allocation7]
        %5787 = vst [vmem:[%s5786] sm:$0xff] %v5778
        %5788 = vst [vmem:[%s5786 + $0x8] sm:$0xff] %v5779
        %5789 = vst [vmem:[%s5786 + $0x10] sm:$0xff] %v5780
        %5790 = vst [vmem:[%s5786 + $0x18] sm:$0xff] %v5781
        %5791 = vst [vmem:[%s5786 + $0x20] sm:$0xf] %v5782
        %5792 = vst [vmem:[%s5786 + $0x28] sm:$0xf] %v5783
        %5793 = vst [vmem:[%s5786 + $0x30] sm:$0xf] %v5784
        %5794 = vst [vmem:[%s5786 + $0x38] sm:$0xf] %v5785
        %s5795 = scalar_lea.vmem %s178, 360 [#allocation2]
        %v5796 = vld [vmem:[%s5795] sm:$0xff]
        %v5797 = vld [vmem:[%s5795 + $0x8] sm:$0xff]
        %v5798 = vld [vmem:[%s5795 + $0x10] sm:$0xf]
        %v5799 = vld [vmem:[%s5795 + $0x14] sm:$0xff]
        %v5800 = vld [vmem:[%s5795 + $0x1c] sm:$0xff]
        %v5801 = vld [vmem:[%s5795 + $0x24] sm:$0xf]
        %v5802 = vld [vmem:[%s5795 + $0x28] sm:$0x77]
        %v5803 = vld [vmem:[%s5795 + $0x30] sm:$0x77]
        %v5804 = vld [vmem:[%s5795 + $0x38] sm:$0x7]
        %v5805 = vld [vmem:[#allocation5] sm:$0xf]
        %v5806 = vld [vmem:[#allocation5 + $0x4] sm:$0x3]
        %v5809 = vunpack.c.l.b16 %v5805
        %v5810 = vunpack.c.l.b16 %v5806
        %v5811 = vpack.c.b16 %v5810, %v5809
        %v5818 = vunpack.c.l.b16 %v5796
        %v5819 = vunpack.c.h.b16 %v5796
        %v5820 = vunpack.c.l.b16 %v5797
        %v5821 = vunpack.c.h.b16 %v5797
        %v5822 = vunpack.c.l.b16 %v5799
        %v5823 = vunpack.c.h.b16 %v5799
        %v5824 = vunpack.c.l.b16 %v5800
        %v5825 = vunpack.c.h.b16 %v5800
        %v5826 = vunpack.c.l.b16 %v5802
        %v5827 = vunpack.c.h.b16 %v5802
        %v5828 = vunpack.c.l.b16 %v5803
        %v5829 = vunpack.c.h.b16 %v5803
        %v5830 = vpack.c.b16 %v5822, %v5818
        %v5831 = vpack.c.b16 %v5823, %v5819
        %v5832 = vpack.c.b16 %v5824, %v5820
        %v5833 = vpack.c.b16 %v5825, %v5821
        %v5834 = vpack.c.b16 %v5826, %v5826
        %v5835 = vpack.c.b16 %v5827, %v5827
        %v5836 = vpack.c.b16 %v5828, %v5828
        %v5837 = vpack.c.b16 %v5829, %v5829
        %v5843 = vsel %vm254, %v5811, 0
        %v5846 = vand.u32 %v5834, %v261
        %v5849 = vand.u32 %v5835, %v261
        %v5852 = vand.u32 %v5836, %v261
        %v5855 = vand.u32 %v5837, %v261
        %5857 = vmatprep.subr.bf16.mxu0 %v5831
        %5858 = vmatpush1.bf16.msra.mxu0 %v5830
        %5859 = vmatprep.subr.bf16.mxu0 %v5849
        %5860 = vmatpush1.bf16.msra.mxu0 %v5846
        %5861 = vmatprep.subr.bf16.mxu0 0
        %5862 = vmatpush1.bf16.msra.mxu0 0
        %5863 = vmatprep.subr.bf16.mxu0 0
        %5864 = vmatpush1.bf16.msra.mxu0 0
        %5865 = vmatprep.subr.bf16.mxu0 0
        %5866 = vmatpush1.bf16.msra.mxu0 0
        %5867 = vmatprep.subr.bf16.mxu0 0
        %5868 = vmatpush1.bf16.msra.mxu0 0
        %5869 = vmatprep.subr.bf16.mxu0 0
        %5870 = vmatpush1.bf16.msra.mxu0 0
        %5871 = vmatprep.subr.bf16.mxu0 0
        %5872 = vmatpush1.bf16.msra.mxu0 0
        %5873 = vmatprep.subr.bf16.mxu0 0
        %5874 = vmatpush1.bf16.msra.mxu0 0
        %5875 = vmatprep.subr.bf16.mxu0 0
        %5876 = vmatpush1.bf16.msra.mxu0 0
        %5877 = vmatprep.subr.bf16.mxu0 0
        %5878 = vmatpush1.bf16.msra.mxu0 0
        %5879 = vmatprep.subr.bf16.mxu0 0
        %5880 = vmatpush1.bf16.msra.mxu0 0
        %5881 = vmatprep.subr.bf16.mxu0 0
        %5882 = vmatpush1.bf16.msra.mxu0 0
        %5883 = vmatprep.subr.bf16.mxu0 0
        %5884 = vmatpush1.bf16.msra.mxu0 0
        %5885 = vmatprep.subr.bf16.mxu0 0
        %5886 = vmatpush1.bf16.msra.mxu0 0
        %5887 = vmatprep.subr.bf16.mxu0 0
        %5888 = vmatpush1.bf16.msra.mxu0 0
        %5889 = vmatprep.mubr.bf16.mxu0 0
        %5890 = vmatmul.mubr.bf16.gmra.mrb[0].mxu0 %v5843
        %v5891 = vpop.f32.mrb[0].mxu0
        %v5892 = vadd.f32 0.0, %v5891
        %v5893 = vpop.f32.mrb[0].mxu0
        %v5894 = vadd.f32 0.0, %v5893
        %v5895 = vpop.f32.mrb[0].mxu0
        %v5896 = vadd.f32 0.0, %v5895
        %v5897 = vpop.f32.mrb[0].mxu0
        %v5898 = vadd.f32 0.0, %v5897
        %5899 = vdwg.mxu0
        %5900 = vmatprep.subr.bf16.mxu0 %v5833
        %5901 = vmatpush1.bf16.msra.mxu0 %v5832
        %5902 = vmatprep.subr.bf16.mxu0 %v5855
        %5903 = vmatpush1.bf16.msra.mxu0 %v5852
        %5904 = vmatprep.subr.bf16.mxu0 0
        %5905 = vmatpush1.bf16.msra.mxu0 0
        %5906 = vmatprep.subr.bf16.mxu0 0
        %5907 = vmatpush1.bf16.msra.mxu0 0
        %5908 = vmatprep.subr.bf16.mxu0 0
        %5909 = vmatpush1.bf16.msra.mxu0 0
        %5910 = vmatprep.subr.bf16.mxu0 0
        %5911 = vmatpush1.bf16.msra.mxu0 0
        %5912 = vmatprep.subr.bf16.mxu0 0
        %5913 = vmatpush1.bf16.msra.mxu0 0
        %5914 = vmatprep.subr.bf16.mxu0 0
        %5915 = vmatpush1.bf16.msra.mxu0 0
        %5916 = vmatprep.subr.bf16.mxu0 0
        %5917 = vmatpush1.bf16.msra.mxu0 0
        %5918 = vmatprep.subr.bf16.mxu0 0
        %5919 = vmatpush1.bf16.msra.mxu0 0
        %5920 = vmatprep.subr.bf16.mxu0 0
        %5921 = vmatpush1.bf16.msra.mxu0 0
        %5922 = vmatprep.subr.bf16.mxu0 0
        %5923 = vmatpush1.bf16.msra.mxu0 0
        %5924 = vmatprep.subr.bf16.mxu0 0
        %5925 = vmatpush1.bf16.msra.mxu0 0
        %5926 = vmatprep.subr.bf16.mxu0 0
        %5927 = vmatpush1.bf16.msra.mxu0 0
        %5928 = vmatprep.subr.bf16.mxu0 0
        %5929 = vmatpush1.bf16.msra.mxu0 0
        %5930 = vmatprep.subr.bf16.mxu0 0
        %5931 = vmatpush1.bf16.msra.mxu0 0
        %5932 = vmatprep.mubr.bf16.mxu0 0
        %5933 = vmatmul.mubr.bf16.gmra.mrb[0].mxu0 %v5843
        %v5934 = vpop.f32.mrb[0].mxu0
        %v5935 = vadd.f32 0.0, %v5934
        %v5936 = vpop.f32.mrb[0].mxu0
        %v5937 = vadd.f32 0.0, %v5936
        %v5938 = vpop.f32.mrb[0].mxu0
        %v5939 = vadd.f32 0.0, %v5938
        %v5940 = vpop.f32.mrb[0].mxu0
        %v5941 = vadd.f32 0.0, %v5940
        %5942 = vdwg.mxu0
        %v5943 = vld [vmem:[%s360] sm:$0xf]
        %v5944 = vld [vmem:[%s360 + $0x4] sm:$0x3]
        %v5947 = vunpack.c.l.b16 %v5943
        %v5948 = vunpack.c.l.b16 %v5944
        %v5949 = vpack.c.b16 %v5948, %v5947
        %v5953 = vunpack.c.l.b16 %v5798
        %v5954 = vunpack.c.l.b16 %v5801
        %v5955 = vunpack.c.l.b16 %v5804
        %v5956 = vpack.c.b16 %v5954, %v5953
        %v5957 = vpack.c.b16 %v5955, %v5955
        %v5960 = vsel %vm254, %v5949, 0
        %v5963 = vand.u32 %v5957, %v261
        %5965 = vmatprep.subr.bf16.mxu0 %v5831
        %5966 = vmatpush1.bf16.msra.mxu0 %v5830
        %5967 = vmatprep.subr.bf16.mxu0 %v5849
        %5968 = vmatpush1.bf16.msra.mxu0 %v5846
        %5969 = vmatprep.subr.bf16.mxu0 0
        %5970 = vmatpush1.bf16.msra.mxu0 0
        %5971 = vmatprep.subr.bf16.mxu0 0
        %5972 = vmatpush1.bf16.msra.mxu0 0
        %5973 = vmatprep.subr.bf16.mxu0 0
        %5974 = vmatpush1.bf16.msra.mxu0 0
        %5975 = vmatprep.subr.bf16.mxu0 0
        %5976 = vmatpush1.bf16.msra.mxu0 0
        %5977 = vmatprep.subr.bf16.mxu0 0
        %5978 = vmatpush1.bf16.msra.mxu0 0
        %5979 = vmatprep.subr.bf16.mxu0 0
        %5980 = vmatpush1.bf16.msra.mxu0 0
        %5981 = vmatprep.subr.bf16.mxu0 0
        %5982 = vmatpush1.bf16.msra.mxu0 0
        %5983 = vmatprep.subr.bf16.mxu0 0
        %5984 = vmatpush1.bf16.msra.mxu0 0
        %5985 = vmatprep.subr.bf16.mxu0 0
        %5986 = vmatpush1.bf16.msra.mxu0 0
        %5987 = vmatprep.subr.bf16.mxu0 0
        %5988 = vmatpush1.bf16.msra.mxu0 0
        %5989 = vmatprep.subr.bf16.mxu0 0
        %5990 = vmatpush1.bf16.msra.mxu0 0
        %5991 = vmatprep.subr.bf16.mxu0 0
        %5992 = vmatpush1.bf16.msra.mxu0 0
        %5993 = vmatprep.subr.bf16.mxu0 0
        %5994 = vmatpush1.bf16.msra.mxu0 0
        %5995 = vmatprep.subr.bf16.mxu0 0
        %5996 = vmatpush1.bf16.msra.mxu0 0
        %5997 = vmatprep.mubr.bf16.mxu0 0
        %5998 = vmatmul.mubr.bf16.gmra.mrb[0].mxu0 %v5960
        %v5999 = vpop.f32.mrb[0].mxu0
        %v6000 = vadd.f32 0.0, %v5999
        %v6001 = vpop.f32.mrb[0].mxu0
        %v6002 = vadd.f32 0.0, %v6001
        %v6003 = vpop.f32.mrb[0].mxu0
        %v6004 = vadd.f32 0.0, %v6003
        %v6005 = vpop.f32.mrb[0].mxu0
        %v6006 = vadd.f32 0.0, %v6005
        %6007 = vdwg.mxu0
        %6008 = vmatprep.subr.bf16.mxu0 %v5833
        %6009 = vmatpush1.bf16.msra.mxu0 %v5832
        %6010 = vmatprep.subr.bf16.mxu0 %v5855
        %6011 = vmatpush1.bf16.msra.mxu0 %v5852
        %6012 = vmatprep.subr.bf16.mxu0 0
        %6013 = vmatpush1.bf16.msra.mxu0 0
        %6014 = vmatprep.subr.bf16.mxu0 0
        %6015 = vmatpush1.bf16.msra.mxu0 0
        %6016 = vmatprep.subr.bf16.mxu0 0
        %6017 = vmatpush1.bf16.msra.mxu0 0
        %6018 = vmatprep.subr.bf16.mxu0 0
        %6019 = vmatpush1.bf16.msra.mxu0 0
        %6020 = vmatprep.subr.bf16.mxu0 0
        %6021 = vmatpush1.bf16.msra.mxu0 0
        %6022 = vmatprep.subr.bf16.mxu0 0
        %6023 = vmatpush1.bf16.msra.mxu0 0
        %6024 = vmatprep.subr.bf16.mxu0 0
        %6025 = vmatpush1.bf16.msra.mxu0 0
        %6026 = vmatprep.subr.bf16.mxu0 0
        %6027 = vmatpush1.bf16.msra.mxu0 0
        %6028 = vmatprep.subr.bf16.mxu0 0
        %6029 = vmatpush1.bf16.msra.mxu0 0
        %6030 = vmatprep.subr.bf16.mxu0 0
        %6031 = vmatpush1.bf16.msra.mxu0 0
        %6032 = vmatprep.subr.bf16.mxu0 0
        %6033 = vmatpush1.bf16.msra.mxu0 0
        %6034 = vmatprep.subr.bf16.mxu0 0
        %6035 = vmatpush1.bf16.msra.mxu0 0
        %6036 = vmatprep.subr.bf16.mxu0 0
        %6037 = vmatpush1.bf16.msra.mxu0 0
        %6038 = vmatprep.subr.bf16.mxu0 0
        %6039 = vmatpush1.bf16.msra.mxu0 0
        %6040 = vmatprep.mubr.bf16.mxu0 0
        %6041 = vmatmul.mubr.bf16.gmra.mrb[0].mxu0 %v5960
        %v6042 = vpop.f32.mrb[0].mxu0
        %v6043 = vadd.f32 0.0, %v6042
        %v6044 = vpop.f32.mrb[0].mxu0
        %v6045 = vadd.f32 0.0, %v6044
        %v6046 = vpop.f32.mrb[0].mxu0
        %v6047 = vadd.f32 0.0, %v6046
        %v6048 = vpop.f32.mrb[0].mxu0
        %v6049 = vadd.f32 0.0, %v6048
        %6050 = vdwg.mxu0
        %6051 = vmatprep.subr.bf16.mxu0 0
        %6052 = vmatpush1.bf16.msra.mxu0 %v5956
        %6053 = vmatprep.subr.bf16.mxu0 0
        %6054 = vmatpush1.bf16.msra.mxu0 %v5963
        %6055 = vmatprep.subr.bf16.mxu0 0
        %6056 = vmatpush1.bf16.msra.mxu0 0
        %6057 = vmatprep.subr.bf16.mxu0 0
        %6058 = vmatpush1.bf16.msra.mxu0 0
        %6059 = vmatprep.subr.bf16.mxu0 0
        %6060 = vmatpush1.bf16.msra.mxu0 0
        %6061 = vmatprep.subr.bf16.mxu0 0
        %6062 = vmatpush1.bf16.msra.mxu0 0
        %6063 = vmatprep.subr.bf16.mxu0 0
        %6064 = vmatpush1.bf16.msra.mxu0 0
        %6065 = vmatprep.subr.bf16.mxu0 0
        %6066 = vmatpush1.bf16.msra.mxu0 0
        %6067 = vmatprep.subr.bf16.mxu0 0
        %6068 = vmatpush1.bf16.msra.mxu0 0
        %6069 = vmatprep.subr.bf16.mxu0 0
        %6070 = vmatpush1.bf16.msra.mxu0 0
        %6071 = vmatprep.subr.bf16.mxu0 0
        %6072 = vmatpush1.bf16.msra.mxu0 0
        %6073 = vmatprep.subr.bf16.mxu0 0
        %6074 = vmatpush1.bf16.msra.mxu0 0
        %6075 = vmatprep.subr.bf16.mxu0 0
        %6076 = vmatpush1.bf16.msra.mxu0 0
        %6077 = vmatprep.subr.bf16.mxu0 0
        %6078 = vmatpush1.bf16.msra.mxu0 0
        %6079 = vmatprep.subr.bf16.mxu0 0
        %6080 = vmatpush1.bf16.msra.mxu0 0
        %6081 = vmatprep.subr.bf16.mxu0 0
        %6082 = vmatpush1.bf16.msra.mxu0 0
        %6083 = vmatprep.mubr.bf16.mxu0 0
        %6084 = vmatmul.mubr.bf16.gmra.mrb[0].mxu0 %v5960
        %v6085 = vpop.f32.mrb[0].mxu0
        %v6086 = vadd.f32 0.0, %v6085
        %v6087 = vpop.f32.mrb[0].mxu0
        %v6088 = vpop.f32.mrb[0].mxu0
        %v6089 = vadd.f32 0.0, %v6088
        %v6090 = vpop.f32.mrb[0].mxu0
        %6091 = vdwg.mxu0
        %6092 = vrot.lane.b32.xlu0 %v6000, 99
        %v6093 = vpop.permute.xlu0 %6092
        %6094 = vrot.lane.b32.xlu0 %v6004, 99
        %v6095 = vpop.permute.xlu0 %6094
        %6096 = vrot.lane.b32.xlu0 %v6002, 99
        %v6097 = vpop.permute.xlu0 %6096
        %6098 = vrot.lane.b32.xlu0 %v6006, 99
        %v6099 = vpop.permute.xlu0 %6098
        %6100 = vrot.lane.b32.xlu0 %v6043, 99
        %v6101 = vpop.permute.xlu0 %6100
        %6102 = vrot.lane.b32.xlu0 %v6047, 99
        %v6103 = vpop.permute.xlu0 %6102
        %6104 = vrot.lane.b32.xlu0 %v6045, 99
        %v6105 = vpop.permute.xlu0 %6104
        %6106 = vrot.lane.b32.xlu0 %v6049, 99
        %v6107 = vpop.permute.xlu0 %6106
        %6108 = vrot.lane.b32.xlu0 %v6086, 99
        %v6109 = vpop.permute.xlu0 %6108
        %6110 = vrot.lane.b32.xlu0 %v6089, 99
        %v6111 = vpop.permute.xlu0 %6110
        %v6112 = vsel %vm532, %v6105, %v6109
        %v6113 = vsel %vm532, %v6107, %v6111
        %v6114 = vsel %vm532, %v6101, %v6105
        %v6115 = vsel %vm532, %v6103, %v6107
        %v6116 = vsel %vm532, %v6097, %v6101
        %v6117 = vsel %vm532, %v6099, %v6103
        %v6118 = vsel %vm532, %v6093, %v6097
        %v6119 = vsel %vm532, %v6095, %v6099
        %v6120 = vadd.f32 %v5892, %v6118
        %v6121 = vadd.f32 %v5894, %v6116
        %v6122 = vadd.f32 %v5935, %v6114
        %v6123 = vadd.f32 %v5937, %v6112
        %v6124 = vadd.f32 %v5896, %v6119
        %v6125 = vadd.f32 %v5898, %v6117
        %v6126 = vadd.f32 %v5939, %v6115
        %v6127 = vadd.f32 %v5941, %v6113
        %v6128 = vld [vmem:[%s549] sm:$0xf]
        %v6129 = vld [vmem:[%s549 + $0x4] sm:$0x3]
        %v6132 = vunpack.c.l.b16 %v6128
        %v6133 = vunpack.c.l.b16 %v6129
        %v6134 = vpack.c.b16 %v6133, %v6132
        %v6136 = vsel %vm254, %v6134, 0
        %6138 = vmatprep.subr.bf16.mxu0 %v5831
        %6139 = vmatpush1.bf16.msra.mxu0 %v5830
        %6140 = vmatprep.subr.bf16.mxu0 %v5849
        %6141 = vmatpush1.bf16.msra.mxu0 %v5846
        %6142 = vmatprep.subr.bf16.mxu0 0
        %6143 = vmatpush1.bf16.msra.mxu0 0
        %6144 = vmatprep.subr.bf16.mxu0 0
        %6145 = vmatpush1.bf16.msra.mxu0 0
        %6146 = vmatprep.subr.bf16.mxu0 0
        %6147 = vmatpush1.bf16.msra.mxu0 0
        %6148 = vmatprep.subr.bf16.mxu0 0
        %6149 = vmatpush1.bf16.msra.mxu0 0
        %6150 = vmatprep.subr.bf16.mxu0 0
        %6151 = vmatpush1.bf16.msra.mxu0 0
        %6152 = vmatprep.subr.bf16.mxu0 0
        %6153 = vmatpush1.bf16.msra.mxu0 0
        %6154 = vmatprep.subr.bf16.mxu0 0
        %6155 = vmatpush1.bf16.msra.mxu0 0
        %6156 = vmatprep.subr.bf16.mxu0 0
        %6157 = vmatpush1.bf16.msra.mxu0 0
        %6158 = vmatprep.subr.bf16.mxu0 0
        %6159 = vmatpush1.bf16.msra.mxu0 0
        %6160 = vmatprep.subr.bf16.mxu0 0
        %6161 = vmatpush1.bf16.msra.mxu0 0
        %6162 = vmatprep.subr.bf16.mxu0 0
        %6163 = vmatpush1.bf16.msra.mxu0 0
        %6164 = vmatprep.subr.bf16.mxu0 0
        %6165 = vmatpush1.bf16.msra.mxu0 0
        %6166 = vmatprep.subr.bf16.mxu0 0
        %6167 = vmatpush1.bf16.msra.mxu0 0
        %6168 = vmatprep.subr.bf16.mxu0 0
        %6169 = vmatpush1.bf16.msra.mxu0 0
        %6170 = vmatprep.mubr.bf16.mxu0 0
        %6171 = vmatmul.mubr.bf16.gmra.mrb[0].mxu0 %v6136
        %v6172 = vpop.f32.mrb[0].mxu0
        %v6173 = vadd.f32 0.0, %v6172
        %v6174 = vpop.f32.mrb[0].mxu0
        %v6175 = vadd.f32 0.0, %v6174
        %v6176 = vpop.f32.mrb[0].mxu0
        %v6177 = vadd.f32 0.0, %v6176
        %v6178 = vpop.f32.mrb[0].mxu0
        %v6179 = vadd.f32 0.0, %v6178
        %6180 = vdwg.mxu0
        %6181 = vmatprep.subr.bf16.mxu0 %v5833
        %6182 = vmatpush1.bf16.msra.mxu0 %v5832
        %6183 = vmatprep.subr.bf16.mxu0 %v5855
        %6184 = vmatpush1.bf16.msra.mxu0 %v5852
        %6185 = vmatprep.subr.bf16.mxu0 0
        %6186 = vmatpush1.bf16.msra.mxu0 0
        %6187 = vmatprep.subr.bf16.mxu0 0
        %6188 = vmatpush1.bf16.msra.mxu0 0
        %6189 = vmatprep.subr.bf16.mxu0 0
        %6190 = vmatpush1.bf16.msra.mxu0 0
        %6191 = vmatprep.subr.bf16.mxu0 0
        %6192 = vmatpush1.bf16.msra.mxu0 0
        %6193 = vmatprep.subr.bf16.mxu0 0
        %6194 = vmatpush1.bf16.msra.mxu0 0
        %6195 = vmatprep.subr.bf16.mxu0 0
        %6196 = vmatpush1.bf16.msra.mxu0 0
        %6197 = vmatprep.subr.bf16.mxu0 0
        %6198 = vmatpush1.bf16.msra.mxu0 0
        %6199 = vmatprep.subr.bf16.mxu0 0
        %6200 = vmatpush1.bf16.msra.mxu0 0
        %6201 = vmatprep.subr.bf16.mxu0 0
        %6202 = vmatpush1.bf16.msra.mxu0 0
        %6203 = vmatprep.subr.bf16.mxu0 0
        %6204 = vmatpush1.bf16.msra.mxu0 0
        %6205 = vmatprep.subr.bf16.mxu0 0
        %6206 = vmatpush1.bf16.msra.mxu0 0
        %6207 = vmatprep.subr.bf16.mxu0 0
        %6208 = vmatpush1.bf16.msra.mxu0 0
        %6209 = vmatprep.subr.bf16.mxu0 0
        %6210 = vmatpush1.bf16.msra.mxu0 0
        %6211 = vmatprep.subr.bf16.mxu0 0
        %6212 = vmatpush1.bf16.msra.mxu0 0
        %6213 = vmatprep.mubr.bf16.mxu0 0
        %6214 = vmatmul.mubr.bf16.gmra.mrb[0].mxu0 %v6136
        %v6215 = vpop.f32.mrb[0].mxu0
        %v6216 = vadd.f32 0.0, %v6215
        %v6217 = vpop.f32.mrb[0].mxu0
        %v6218 = vadd.f32 0.0, %v6217
        %v6219 = vpop.f32.mrb[0].mxu0
        %v6220 = vadd.f32 0.0, %v6219
        %v6221 = vpop.f32.mrb[0].mxu0
        %v6222 = vadd.f32 0.0, %v6221
        %6223 = vdwg.mxu0
        %6224 = vmatprep.subr.bf16.mxu0 0
        %6225 = vmatpush1.bf16.msra.mxu0 %v5956
        %6226 = vmatprep.subr.bf16.mxu0 0
        %6227 = vmatpush1.bf16.msra.mxu0 %v5963
        %6228 = vmatprep.subr.bf16.mxu0 0
        %6229 = vmatpush1.bf16.msra.mxu0 0
        %6230 = vmatprep.subr.bf16.mxu0 0
        %6231 = vmatpush1.bf16.msra.mxu0 0
        %6232 = vmatprep.subr.bf16.mxu0 0
        %6233 = vmatpush1.bf16.msra.mxu0 0
        %6234 = vmatprep.subr.bf16.mxu0 0
        %6235 = vmatpush1.bf16.msra.mxu0 0
        %6236 = vmatprep.subr.bf16.mxu0 0
        %6237 = vmatpush1.bf16.msra.mxu0 0
        %6238 = vmatprep.subr.bf16.mxu0 0
        %6239 = vmatpush1.bf16.msra.mxu0 0
        %6240 = vmatprep.subr.bf16.mxu0 0
        %6241 = vmatpush1.bf16.msra.mxu0 0
        %6242 = vmatprep.subr.bf16.mxu0 0
        %6243 = vmatpush1.bf16.msra.mxu0 0
        %6244 = vmatprep.subr.bf16.mxu0 0
        %6245 = vmatpush1.bf16.msra.mxu0 0
        %6246 = vmatprep.subr.bf16.mxu0 0
        %6247 = vmatpush1.bf16.msra.mxu0 0
        %6248 = vmatprep.subr.bf16.mxu0 0
        %6249 = vmatpush1.bf16.msra.mxu0 0
        %6250 = vmatprep.subr.bf16.mxu0 0
        %6251 = vmatpush1.bf16.msra.mxu0 0
        %6252 = vmatprep.subr.bf16.mxu0 0
        %6253 = vmatpush1.bf16.msra.mxu0 0
        %6254 = vmatprep.subr.bf16.mxu0 0
        %6255 = vmatpush1.bf16.msra.mxu0 0
        %6256 = vmatprep.mubr.bf16.mxu0 0
        %6257 = vmatmul.mubr.bf16.gmra.mrb[0].mxu0 %v6136
        %v6258 = vpop.f32.mrb[0].mxu0
        %v6259 = vadd.f32 0.0, %v6258
        %v6260 = vpop.f32.mrb[0].mxu0
        %v6261 = vpop.f32.mrb[0].mxu0
        %v6262 = vadd.f32 0.0, %v6261
        %v6263 = vpop.f32.mrb[0].mxu0
        %6264 = vdwg.mxu0
        %6265 = vrot.lane.b32.xlu0 %v6173, 70
        %v6266 = vpop.permute.xlu0 %6265
        %6267 = vrot.lane.b32.xlu0 %v6177, 70
        %v6268 = vpop.permute.xlu0 %6267
        %6269 = vrot.lane.b32.xlu0 %v6175, 70
        %v6270 = vpop.permute.xlu0 %6269
        %6271 = vrot.lane.b32.xlu0 %v6179, 70
        %v6272 = vpop.permute.xlu0 %6271
        %6273 = vrot.lane.b32.xlu0 %v6216, 70
        %v6274 = vpop.permute.xlu0 %6273
        %6275 = vrot.lane.b32.xlu0 %v6220, 70
        %v6276 = vpop.permute.xlu0 %6275
        %6277 = vrot.lane.b32.xlu0 %v6218, 70
        %v6278 = vpop.permute.xlu0 %6277
        %6279 = vrot.lane.b32.xlu0 %v6222, 70
        %v6280 = vpop.permute.xlu0 %6279
        %6281 = vrot.lane.b32.xlu0 %v6259, 70
        %v6282 = vpop.permute.xlu0 %6281
        %6283 = vrot.lane.b32.xlu0 %v6262, 70
        %v6284 = vpop.permute.xlu0 %6283
        %v6285 = vsel %vm707, %v6278, %v6282
        %v6286 = vsel %vm707, %v6280, %v6284
        %v6287 = vsel %vm707, %v6274, %v6278
        %v6288 = vsel %vm707, %v6276, %v6280
        %v6289 = vsel %vm707, %v6270, %v6274
        %v6290 = vsel %vm707, %v6272, %v6276
        %v6291 = vsel %vm707, %v6266, %v6270
        %v6292 = vsel %vm707, %v6268, %v6272
        %v6293 = vadd.f32 %v6120, %v6291
        %v6294 = vadd.f32 %v6121, %v6289
        %v6295 = vadd.f32 %v6122, %v6287
        %v6296 = vadd.f32 %v6123, %v6285
        %v6297 = vadd.f32 %v6124, %v6292
        %v6298 = vadd.f32 %v6125, %v6290
        %v6299 = vadd.f32 %v6126, %v6288
        %v6300 = vadd.f32 %v6127, %v6286
        %v6301 = vld [vmem:[%s724] sm:$0xf]
        %v6302 = vld [vmem:[%s724 + $0x4] sm:$0x3]
        %v6305 = vunpack.c.l.b16 %v6301
        %v6306 = vunpack.c.l.b16 %v6302
        %v6307 = vpack.c.b16 %v6306, %v6305
        %v6309 = vsel %vm254, %v6307, 0
        %6311 = vmatprep.subr.bf16.mxu0 %v5831
        %6312 = vmatpush1.bf16.msra.mxu0 %v5830
        %6313 = vmatprep.subr.bf16.mxu0 %v5849
        %6314 = vmatpush1.bf16.msra.mxu0 %v5846
        %6315 = vmatprep.subr.bf16.mxu0 0
        %6316 = vmatpush1.bf16.msra.mxu0 0
        %6317 = vmatprep.subr.bf16.mxu0 0
        %6318 = vmatpush1.bf16.msra.mxu0 0
        %6319 = vmatprep.subr.bf16.mxu0 0
        %6320 = vmatpush1.bf16.msra.mxu0 0
        %6321 = vmatprep.subr.bf16.mxu0 0
        %6322 = vmatpush1.bf16.msra.mxu0 0
        %6323 = vmatprep.subr.bf16.mxu0 0
        %6324 = vmatpush1.bf16.msra.mxu0 0
        %6325 = vmatprep.subr.bf16.mxu0 0
        %6326 = vmatpush1.bf16.msra.mxu0 0
        %6327 = vmatprep.subr.bf16.mxu0 0
        %6328 = vmatpush1.bf16.msra.mxu0 0
        %6329 = vmatprep.subr.bf16.mxu0 0
        %6330 = vmatpush1.bf16.msra.mxu0 0
        %6331 = vmatprep.subr.bf16.mxu0 0
        %6332 = vmatpush1.bf16.msra.mxu0 0
        %6333 = vmatprep.subr.bf16.mxu0 0
        %6334 = vmatpush1.bf16.msra.mxu0 0
        %6335 = vmatprep.subr.bf16.mxu0 0
        %6336 = vmatpush1.bf16.msra.mxu0 0
        %6337 = vmatprep.subr.bf16.mxu0 0
        %6338 = vmatpush1.bf16.msra.mxu0 0
        %6339 = vmatprep.subr.bf16.mxu0 0
        %6340 = vmatpush1.bf16.msra.mxu0 0
        %6341 = vmatprep.subr.bf16.mxu0 0
        %6342 = vmatpush1.bf16.msra.mxu0 0
        %6343 = vmatprep.mubr.bf16.mxu0 0
        %6344 = vmatmul.mubr.bf16.gmra.mrb[0].mxu0 %v6309
        %v6345 = vpop.f32.mrb[0].mxu0
        %v6346 = vadd.f32 0.0, %v6345
        %v6347 = vpop.f32.mrb[0].mxu0
        %v6348 = vadd.f32 0.0, %v6347
        %v6349 = vpop.f32.mrb[0].mxu0
        %v6350 = vadd.f32 0.0, %v6349
        %v6351 = vpop.f32.mrb[0].mxu0
        %v6352 = vadd.f32 0.0, %v6351
        %6353 = vdwg.mxu0
        %6354 = vmatprep.subr.bf16.mxu0 %v5833
        %6355 = vmatpush1.bf16.msra.mxu0 %v5832
        %6356 = vmatprep.subr.bf16.mxu0 %v5855
        %6357 = vmatpush1.bf16.msra.mxu0 %v5852
        %6358 = vmatprep.subr.bf16.mxu0 0
        %6359 = vmatpush1.bf16.msra.mxu0 0
        %6360 = vmatprep.subr.bf16.mxu0 0
        %6361 = vmatpush1.bf16.msra.mxu0 0
        %6362 = vmatprep.subr.bf16.mxu0 0
        %6363 = vmatpush1.bf16.msra.mxu0 0
        %6364 = vmatprep.subr.bf16.mxu0 0
        %6365 = vmatpush1.bf16.msra.mxu0 0
        %6366 = vmatprep.subr.bf16.mxu0 0
        %6367 = vmatpush1.bf16.msra.mxu0 0
        %6368 = vmatprep.subr.bf16.mxu0 0
        %6369 = vmatpush1.bf16.msra.mxu0 0
        %6370 = vmatprep.subr.bf16.mxu0 0
        %6371 = vmatpush1.bf16.msra.mxu0 0
        %6372 = vmatprep.subr.bf16.mxu0 0
        %6373 = vmatpush1.bf16.msra.mxu0 0
        %6374 = vmatprep.subr.bf16.mxu0 0
        %6375 = vmatpush1.bf16.msra.mxu0 0
        %6376 = vmatprep.subr.bf16.mxu0 0
        %6377 = vmatpush1.bf16.msra.mxu0 0
        %6378 = vmatprep.subr.bf16.mxu0 0
        %6379 = vmatpush1.bf16.msra.mxu0 0
        %6380 = vmatprep.subr.bf16.mxu0 0
        %6381 = vmatpush1.bf16.msra.mxu0 0
        %6382 = vmatprep.subr.bf16.mxu0 0
        %6383 = vmatpush1.bf16.msra.mxu0 0
        %6384 = vmatprep.subr.bf16.mxu0 0
        %6385 = vmatpush1.bf16.msra.mxu0 0
        %6386 = vmatprep.mubr.bf16.mxu0 0
        %6387 = vmatmul.mubr.bf16.gmra.mrb[0].mxu0 %v6309
        %v6388 = vpop.f32.mrb[0].mxu0
        %v6389 = vadd.f32 0.0, %v6388
        %v6390 = vpop.f32.mrb[0].mxu0
        %v6391 = vadd.f32 0.0, %v6390
        %v6392 = vpop.f32.mrb[0].mxu0
        %v6393 = vadd.f32 0.0, %v6392
        %v6394 = vpop.f32.mrb[0].mxu0
        %v6395 = vadd.f32 0.0, %v6394
        %6396 = vdwg.mxu0
        %6397 = vmatprep.subr.bf16.mxu0 0
        %6398 = vmatpush1.bf16.msra.mxu0 %v5956
        %6399 = vmatprep.subr.bf16.mxu0 0
        %6400 = vmatpush1.bf16.msra.mxu0 %v5963
        %6401 = vmatprep.subr.bf16.mxu0 0
        %6402 = vmatpush1.bf16.msra.mxu0 0
        %6403 = vmatprep.subr.bf16.mxu0 0
        %6404 = vmatpush1.bf16.msra.mxu0 0
        %6405 = vmatprep.subr.bf16.mxu0 0
        %6406 = vmatpush1.bf16.msra.mxu0 0
        %6407 = vmatprep.subr.bf16.mxu0 0
        %6408 = vmatpush1.bf16.msra.mxu0 0
        %6409 = vmatprep.subr.bf16.mxu0 0
        %6410 = vmatpush1.bf16.msra.mxu0 0
        %6411 = vmatprep.subr.bf16.mxu0 0
        %6412 = vmatpush1.bf16.msra.mxu0 0
        %6413 = vmatprep.subr.bf16.mxu0 0
        %6414 = vmatpush1.bf16.msra.mxu0 0
        %6415 = vmatprep.subr.bf16.mxu0 0
        %6416 = vmatpush1.bf16.msra.mxu0 0
        %6417 = vmatprep.subr.bf16.mxu0 0
        %6418 = vmatpush1.bf16.msra.mxu0 0
        %6419 = vmatprep.subr.bf16.mxu0 0
        %6420 = vmatpush1.bf16.msra.mxu0 0
        %6421 = vmatprep.subr.bf16.mxu0 0
        %6422 = vmatpush1.bf16.msra.mxu0 0
        %6423 = vmatprep.subr.bf16.mxu0 0
        %6424 = vmatpush1.bf16.msra.mxu0 0
        %6425 = vmatprep.subr.bf16.mxu0 0
        %6426 = vmatpush1.bf16.msra.mxu0 0
        %6427 = vmatprep.subr.bf16.mxu0 0
        %6428 = vmatpush1.bf16.msra.mxu0 0
        %6429 = vmatprep.mubr.bf16.mxu0 0
        %6430 = vmatmul.mubr.bf16.gmra.mrb[0].mxu0 %v6309
        %v6431 = vpop.f32.mrb[0].mxu0
        %v6432 = vadd.f32 0.0, %v6431
        %v6433 = vpop.f32.mrb[0].mxu0
        %v6434 = vpop.f32.mrb[0].mxu0
        %v6435 = vadd.f32 0.0, %v6434
        %v6436 = vpop.f32.mrb[0].mxu0
        %6437 = vdwg.mxu0
        %6438 = vrot.lane.b32.xlu0 %v6346, 41
        %v6439 = vpop.permute.xlu0 %6438
        %6440 = vrot.lane.b32.xlu0 %v6350, 41
        %v6441 = vpop.permute.xlu0 %6440
        %6442 = vrot.lane.b32.xlu0 %v6348, 41
        %v6443 = vpop.permute.xlu0 %6442
        %6444 = vrot.lane.b32.xlu0 %v6352, 41
        %v6445 = vpop.permute.xlu0 %6444
        %6446 = vrot.lane.b32.xlu0 %v6389, 41
        %v6447 = vpop.permute.xlu0 %6446
        %6448 = vrot.lane.b32.xlu0 %v6393, 41
        %v6449 = vpop.permute.xlu0 %6448
        %6450 = vrot.lane.b32.xlu0 %v6391, 41
        %v6451 = vpop.permute.xlu0 %6450
        %6452 = vrot.lane.b32.xlu0 %v6395, 41
        %v6453 = vpop.permute.xlu0 %6452
        %6454 = vrot.lane.b32.xlu0 %v6432, 41
        %v6455 = vpop.permute.xlu0 %6454
        %6456 = vrot.lane.b32.xlu0 %v6435, 41
        %v6457 = vpop.permute.xlu0 %6456
        %v6458 = vsel %vm882, %v6451, %v6455
        %v6459 = vsel %vm882, %v6453, %v6457
        %v6460 = vsel %vm882, %v6447, %v6451
        %v6461 = vsel %vm882, %v6449, %v6453
        %v6462 = vsel %vm882, %v6443, %v6447
        %v6463 = vsel %vm882, %v6445, %v6449
        %v6464 = vsel %vm882, %v6439, %v6443
        %v6465 = vsel %vm882, %v6441, %v6445
        %v6466 = vadd.f32 %v6293, %v6464
        %v6467 = vadd.f32 %v6294, %v6462
        %v6468 = vadd.f32 %v6295, %v6460
        %v6469 = vadd.f32 %v6296, %v6458
        %v6470 = vadd.f32 %v6297, %v6465
        %v6471 = vadd.f32 %v6298, %v6463
        %v6472 = vadd.f32 %v6299, %v6461
        %v6473 = vadd.f32 %v6300, %v6459
        %v6474 = vld [vmem:[%s899] sm:$0xf]
        %v6475 = vld [vmem:[%s899 + $0x4] sm:$0x3]
        %v6478 = vunpack.c.l.b16 %v6474
        %v6479 = vunpack.c.l.b16 %v6475
        %v6480 = vpack.c.b16 %v6479, %v6478
        %v6482 = vsel %vm254, %v6480, 0
        %6484 = vmatprep.subr.bf16.mxu0 %v5831
        %6485 = vmatpush1.bf16.msra.mxu0 %v5830
        %6486 = vmatprep.subr.bf16.mxu0 %v5849
        %6487 = vmatpush1.bf16.msra.mxu0 %v5846
        %6488 = vmatprep.subr.bf16.mxu0 0
        %6489 = vmatpush1.bf16.msra.mxu0 0
        %6490 = vmatprep.subr.bf16.mxu0 0
        %6491 = vmatpush1.bf16.msra.mxu0 0
        %6492 = vmatprep.subr.bf16.mxu0 0
        %6493 = vmatpush1.bf16.msra.mxu0 0
        %6494 = vmatprep.subr.bf16.mxu0 0
        %6495 = vmatpush1.bf16.msra.mxu0 0
        %6496 = vmatprep.subr.bf16.mxu0 0
        %6497 = vmatpush1.bf16.msra.mxu0 0
        %6498 = vmatprep.subr.bf16.mxu0 0
        %6499 = vmatpush1.bf16.msra.mxu0 0
        %6500 = vmatprep.subr.bf16.mxu0 0
        %6501 = vmatpush1.bf16.msra.mxu0 0
        %6502 = vmatprep.subr.bf16.mxu0 0
        %6503 = vmatpush1.bf16.msra.mxu0 0
        %6504 = vmatprep.subr.bf16.mxu0 0
        %6505 = vmatpush1.bf16.msra.mxu0 0
        %6506 = vmatprep.subr.bf16.mxu0 0
        %6507 = vmatpush1.bf16.msra.mxu0 0
        %6508 = vmatprep.subr.bf16.mxu0 0
        %6509 = vmatpush1.bf16.msra.mxu0 0
        %6510 = vmatprep.subr.bf16.mxu0 0
        %6511 = vmatpush1.bf16.msra.mxu0 0
        %6512 = vmatprep.subr.bf16.mxu0 0
        %6513 = vmatpush1.bf16.msra.mxu0 0
        %6514 = vmatprep.subr.bf16.mxu0 0
        %6515 = vmatpush1.bf16.msra.mxu0 0
        %6516 = vmatprep.mubr.bf16.mxu0 0
        %6517 = vmatmul.mubr.bf16.gmra.mrb[0].mxu0 %v6482
        %v6518 = vpop.f32.mrb[0].mxu0
        %v6519 = vadd.f32 0.0, %v6518
        %v6520 = vpop.f32.mrb[0].mxu0
        %v6521 = vadd.f32 0.0, %v6520
        %v6522 = vpop.f32.mrb[0].mxu0
        %v6523 = vadd.f32 0.0, %v6522
        %v6524 = vpop.f32.mrb[0].mxu0
        %v6525 = vadd.f32 0.0, %v6524
        %6526 = vdwg.mxu0
        %6527 = vmatprep.subr.bf16.mxu0 %v5833
        %6528 = vmatpush1.bf16.msra.mxu0 %v5832
        %6529 = vmatprep.subr.bf16.mxu0 %v5855
        %6530 = vmatpush1.bf16.msra.mxu0 %v5852
        %6531 = vmatprep.subr.bf16.mxu0 0
        %6532 = vmatpush1.bf16.msra.mxu0 0
        %6533 = vmatprep.subr.bf16.mxu0 0
        %6534 = vmatpush1.bf16.msra.mxu0 0
        %6535 = vmatprep.subr.bf16.mxu0 0
        %6536 = vmatpush1.bf16.msra.mxu0 0
        %6537 = vmatprep.subr.bf16.mxu0 0
        %6538 = vmatpush1.bf16.msra.mxu0 0
        %6539 = vmatprep.subr.bf16.mxu0 0
        %6540 = vmatpush1.bf16.msra.mxu0 0
        %6541 = vmatprep.subr.bf16.mxu0 0
        %6542 = vmatpush1.bf16.msra.mxu0 0
        %6543 = vmatprep.subr.bf16.mxu0 0
        %6544 = vmatpush1.bf16.msra.mxu0 0
        %6545 = vmatprep.subr.bf16.mxu0 0
        %6546 = vmatpush1.bf16.msra.mxu0 0
        %6547 = vmatprep.subr.bf16.mxu0 0
        %6548 = vmatpush1.bf16.msra.mxu0 0
        %6549 = vmatprep.subr.bf16.mxu0 0
        %6550 = vmatpush1.bf16.msra.mxu0 0
        %6551 = vmatprep.subr.bf16.mxu0 0
        %6552 = vmatpush1.bf16.msra.mxu0 0
        %6553 = vmatprep.subr.bf16.mxu0 0
        %6554 = vmatpush1.bf16.msra.mxu0 0
        %6555 = vmatprep.subr.bf16.mxu0 0
        %6556 = vmatpush1.bf16.msra.mxu0 0
        %6557 = vmatprep.subr.bf16.mxu0 0
        %6558 = vmatpush1.bf16.msra.mxu0 0
        %6559 = vmatprep.mubr.bf16.mxu0 0
        %6560 = vmatmul.mubr.bf16.gmra.mrb[0].mxu0 %v6482
        %v6561 = vpop.f32.mrb[0].mxu0
        %v6562 = vadd.f32 0.0, %v6561
        %v6563 = vpop.f32.mrb[0].mxu0
        %v6564 = vadd.f32 0.0, %v6563
        %v6565 = vpop.f32.mrb[0].mxu0
        %v6566 = vadd.f32 0.0, %v6565
        %v6567 = vpop.f32.mrb[0].mxu0
        %v6568 = vadd.f32 0.0, %v6567
        %6569 = vdwg.mxu0
        %6570 = vmatprep.subr.bf16.mxu0 0
        %6571 = vmatpush1.bf16.msra.mxu0 %v5956
        %6572 = vmatprep.subr.bf16.mxu0 0
        %6573 = vmatpush1.bf16.msra.mxu0 %v5963
        %6574 = vmatprep.subr.bf16.mxu0 0
        %6575 = vmatpush1.bf16.msra.mxu0 0
        %6576 = vmatprep.subr.bf16.mxu0 0
        %6577 = vmatpush1.bf16.msra.mxu0 0
        %6578 = vmatprep.subr.bf16.mxu0 0
        %6579 = vmatpush1.bf16.msra.mxu0 0
        %6580 = vmatprep.subr.bf16.mxu0 0
        %6581 = vmatpush1.bf16.msra.mxu0 0
        %6582 = vmatprep.subr.bf16.mxu0 0
        %6583 = vmatpush1.bf16.msra.mxu0 0
        %6584 = vmatprep.subr.bf16.mxu0 0
        %6585 = vmatpush1.bf16.msra.mxu0 0
        %6586 = vmatprep.subr.bf16.mxu0 0
        %6587 = vmatpush1.bf16.msra.mxu0 0
        %6588 = vmatprep.subr.bf16.mxu0 0
        %6589 = vmatpush1.bf16.msra.mxu0 0
        %6590 = vmatprep.subr.bf16.mxu0 0
        %6591 = vmatpush1.bf16.msra.mxu0 0
        %6592 = vmatprep.subr.bf16.mxu0 0
        %6593 = vmatpush1.bf16.msra.mxu0 0
        %6594 = vmatprep.subr.bf16.mxu0 0
        %6595 = vmatpush1.bf16.msra.mxu0 0
        %6596 = vmatprep.subr.bf16.mxu0 0
        %6597 = vmatpush1.bf16.msra.mxu0 0
        %6598 = vmatprep.subr.bf16.mxu0 0
        %6599 = vmatpush1.bf16.msra.mxu0 0
        %6600 = vmatprep.subr.bf16.mxu0 0
        %6601 = vmatpush1.bf16.msra.mxu0 0
        %6602 = vmatprep.mubr.bf16.mxu0 0
        %6603 = vmatmul.mubr.bf16.gmra.mrb[0].mxu0 %v6482
        %v6604 = vpop.f32.mrb[0].mxu0
        %v6605 = vadd.f32 0.0, %v6604
        %v6606 = vpop.f32.mrb[0].mxu0
        %v6607 = vpop.f32.mrb[0].mxu0
        %v6608 = vadd.f32 0.0, %v6607
        %v6609 = vpop.f32.mrb[0].mxu0
        %6610 = vdwg.mxu0
        %6611 = vrot.lane.b32.xlu0 %v6519, 12
        %v6612 = vpop.permute.xlu0 %6611
        %6613 = vrot.lane.b32.xlu0 %v6523, 12
        %v6614 = vpop.permute.xlu0 %6613
        %6615 = vrot.lane.b32.xlu0 %v6521, 12
        %v6616 = vpop.permute.xlu0 %6615
        %6617 = vrot.lane.b32.xlu0 %v6525, 12
        %v6618 = vpop.permute.xlu0 %6617
        %6619 = vrot.lane.b32.xlu0 %v6562, 12
        %v6620 = vpop.permute.xlu0 %6619
        %6621 = vrot.lane.b32.xlu0 %v6566, 12
        %v6622 = vpop.permute.xlu0 %6621
        %6623 = vrot.lane.b32.xlu0 %v6564, 12
        %v6624 = vpop.permute.xlu0 %6623
        %6625 = vrot.lane.b32.xlu0 %v6568, 12
        %v6626 = vpop.permute.xlu0 %6625
        %6627 = vrot.lane.b32.xlu0 %v6605, 12
        %v6628 = vpop.permute.xlu0 %6627
        %6629 = vrot.lane.b32.xlu0 %v6608, 12
        %v6630 = vpop.permute.xlu0 %6629
        %v6631 = vsel %vm1057, %v6624, %v6628
        %v6632 = vsel %vm1057, %v6626, %v6630
        %v6633 = vsel %vm1057, %v6620, %v6624
        %v6634 = vsel %vm1057, %v6622, %v6626
        %v6635 = vsel %vm1057, %v6616, %v6620
        %v6636 = vsel %vm1057, %v6618, %v6622
        %v6637 = vsel %vm1057, %v6612, %v6616
        %v6638 = vsel %vm1057, %v6614, %v6618
        %v6639 = vadd.f32 %v6466, %v6637
        %v6640 = vadd.f32 %v6467, %v6635
        %v6641 = vadd.f32 %v6468, %v6633
        %v6642 = vadd.f32 %v6469, %v6631
        %v6643 = vadd.f32 %v6470, %v6638
        %v6644 = vadd.f32 %v6471, %v6636
        %v6645 = vadd.f32 %v6472, %v6634
        %v6646 = vadd.f32 %v6473, %v6632
        %v6647 = vld [vmem:[%s2] sm:$0xff]
        %v6648 = vld [vmem:[%s2 + $0x8] sm:$0xf]
        %6650 = vset.pattern.permute.xlu0 0
        %6651 = vperm.xlu0 %6650, %v6647
        %v6652 = vpop.permute.xlu0 %6651
        %6655 = vset.pattern.permute.xlu0 0
        %6656 = vperm.xlu0 %6655, %v6648
        %v6657 = vpop.permute.xlu0 %6656
        %v6659 = vadd.f32 %v6639, %v6652
        %v6660 = vadd.f32 %v6640, %v6652
        %v6661 = vadd.f32 %v6641, %v6652
        %v6662 = vadd.f32 %v6642, %v6652
        %v6663 = vadd.f32 %v6643, %v6657
        %v6664 = vadd.f32 %v6644, %v6657
        %v6665 = vadd.f32 %v6645, %v6657
        %v6666 = vadd.f32 %v6646, %v6657
        %vm6667 = vcmp.gt.f32.partialorder %v6659, 0.0
        %vm6668 = vcmp.gt.f32.partialorder %v6660, 0.0
        %vm6669 = vcmp.gt.f32.partialorder %v6661, 0.0
        %vm6670 = vcmp.gt.f32.partialorder %v6662, 0.0
        %vm6671 = vcmp.gt.f32.partialorder %v6663, 0.0
        %vm6672 = vcmp.gt.f32.partialorder %v6664, 0.0
        %vm6673 = vcmp.gt.f32.partialorder %v6665, 0.0
        %vm6674 = vcmp.gt.f32.partialorder %v6666, 0.0
        %v6675 = vmin.f32 %v6659, 0.0
        %v6676 = vmin.f32 %v6660, 0.0
        %v6677 = vmin.f32 %v6661, 0.0
        %v6678 = vmin.f32 %v6662, 0.0
        %v6679 = vmin.f32 %v6663, 0.0
        %v6680 = vmin.f32 %v6664, 0.0
        %v6681 = vmin.f32 %v6665, 0.0
        %v6682 = vmin.f32 %v6666, 0.0
        %v6683 = vmul.f32 %v6675, 1.442695
        %v6684 = vpow.pop %v6683
        %v6685 = vmul.f32 %v6676, 1.442695
        %v6686 = vpow.pop %v6685
        %v6687 = vmul.f32 %v6677, 1.442695
        %v6688 = vpow.pop %v6687
        %v6689 = vmul.f32 %v6678, 1.442695
        %v6690 = vpow.pop %v6689
        %v6691 = vmul.f32 %v6679, 1.442695
        %v6692 = vpow.pop %v6691
        %v6693 = vmul.f32 %v6680, 1.442695
        %v6694 = vpow.pop %v6693
        %v6695 = vmul.f32 %v6681, 1.442695
        %v6696 = vpow.pop %v6695
        %v6697 = vmul.f32 %v6682, 1.442695
        %v6698 = vpow.pop %v6697
        %v6699 = vsub.f32 %v6684, 1.0
        %v6700 = vsub.f32 %v6686, 1.0
        %v6701 = vsub.f32 %v6688, 1.0
        %v6702 = vsub.f32 %v6690, 1.0
        %v6703 = vsub.f32 %v6692, 1.0
        %v6704 = vsub.f32 %v6694, 1.0
        %v6705 = vsub.f32 %v6696, 1.0
        %v6706 = vsub.f32 %v6698, 1.0
        %v6707 = vsel %vm6667, %v6659, %v6699
        %v6708 = vsel %vm6668, %v6660, %v6700
        %v6709 = vsel %vm6669, %v6661, %v6701
        %v6710 = vsel %vm6670, %v6662, %v6702
        %v6711 = vsel %vm6671, %v6663, %v6703
        %v6712 = vsel %vm6672, %v6664, %v6704
        %v6713 = vsel %vm6673, %v6665, %v6705
        %v6714 = vsel %vm6674, %v6666, %v6706
        %s6715 = scalar_lea.vmem %s204, 384 [#allocation7]
        %6716 = vst [vmem:[%s6715] sm:$0xff] %v6707
        %6717 = vst [vmem:[%s6715 + $0x8] sm:$0xff] %v6708
        %6718 = vst [vmem:[%s6715 + $0x10] sm:$0xff] %v6709
        %6719 = vst [vmem:[%s6715 + $0x18] sm:$0xff] %v6710
        %6720 = vst [vmem:[%s6715 + $0x20] sm:$0xf] %v6711
        %6721 = vst [vmem:[%s6715 + $0x28] sm:$0xf] %v6712
        %6722 = vst [vmem:[%s6715 + $0x30] sm:$0xf] %v6713
        %6723 = vst [vmem:[%s6715 + $0x38] sm:$0xf] %v6714
        %s6724 = scalar_lea.vmem %s178, 420 [#allocation2]
        %v6725 = vld [vmem:[%s6724] sm:$0xff]
        %v6726 = vld [vmem:[%s6724 + $0x8] sm:$0xff]
        %v6727 = vld [vmem:[%s6724 + $0x10] sm:$0xf]
        %v6728 = vld [vmem:[%s6724 + $0x14] sm:$0xff]
        %v6729 = vld [vmem:[%s6724 + $0x1c] sm:$0xff]
        %v6730 = vld [vmem:[%s6724 + $0x24] sm:$0xf]
        %v6731 = vld [vmem:[%s6724 + $0x28] sm:$0x77]
        %v6732 = vld [vmem:[%s6724 + $0x30] sm:$0x77]
        %v6733 = vld [vmem:[%s6724 + $0x38] sm:$0x7]
        %v6734 = vld [vmem:[#allocation5] sm:$0xf]
        %v6735 = vld [vmem:[#allocation5 + $0x4] sm:$0x3]
        %v6738 = vunpack.c.l.b16 %v6734
        %v6739 = vunpack.c.l.b16 %v6735
        %v6740 = vpack.c.b16 %v6739, %v6738
        %v6747 = vunpack.c.l.b16 %v6725
        %v6748 = vunpack.c.h.b16 %v6725
        %v6749 = vunpack.c.l.b16 %v6726
        %v6750 = vunpack.c.h.b16 %v6726
        %v6751 = vunpack.c.l.b16 %v6728
        %v6752 = vunpack.c.h.b16 %v6728
        %v6753 = vunpack.c.l.b16 %v6729
        %v6754 = vunpack.c.h.b16 %v6729
        %v6755 = vunpack.c.l.b16 %v6731
        %v6756 = vunpack.c.h.b16 %v6731
        %v6757 = vunpack.c.l.b16 %v6732
        %v6758 = vunpack.c.h.b16 %v6732
        %v6759 = vpack.c.b16 %v6751, %v6747
        %v6760 = vpack.c.b16 %v6752, %v6748
        %v6761 = vpack.c.b16 %v6753, %v6749
        %v6762 = vpack.c.b16 %v6754, %v6750
        %v6763 = vpack.c.b16 %v6755, %v6755
        %v6764 = vpack.c.b16 %v6756, %v6756
        %v6765 = vpack.c.b16 %v6757, %v6757
        %v6766 = vpack.c.b16 %v6758, %v6758
        %v6772 = vsel %vm254, %v6740, 0
        %v6775 = vand.u32 %v6763, %v261
        %v6778 = vand.u32 %v6764, %v261
        %v6781 = vand.u32 %v6765, %v261
        %v6784 = vand.u32 %v6766, %v261
        %6786 = vmatprep.subr.bf16.mxu0 %v6760
        %6787 = vmatpush1.bf16.msra.mxu0 %v6759
        %6788 = vmatprep.subr.bf16.mxu0 %v6778
        %6789 = vmatpush1.bf16.msra.mxu0 %v6775
        %6790 = vmatprep.subr.bf16.mxu0 0
        %6791 = vmatpush1.bf16.msra.mxu0 0
        %6792 = vmatprep.subr.bf16.mxu0 0
        %6793 = vmatpush1.bf16.msra.mxu0 0
        %6794 = vmatprep.subr.bf16.mxu0 0
        %6795 = vmatpush1.bf16.msra.mxu0 0
        %6796 = vmatprep.subr.bf16.mxu0 0
        %6797 = vmatpush1.bf16.msra.mxu0 0
        %6798 = vmatprep.subr.bf16.mxu0 0
        %6799 = vmatpush1.bf16.msra.mxu0 0
        %6800 = vmatprep.subr.bf16.mxu0 0
        %6801 = vmatpush1.bf16.msra.mxu0 0
        %6802 = vmatprep.subr.bf16.mxu0 0
        %6803 = vmatpush1.bf16.msra.mxu0 0
        %6804 = vmatprep.subr.bf16.mxu0 0
        %6805 = vmatpush1.bf16.msra.mxu0 0
        %6806 = vmatprep.subr.bf16.mxu0 0
        %6807 = vmatpush1.bf16.msra.mxu0 0
        %6808 = vmatprep.subr.bf16.mxu0 0
        %6809 = vmatpush1.bf16.msra.mxu0 0
        %6810 = vmatprep.subr.bf16.mxu0 0
        %6811 = vmatpush1.bf16.msra.mxu0 0
        %6812 = vmatprep.subr.bf16.mxu0 0
        %6813 = vmatpush1.bf16.msra.mxu0 0
        %6814 = vmatprep.subr.bf16.mxu0 0
        %6815 = vmatpush1.bf16.msra.mxu0 0
        %6816 = vmatprep.subr.bf16.mxu0 0
        %6817 = vmatpush1.bf16.msra.mxu0 0
        %6818 = vmatprep.mubr.bf16.mxu0 0
        %6819 = vmatmul.mubr.bf16.gmra.mrb[0].mxu0 %v6772
        %v6820 = vpop.f32.mrb[0].mxu0
        %v6821 = vadd.f32 0.0, %v6820
        %v6822 = vpop.f32.mrb[0].mxu0
        %v6823 = vadd.f32 0.0, %v6822
        %v6824 = vpop.f32.mrb[0].mxu0
        %v6825 = vadd.f32 0.0, %v6824
        %v6826 = vpop.f32.mrb[0].mxu0
        %v6827 = vadd.f32 0.0, %v6826
        %6828 = vdwg.mxu0
        %6829 = vmatprep.subr.bf16.mxu0 %v6762
        %6830 = vmatpush1.bf16.msra.mxu0 %v6761
        %6831 = vmatprep.subr.bf16.mxu0 %v6784
        %6832 = vmatpush1.bf16.msra.mxu0 %v6781
        %6833 = vmatprep.subr.bf16.mxu0 0
        %6834 = vmatpush1.bf16.msra.mxu0 0
        %6835 = vmatprep.subr.bf16.mxu0 0
        %6836 = vmatpush1.bf16.msra.mxu0 0
        %6837 = vmatprep.subr.bf16.mxu0 0
        %6838 = vmatpush1.bf16.msra.mxu0 0
        %6839 = vmatprep.subr.bf16.mxu0 0
        %6840 = vmatpush1.bf16.msra.mxu0 0
        %6841 = vmatprep.subr.bf16.mxu0 0
        %6842 = vmatpush1.bf16.msra.mxu0 0
        %6843 = vmatprep.subr.bf16.mxu0 0
        %6844 = vmatpush1.bf16.msra.mxu0 0
        %6845 = vmatprep.subr.bf16.mxu0 0
        %6846 = vmatpush1.bf16.msra.mxu0 0
        %6847 = vmatprep.subr.bf16.mxu0 0
        %6848 = vmatpush1.bf16.msra.mxu0 0
        %6849 = vmatprep.subr.bf16.mxu0 0
        %6850 = vmatpush1.bf16.msra.mxu0 0
        %6851 = vmatprep.subr.bf16.mxu0 0
        %6852 = vmatpush1.bf16.msra.mxu0 0
        %6853 = vmatprep.subr.bf16.mxu0 0
        %6854 = vmatpush1.bf16.msra.mxu0 0
        %6855 = vmatprep.subr.bf16.mxu0 0
        %6856 = vmatpush1.bf16.msra.mxu0 0
        %6857 = vmatprep.subr.bf16.mxu0 0
        %6858 = vmatpush1.bf16.msra.mxu0 0
        %6859 = vmatprep.subr.bf16.mxu0 0
        %6860 = vmatpush1.bf16.msra.mxu0 0
        %6861 = vmatprep.mubr.bf16.mxu0 0
        %6862 = vmatmul.mubr.bf16.gmra.mrb[0].mxu0 %v6772
        %v6863 = vpop.f32.mrb[0].mxu0
        %v6864 = vadd.f32 0.0, %v6863
        %v6865 = vpop.f32.mrb[0].mxu0
        %v6866 = vadd.f32 0.0, %v6865
        %v6867 = vpop.f32.mrb[0].mxu0
        %v6868 = vadd.f32 0.0, %v6867
        %v6869 = vpop.f32.mrb[0].mxu0
        %v6870 = vadd.f32 0.0, %v6869
        %6871 = vdwg.mxu0
        %v6872 = vld [vmem:[%s360] sm:$0xf]
        %v6873 = vld [vmem:[%s360 + $0x4] sm:$0x3]
        %v6876 = vunpack.c.l.b16 %v6872
        %v6877 = vunpack.c.l.b16 %v6873
        %v6878 = vpack.c.b16 %v6877, %v6876
        %v6882 = vunpack.c.l.b16 %v6727
        %v6883 = vunpack.c.l.b16 %v6730
        %v6884 = vunpack.c.l.b16 %v6733
        %v6885 = vpack.c.b16 %v6883, %v6882
        %v6886 = vpack.c.b16 %v6884, %v6884
        %v6889 = vsel %vm254, %v6878, 0
        %v6892 = vand.u32 %v6886, %v261
        %6894 = vmatprep.subr.bf16.mxu0 %v6760
        %6895 = vmatpush1.bf16.msra.mxu0 %v6759
        %6896 = vmatprep.subr.bf16.mxu0 %v6778
        %6897 = vmatpush1.bf16.msra.mxu0 %v6775
        %6898 = vmatprep.subr.bf16.mxu0 0
        %6899 = vmatpush1.bf16.msra.mxu0 0
        %6900 = vmatprep.subr.bf16.mxu0 0
        %6901 = vmatpush1.bf16.msra.mxu0 0
        %6902 = vmatprep.subr.bf16.mxu0 0
        %6903 = vmatpush1.bf16.msra.mxu0 0
        %6904 = vmatprep.subr.bf16.mxu0 0
        %6905 = vmatpush1.bf16.msra.mxu0 0
        %6906 = vmatprep.subr.bf16.mxu0 0
        %6907 = vmatpush1.bf16.msra.mxu0 0
        %6908 = vmatprep.subr.bf16.mxu0 0
        %6909 = vmatpush1.bf16.msra.mxu0 0
        %6910 = vmatprep.subr.bf16.mxu0 0
        %6911 = vmatpush1.bf16.msra.mxu0 0
        %6912 = vmatprep.subr.bf16.mxu0 0
        %6913 = vmatpush1.bf16.msra.mxu0 0
        %6914 = vmatprep.subr.bf16.mxu0 0
        %6915 = vmatpush1.bf16.msra.mxu0 0
        %6916 = vmatprep.subr.bf16.mxu0 0
        %6917 = vmatpush1.bf16.msra.mxu0 0
        %6918 = vmatprep.subr.bf16.mxu0 0
        %6919 = vmatpush1.bf16.msra.mxu0 0
        %6920 = vmatprep.subr.bf16.mxu0 0
        %6921 = vmatpush1.bf16.msra.mxu0 0
        %6922 = vmatprep.subr.bf16.mxu0 0
        %6923 = vmatpush1.bf16.msra.mxu0 0
        %6924 = vmatprep.subr.bf16.mxu0 0
        %6925 = vmatpush1.bf16.msra.mxu0 0
        %6926 = vmatprep.mubr.bf16.mxu0 0
        %6927 = vmatmul.mubr.bf16.gmra.mrb[0].mxu0 %v6889
        %v6928 = vpop.f32.mrb[0].mxu0
        %v6929 = vadd.f32 0.0, %v6928
        %v6930 = vpop.f32.mrb[0].mxu0
        %v6931 = vadd.f32 0.0, %v6930
        %v6932 = vpop.f32.mrb[0].mxu0
        %v6933 = vadd.f32 0.0, %v6932
        %v6934 = vpop.f32.mrb[0].mxu0
        %v6935 = vadd.f32 0.0, %v6934
        %6936 = vdwg.mxu0
        %6937 = vmatprep.subr.bf16.mxu0 %v6762
        %6938 = vmatpush1.bf16.msra.mxu0 %v6761
        %6939 = vmatprep.subr.bf16.mxu0 %v6784
        %6940 = vmatpush1.bf16.msra.mxu0 %v6781
        %6941 = vmatprep.subr.bf16.mxu0 0
        %6942 = vmatpush1.bf16.msra.mxu0 0
        %6943 = vmatprep.subr.bf16.mxu0 0
        %6944 = vmatpush1.bf16.msra.mxu0 0
        %6945 = vmatprep.subr.bf16.mxu0 0
        %6946 = vmatpush1.bf16.msra.mxu0 0
        %6947 = vmatprep.subr.bf16.mxu0 0
        %6948 = vmatpush1.bf16.msra.mxu0 0
        %6949 = vmatprep.subr.bf16.mxu0 0
        %6950 = vmatpush1.bf16.msra.mxu0 0
        %6951 = vmatprep.subr.bf16.mxu0 0
        %6952 = vmatpush1.bf16.msra.mxu0 0
        %6953 = vmatprep.subr.bf16.mxu0 0
        %6954 = vmatpush1.bf16.msra.mxu0 0
        %6955 = vmatprep.subr.bf16.mxu0 0
        %6956 = vmatpush1.bf16.msra.mxu0 0
        %6957 = vmatprep.subr.bf16.mxu0 0
        %6958 = vmatpush1.bf16.msra.mxu0 0
        %6959 = vmatprep.subr.bf16.mxu0 0
        %6960 = vmatpush1.bf16.msra.mxu0 0
        %6961 = vmatprep.subr.bf16.mxu0 0
        %6962 = vmatpush1.bf16.msra.mxu0 0
        %6963 = vmatprep.subr.bf16.mxu0 0
        %6964 = vmatpush1.bf16.msra.mxu0 0
        %6965 = vmatprep.subr.bf16.mxu0 0
        %6966 = vmatpush1.bf16.msra.mxu0 0
        %6967 = vmatprep.subr.bf16.mxu0 0
        %6968 = vmatpush1.bf16.msra.mxu0 0
        %6969 = vmatprep.mubr.bf16.mxu0 0
        %6970 = vmatmul.mubr.bf16.gmra.mrb[0].mxu0 %v6889
        %v6971 = vpop.f32.mrb[0].mxu0
        %v6972 = vadd.f32 0.0, %v6971
        %v6973 = vpop.f32.mrb[0].mxu0
        %v6974 = vadd.f32 0.0, %v6973
        %v6975 = vpop.f32.mrb[0].mxu0
        %v6976 = vadd.f32 0.0, %v6975
        %v6977 = vpop.f32.mrb[0].mxu0
        %v6978 = vadd.f32 0.0, %v6977
        %6979 = vdwg.mxu0
        %6980 = vmatprep.subr.bf16.mxu0 0
        %6981 = vmatpush1.bf16.msra.mxu0 %v6885
        %6982 = vmatprep.subr.bf16.mxu0 0
        %6983 = vmatpush1.bf16.msra.mxu0 %v6892
        %6984 = vmatprep.subr.bf16.mxu0 0
        %6985 = vmatpush1.bf16.msra.mxu0 0
        %6986 = vmatprep.subr.bf16.mxu0 0
        %6987 = vmatpush1.bf16.msra.mxu0 0
        %6988 = vmatprep.subr.bf16.mxu0 0
        %6989 = vmatpush1.bf16.msra.mxu0 0
        %6990 = vmatprep.subr.bf16.mxu0 0
        %6991 = vmatpush1.bf16.msra.mxu0 0
        %6992 = vmatprep.subr.bf16.mxu0 0
        %6993 = vmatpush1.bf16.msra.mxu0 0
        %6994 = vmatprep.subr.bf16.mxu0 0
        %6995 = vmatpush1.bf16.msra.mxu0 0
        %6996 = vmatprep.subr.bf16.mxu0 0
        %6997 = vmatpush1.bf16.msra.mxu0 0
        %6998 = vmatprep.subr.bf16.mxu0 0
        %6999 = vmatpush1.bf16.msra.mxu0 0
        %7000 = vmatprep.subr.bf16.mxu0 0
        %7001 = vmatpush1.bf16.msra.mxu0 0
        %7002 = vmatprep.subr.bf16.mxu0 0
        %7003 = vmatpush1.bf16.msra.mxu0 0
        %7004 = vmatprep.subr.bf16.mxu0 0
        %7005 = vmatpush1.bf16.msra.mxu0 0
        %7006 = vmatprep.subr.bf16.mxu0 0
        %7007 = vmatpush1.bf16.msra.mxu0 0
        %7008 = vmatprep.subr.bf16.mxu0 0
        %7009 = vmatpush1.bf16.msra.mxu0 0
        %7010 = vmatprep.subr.bf16.mxu0 0
        %7011 = vmatpush1.bf16.msra.mxu0 0
        %7012 = vmatprep.mubr.bf16.mxu0 0
        %7013 = vmatmul.mubr.bf16.gmra.mrb[0].mxu0 %v6889
        %v7014 = vpop.f32.mrb[0].mxu0
        %v7015 = vadd.f32 0.0, %v7014
        %v7016 = vpop.f32.mrb[0].mxu0
        %v7017 = vpop.f32.mrb[0].mxu0
        %v7018 = vadd.f32 0.0, %v7017
        %v7019 = vpop.f32.mrb[0].mxu0
        %7020 = vdwg.mxu0
        %7021 = vrot.lane.b32.xlu0 %v6929, 99
        %v7022 = vpop.permute.xlu0 %7021
        %7023 = vrot.lane.b32.xlu0 %v6933, 99
        %v7024 = vpop.permute.xlu0 %7023
        %7025 = vrot.lane.b32.xlu0 %v6931, 99
        %v7026 = vpop.permute.xlu0 %7025
        %7027 = vrot.lane.b32.xlu0 %v6935, 99
        %v7028 = vpop.permute.xlu0 %7027
        %7029 = vrot.lane.b32.xlu0 %v6972, 99
        %v7030 = vpop.permute.xlu0 %7029
        %7031 = vrot.lane.b32.xlu0 %v6976, 99
        %v7032 = vpop.permute.xlu0 %7031
        %7033 = vrot.lane.b32.xlu0 %v6974, 99
        %v7034 = vpop.permute.xlu0 %7033
        %7035 = vrot.lane.b32.xlu0 %v6978, 99
        %v7036 = vpop.permute.xlu0 %7035
        %7037 = vrot.lane.b32.xlu0 %v7015, 99
        %v7038 = vpop.permute.xlu0 %7037
        %7039 = vrot.lane.b32.xlu0 %v7018, 99
        %v7040 = vpop.permute.xlu0 %7039
        %v7041 = vsel %vm532, %v7034, %v7038
        %v7042 = vsel %vm532, %v7036, %v7040
        %v7043 = vsel %vm532, %v7030, %v7034
        %v7044 = vsel %vm532, %v7032, %v7036
        %v7045 = vsel %vm532, %v7026, %v7030
        %v7046 = vsel %vm532, %v7028, %v7032
        %v7047 = vsel %vm532, %v7022, %v7026
        %v7048 = vsel %vm532, %v7024, %v7028
        %v7049 = vadd.f32 %v6821, %v7047
        %v7050 = vadd.f32 %v6823, %v7045
        %v7051 = vadd.f32 %v6864, %v7043
        %v7052 = vadd.f32 %v6866, %v7041
        %v7053 = vadd.f32 %v6825, %v7048
        %v7054 = vadd.f32 %v6827, %v7046
        %v7055 = vadd.f32 %v6868, %v7044
        %v7056 = vadd.f32 %v6870, %v7042
        %v7057 = vld [vmem:[%s549] sm:$0xf]
        %v7058 = vld [vmem:[%s549 + $0x4] sm:$0x3]
        %v7061 = vunpack.c.l.b16 %v7057
        %v7062 = vunpack.c.l.b16 %v7058
        %v7063 = vpack.c.b16 %v7062, %v7061
        %v7065 = vsel %vm254, %v7063, 0
        %7067 = vmatprep.subr.bf16.mxu0 %v6760
        %7068 = vmatpush1.bf16.msra.mxu0 %v6759
        %7069 = vmatprep.subr.bf16.mxu0 %v6778
        %7070 = vmatpush1.bf16.msra.mxu0 %v6775
        %7071 = vmatprep.subr.bf16.mxu0 0
        %7072 = vmatpush1.bf16.msra.mxu0 0
        %7073 = vmatprep.subr.bf16.mxu0 0
        %7074 = vmatpush1.bf16.msra.mxu0 0
        %7075 = vmatprep.subr.bf16.mxu0 0
        %7076 = vmatpush1.bf16.msra.mxu0 0
        %7077 = vmatprep.subr.bf16.mxu0 0
        %7078 = vmatpush1.bf16.msra.mxu0 0
        %7079 = vmatprep.subr.bf16.mxu0 0
        %7080 = vmatpush1.bf16.msra.mxu0 0
        %7081 = vmatprep.subr.bf16.mxu0 0
        %7082 = vmatpush1.bf16.msra.mxu0 0
        %7083 = vmatprep.subr.bf16.mxu0 0
        %7084 = vmatpush1.bf16.msra.mxu0 0
        %7085 = vmatprep.subr.bf16.mxu0 0
        %7086 = vmatpush1.bf16.msra.mxu0 0
        %7087 = vmatprep.subr.bf16.mxu0 0
        %7088 = vmatpush1.bf16.msra.mxu0 0
        %7089 = vmatprep.subr.bf16.mxu0 0
        %7090 = vmatpush1.bf16.msra.mxu0 0
        %7091 = vmatprep.subr.bf16.mxu0 0
        %7092 = vmatpush1.bf16.msra.mxu0 0
        %7093 = vmatprep.subr.bf16.mxu0 0
        %7094 = vmatpush1.bf16.msra.mxu0 0
        %7095 = vmatprep.subr.bf16.mxu0 0
        %7096 = vmatpush1.bf16.msra.mxu0 0
        %7097 = vmatprep.subr.bf16.mxu0 0
        %7098 = vmatpush1.bf16.msra.mxu0 0
        %7099 = vmatprep.mubr.bf16.mxu0 0
        %7100 = vmatmul.mubr.bf16.gmra.mrb[0].mxu0 %v7065
        %v7101 = vpop.f32.mrb[0].mxu0
        %v7102 = vadd.f32 0.0, %v7101
        %v7103 = vpop.f32.mrb[0].mxu0
        %v7104 = vadd.f32 0.0, %v7103
        %v7105 = vpop.f32.mrb[0].mxu0
        %v7106 = vadd.f32 0.0, %v7105
        %v7107 = vpop.f32.mrb[0].mxu0
        %v7108 = vadd.f32 0.0, %v7107
        %7109 = vdwg.mxu0
        %7110 = vmatprep.subr.bf16.mxu0 %v6762
        %7111 = vmatpush1.bf16.msra.mxu0 %v6761
        %7112 = vmatprep.subr.bf16.mxu0 %v6784
        %7113 = vmatpush1.bf16.msra.mxu0 %v6781
        %7114 = vmatprep.subr.bf16.mxu0 0
        %7115 = vmatpush1.bf16.msra.mxu0 0
        %7116 = vmatprep.subr.bf16.mxu0 0
        %7117 = vmatpush1.bf16.msra.mxu0 0
        %7118 = vmatprep.subr.bf16.mxu0 0
        %7119 = vmatpush1.bf16.msra.mxu0 0
        %7120 = vmatprep.subr.bf16.mxu0 0
        %7121 = vmatpush1.bf16.msra.mxu0 0
        %7122 = vmatprep.subr.bf16.mxu0 0
        %7123 = vmatpush1.bf16.msra.mxu0 0
        %7124 = vmatprep.subr.bf16.mxu0 0
        %7125 = vmatpush1.bf16.msra.mxu0 0
        %7126 = vmatprep.subr.bf16.mxu0 0
        %7127 = vmatpush1.bf16.msra.mxu0 0
        %7128 = vmatprep.subr.bf16.mxu0 0
        %7129 = vmatpush1.bf16.msra.mxu0 0
        %7130 = vmatprep.subr.bf16.mxu0 0
        %7131 = vmatpush1.bf16.msra.mxu0 0
        %7132 = vmatprep.subr.bf16.mxu0 0
        %7133 = vmatpush1.bf16.msra.mxu0 0
        %7134 = vmatprep.subr.bf16.mxu0 0
        %7135 = vmatpush1.bf16.msra.mxu0 0
        %7136 = vmatprep.subr.bf16.mxu0 0
        %7137 = vmatpush1.bf16.msra.mxu0 0
        %7138 = vmatprep.subr.bf16.mxu0 0
        %7139 = vmatpush1.bf16.msra.mxu0 0
        %7140 = vmatprep.subr.bf16.mxu0 0
        %7141 = vmatpush1.bf16.msra.mxu0 0
        %7142 = vmatprep.mubr.bf16.mxu0 0
        %7143 = vmatmul.mubr.bf16.gmra.mrb[0].mxu0 %v7065
        %v7144 = vpop.f32.mrb[0].mxu0
        %v7145 = vadd.f32 0.0, %v7144
        %v7146 = vpop.f32.mrb[0].mxu0
        %v7147 = vadd.f32 0.0, %v7146
        %v7148 = vpop.f32.mrb[0].mxu0
        %v7149 = vadd.f32 0.0, %v7148
        %v7150 = vpop.f32.mrb[0].mxu0
        %v7151 = vadd.f32 0.0, %v7150
        %7152 = vdwg.mxu0
        %7153 = vmatprep.subr.bf16.mxu0 0
        %7154 = vmatpush1.bf16.msra.mxu0 %v6885
        %7155 = vmatprep.subr.bf16.mxu0 0
        %7156 = vmatpush1.bf16.msra.mxu0 %v6892
        %7157 = vmatprep.subr.bf16.mxu0 0
        %7158 = vmatpush1.bf16.msra.mxu0 0
        %7159 = vmatprep.subr.bf16.mxu0 0
        %7160 = vmatpush1.bf16.msra.mxu0 0
        %7161 = vmatprep.subr.bf16.mxu0 0
        %7162 = vmatpush1.bf16.msra.mxu0 0
        %7163 = vmatprep.subr.bf16.mxu0 0
        %7164 = vmatpush1.bf16.msra.mxu0 0
        %7165 = vmatprep.subr.bf16.mxu0 0
        %7166 = vmatpush1.bf16.msra.mxu0 0
        %7167 = vmatprep.subr.bf16.mxu0 0
        %7168 = vmatpush1.bf16.msra.mxu0 0
        %7169 = vmatprep.subr.bf16.mxu0 0
        %7170 = vmatpush1.bf16.msra.mxu0 0
        %7171 = vmatprep.subr.bf16.mxu0 0
        %7172 = vmatpush1.bf16.msra.mxu0 0
        %7173 = vmatprep.subr.bf16.mxu0 0
        %7174 = vmatpush1.bf16.msra.mxu0 0
        %7175 = vmatprep.subr.bf16.mxu0 0
        %7176 = vmatpush1.bf16.msra.mxu0 0
        %7177 = vmatprep.subr.bf16.mxu0 0
        %7178 = vmatpush1.bf16.msra.mxu0 0
        %7179 = vmatprep.subr.bf16.mxu0 0
        %7180 = vmatpush1.bf16.msra.mxu0 0
        %7181 = vmatprep.subr.bf16.mxu0 0
        %7182 = vmatpush1.bf16.msra.mxu0 0
        %7183 = vmatprep.subr.bf16.mxu0 0
        %7184 = vmatpush1.bf16.msra.mxu0 0
        %7185 = vmatprep.mubr.bf16.mxu0 0
        %7186 = vmatmul.mubr.bf16.gmra.mrb[0].mxu0 %v7065
        %v7187 = vpop.f32.mrb[0].mxu0
        %v7188 = vadd.f32 0.0, %v7187
        %v7189 = vpop.f32.mrb[0].mxu0
        %v7190 = vpop.f32.mrb[0].mxu0
        %v7191 = vadd.f32 0.0, %v7190
        %v7192 = vpop.f32.mrb[0].mxu0
        %7193 = vdwg.mxu0
        %7194 = vrot.lane.b32.xlu0 %v7102, 70
        %v7195 = vpop.permute.xlu0 %7194
        %7196 = vrot.lane.b32.xlu0 %v7106, 70
        %v7197 = vpop.permute.xlu0 %7196
        %7198 = vrot.lane.b32.xlu0 %v7104, 70
        %v7199 = vpop.permute.xlu0 %7198
        %7200 = vrot.lane.b32.xlu0 %v7108, 70
        %v7201 = vpop.permute.xlu0 %7200
        %7202 = vrot.lane.b32.xlu0 %v7145, 70
        %v7203 = vpop.permute.xlu0 %7202
        %7204 = vrot.lane.b32.xlu0 %v7149, 70
        %v7205 = vpop.permute.xlu0 %7204
        %7206 = vrot.lane.b32.xlu0 %v7147, 70
        %v7207 = vpop.permute.xlu0 %7206
        %7208 = vrot.lane.b32.xlu0 %v7151, 70
        %v7209 = vpop.permute.xlu0 %7208
        %7210 = vrot.lane.b32.xlu0 %v7188, 70
        %v7211 = vpop.permute.xlu0 %7210
        %7212 = vrot.lane.b32.xlu0 %v7191, 70
        %v7213 = vpop.permute.xlu0 %7212
        %v7214 = vsel %vm707, %v7207, %v7211
        %v7215 = vsel %vm707, %v7209, %v7213
        %v7216 = vsel %vm707, %v7203, %v7207
        %v7217 = vsel %vm707, %v7205, %v7209
        %v7218 = vsel %vm707, %v7199, %v7203
        %v7219 = vsel %vm707, %v7201, %v7205
        %v7220 = vsel %vm707, %v7195, %v7199
        %v7221 = vsel %vm707, %v7197, %v7201
        %v7222 = vadd.f32 %v7049, %v7220
        %v7223 = vadd.f32 %v7050, %v7218
        %v7224 = vadd.f32 %v7051, %v7216
        %v7225 = vadd.f32 %v7052, %v7214
        %v7226 = vadd.f32 %v7053, %v7221
        %v7227 = vadd.f32 %v7054, %v7219
        %v7228 = vadd.f32 %v7055, %v7217
        %v7229 = vadd.f32 %v7056, %v7215
        %v7230 = vld [vmem:[%s724] sm:$0xf]
        %v7231 = vld [vmem:[%s724 + $0x4] sm:$0x3]
        %v7234 = vunpack.c.l.b16 %v7230
        %v7235 = vunpack.c.l.b16 %v7231
        %v7236 = vpack.c.b16 %v7235, %v7234
        %v7238 = vsel %vm254, %v7236, 0
        %7240 = vmatprep.subr.bf16.mxu0 %v6760
        %7241 = vmatpush1.bf16.msra.mxu0 %v6759
        %7242 = vmatprep.subr.bf16.mxu0 %v6778
        %7243 = vmatpush1.bf16.msra.mxu0 %v6775
        %7244 = vmatprep.subr.bf16.mxu0 0
        %7245 = vmatpush1.bf16.msra.mxu0 0
        %7246 = vmatprep.subr.bf16.mxu0 0
        %7247 = vmatpush1.bf16.msra.mxu0 0
        %7248 = vmatprep.subr.bf16.mxu0 0
        %7249 = vmatpush1.bf16.msra.mxu0 0
        %7250 = vmatprep.subr.bf16.mxu0 0
        %7251 = vmatpush1.bf16.msra.mxu0 0
        %7252 = vmatprep.subr.bf16.mxu0 0
        %7253 = vmatpush1.bf16.msra.mxu0 0
        %7254 = vmatprep.subr.bf16.mxu0 0
        %7255 = vmatpush1.bf16.msra.mxu0 0
        %7256 = vmatprep.subr.bf16.mxu0 0
        %7257 = vmatpush1.bf16.msra.mxu0 0
        %7258 = vmatprep.subr.bf16.mxu0 0
        %7259 = vmatpush1.bf16.msra.mxu0 0
        %7260 = vmatprep.subr.bf16.mxu0 0
        %7261 = vmatpush1.bf16.msra.mxu0 0
        %7262 = vmatprep.subr.bf16.mxu0 0
        %7263 = vmatpush1.bf16.msra.mxu0 0
        %7264 = vmatprep.subr.bf16.mxu0 0
        %7265 = vmatpush1.bf16.msra.mxu0 0
        %7266 = vmatprep.subr.bf16.mxu0 0
        %7267 = vmatpush1.bf16.msra.mxu0 0
        %7268 = vmatprep.subr.bf16.mxu0 0
        %7269 = vmatpush1.bf16.msra.mxu0 0
        %7270 = vmatprep.subr.bf16.mxu0 0
        %7271 = vmatpush1.bf16.msra.mxu0 0
        %7272 = vmatprep.mubr.bf16.mxu0 0
        %7273 = vmatmul.mubr.bf16.gmra.mrb[0].mxu0 %v7238
        %v7274 = vpop.f32.mrb[0].mxu0
        %v7275 = vadd.f32 0.0, %v7274
        %v7276 = vpop.f32.mrb[0].mxu0
        %v7277 = vadd.f32 0.0, %v7276
        %v7278 = vpop.f32.mrb[0].mxu0
        %v7279 = vadd.f32 0.0, %v7278
        %v7280 = vpop.f32.mrb[0].mxu0
        %v7281 = vadd.f32 0.0, %v7280
        %7282 = vdwg.mxu0
        %7283 = vmatprep.subr.bf16.mxu0 %v6762
        %7284 = vmatpush1.bf16.msra.mxu0 %v6761
        %7285 = vmatprep.subr.bf16.mxu0 %v6784
        %7286 = vmatpush1.bf16.msra.mxu0 %v6781
        %7287 = vmatprep.subr.bf16.mxu0 0
        %7288 = vmatpush1.bf16.msra.mxu0 0
        %7289 = vmatprep.subr.bf16.mxu0 0
        %7290 = vmatpush1.bf16.msra.mxu0 0
        %7291 = vmatprep.subr.bf16.mxu0 0
        %7292 = vmatpush1.bf16.msra.mxu0 0
        %7293 = vmatprep.subr.bf16.mxu0 0
        %7294 = vmatpush1.bf16.msra.mxu0 0
        %7295 = vmatprep.subr.bf16.mxu0 0
        %7296 = vmatpush1.bf16.msra.mxu0 0
        %7297 = vmatprep.subr.bf16.mxu0 0
        %7298 = vmatpush1.bf16.msra.mxu0 0
        %7299 = vmatprep.subr.bf16.mxu0 0
        %7300 = vmatpush1.bf16.msra.mxu0 0
        %7301 = vmatprep.subr.bf16.mxu0 0
        %7302 = vmatpush1.bf16.msra.mxu0 0
        %7303 = vmatprep.subr.bf16.mxu0 0
        %7304 = vmatpush1.bf16.msra.mxu0 0
        %7305 = vmatprep.subr.bf16.mxu0 0
        %7306 = vmatpush1.bf16.msra.mxu0 0
        %7307 = vmatprep.subr.bf16.mxu0 0
        %7308 = vmatpush1.bf16.msra.mxu0 0
        %7309 = vmatprep.subr.bf16.mxu0 0
        %7310 = vmatpush1.bf16.msra.mxu0 0
        %7311 = vmatprep.subr.bf16.mxu0 0
        %7312 = vmatpush1.bf16.msra.mxu0 0
        %7313 = vmatprep.subr.bf16.mxu0 0
        %7314 = vmatpush1.bf16.msra.mxu0 0
        %7315 = vmatprep.mubr.bf16.mxu0 0
        %7316 = vmatmul.mubr.bf16.gmra.mrb[0].mxu0 %v7238
        %v7317 = vpop.f32.mrb[0].mxu0
        %v7318 = vadd.f32 0.0, %v7317
        %v7319 = vpop.f32.mrb[0].mxu0
        %v7320 = vadd.f32 0.0, %v7319
        %v7321 = vpop.f32.mrb[0].mxu0
        %v7322 = vadd.f32 0.0, %v7321
        %v7323 = vpop.f32.mrb[0].mxu0
        %v7324 = vadd.f32 0.0, %v7323
        %7325 = vdwg.mxu0
        %7326 = vmatprep.subr.bf16.mxu0 0
        %7327 = vmatpush1.bf16.msra.mxu0 %v6885
        %7328 = vmatprep.subr.bf16.mxu0 0
        %7329 = vmatpush1.bf16.msra.mxu0 %v6892
        %7330 = vmatprep.subr.bf16.mxu0 0
        %7331 = vmatpush1.bf16.msra.mxu0 0
        %7332 = vmatprep.subr.bf16.mxu0 0
        %7333 = vmatpush1.bf16.msra.mxu0 0
        %7334 = vmatprep.subr.bf16.mxu0 0
        %7335 = vmatpush1.bf16.msra.mxu0 0
        %7336 = vmatprep.subr.bf16.mxu0 0
        %7337 = vmatpush1.bf16.msra.mxu0 0
        %7338 = vmatprep.subr.bf16.mxu0 0
        %7339 = vmatpush1.bf16.msra.mxu0 0
        %7340 = vmatprep.subr.bf16.mxu0 0
        %7341 = vmatpush1.bf16.msra.mxu0 0
        %7342 = vmatprep.subr.bf16.mxu0 0
        %7343 = vmatpush1.bf16.msra.mxu0 0
        %7344 = vmatprep.subr.bf16.mxu0 0
        %7345 = vmatpush1.bf16.msra.mxu0 0
        %7346 = vmatprep.subr.bf16.mxu0 0
        %7347 = vmatpush1.bf16.msra.mxu0 0
        %7348 = vmatprep.subr.bf16.mxu0 0
        %7349 = vmatpush1.bf16.msra.mxu0 0
        %7350 = vmatprep.subr.bf16.mxu0 0
        %7351 = vmatpush1.bf16.msra.mxu0 0
        %7352 = vmatprep.subr.bf16.mxu0 0
        %7353 = vmatpush1.bf16.msra.mxu0 0
        %7354 = vmatprep.subr.bf16.mxu0 0
        %7355 = vmatpush1.bf16.msra.mxu0 0
        %7356 = vmatprep.subr.bf16.mxu0 0
        %7357 = vmatpush1.bf16.msra.mxu0 0
        %7358 = vmatprep.mubr.bf16.mxu0 0
        %7359 = vmatmul.mubr.bf16.gmra.mrb[0].mxu0 %v7238
        %v7360 = vpop.f32.mrb[0].mxu0
        %v7361 = vadd.f32 0.0, %v7360
        %v7362 = vpop.f32.mrb[0].mxu0
        %v7363 = vpop.f32.mrb[0].mxu0
        %v7364 = vadd.f32 0.0, %v7363
        %v7365 = vpop.f32.mrb[0].mxu0
        %7366 = vdwg.mxu0
        %7367 = vrot.lane.b32.xlu0 %v7275, 41
        %v7368 = vpop.permute.xlu0 %7367
        %7369 = vrot.lane.b32.xlu0 %v7279, 41
        %v7370 = vpop.permute.xlu0 %7369
        %7371 = vrot.lane.b32.xlu0 %v7277, 41
        %v7372 = vpop.permute.xlu0 %7371
        %7373 = vrot.lane.b32.xlu0 %v7281, 41
        %v7374 = vpop.permute.xlu0 %7373
        %7375 = vrot.lane.b32.xlu0 %v7318, 41
        %v7376 = vpop.permute.xlu0 %7375
        %7377 = vrot.lane.b32.xlu0 %v7322, 41
        %v7378 = vpop.permute.xlu0 %7377
        %7379 = vrot.lane.b32.xlu0 %v7320, 41
        %v7380 = vpop.permute.xlu0 %7379
        %7381 = vrot.lane.b32.xlu0 %v7324, 41
        %v7382 = vpop.permute.xlu0 %7381
        %7383 = vrot.lane.b32.xlu0 %v7361, 41
        %v7384 = vpop.permute.xlu0 %7383
        %7385 = vrot.lane.b32.xlu0 %v7364, 41
        %v7386 = vpop.permute.xlu0 %7385
        %v7387 = vsel %vm882, %v7380, %v7384
        %v7388 = vsel %vm882, %v7382, %v7386
        %v7389 = vsel %vm882, %v7376, %v7380
        %v7390 = vsel %vm882, %v7378, %v7382
        %v7391 = vsel %vm882, %v7372, %v7376
        %v7392 = vsel %vm882, %v7374, %v7378
        %v7393 = vsel %vm882, %v7368, %v7372
        %v7394 = vsel %vm882, %v7370, %v7374
        %v7395 = vadd.f32 %v7222, %v7393
        %v7396 = vadd.f32 %v7223, %v7391
        %v7397 = vadd.f32 %v7224, %v7389
        %v7398 = vadd.f32 %v7225, %v7387
        %v7399 = vadd.f32 %v7226, %v7394
        %v7400 = vadd.f32 %v7227, %v7392
        %v7401 = vadd.f32 %v7228, %v7390
        %v7402 = vadd.f32 %v7229, %v7388
        %v7403 = vld [vmem:[%s899] sm:$0xf]
        %v7404 = vld [vmem:[%s899 + $0x4] sm:$0x3]
        %v7407 = vunpack.c.l.b16 %v7403
        %v7408 = vunpack.c.l.b16 %v7404
        %v7409 = vpack.c.b16 %v7408, %v7407
        %v7411 = vsel %vm254, %v7409, 0
        %7413 = vmatprep.subr.bf16.mxu0 %v6760
        %7414 = vmatpush1.bf16.msra.mxu0 %v6759
        %7415 = vmatprep.subr.bf16.mxu0 %v6778
        %7416 = vmatpush1.bf16.msra.mxu0 %v6775
        %7417 = vmatprep.subr.bf16.mxu0 0
        %7418 = vmatpush1.bf16.msra.mxu0 0
        %7419 = vmatprep.subr.bf16.mxu0 0
        %7420 = vmatpush1.bf16.msra.mxu0 0
        %7421 = vmatprep.subr.bf16.mxu0 0
        %7422 = vmatpush1.bf16.msra.mxu0 0
        %7423 = vmatprep.subr.bf16.mxu0 0
        %7424 = vmatpush1.bf16.msra.mxu0 0
        %7425 = vmatprep.subr.bf16.mxu0 0
        %7426 = vmatpush1.bf16.msra.mxu0 0
        %7427 = vmatprep.subr.bf16.mxu0 0
        %7428 = vmatpush1.bf16.msra.mxu0 0
        %7429 = vmatprep.subr.bf16.mxu0 0
        %7430 = vmatpush1.bf16.msra.mxu0 0
        %7431 = vmatprep.subr.bf16.mxu0 0
        %7432 = vmatpush1.bf16.msra.mxu0 0
        %7433 = vmatprep.subr.bf16.mxu0 0
        %7434 = vmatpush1.bf16.msra.mxu0 0
        %7435 = vmatprep.subr.bf16.mxu0 0
        %7436 = vmatpush1.bf16.msra.mxu0 0
        %7437 = vmatprep.subr.bf16.mxu0 0
        %7438 = vmatpush1.bf16.msra.mxu0 0
        %7439 = vmatprep.subr.bf16.mxu0 0
        %7440 = vmatpush1.bf16.msra.mxu0 0
        %7441 = vmatprep.subr.bf16.mxu0 0
        %7442 = vmatpush1.bf16.msra.mxu0 0
        %7443 = vmatprep.subr.bf16.mxu0 0
        %7444 = vmatpush1.bf16.msra.mxu0 0
        %7445 = vmatprep.mubr.bf16.mxu0 0
        %7446 = vmatmul.mubr.bf16.gmra.mrb[0].mxu0 %v7411
        %v7447 = vpop.f32.mrb[0].mxu0
        %v7448 = vadd.f32 0.0, %v7447
        %v7449 = vpop.f32.mrb[0].mxu0
        %v7450 = vadd.f32 0.0, %v7449
        %v7451 = vpop.f32.mrb[0].mxu0
        %v7452 = vadd.f32 0.0, %v7451
        %v7453 = vpop.f32.mrb[0].mxu0
        %v7454 = vadd.f32 0.0, %v7453
        %7455 = vdwg.mxu0
        %7456 = vmatprep.subr.bf16.mxu0 %v6762
        %7457 = vmatpush1.bf16.msra.mxu0 %v6761
        %7458 = vmatprep.subr.bf16.mxu0 %v6784
        %7459 = vmatpush1.bf16.msra.mxu0 %v6781
        %7460 = vmatprep.subr.bf16.mxu0 0
        %7461 = vmatpush1.bf16.msra.mxu0 0
        %7462 = vmatprep.subr.bf16.mxu0 0
        %7463 = vmatpush1.bf16.msra.mxu0 0
        %7464 = vmatprep.subr.bf16.mxu0 0
        %7465 = vmatpush1.bf16.msra.mxu0 0
        %7466 = vmatprep.subr.bf16.mxu0 0
        %7467 = vmatpush1.bf16.msra.mxu0 0
        %7468 = vmatprep.subr.bf16.mxu0 0
        %7469 = vmatpush1.bf16.msra.mxu0 0
        %7470 = vmatprep.subr.bf16.mxu0 0
        %7471 = vmatpush1.bf16.msra.mxu0 0
        %7472 = vmatprep.subr.bf16.mxu0 0
        %7473 = vmatpush1.bf16.msra.mxu0 0
        %7474 = vmatprep.subr.bf16.mxu0 0
        %7475 = vmatpush1.bf16.msra.mxu0 0
        %7476 = vmatprep.subr.bf16.mxu0 0
        %7477 = vmatpush1.bf16.msra.mxu0 0
        %7478 = vmatprep.subr.bf16.mxu0 0
        %7479 = vmatpush1.bf16.msra.mxu0 0
        %7480 = vmatprep.subr.bf16.mxu0 0
        %7481 = vmatpush1.bf16.msra.mxu0 0
        %7482 = vmatprep.subr.bf16.mxu0 0
        %7483 = vmatpush1.bf16.msra.mxu0 0
        %7484 = vmatprep.subr.bf16.mxu0 0
        %7485 = vmatpush1.bf16.msra.mxu0 0
        %7486 = vmatprep.subr.bf16.mxu0 0
        %7487 = vmatpush1.bf16.msra.mxu0 0
        %7488 = vmatprep.mubr.bf16.mxu0 0
        %7489 = vmatmul.mubr.bf16.gmra.mrb[0].mxu0 %v7411
        %v7490 = vpop.f32.mrb[0].mxu0
        %v7491 = vadd.f32 0.0, %v7490
        %v7492 = vpop.f32.mrb[0].mxu0
        %v7493 = vadd.f32 0.0, %v7492
        %v7494 = vpop.f32.mrb[0].mxu0
        %v7495 = vadd.f32 0.0, %v7494
        %v7496 = vpop.f32.mrb[0].mxu0
        %v7497 = vadd.f32 0.0, %v7496
        %7498 = vdwg.mxu0
        %7499 = vmatprep.subr.bf16.mxu0 0
        %7500 = vmatpush1.bf16.msra.mxu0 %v6885
        %7501 = vmatprep.subr.bf16.mxu0 0
        %7502 = vmatpush1.bf16.msra.mxu0 %v6892
        %7503 = vmatprep.subr.bf16.mxu0 0
        %7504 = vmatpush1.bf16.msra.mxu0 0
        %7505 = vmatprep.subr.bf16.mxu0 0
        %7506 = vmatpush1.bf16.msra.mxu0 0
        %7507 = vmatprep.subr.bf16.mxu0 0
        %7508 = vmatpush1.bf16.msra.mxu0 0
        %7509 = vmatprep.subr.bf16.mxu0 0
        %7510 = vmatpush1.bf16.msra.mxu0 0
        %7511 = vmatprep.subr.bf16.mxu0 0
        %7512 = vmatpush1.bf16.msra.mxu0 0
        %7513 = vmatprep.subr.bf16.mxu0 0
        %7514 = vmatpush1.bf16.msra.mxu0 0
        %7515 = vmatprep.subr.bf16.mxu0 0
        %7516 = vmatpush1.bf16.msra.mxu0 0
        %7517 = vmatprep.subr.bf16.mxu0 0
        %7518 = vmatpush1.bf16.msra.mxu0 0
        %7519 = vmatprep.subr.bf16.mxu0 0
        %7520 = vmatpush1.bf16.msra.mxu0 0
        %7521 = vmatprep.subr.bf16.mxu0 0
        %7522 = vmatpush1.bf16.msra.mxu0 0
        %7523 = vmatprep.subr.bf16.mxu0 0
        %7524 = vmatpush1.bf16.msra.mxu0 0
        %7525 = vmatprep.subr.bf16.mxu0 0
        %7526 = vmatpush1.bf16.msra.mxu0 0
        %7527 = vmatprep.subr.bf16.mxu0 0
        %7528 = vmatpush1.bf16.msra.mxu0 0
        %7529 = vmatprep.subr.bf16.mxu0 0
        %7530 = vmatpush1.bf16.msra.mxu0 0
        %7531 = vmatprep.mubr.bf16.mxu0 0
        %7532 = vmatmul.mubr.bf16.gmra.mrb[0].mxu0 %v7411
        %v7533 = vpop.f32.mrb[0].mxu0
        %v7534 = vadd.f32 0.0, %v7533
        %v7535 = vpop.f32.mrb[0].mxu0
        %v7536 = vpop.f32.mrb[0].mxu0
        %v7537 = vadd.f32 0.0, %v7536
        %v7538 = vpop.f32.mrb[0].mxu0
        %7539 = vdwg.mxu0
        %7540 = vrot.lane.b32.xlu0 %v7448, 12
        %v7541 = vpop.permute.xlu0 %7540
        %7542 = vrot.lane.b32.xlu0 %v7452, 12
        %v7543 = vpop.permute.xlu0 %7542
        %7544 = vrot.lane.b32.xlu0 %v7450, 12
        %v7545 = vpop.permute.xlu0 %7544
        %7546 = vrot.lane.b32.xlu0 %v7454, 12
        %v7547 = vpop.permute.xlu0 %7546
        %7548 = vrot.lane.b32.xlu0 %v7491, 12
        %v7549 = vpop.permute.xlu0 %7548
        %7550 = vrot.lane.b32.xlu0 %v7495, 12
        %v7551 = vpop.permute.xlu0 %7550
        %7552 = vrot.lane.b32.xlu0 %v7493, 12
        %v7553 = vpop.permute.xlu0 %7552
        %7554 = vrot.lane.b32.xlu0 %v7497, 12
        %v7555 = vpop.permute.xlu0 %7554
        %7556 = vrot.lane.b32.xlu0 %v7534, 12
        %v7557 = vpop.permute.xlu0 %7556
        %7558 = vrot.lane.b32.xlu0 %v7537, 12
        %v7559 = vpop.permute.xlu0 %7558
        %v7560 = vsel %vm1057, %v7553, %v7557
        %v7561 = vsel %vm1057, %v7555, %v7559
        %v7562 = vsel %vm1057, %v7549, %v7553
        %v7563 = vsel %vm1057, %v7551, %v7555
        %v7564 = vsel %vm1057, %v7545, %v7549
        %v7565 = vsel %vm1057, %v7547, %v7551
        %v7566 = vsel %vm1057, %v7541, %v7545
        %v7567 = vsel %vm1057, %v7543, %v7547
        %v7568 = vadd.f32 %v7395, %v7566
        %v7569 = vadd.f32 %v7396, %v7564
        %v7570 = vadd.f32 %v7397, %v7562
        %v7571 = vadd.f32 %v7398, %v7560
        %v7572 = vadd.f32 %v7399, %v7567
        %v7573 = vadd.f32 %v7400, %v7565
        %v7574 = vadd.f32 %v7401, %v7563
        %v7575 = vadd.f32 %v7402, %v7561
        %v7576 = vld [vmem:[%s2] sm:$0xff]
        %v7577 = vld [vmem:[%s2 + $0x8] sm:$0xf]
        %7579 = vset.pattern.permute.xlu0 0
        %7580 = vperm.xlu0 %7579, %v7576
        %v7581 = vpop.permute.xlu0 %7580
        %7584 = vset.pattern.permute.xlu0 0
        %7585 = vperm.xlu0 %7584, %v7577
        %v7586 = vpop.permute.xlu0 %7585
        %v7588 = vadd.f32 %v7568, %v7581
        %v7589 = vadd.f32 %v7569, %v7581
        %v7590 = vadd.f32 %v7570, %v7581
        %v7591 = vadd.f32 %v7571, %v7581
        %v7592 = vadd.f32 %v7572, %v7586
        %v7593 = vadd.f32 %v7573, %v7586
        %v7594 = vadd.f32 %v7574, %v7586
        %v7595 = vadd.f32 %v7575, %v7586
        %vm7596 = vcmp.gt.f32.partialorder %v7588, 0.0
        %vm7597 = vcmp.gt.f32.partialorder %v7589, 0.0
        %vm7598 = vcmp.gt.f32.partialorder %v7590, 0.0
        %vm7599 = vcmp.gt.f32.partialorder %v7591, 0.0
        %vm7600 = vcmp.gt.f32.partialorder %v7592, 0.0
        %vm7601 = vcmp.gt.f32.partialorder %v7593, 0.0
        %vm7602 = vcmp.gt.f32.partialorder %v7594, 0.0
        %vm7603 = vcmp.gt.f32.partialorder %v7595, 0.0
        %v7604 = vmin.f32 %v7588, 0.0
        %v7605 = vmin.f32 %v7589, 0.0
        %v7606 = vmin.f32 %v7590, 0.0
        %v7607 = vmin.f32 %v7591, 0.0
        %v7608 = vmin.f32 %v7592, 0.0
        %v7609 = vmin.f32 %v7593, 0.0
        %v7610 = vmin.f32 %v7594, 0.0
        %v7611 = vmin.f32 %v7595, 0.0
        %v7612 = vmul.f32 %v7604, 1.442695
        %v7613 = vpow.pop %v7612
        %v7614 = vmul.f32 %v7605, 1.442695
        %v7615 = vpow.pop %v7614
        %v7616 = vmul.f32 %v7606, 1.442695
        %v7617 = vpow.pop %v7616
        %v7618 = vmul.f32 %v7607, 1.442695
        %v7619 = vpow.pop %v7618
        %v7620 = vmul.f32 %v7608, 1.442695
        %v7621 = vpow.pop %v7620
        %v7622 = vmul.f32 %v7609, 1.442695
        %v7623 = vpow.pop %v7622
        %v7624 = vmul.f32 %v7610, 1.442695
        %v7625 = vpow.pop %v7624
        %v7626 = vmul.f32 %v7611, 1.442695
        %v7627 = vpow.pop %v7626
        %v7628 = vsub.f32 %v7613, 1.0
        %v7629 = vsub.f32 %v7615, 1.0
        %v7630 = vsub.f32 %v7617, 1.0
        %v7631 = vsub.f32 %v7619, 1.0
        %v7632 = vsub.f32 %v7621, 1.0
        %v7633 = vsub.f32 %v7623, 1.0
        %v7634 = vsub.f32 %v7625, 1.0
        %v7635 = vsub.f32 %v7627, 1.0
        %v7636 = vsel %vm7596, %v7588, %v7628
        %v7637 = vsel %vm7597, %v7589, %v7629
        %v7638 = vsel %vm7598, %v7590, %v7630
        %v7639 = vsel %vm7599, %v7591, %v7631
        %v7640 = vsel %vm7600, %v7592, %v7632
        %v7641 = vsel %vm7601, %v7593, %v7633
        %v7642 = vsel %vm7602, %v7594, %v7634
        %v7643 = vsel %vm7603, %v7595, %v7635
        %s7644 = scalar_lea.vmem %s204, 448 [#allocation7]
        %7645 = vst [vmem:[%s7644] sm:$0xff] %v7636
        %7646 = vst [vmem:[%s7644 + $0x8] sm:$0xff] %v7637
        %7647 = vst [vmem:[%s7644 + $0x10] sm:$0xff] %v7638
        %7648 = vst [vmem:[%s7644 + $0x18] sm:$0xff] %v7639
        %7649 = vst [vmem:[%s7644 + $0x20] sm:$0xf] %v7640
        %7650 = vst [vmem:[%s7644 + $0x28] sm:$0xf] %v7641
        %7651 = vst [vmem:[%s7644 + $0x30] sm:$0xf] %v7642
        %7652 = vst [vmem:[%s7644 + $0x38] sm:$0xf] %v7643
        %s7653 = scalar_lea.vmem %s178, 480 [#allocation2]
        %v7654 = vld [vmem:[%s7653] sm:$0xff]
        %v7655 = vld [vmem:[%s7653 + $0x8] sm:$0xff]
        %v7656 = vld [vmem:[%s7653 + $0x10] sm:$0xf]
        %v7657 = vld [vmem:[%s7653 + $0x14] sm:$0xff]
        %v7658 = vld [vmem:[%s7653 + $0x1c] sm:$0xff]
        %v7659 = vld [vmem:[%s7653 + $0x24] sm:$0xf]
        %v7660 = vld [vmem:[%s7653 + $0x28] sm:$0x77]
        %v7661 = vld [vmem:[%s7653 + $0x30] sm:$0x77]
        %v7662 = vld [vmem:[%s7653 + $0x38] sm:$0x7]
        %v7663 = vld [vmem:[#allocation5] sm:$0xf]
        %v7664 = vld [vmem:[#allocation5 + $0x4] sm:$0x3]
        %v7667 = vunpack.c.l.b16 %v7663
        %v7668 = vunpack.c.l.b16 %v7664
        %v7669 = vpack.c.b16 %v7668, %v7667
        %v7676 = vunpack.c.l.b16 %v7654
        %v7677 = vunpack.c.h.b16 %v7654
        %v7678 = vunpack.c.l.b16 %v7655
        %v7679 = vunpack.c.h.b16 %v7655
        %v7680 = vunpack.c.l.b16 %v7657
        %v7681 = vunpack.c.h.b16 %v7657
        %v7682 = vunpack.c.l.b16 %v7658
        %v7683 = vunpack.c.h.b16 %v7658
        %v7684 = vunpack.c.l.b16 %v7660
        %v7685 = vunpack.c.h.b16 %v7660
        %v7686 = vunpack.c.l.b16 %v7661
        %v7687 = vunpack.c.h.b16 %v7661
        %v7688 = vpack.c.b16 %v7680, %v7676
        %v7689 = vpack.c.b16 %v7681, %v7677
        %v7690 = vpack.c.b16 %v7682, %v7678
        %v7691 = vpack.c.b16 %v7683, %v7679
        %v7692 = vpack.c.b16 %v7684, %v7684
        %v7693 = vpack.c.b16 %v7685, %v7685
        %v7694 = vpack.c.b16 %v7686, %v7686
        %v7695 = vpack.c.b16 %v7687, %v7687
        %v7701 = vsel %vm254, %v7669, 0
        %v7704 = vand.u32 %v7692, %v261
        %v7707 = vand.u32 %v7693, %v261
        %v7710 = vand.u32 %v7694, %v261
        %v7713 = vand.u32 %v7695, %v261
        %7715 = vmatprep.subr.bf16.mxu0 %v7689
        %7716 = vmatpush1.bf16.msra.mxu0 %v7688
        %7717 = vmatprep.subr.bf16.mxu0 %v7707
        %7718 = vmatpush1.bf16.msra.mxu0 %v7704
        %7719 = vmatprep.subr.bf16.mxu0 0
        %7720 = vmatpush1.bf16.msra.mxu0 0
        %7721 = vmatprep.subr.bf16.mxu0 0
        %7722 = vmatpush1.bf16.msra.mxu0 0
        %7723 = vmatprep.subr.bf16.mxu0 0
        %7724 = vmatpush1.bf16.msra.mxu0 0
        %7725 = vmatprep.subr.bf16.mxu0 0
        %7726 = vmatpush1.bf16.msra.mxu0 0
        %7727 = vmatprep.subr.bf16.mxu0 0
        %7728 = vmatpush1.bf16.msra.mxu0 0
        %7729 = vmatprep.subr.bf16.mxu0 0
        %7730 = vmatpush1.bf16.msra.mxu0 0
        %7731 = vmatprep.subr.bf16.mxu0 0
        %7732 = vmatpush1.bf16.msra.mxu0 0
        %7733 = vmatprep.subr.bf16.mxu0 0
        %7734 = vmatpush1.bf16.msra.mxu0 0
        %7735 = vmatprep.subr.bf16.mxu0 0
        %7736 = vmatpush1.bf16.msra.mxu0 0
        %7737 = vmatprep.subr.bf16.mxu0 0
        %7738 = vmatpush1.bf16.msra.mxu0 0
        %7739 = vmatprep.subr.bf16.mxu0 0
        %7740 = vmatpush1.bf16.msra.mxu0 0
        %7741 = vmatprep.subr.bf16.mxu0 0
        %7742 = vmatpush1.bf16.msra.mxu0 0
        %7743 = vmatprep.subr.bf16.mxu0 0
        %7744 = vmatpush1.bf16.msra.mxu0 0
        %7745 = vmatprep.subr.bf16.mxu0 0
        %7746 = vmatpush1.bf16.msra.mxu0 0
        %7747 = vmatprep.mubr.bf16.mxu0 0
        %7748 = vmatmul.mubr.bf16.gmra.mrb[0].mxu0 %v7701
        %v7749 = vpop.f32.mrb[0].mxu0
        %v7750 = vadd.f32 0.0, %v7749
        %v7751 = vpop.f32.mrb[0].mxu0
        %v7752 = vadd.f32 0.0, %v7751
        %v7753 = vpop.f32.mrb[0].mxu0
        %v7754 = vadd.f32 0.0, %v7753
        %v7755 = vpop.f32.mrb[0].mxu0
        %v7756 = vadd.f32 0.0, %v7755
        %7757 = vdwg.mxu0
        %7758 = vmatprep.subr.bf16.mxu0 %v7691
        %7759 = vmatpush1.bf16.msra.mxu0 %v7690
        %7760 = vmatprep.subr.bf16.mxu0 %v7713
        %7761 = vmatpush1.bf16.msra.mxu0 %v7710
        %7762 = vmatprep.subr.bf16.mxu0 0
        %7763 = vmatpush1.bf16.msra.mxu0 0
        %7764 = vmatprep.subr.bf16.mxu0 0
        %7765 = vmatpush1.bf16.msra.mxu0 0
        %7766 = vmatprep.subr.bf16.mxu0 0
        %7767 = vmatpush1.bf16.msra.mxu0 0
        %7768 = vmatprep.subr.bf16.mxu0 0
        %7769 = vmatpush1.bf16.msra.mxu0 0
        %7770 = vmatprep.subr.bf16.mxu0 0
        %7771 = vmatpush1.bf16.msra.mxu0 0
        %7772 = vmatprep.subr.bf16.mxu0 0
        %7773 = vmatpush1.bf16.msra.mxu0 0
        %7774 = vmatprep.subr.bf16.mxu0 0
        %7775 = vmatpush1.bf16.msra.mxu0 0
        %7776 = vmatprep.subr.bf16.mxu0 0
        %7777 = vmatpush1.bf16.msra.mxu0 0
        %7778 = vmatprep.subr.bf16.mxu0 0
        %7779 = vmatpush1.bf16.msra.mxu0 0
        %7780 = vmatprep.subr.bf16.mxu0 0
        %7781 = vmatpush1.bf16.msra.mxu0 0
        %7782 = vmatprep.subr.bf16.mxu0 0
        %7783 = vmatpush1.bf16.msra.mxu0 0
        %7784 = vmatprep.subr.bf16.mxu0 0
        %7785 = vmatpush1.bf16.msra.mxu0 0
        %7786 = vmatprep.subr.bf16.mxu0 0
        %7787 = vmatpush1.bf16.msra.mxu0 0
        %7788 = vmatprep.subr.bf16.mxu0 0
        %7789 = vmatpush1.bf16.msra.mxu0 0
        %7790 = vmatprep.mubr.bf16.mxu0 0
        %7791 = vmatmul.mubr.bf16.gmra.mrb[0].mxu0 %v7701
        %v7792 = vpop.f32.mrb[0].mxu0
        %v7793 = vadd.f32 0.0, %v7792
        %v7794 = vpop.f32.mrb[0].mxu0
        %v7795 = vadd.f32 0.0, %v7794
        %v7796 = vpop.f32.mrb[0].mxu0
        %v7797 = vadd.f32 0.0, %v7796
        %v7798 = vpop.f32.mrb[0].mxu0
        %v7799 = vadd.f32 0.0, %v7798
        %7800 = vdwg.mxu0
        %v7801 = vld [vmem:[%s360] sm:$0xf]
        %v7802 = vld [vmem:[%s360 + $0x4] sm:$0x3]
        %v7805 = vunpack.c.l.b16 %v7801
        %v7806 = vunpack.c.l.b16 %v7802
        %v7807 = vpack.c.b16 %v7806, %v7805
        %v7811 = vunpack.c.l.b16 %v7656
        %v7812 = vunpack.c.l.b16 %v7659
        %v7813 = vunpack.c.l.b16 %v7662
        %v7814 = vpack.c.b16 %v7812, %v7811
        %v7815 = vpack.c.b16 %v7813, %v7813
        %v7818 = vsel %vm254, %v7807, 0
        %v7821 = vand.u32 %v7815, %v261
        %7823 = vmatprep.subr.bf16.mxu0 %v7689
        %7824 = vmatpush1.bf16.msra.mxu0 %v7688
        %7825 = vmatprep.subr.bf16.mxu0 %v7707
        %7826 = vmatpush1.bf16.msra.mxu0 %v7704
        %7827 = vmatprep.subr.bf16.mxu0 0
        %7828 = vmatpush1.bf16.msra.mxu0 0
        %7829 = vmatprep.subr.bf16.mxu0 0
        %7830 = vmatpush1.bf16.msra.mxu0 0
        %7831 = vmatprep.subr.bf16.mxu0 0
        %7832 = vmatpush1.bf16.msra.mxu0 0
        %7833 = vmatprep.subr.bf16.mxu0 0
        %7834 = vmatpush1.bf16.msra.mxu0 0
        %7835 = vmatprep.subr.bf16.mxu0 0
        %7836 = vmatpush1.bf16.msra.mxu0 0
        %7837 = vmatprep.subr.bf16.mxu0 0
        %7838 = vmatpush1.bf16.msra.mxu0 0
        %7839 = vmatprep.subr.bf16.mxu0 0
        %7840 = vmatpush1.bf16.msra.mxu0 0
        %7841 = vmatprep.subr.bf16.mxu0 0
        %7842 = vmatpush1.bf16.msra.mxu0 0
        %7843 = vmatprep.subr.bf16.mxu0 0
        %7844 = vmatpush1.bf16.msra.mxu0 0
        %7845 = vmatprep.subr.bf16.mxu0 0
        %7846 = vmatpush1.bf16.msra.mxu0 0
        %7847 = vmatprep.subr.bf16.mxu0 0
        %7848 = vmatpush1.bf16.msra.mxu0 0
        %7849 = vmatprep.subr.bf16.mxu0 0
        %7850 = vmatpush1.bf16.msra.mxu0 0
        %7851 = vmatprep.subr.bf16.mxu0 0
        %7852 = vmatpush1.bf16.msra.mxu0 0
        %7853 = vmatprep.subr.bf16.mxu0 0
        %7854 = vmatpush1.bf16.msra.mxu0 0
        %7855 = vmatprep.mubr.bf16.mxu0 0
        %7856 = vmatmul.mubr.bf16.gmra.mrb[0].mxu0 %v7818
        %v7857 = vpop.f32.mrb[0].mxu0
        %v7858 = vadd.f32 0.0, %v7857
        %v7859 = vpop.f32.mrb[0].mxu0
        %v7860 = vadd.f32 0.0, %v7859
        %v7861 = vpop.f32.mrb[0].mxu0
        %v7862 = vadd.f32 0.0, %v7861
        %v7863 = vpop.f32.mrb[0].mxu0
        %v7864 = vadd.f32 0.0, %v7863
        %7865 = vdwg.mxu0
        %7866 = vmatprep.subr.bf16.mxu0 %v7691
        %7867 = vmatpush1.bf16.msra.mxu0 %v7690
        %7868 = vmatprep.subr.bf16.mxu0 %v7713
        %7869 = vmatpush1.bf16.msra.mxu0 %v7710
        %7870 = vmatprep.subr.bf16.mxu0 0
        %7871 = vmatpush1.bf16.msra.mxu0 0
        %7872 = vmatprep.subr.bf16.mxu0 0
        %7873 = vmatpush1.bf16.msra.mxu0 0
        %7874 = vmatprep.subr.bf16.mxu0 0
        %7875 = vmatpush1.bf16.msra.mxu0 0
        %7876 = vmatprep.subr.bf16.mxu0 0
        %7877 = vmatpush1.bf16.msra.mxu0 0
        %7878 = vmatprep.subr.bf16.mxu0 0
        %7879 = vmatpush1.bf16.msra.mxu0 0
        %7880 = vmatprep.subr.bf16.mxu0 0
        %7881 = vmatpush1.bf16.msra.mxu0 0
        %7882 = vmatprep.subr.bf16.mxu0 0
        %7883 = vmatpush1.bf16.msra.mxu0 0
        %7884 = vmatprep.subr.bf16.mxu0 0
        %7885 = vmatpush1.bf16.msra.mxu0 0
        %7886 = vmatprep.subr.bf16.mxu0 0
        %7887 = vmatpush1.bf16.msra.mxu0 0
        %7888 = vmatprep.subr.bf16.mxu0 0
        %7889 = vmatpush1.bf16.msra.mxu0 0
        %7890 = vmatprep.subr.bf16.mxu0 0
        %7891 = vmatpush1.bf16.msra.mxu0 0
        %7892 = vmatprep.subr.bf16.mxu0 0
        %7893 = vmatpush1.bf16.msra.mxu0 0
        %7894 = vmatprep.subr.bf16.mxu0 0
        %7895 = vmatpush1.bf16.msra.mxu0 0
        %7896 = vmatprep.subr.bf16.mxu0 0
        %7897 = vmatpush1.bf16.msra.mxu0 0
        %7898 = vmatprep.mubr.bf16.mxu0 0
        %7899 = vmatmul.mubr.bf16.gmra.mrb[0].mxu0 %v7818
        %v7900 = vpop.f32.mrb[0].mxu0
        %v7901 = vadd.f32 0.0, %v7900
        %v7902 = vpop.f32.mrb[0].mxu0
        %v7903 = vadd.f32 0.0, %v7902
        %v7904 = vpop.f32.mrb[0].mxu0
        %v7905 = vadd.f32 0.0, %v7904
        %v7906 = vpop.f32.mrb[0].mxu0
        %v7907 = vadd.f32 0.0, %v7906
        %7908 = vdwg.mxu0
        %7909 = vmatprep.subr.bf16.mxu0 0
        %7910 = vmatpush1.bf16.msra.mxu0 %v7814
        %7911 = vmatprep.subr.bf16.mxu0 0
        %7912 = vmatpush1.bf16.msra.mxu0 %v7821
        %7913 = vmatprep.subr.bf16.mxu0 0
        %7914 = vmatpush1.bf16.msra.mxu0 0
        %7915 = vmatprep.subr.bf16.mxu0 0
        %7916 = vmatpush1.bf16.msra.mxu0 0
        %7917 = vmatprep.subr.bf16.mxu0 0
        %7918 = vmatpush1.bf16.msra.mxu0 0
        %7919 = vmatprep.subr.bf16.mxu0 0
        %7920 = vmatpush1.bf16.msra.mxu0 0
        %7921 = vmatprep.subr.bf16.mxu0 0
        %7922 = vmatpush1.bf16.msra.mxu0 0
        %7923 = vmatprep.subr.bf16.mxu0 0
        %7924 = vmatpush1.bf16.msra.mxu0 0
        %7925 = vmatprep.subr.bf16.mxu0 0
        %7926 = vmatpush1.bf16.msra.mxu0 0
        %7927 = vmatprep.subr.bf16.mxu0 0
        %7928 = vmatpush1.bf16.msra.mxu0 0
        %7929 = vmatprep.subr.bf16.mxu0 0
        %7930 = vmatpush1.bf16.msra.mxu0 0
        %7931 = vmatprep.subr.bf16.mxu0 0
        %7932 = vmatpush1.bf16.msra.mxu0 0
        %7933 = vmatprep.subr.bf16.mxu0 0
        %7934 = vmatpush1.bf16.msra.mxu0 0
        %7935 = vmatprep.subr.bf16.mxu0 0
        %7936 = vmatpush1.bf16.msra.mxu0 0
        %7937 = vmatprep.subr.bf16.mxu0 0
        %7938 = vmatpush1.bf16.msra.mxu0 0
        %7939 = vmatprep.subr.bf16.mxu0 0
        %7940 = vmatpush1.bf16.msra.mxu0 0
        %7941 = vmatprep.mubr.bf16.mxu0 0
        %7942 = vmatmul.mubr.bf16.gmra.mrb[0].mxu0 %v7818
        %v7943 = vpop.f32.mrb[0].mxu0
        %v7944 = vadd.f32 0.0, %v7943
        %v7945 = vpop.f32.mrb[0].mxu0
        %v7946 = vpop.f32.mrb[0].mxu0
        %v7947 = vadd.f32 0.0, %v7946
        %v7948 = vpop.f32.mrb[0].mxu0
        %7949 = vdwg.mxu0
        %7950 = vrot.lane.b32.xlu0 %v7858, 99
        %v7951 = vpop.permute.xlu0 %7950
        %7952 = vrot.lane.b32.xlu0 %v7862, 99
        %v7953 = vpop.permute.xlu0 %7952
        %7954 = vrot.lane.b32.xlu0 %v7860, 99
        %v7955 = vpop.permute.xlu0 %7954
        %7956 = vrot.lane.b32.xlu0 %v7864, 99
        %v7957 = vpop.permute.xlu0 %7956
        %7958 = vrot.lane.b32.xlu0 %v7901, 99
        %v7959 = vpop.permute.xlu0 %7958
        %7960 = vrot.lane.b32.xlu0 %v7905, 99
        %v7961 = vpop.permute.xlu0 %7960
        %7962 = vrot.lane.b32.xlu0 %v7903, 99
        %v7963 = vpop.permute.xlu0 %7962
        %7964 = vrot.lane.b32.xlu0 %v7907, 99
        %v7965 = vpop.permute.xlu0 %7964
        %7966 = vrot.lane.b32.xlu0 %v7944, 99
        %v7967 = vpop.permute.xlu0 %7966
        %7968 = vrot.lane.b32.xlu0 %v7947, 99
        %v7969 = vpop.permute.xlu0 %7968
        %v7970 = vsel %vm532, %v7963, %v7967
        %v7971 = vsel %vm532, %v7965, %v7969
        %v7972 = vsel %vm532, %v7959, %v7963
        %v7973 = vsel %vm532, %v7961, %v7965
        %v7974 = vsel %vm532, %v7955, %v7959
        %v7975 = vsel %vm532, %v7957, %v7961
        %v7976 = vsel %vm532, %v7951, %v7955
        %v7977 = vsel %vm532, %v7953, %v7957
        %v7978 = vadd.f32 %v7750, %v7976
        %v7979 = vadd.f32 %v7752, %v7974
        %v7980 = vadd.f32 %v7793, %v7972
        %v7981 = vadd.f32 %v7795, %v7970
        %v7982 = vadd.f32 %v7754, %v7977
        %v7983 = vadd.f32 %v7756, %v7975
        %v7984 = vadd.f32 %v7797, %v7973
        %v7985 = vadd.f32 %v7799, %v7971
        %v7986 = vld [vmem:[%s549] sm:$0xf]
        %v7987 = vld [vmem:[%s549 + $0x4] sm:$0x3]
        %v7990 = vunpack.c.l.b16 %v7986
        %v7991 = vunpack.c.l.b16 %v7987
        %v7992 = vpack.c.b16 %v7991, %v7990
        %v7994 = vsel %vm254, %v7992, 0
        %7996 = vmatprep.subr.bf16.mxu0 %v7689
        %7997 = vmatpush1.bf16.msra.mxu0 %v7688
        %7998 = vmatprep.subr.bf16.mxu0 %v7707
        %7999 = vmatpush1.bf16.msra.mxu0 %v7704
        %8000 = vmatprep.subr.bf16.mxu0 0
        %8001 = vmatpush1.bf16.msra.mxu0 0
        %8002 = vmatprep.subr.bf16.mxu0 0
        %8003 = vmatpush1.bf16.msra.mxu0 0
        %8004 = vmatprep.subr.bf16.mxu0 0
        %8005 = vmatpush1.bf16.msra.mxu0 0
        %8006 = vmatprep.subr.bf16.mxu0 0
        %8007 = vmatpush1.bf16.msra.mxu0 0
        %8008 = vmatprep.subr.bf16.mxu0 0
        %8009 = vmatpush1.bf16.msra.mxu0 0
        %8010 = vmatprep.subr.bf16.mxu0 0
        %8011 = vmatpush1.bf16.msra.mxu0 0
        %8012 = vmatprep.subr.bf16.mxu0 0
        %8013 = vmatpush1.bf16.msra.mxu0 0
        %8014 = vmatprep.subr.bf16.mxu0 0
        %8015 = vmatpush1.bf16.msra.mxu0 0
        %8016 = vmatprep.subr.bf16.mxu0 0
        %8017 = vmatpush1.bf16.msra.mxu0 0
        %8018 = vmatprep.subr.bf16.mxu0 0
        %8019 = vmatpush1.bf16.msra.mxu0 0
        %8020 = vmatprep.subr.bf16.mxu0 0
        %8021 = vmatpush1.bf16.msra.mxu0 0
        %8022 = vmatprep.subr.bf16.mxu0 0
        %8023 = vmatpush1.bf16.msra.mxu0 0
        %8024 = vmatprep.subr.bf16.mxu0 0
        %8025 = vmatpush1.bf16.msra.mxu0 0
        %8026 = vmatprep.subr.bf16.mxu0 0
        %8027 = vmatpush1.bf16.msra.mxu0 0
        %8028 = vmatprep.mubr.bf16.mxu0 0
        %8029 = vmatmul.mubr.bf16.gmra.mrb[0].mxu0 %v7994
        %v8030 = vpop.f32.mrb[0].mxu0
        %v8031 = vadd.f32 0.0, %v8030
        %v8032 = vpop.f32.mrb[0].mxu0
        %v8033 = vadd.f32 0.0, %v8032
        %v8034 = vpop.f32.mrb[0].mxu0
        %v8035 = vadd.f32 0.0, %v8034
        %v8036 = vpop.f32.mrb[0].mxu0
        %v8037 = vadd.f32 0.0, %v8036
        %8038 = vdwg.mxu0
        %8039 = vmatprep.subr.bf16.mxu0 %v7691
        %8040 = vmatpush1.bf16.msra.mxu0 %v7690
        %8041 = vmatprep.subr.bf16.mxu0 %v7713
        %8042 = vmatpush1.bf16.msra.mxu0 %v7710
        %8043 = vmatprep.subr.bf16.mxu0 0
        %8044 = vmatpush1.bf16.msra.mxu0 0
        %8045 = vmatprep.subr.bf16.mxu0 0
        %8046 = vmatpush1.bf16.msra.mxu0 0
        %8047 = vmatprep.subr.bf16.mxu0 0
        %8048 = vmatpush1.bf16.msra.mxu0 0
        %8049 = vmatprep.subr.bf16.mxu0 0
        %8050 = vmatpush1.bf16.msra.mxu0 0
        %8051 = vmatprep.subr.bf16.mxu0 0
        %8052 = vmatpush1.bf16.msra.mxu0 0
        %8053 = vmatprep.subr.bf16.mxu0 0
        %8054 = vmatpush1.bf16.msra.mxu0 0
        %8055 = vmatprep.subr.bf16.mxu0 0
        %8056 = vmatpush1.bf16.msra.mxu0 0
        %8057 = vmatprep.subr.bf16.mxu0 0
        %8058 = vmatpush1.bf16.msra.mxu0 0
        %8059 = vmatprep.subr.bf16.mxu0 0
        %8060 = vmatpush1.bf16.msra.mxu0 0
        %8061 = vmatprep.subr.bf16.mxu0 0
        %8062 = vmatpush1.bf16.msra.mxu0 0
        %8063 = vmatprep.subr.bf16.mxu0 0
        %8064 = vmatpush1.bf16.msra.mxu0 0
        %8065 = vmatprep.subr.bf16.mxu0 0
        %8066 = vmatpush1.bf16.msra.mxu0 0
        %8067 = vmatprep.subr.bf16.mxu0 0
        %8068 = vmatpush1.bf16.msra.mxu0 0
        %8069 = vmatprep.subr.bf16.mxu0 0
        %8070 = vmatpush1.bf16.msra.mxu0 0
        %8071 = vmatprep.mubr.bf16.mxu0 0
        %8072 = vmatmul.mubr.bf16.gmra.mrb[0].mxu0 %v7994
        %v8073 = vpop.f32.mrb[0].mxu0
        %v8074 = vadd.f32 0.0, %v8073
        %v8075 = vpop.f32.mrb[0].mxu0
        %v8076 = vadd.f32 0.0, %v8075
        %v8077 = vpop.f32.mrb[0].mxu0
        %v8078 = vadd.f32 0.0, %v8077
        %v8079 = vpop.f32.mrb[0].mxu0
        %v8080 = vadd.f32 0.0, %v8079
        %8081 = vdwg.mxu0
        %8082 = vmatprep.subr.bf16.mxu0 0
        %8083 = vmatpush1.bf16.msra.mxu0 %v7814
        %8084 = vmatprep.subr.bf16.mxu0 0
        %8085 = vmatpush1.bf16.msra.mxu0 %v7821
        %8086 = vmatprep.subr.bf16.mxu0 0
        %8087 = vmatpush1.bf16.msra.mxu0 0
        %8088 = vmatprep.subr.bf16.mxu0 0
        %8089 = vmatpush1.bf16.msra.mxu0 0
        %8090 = vmatprep.subr.bf16.mxu0 0
        %8091 = vmatpush1.bf16.msra.mxu0 0
        %8092 = vmatprep.subr.bf16.mxu0 0
        %8093 = vmatpush1.bf16.msra.mxu0 0
        %8094 = vmatprep.subr.bf16.mxu0 0
        %8095 = vmatpush1.bf16.msra.mxu0 0
        %8096 = vmatprep.subr.bf16.mxu0 0
        %8097 = vmatpush1.bf16.msra.mxu0 0
        %8098 = vmatprep.subr.bf16.mxu0 0
        %8099 = vmatpush1.bf16.msra.mxu0 0
        %8100 = vmatprep.subr.bf16.mxu0 0
        %8101 = vmatpush1.bf16.msra.mxu0 0
        %8102 = vmatprep.subr.bf16.mxu0 0
        %8103 = vmatpush1.bf16.msra.mxu0 0
        %8104 = vmatprep.subr.bf16.mxu0 0
        %8105 = vmatpush1.bf16.msra.mxu0 0
        %8106 = vmatprep.subr.bf16.mxu0 0
        %8107 = vmatpush1.bf16.msra.mxu0 0
        %8108 = vmatprep.subr.bf16.mxu0 0
        %8109 = vmatpush1.bf16.msra.mxu0 0
        %8110 = vmatprep.subr.bf16.mxu0 0
        %8111 = vmatpush1.bf16.msra.mxu0 0
        %8112 = vmatprep.subr.bf16.mxu0 0
        %8113 = vmatpush1.bf16.msra.mxu0 0
        %8114 = vmatprep.mubr.bf16.mxu0 0
        %8115 = vmatmul.mubr.bf16.gmra.mrb[0].mxu0 %v7994
        %v8116 = vpop.f32.mrb[0].mxu0
        %v8117 = vadd.f32 0.0, %v8116
        %v8118 = vpop.f32.mrb[0].mxu0
        %v8119 = vpop.f32.mrb[0].mxu0
        %v8120 = vadd.f32 0.0, %v8119
        %v8121 = vpop.f32.mrb[0].mxu0
        %8122 = vdwg.mxu0
        %8123 = vrot.lane.b32.xlu0 %v8031, 70
        %v8124 = vpop.permute.xlu0 %8123
        %8125 = vrot.lane.b32.xlu0 %v8035, 70
        %v8126 = vpop.permute.xlu0 %8125
        %8127 = vrot.lane.b32.xlu0 %v8033, 70
        %v8128 = vpop.permute.xlu0 %8127
        %8129 = vrot.lane.b32.xlu0 %v8037, 70
        %v8130 = vpop.permute.xlu0 %8129
        %8131 = vrot.lane.b32.xlu0 %v8074, 70
        %v8132 = vpop.permute.xlu0 %8131
        %8133 = vrot.lane.b32.xlu0 %v8078, 70
        %v8134 = vpop.permute.xlu0 %8133
        %8135 = vrot.lane.b32.xlu0 %v8076, 70
        %v8136 = vpop.permute.xlu0 %8135
        %8137 = vrot.lane.b32.xlu0 %v8080, 70
        %v8138 = vpop.permute.xlu0 %8137
        %8139 = vrot.lane.b32.xlu0 %v8117, 70
        %v8140 = vpop.permute.xlu0 %8139
        %8141 = vrot.lane.b32.xlu0 %v8120, 70
        %v8142 = vpop.permute.xlu0 %8141
        %v8143 = vsel %vm707, %v8136, %v8140
        %v8144 = vsel %vm707, %v8138, %v8142
        %v8145 = vsel %vm707, %v8132, %v8136
        %v8146 = vsel %vm707, %v8134, %v8138
        %v8147 = vsel %vm707, %v8128, %v8132
        %v8148 = vsel %vm707, %v8130, %v8134
        %v8149 = vsel %vm707, %v8124, %v8128
        %v8150 = vsel %vm707, %v8126, %v8130
        %v8151 = vadd.f32 %v7978, %v8149
        %v8152 = vadd.f32 %v7979, %v8147
        %v8153 = vadd.f32 %v7980, %v8145
        %v8154 = vadd.f32 %v7981, %v8143
        %v8155 = vadd.f32 %v7982, %v8150
        %v8156 = vadd.f32 %v7983, %v8148
        %v8157 = vadd.f32 %v7984, %v8146
        %v8158 = vadd.f32 %v7985, %v8144
        %v8159 = vld [vmem:[%s724] sm:$0xf]
        %v8160 = vld [vmem:[%s724 + $0x4] sm:$0x3]
        %v8163 = vunpack.c.l.b16 %v8159
        %v8164 = vunpack.c.l.b16 %v8160
        %v8165 = vpack.c.b16 %v8164, %v8163
        %v8167 = vsel %vm254, %v8165, 0
        %8169 = vmatprep.subr.bf16.mxu0 %v7689
        %8170 = vmatpush1.bf16.msra.mxu0 %v7688
        %8171 = vmatprep.subr.bf16.mxu0 %v7707
        %8172 = vmatpush1.bf16.msra.mxu0 %v7704
        %8173 = vmatprep.subr.bf16.mxu0 0
        %8174 = vmatpush1.bf16.msra.mxu0 0
        %8175 = vmatprep.subr.bf16.mxu0 0
        %8176 = vmatpush1.bf16.msra.mxu0 0
        %8177 = vmatprep.subr.bf16.mxu0 0
        %8178 = vmatpush1.bf16.msra.mxu0 0
        %8179 = vmatprep.subr.bf16.mxu0 0
        %8180 = vmatpush1.bf16.msra.mxu0 0
        %8181 = vmatprep.subr.bf16.mxu0 0
        %8182 = vmatpush1.bf16.msra.mxu0 0
        %8183 = vmatprep.subr.bf16.mxu0 0
        %8184 = vmatpush1.bf16.msra.mxu0 0
        %8185 = vmatprep.subr.bf16.mxu0 0
        %8186 = vmatpush1.bf16.msra.mxu0 0
        %8187 = vmatprep.subr.bf16.mxu0 0
        %8188 = vmatpush1.bf16.msra.mxu0 0
        %8189 = vmatprep.subr.bf16.mxu0 0
        %8190 = vmatpush1.bf16.msra.mxu0 0
        %8191 = vmatprep.subr.bf16.mxu0 0
        %8192 = vmatpush1.bf16.msra.mxu0 0
        %8193 = vmatprep.subr.bf16.mxu0 0
        %8194 = vmatpush1.bf16.msra.mxu0 0
        %8195 = vmatprep.subr.bf16.mxu0 0
        %8196 = vmatpush1.bf16.msra.mxu0 0
        %8197 = vmatprep.subr.bf16.mxu0 0
        %8198 = vmatpush1.bf16.msra.mxu0 0
        %8199 = vmatprep.subr.bf16.mxu0 0
        %8200 = vmatpush1.bf16.msra.mxu0 0
        %8201 = vmatprep.mubr.bf16.mxu0 0
        %8202 = vmatmul.mubr.bf16.gmra.mrb[0].mxu0 %v8167
        %v8203 = vpop.f32.mrb[0].mxu0
        %v8204 = vadd.f32 0.0, %v8203
        %v8205 = vpop.f32.mrb[0].mxu0
        %v8206 = vadd.f32 0.0, %v8205
        %v8207 = vpop.f32.mrb[0].mxu0
        %v8208 = vadd.f32 0.0, %v8207
        %v8209 = vpop.f32.mrb[0].mxu0
        %v8210 = vadd.f32 0.0, %v8209
        %8211 = vdwg.mxu0
        %8212 = vmatprep.subr.bf16.mxu0 %v7691
        %8213 = vmatpush1.bf16.msra.mxu0 %v7690
        %8214 = vmatprep.subr.bf16.mxu0 %v7713
        %8215 = vmatpush1.bf16.msra.mxu0 %v7710
        %8216 = vmatprep.subr.bf16.mxu0 0
        %8217 = vmatpush1.bf16.msra.mxu0 0
        %8218 = vmatprep.subr.bf16.mxu0 0
        %8219 = vmatpush1.bf16.msra.mxu0 0
        %8220 = vmatprep.subr.bf16.mxu0 0
        %8221 = vmatpush1.bf16.msra.mxu0 0
        %8222 = vmatprep.subr.bf16.mxu0 0
        %8223 = vmatpush1.bf16.msra.mxu0 0
        %8224 = vmatprep.subr.bf16.mxu0 0
        %8225 = vmatpush1.bf16.msra.mxu0 0
        %8226 = vmatprep.subr.bf16.mxu0 0
        %8227 = vmatpush1.bf16.msra.mxu0 0
        %8228 = vmatprep.subr.bf16.mxu0 0
        %8229 = vmatpush1.bf16.msra.mxu0 0
        %8230 = vmatprep.subr.bf16.mxu0 0
        %8231 = vmatpush1.bf16.msra.mxu0 0
        %8232 = vmatprep.subr.bf16.mxu0 0
        %8233 = vmatpush1.bf16.msra.mxu0 0
        %8234 = vmatprep.subr.bf16.mxu0 0
        %8235 = vmatpush1.bf16.msra.mxu0 0
        %8236 = vmatprep.subr.bf16.mxu0 0
        %8237 = vmatpush1.bf16.msra.mxu0 0
        %8238 = vmatprep.subr.bf16.mxu0 0
        %8239 = vmatpush1.bf16.msra.mxu0 0
        %8240 = vmatprep.subr.bf16.mxu0 0
        %8241 = vmatpush1.bf16.msra.mxu0 0
        %8242 = vmatprep.subr.bf16.mxu0 0
        %8243 = vmatpush1.bf16.msra.mxu0 0
        %8244 = vmatprep.mubr.bf16.mxu0 0
        %8245 = vmatmul.mubr.bf16.gmra.mrb[0].mxu0 %v8167
        %v8246 = vpop.f32.mrb[0].mxu0
        %v8247 = vadd.f32 0.0, %v8246
        %v8248 = vpop.f32.mrb[0].mxu0
        %v8249 = vadd.f32 0.0, %v8248
        %v8250 = vpop.f32.mrb[0].mxu0
        %v8251 = vadd.f32 0.0, %v8250
        %v8252 = vpop.f32.mrb[0].mxu0
        %v8253 = vadd.f32 0.0, %v8252
        %8254 = vdwg.mxu0
        %8255 = vmatprep.subr.bf16.mxu0 0
        %8256 = vmatpush1.bf16.msra.mxu0 %v7814
        %8257 = vmatprep.subr.bf16.mxu0 0
        %8258 = vmatpush1.bf16.msra.mxu0 %v7821
        %8259 = vmatprep.subr.bf16.mxu0 0
        %8260 = vmatpush1.bf16.msra.mxu0 0
        %8261 = vmatprep.subr.bf16.mxu0 0
        %8262 = vmatpush1.bf16.msra.mxu0 0
        %8263 = vmatprep.subr.bf16.mxu0 0
        %8264 = vmatpush1.bf16.msra.mxu0 0
        %8265 = vmatprep.subr.bf16.mxu0 0
        %8266 = vmatpush1.bf16.msra.mxu0 0
        %8267 = vmatprep.subr.bf16.mxu0 0
        %8268 = vmatpush1.bf16.msra.mxu0 0
        %8269 = vmatprep.subr.bf16.mxu0 0
        %8270 = vmatpush1.bf16.msra.mxu0 0
        %8271 = vmatprep.subr.bf16.mxu0 0
        %8272 = vmatpush1.bf16.msra.mxu0 0
        %8273 = vmatprep.subr.bf16.mxu0 0
        %8274 = vmatpush1.bf16.msra.mxu0 0
        %8275 = vmatprep.subr.bf16.mxu0 0
        %8276 = vmatpush1.bf16.msra.mxu0 0
        %8277 = vmatprep.subr.bf16.mxu0 0
        %8278 = vmatpush1.bf16.msra.mxu0 0
        %8279 = vmatprep.subr.bf16.mxu0 0
        %8280 = vmatpush1.bf16.msra.mxu0 0
        %8281 = vmatprep.subr.bf16.mxu0 0
        %8282 = vmatpush1.bf16.msra.mxu0 0
        %8283 = vmatprep.subr.bf16.mxu0 0
        %8284 = vmatpush1.bf16.msra.mxu0 0
        %8285 = vmatprep.subr.bf16.mxu0 0
        %8286 = vmatpush1.bf16.msra.mxu0 0
        %8287 = vmatprep.mubr.bf16.mxu0 0
        %8288 = vmatmul.mubr.bf16.gmra.mrb[0].mxu0 %v8167
        %v8289 = vpop.f32.mrb[0].mxu0
        %v8290 = vadd.f32 0.0, %v8289
        %v8291 = vpop.f32.mrb[0].mxu0
        %v8292 = vpop.f32.mrb[0].mxu0
        %v8293 = vadd.f32 0.0, %v8292
        %v8294 = vpop.f32.mrb[0].mxu0
        %8295 = vdwg.mxu0
        %8296 = vrot.lane.b32.xlu0 %v8204, 41
        %v8297 = vpop.permute.xlu0 %8296
        %8298 = vrot.lane.b32.xlu0 %v8208, 41
        %v8299 = vpop.permute.xlu0 %8298
        %8300 = vrot.lane.b32.xlu0 %v8206, 41
        %v8301 = vpop.permute.xlu0 %8300
        %8302 = vrot.lane.b32.xlu0 %v8210, 41
        %v8303 = vpop.permute.xlu0 %8302
        %8304 = vrot.lane.b32.xlu0 %v8247, 41
        %v8305 = vpop.permute.xlu0 %8304
        %8306 = vrot.lane.b32.xlu0 %v8251, 41
        %v8307 = vpop.permute.xlu0 %8306
        %8308 = vrot.lane.b32.xlu0 %v8249, 41
        %v8309 = vpop.permute.xlu0 %8308
        %8310 = vrot.lane.b32.xlu0 %v8253, 41
        %v8311 = vpop.permute.xlu0 %8310
        %8312 = vrot.lane.b32.xlu0 %v8290, 41
        %v8313 = vpop.permute.xlu0 %8312
        %8314 = vrot.lane.b32.xlu0 %v8293, 41
        %v8315 = vpop.permute.xlu0 %8314
        %v8316 = vsel %vm882, %v8309, %v8313
        %v8317 = vsel %vm882, %v8311, %v8315
        %v8318 = vsel %vm882, %v8305, %v8309
        %v8319 = vsel %vm882, %v8307, %v8311
        %v8320 = vsel %vm882, %v8301, %v8305
        %v8321 = vsel %vm882, %v8303, %v8307
        %v8322 = vsel %vm882, %v8297, %v8301
        %v8323 = vsel %vm882, %v8299, %v8303
        %v8324 = vadd.f32 %v8151, %v8322
        %v8325 = vadd.f32 %v8152, %v8320
        %v8326 = vadd.f32 %v8153, %v8318
        %v8327 = vadd.f32 %v8154, %v8316
        %v8328 = vadd.f32 %v8155, %v8323
        %v8329 = vadd.f32 %v8156, %v8321
        %v8330 = vadd.f32 %v8157, %v8319
        %v8331 = vadd.f32 %v8158, %v8317
        %v8332 = vld [vmem:[%s899] sm:$0xf]
        %v8333 = vld [vmem:[%s899 + $0x4] sm:$0x3]
        %v8336 = vunpack.c.l.b16 %v8332
        %v8337 = vunpack.c.l.b16 %v8333
        %v8338 = vpack.c.b16 %v8337, %v8336
        %v8340 = vsel %vm254, %v8338, 0
        %8342 = vmatprep.subr.bf16.mxu0 %v7689
        %8343 = vmatpush1.bf16.msra.mxu0 %v7688
        %8344 = vmatprep.subr.bf16.mxu0 %v7707
        %8345 = vmatpush1.bf16.msra.mxu0 %v7704
        %8346 = vmatprep.subr.bf16.mxu0 0
        %8347 = vmatpush1.bf16.msra.mxu0 0
        %8348 = vmatprep.subr.bf16.mxu0 0
        %8349 = vmatpush1.bf16.msra.mxu0 0
        %8350 = vmatprep.subr.bf16.mxu0 0
        %8351 = vmatpush1.bf16.msra.mxu0 0
        %8352 = vmatprep.subr.bf16.mxu0 0
        %8353 = vmatpush1.bf16.msra.mxu0 0
        %8354 = vmatprep.subr.bf16.mxu0 0
        %8355 = vmatpush1.bf16.msra.mxu0 0
        %8356 = vmatprep.subr.bf16.mxu0 0
        %8357 = vmatpush1.bf16.msra.mxu0 0
        %8358 = vmatprep.subr.bf16.mxu0 0
        %8359 = vmatpush1.bf16.msra.mxu0 0
        %8360 = vmatprep.subr.bf16.mxu0 0
        %8361 = vmatpush1.bf16.msra.mxu0 0
        %8362 = vmatprep.subr.bf16.mxu0 0
        %8363 = vmatpush1.bf16.msra.mxu0 0
        %8364 = vmatprep.subr.bf16.mxu0 0
        %8365 = vmatpush1.bf16.msra.mxu0 0
        %8366 = vmatprep.subr.bf16.mxu0 0
        %8367 = vmatpush1.bf16.msra.mxu0 0
        %8368 = vmatprep.subr.bf16.mxu0 0
        %8369 = vmatpush1.bf16.msra.mxu0 0
        %8370 = vmatprep.subr.bf16.mxu0 0
        %8371 = vmatpush1.bf16.msra.mxu0 0
        %8372 = vmatprep.subr.bf16.mxu0 0
        %8373 = vmatpush1.bf16.msra.mxu0 0
        %8374 = vmatprep.mubr.bf16.mxu0 0
        %8375 = vmatmul.mubr.bf16.gmra.mrb[0].mxu0 %v8340
        %v8376 = vpop.f32.mrb[0].mxu0
        %v8377 = vadd.f32 0.0, %v8376
        %v8378 = vpop.f32.mrb[0].mxu0
        %v8379 = vadd.f32 0.0, %v8378
        %v8380 = vpop.f32.mrb[0].mxu0
        %v8381 = vadd.f32 0.0, %v8380
        %v8382 = vpop.f32.mrb[0].mxu0
        %v8383 = vadd.f32 0.0, %v8382
        %8384 = vdwg.mxu0
        %8385 = vmatprep.subr.bf16.mxu0 %v7691
        %8386 = vmatpush1.bf16.msra.mxu0 %v7690
        %8387 = vmatprep.subr.bf16.mxu0 %v7713
        %8388 = vmatpush1.bf16.msra.mxu0 %v7710
        %8389 = vmatprep.subr.bf16.mxu0 0
        %8390 = vmatpush1.bf16.msra.mxu0 0
        %8391 = vmatprep.subr.bf16.mxu0 0
        %8392 = vmatpush1.bf16.msra.mxu0 0
        %8393 = vmatprep.subr.bf16.mxu0 0
        %8394 = vmatpush1.bf16.msra.mxu0 0
        %8395 = vmatprep.subr.bf16.mxu0 0
        %8396 = vmatpush1.bf16.msra.mxu0 0
        %8397 = vmatprep.subr.bf16.mxu0 0
        %8398 = vmatpush1.bf16.msra.mxu0 0
        %8399 = vmatprep.subr.bf16.mxu0 0
        %8400 = vmatpush1.bf16.msra.mxu0 0
        %8401 = vmatprep.subr.bf16.mxu0 0
        %8402 = vmatpush1.bf16.msra.mxu0 0
        %8403 = vmatprep.subr.bf16.mxu0 0
        %8404 = vmatpush1.bf16.msra.mxu0 0
        %8405 = vmatprep.subr.bf16.mxu0 0
        %8406 = vmatpush1.bf16.msra.mxu0 0
        %8407 = vmatprep.subr.bf16.mxu0 0
        %8408 = vmatpush1.bf16.msra.mxu0 0
        %8409 = vmatprep.subr.bf16.mxu0 0
        %8410 = vmatpush1.bf16.msra.mxu0 0
        %8411 = vmatprep.subr.bf16.mxu0 0
        %8412 = vmatpush1.bf16.msra.mxu0 0
        %8413 = vmatprep.subr.bf16.mxu0 0
        %8414 = vmatpush1.bf16.msra.mxu0 0
        %8415 = vmatprep.subr.bf16.mxu0 0
        %8416 = vmatpush1.bf16.msra.mxu0 0
        %8417 = vmatprep.mubr.bf16.mxu0 0
        %8418 = vmatmul.mubr.bf16.gmra.mrb[0].mxu0 %v8340
        %v8419 = vpop.f32.mrb[0].mxu0
        %v8420 = vadd.f32 0.0, %v8419
        %v8421 = vpop.f32.mrb[0].mxu0
        %v8422 = vadd.f32 0.0, %v8421
        %v8423 = vpop.f32.mrb[0].mxu0
        %v8424 = vadd.f32 0.0, %v8423
        %v8425 = vpop.f32.mrb[0].mxu0
        %v8426 = vadd.f32 0.0, %v8425
        %8427 = vdwg.mxu0
        %8428 = vmatprep.subr.bf16.mxu0 0
        %8429 = vmatpush1.bf16.msra.mxu0 %v7814
        %8430 = vmatprep.subr.bf16.mxu0 0
        %8431 = vmatpush1.bf16.msra.mxu0 %v7821
        %8432 = vmatprep.subr.bf16.mxu0 0
        %8433 = vmatpush1.bf16.msra.mxu0 0
        %8434 = vmatprep.subr.bf16.mxu0 0
        %8435 = vmatpush1.bf16.msra.mxu0 0
        %8436 = vmatprep.subr.bf16.mxu0 0
        %8437 = vmatpush1.bf16.msra.mxu0 0
        %8438 = vmatprep.subr.bf16.mxu0 0
        %8439 = vmatpush1.bf16.msra.mxu0 0
        %8440 = vmatprep.subr.bf16.mxu0 0
        %8441 = vmatpush1.bf16.msra.mxu0 0
        %8442 = vmatprep.subr.bf16.mxu0 0
        %8443 = vmatpush1.bf16.msra.mxu0 0
        %8444 = vmatprep.subr.bf16.mxu0 0
        %8445 = vmatpush1.bf16.msra.mxu0 0
        %8446 = vmatprep.subr.bf16.mxu0 0
        %8447 = vmatpush1.bf16.msra.mxu0 0
        %8448 = vmatprep.subr.bf16.mxu0 0
        %8449 = vmatpush1.bf16.msra.mxu0 0
        %8450 = vmatprep.subr.bf16.mxu0 0
        %8451 = vmatpush1.bf16.msra.mxu0 0
        %8452 = vmatprep.subr.bf16.mxu0 0
        %8453 = vmatpush1.bf16.msra.mxu0 0
        %8454 = vmatprep.subr.bf16.mxu0 0
        %8455 = vmatpush1.bf16.msra.mxu0 0
        %8456 = vmatprep.subr.bf16.mxu0 0
        %8457 = vmatpush1.bf16.msra.mxu0 0
        %8458 = vmatprep.subr.bf16.mxu0 0
        %8459 = vmatpush1.bf16.msra.mxu0 0
        %8460 = vmatprep.mubr.bf16.mxu0 0
        %8461 = vmatmul.mubr.bf16.gmra.mrb[0].mxu0 %v8340
        %v8462 = vpop.f32.mrb[0].mxu0
        %v8463 = vadd.f32 0.0, %v8462
        %v8464 = vpop.f32.mrb[0].mxu0
        %v8465 = vpop.f32.mrb[0].mxu0
        %v8466 = vadd.f32 0.0, %v8465
        %v8467 = vpop.f32.mrb[0].mxu0
        %8468 = vdwg.mxu0
        %8469 = vrot.lane.b32.xlu0 %v8377, 12
        %v8470 = vpop.permute.xlu0 %8469
        %8471 = vrot.lane.b32.xlu0 %v8381, 12
        %v8472 = vpop.permute.xlu0 %8471
        %8473 = vrot.lane.b32.xlu0 %v8379, 12
        %v8474 = vpop.permute.xlu0 %8473
        %8475 = vrot.lane.b32.xlu0 %v8383, 12
        %v8476 = vpop.permute.xlu0 %8475
        %8477 = vrot.lane.b32.xlu0 %v8420, 12
        %v8478 = vpop.permute.xlu0 %8477
        %8479 = vrot.lane.b32.xlu0 %v8424, 12
        %v8480 = vpop.permute.xlu0 %8479
        %8481 = vrot.lane.b32.xlu0 %v8422, 12
        %v8482 = vpop.permute.xlu0 %8481
        %8483 = vrot.lane.b32.xlu0 %v8426, 12
        %v8484 = vpop.permute.xlu0 %8483
        %8485 = vrot.lane.b32.xlu0 %v8463, 12
        %v8486 = vpop.permute.xlu0 %8485
        %8487 = vrot.lane.b32.xlu0 %v8466, 12
        %v8488 = vpop.permute.xlu0 %8487
        %v8489 = vsel %vm1057, %v8482, %v8486
        %v8490 = vsel %vm1057, %v8484, %v8488
        %v8491 = vsel %vm1057, %v8478, %v8482
        %v8492 = vsel %vm1057, %v8480, %v8484
        %v8493 = vsel %vm1057, %v8474, %v8478
        %v8494 = vsel %vm1057, %v8476, %v8480
        %v8495 = vsel %vm1057, %v8470, %v8474
        %v8496 = vsel %vm1057, %v8472, %v8476
        %v8497 = vadd.f32 %v8324, %v8495
        %v8498 = vadd.f32 %v8325, %v8493
        %v8499 = vadd.f32 %v8326, %v8491
        %v8500 = vadd.f32 %v8327, %v8489
        %v8501 = vadd.f32 %v8328, %v8496
        %v8502 = vadd.f32 %v8329, %v8494
        %v8503 = vadd.f32 %v8330, %v8492
        %v8504 = vadd.f32 %v8331, %v8490
        %v8505 = vld [vmem:[%s2] sm:$0xff]
        %v8506 = vld [vmem:[%s2 + $0x8] sm:$0xf]
        %8508 = vset.pattern.permute.xlu0 0
        %8509 = vperm.xlu0 %8508, %v8505
        %v8510 = vpop.permute.xlu0 %8509
        %8513 = vset.pattern.permute.xlu0 0
        %8514 = vperm.xlu0 %8513, %v8506
        %v8515 = vpop.permute.xlu0 %8514
        %v8517 = vadd.f32 %v8497, %v8510
        %v8518 = vadd.f32 %v8498, %v8510
        %v8519 = vadd.f32 %v8499, %v8510
        %v8520 = vadd.f32 %v8500, %v8510
        %v8521 = vadd.f32 %v8501, %v8515
        %v8522 = vadd.f32 %v8502, %v8515
        %v8523 = vadd.f32 %v8503, %v8515
        %v8524 = vadd.f32 %v8504, %v8515
        %vm8525 = vcmp.gt.f32.partialorder %v8517, 0.0
        %vm8526 = vcmp.gt.f32.partialorder %v8518, 0.0
        %vm8527 = vcmp.gt.f32.partialorder %v8519, 0.0
        %vm8528 = vcmp.gt.f32.partialorder %v8520, 0.0
        %vm8529 = vcmp.gt.f32.partialorder %v8521, 0.0
        %vm8530 = vcmp.gt.f32.partialorder %v8522, 0.0
        %vm8531 = vcmp.gt.f32.partialorder %v8523, 0.0
        %vm8532 = vcmp.gt.f32.partialorder %v8524, 0.0
        %v8533 = vmin.f32 %v8517, 0.0
        %v8534 = vmin.f32 %v8518, 0.0
        %v8535 = vmin.f32 %v8519, 0.0
        %v8536 = vmin.f32 %v8520, 0.0
        %v8537 = vmin.f32 %v8521, 0.0
        %v8538 = vmin.f32 %v8522, 0.0
        %v8539 = vmin.f32 %v8523, 0.0
        %v8540 = vmin.f32 %v8524, 0.0
        %v8541 = vmul.f32 %v8533, 1.442695
        %v8542 = vpow.pop %v8541
        %v8543 = vmul.f32 %v8534, 1.442695
        %v8544 = vpow.pop %v8543
        %v8545 = vmul.f32 %v8535, 1.442695
        %v8546 = vpow.pop %v8545
        %v8547 = vmul.f32 %v8536, 1.442695
        %v8548 = vpow.pop %v8547
        %v8549 = vmul.f32 %v8537, 1.442695
        %v8550 = vpow.pop %v8549
        %v8551 = vmul.f32 %v8538, 1.442695
        %v8552 = vpow.pop %v8551
        %v8553 = vmul.f32 %v8539, 1.442695
        %v8554 = vpow.pop %v8553
        %v8555 = vmul.f32 %v8540, 1.442695
        %v8556 = vpow.pop %v8555
        %v8557 = vsub.f32 %v8542, 1.0
        %v8558 = vsub.f32 %v8544, 1.0
        %v8559 = vsub.f32 %v8546, 1.0
        %v8560 = vsub.f32 %v8548, 1.0
        %v8561 = vsub.f32 %v8550, 1.0
        %v8562 = vsub.f32 %v8552, 1.0
        %v8563 = vsub.f32 %v8554, 1.0
        %v8564 = vsub.f32 %v8556, 1.0
        %v8565 = vsel %vm8525, %v8517, %v8557
        %v8566 = vsel %vm8526, %v8518, %v8558
        %v8567 = vsel %vm8527, %v8519, %v8559
        %v8568 = vsel %vm8528, %v8520, %v8560
        %v8569 = vsel %vm8529, %v8521, %v8561
        %v8570 = vsel %vm8530, %v8522, %v8562
        %v8571 = vsel %vm8531, %v8523, %v8563
        %v8572 = vsel %vm8532, %v8524, %v8564
        %s8573 = scalar_lea.vmem %s204, 512 [#allocation7]
        %8574 = vst [vmem:[%s8573] sm:$0xff] %v8565
        %8575 = vst [vmem:[%s8573 + $0x8] sm:$0xff] %v8566
        %8576 = vst [vmem:[%s8573 + $0x10] sm:$0xff] %v8567
        %8577 = vst [vmem:[%s8573 + $0x18] sm:$0xff] %v8568
        %8578 = vst [vmem:[%s8573 + $0x20] sm:$0xf] %v8569
        %8579 = vst [vmem:[%s8573 + $0x28] sm:$0xf] %v8570
        %8580 = vst [vmem:[%s8573 + $0x30] sm:$0xf] %v8571
        %8581 = vst [vmem:[%s8573 + $0x38] sm:$0xf] %v8572
        %s8582 = sand.u32 %s97, 1
        %s8583 = scalar_lea.sflag [#allocation4], %s8582
        %s8584 = sand.u32 %s97, 1
        %s8585 = smul.addr %s8584, 576
        %s8586 = scalar_lea.vmem [#allocation7], %s8585
        // Predicated region
        $region41: #{tpu_custom_call.1} parent=31 // pred_check
          %p8587 = pneg %p107
        $region42: #{tpu_custom_call.1} parent=31 // pred_check_branch
          %8589 = sbr.rel (%p8587) target = $region44
        $region43: #{tpu_custom_call.1} parent=31 // pred_region
          %s8590 = smul.u32 9, %s21
          %s8592 = ssub.s32 9216, 9216
          %8593 = vsyncadd %s8583, %s8592
          %s8594 = smul.addr %s8590, 8
          %s8595 = smul.addr %s8594, 128
          %s8596 = scalar_lea.hbm %s3, %s8595
          %s8597 = sshll.u32 %s8586, 4
          %s8598 = int_to_ptr.vmem [resolvable:$true] %s8597
          %8603 = dma.vmem_to_hbm [thread:$0]  %s8598, 9216, %s8596, %s8583, 512, 512, 32
        $region44: #{tpu_custom_call.1} parent=31 // pred_fallthru
          _
      $region32: #{tpu_custom_call.1} parent=5 // pred_fallthru
        _
      %p8604 = scmp.le.s32.totalorder 2, %s16
      // Predicated region
      $region45: #{tpu_custom_call.1} parent=5 // pred_check
        %p8605 = pneg %p8604
      $region46: #{tpu_custom_call.1} parent=5 // pred_check_branch
        %8607 = sbr.rel (%p8605) target = $region48
      $region47: #{tpu_custom_call.1} parent=5 // pred_region
        %s8608 = ssub.s32 %s16, 2
        // Predicated region
        $region49: #{tpu_custom_call.1} parent=47 // pred_check
          %p8609 = pneg %p113
        $region50: #{tpu_custom_call.1} parent=47 // pred_check_branch
          %8611 = sbr.rel (%p8609) target = $region52
        $region51: #{tpu_custom_call.1} parent=47 // pred_region
          %s8612 = sand.u32 %s98, 1
          %s8613 = scalar_lea.sflag [#allocation4], %s8612
          %s8614 = sand.u32 %s98, 1
          %s8615 = smul.addr %s8614, 576
          %s8616 = scalar_lea.vmem [#allocation7], %s8615
          %8617 = dma.done %s8613, 9216
        $region52: #{tpu_custom_call.1} parent=47 // pred_fallthru
          _
      $region48: #{tpu_custom_call.1} parent=5 // pred_fallthru
        _
    $region6: #{tpu_custom_call.1} parent=1 // loop_footer
      %s20 = sadd.s32 1, %s16
    $region7: #{tpu_custom_call.1} parent=1 // loop_footer_branch
      %15 = sbr.rel target = $region3
    $region8: #{tpu_custom_call.1} parent=1 // loop_exit
      _
    %8618 = vsyncpa [#allocation3], 1
    %s8619 = scalar_lea.sflag [#allocation3], 1
    %8620 = vsyncpa %s8619, 1
    %8621 = vsyncpa [#allocation6], 1
    %8622 = vsyncpa [#allocation4], 1
    %s8623 = scalar_lea.sflag [#allocation4], 1
    %8624 = vsyncpa %s8623, 1

</llo_original>
